<compile_context>
chip_gen: v7x
topology: tpu7x:2x2x1
jax: 0.10.0
libtpu: 0.0.40
codegen_flags: <defaults>
</compile_context>

<pallas_src>
import jax
import jax.numpy as jnp
from jax.experimental import pallas as pl
from jax.experimental.pallas import tpu as pltpu

BN_EPS = 1e-5


# ----------------------------- in-kernel helpers ----------------------------

def _shift_rows(x, dr):
    """y[r, p] = x[r + dr, p]; rows shifted in from outside are zero."""
    R, P = x.shape
    if dr == 0:
        return x
    if dr > 0:
        return jnp.concatenate([x[dr:, :], jnp.zeros((dr, P), x.dtype)], axis=0)
    return jnp.concatenate([jnp.zeros((-dr, P), x.dtype), x[:R + dr, :]], axis=0)


def _roll_lanes(x, dp):
    """y[r, p] = x[r, (p + dp) mod P] via the XLU lane rotation.

    Wrap-around values only land on halo/pad output positions, which are
    masked to zero before they feed the BN statistics or the next conv.
    """
    P = x.shape[-1]
    s = (-dp) % P
    if s == 0:
        return x
    return pltpu.roll(x, s, axis=1)


def _build_decoder_kernel(C, c, Wp, bn_count, cell_specs):
    """One fused kernel; grid step k computes alpha_k * (x + cell_k(x)).

    Activations are Python lists of (Rpad, Ppad) float32 arrays, one per
    channel (channels on the leading axis, flattened padded spatial volume on
    sublanes x lanes).  The zero halo of width 1 around every (D, H, W) volume
    implements the convs' zero padding; mask multiplies re-establish the
    halo-zero invariant wherever a stage breaks it.
    """
    inv_n = 1.0 / bn_count

    def conv1x1(rd, base, xs, cin):
        # theta: w[c, cin] row-major, then bias[c]
        outs = []
        for co in range(c):
            acc = rd(base + co * cin) * xs[0]
            for ci in range(1, cin):
                acc = acc + rd(base + co * cin + ci) * xs[ci]
            outs.append(acc + rd(base + c * cin + co))
        return outs, c * cin + c

    def conv_spatial(rd, base, xs, kshape):
        # theta: w[c, c, kd, kh, kw] row-major, then bias[c].  Real taps only.
        kd, kh, kw = kshape
        KT = kd * kh * kw
        accs = [None] * c
        for i in range(kd):
            dr = i - (kd - 1) // 2
            xs_d = [_shift_rows(t, dr) for t in xs] if dr else xs
            for j in range(kh):
                for k in range(kw):
                    dp = (j - (kh - 1) // 2) * Wp + (k - (kw - 1) // 2)
                    xs_t = [_roll_lanes(t, dp) for t in xs_d] if dp else xs_d
                    tap = (i * kh + j) * kw + k
                    for co in range(c):
                        for ci in range(c):
                            term = rd(base + (co * c + ci) * KT + tap) * xs_t[ci]
                            accs[co] = term if accs[co] is None else accs[co] + term
        bb = base + c * c * KT
        return [accs[co] + rd(bb + co) for co in range(c)], c * c * KT + c

    def bn_relu(rd, base, xs, mask):
        # theta: gamma[c], beta[c].  Training-mode BatchNorm3d + ReLU.
        # Single-pass stats: sum(y), sum(y*y) reduce independently (halo is 0).
        outs = []
        for ci, y in enumerate(xs):
            mean = jnp.sum(y) * inv_n
            var = jnp.sum(y * y) * inv_n - mean * mean      # biased variance
            scale = rd(base + ci) * jax.lax.rsqrt(var + BN_EPS)
            shift = rd(base + c + ci) - mean * scale
            outs.append(jnp.maximum(y * scale + shift, 0.0) * mask)
        return outs, 2 * c

    def mini_block(rd, base, xs, cin, kshape, mask):
        o = base
        y, n = conv1x1(rd, o, xs, cin); o += n
        if kshape != (1, 1, 1):
            y = [t * mask for t in y]          # conv zero-padding semantics
        y, n = conv_spatial(rd, o, y, kshape); o += n
        y, n = conv1x1(rd, o, y, c); o += n
        y = [t * mask for t in y]              # halo must be 0 for BN sums
        y, n = bn_relu(rd, o, y, mask); o += n
        return y, o

    def kernel(theta_ref, xp_ref, mask_ref, o_ref):
        mask = mask_ref[...]
        xs = [xp_ref[ch] for ch in range(C)]
        for cell, (lk, rk) in enumerate(cell_specs):
            @pl.when(pl.program_id(0) == cell)
            def _(cell=cell, lk=lk, rk=rk):
                rd = lambda idx: theta_ref[cell, idx]   # static SMEM scalar load
                x1, off = mini_block(rd, 0, xs, C, lk, mask)    # left  (C -> c)
                x2, off = mini_block(rd, off, x1, c, rk, mask)  # right (c -> c)
                a = rd(off)                                     # softmaxed alpha
                cat = x1 + x2                                   # channel concat
                for ch in range(C):
                    o_ref[0, ch, :, :] = a * (xs[ch] + cat[ch])  # residual + alpha

    return kernel


# ----------------------------- parameter packing ----------------------------

def _pack_block(p):
    """w1 | b1 | w2 (real taps only) | b2 | w3 | b3 | gamma | beta."""
    return jnp.concatenate([
        p["w1"].reshape(-1), p["b1"],
        p["w2"].reshape(-1), p["b2"],
        p["w3"].reshape(-1), p["b3"],
        p["gamma"], p["beta"],
    ])


# -------------------------------- forward -----------------------------------

def decoder_forward(x, params):
    """x: (N, C, D, H, W) float32 -> (N, C, D, H, W) float32."""
    N, C, D, H, W = x.shape
    assert C % 2 == 0
    c = C // 2
    Dp, Hp, Wp = D + 2, H + 2, W + 2
    R, P = N * Dp, Hp * Wp
    Rpad = -(-R // 8) * 8          # sublane-aligned
    Ppad = -(-P // 128) * 128      # lane-dense, unmasked stores
    bn_count = float(N * D * H * W)

    # ---- layout plumbing only (no im2col): channels-major padded frame
    # (C, N*Dp, Hp*Wp) with a zero halo of width 1 around each volume, then
    # zero-padded to the (8, 128)-aligned (C, Rpad, Ppad) slab.
    xp = jnp.pad(jnp.transpose(x, (1, 0, 2, 3, 4)).astype(jnp.float32),
                 ((0, 0), (0, 0), (1, 1), (1, 1), (1, 1))).reshape(C, R, P)
    xp = jnp.pad(xp, ((0, 0), (0, Rpad - R), (0, Ppad - P)))
    mask = jnp.pad(jnp.ones((N, D, H, W), jnp.float32),
                   ((0, 0), (1, 1), (1, 1), (1, 1))).reshape(R, P)
    mask = jnp.pad(mask, ((0, Rpad - R), (0, Ppad - P)))

    cell_params = [(params["2d_left"], params["2d_right"]),
                   (params["3d_left"], params["3d_right"]),
                   (params["p3d_left"], params["p3d_right"])]
    # Static spatial-kernel shapes drive the per-cell specialization.
    cell_specs = tuple((tuple(l["w2"].shape[2:]), tuple(r["w2"].shape[2:]))
                       for l, r in cell_params)

    # All per-cell weights (+ this cell's softmaxed alpha) in one flat SMEM row.
    alphas = jax.nn.softmax(params["alpha"].astype(jnp.float32))
    rows = [jnp.concatenate([_pack_block(l), _pack_block(r), alphas[i:i + 1]])
            for i, (l, r) in enumerate(cell_params)]
    L = max(r.shape[0] for r in rows)
    theta = jnp.stack([jnp.pad(r, (0, L - r.shape[0])) for r in rows]
                      ).astype(jnp.float32)

    kernel = _build_decoder_kernel(C, c, Wp, bn_count, cell_specs)
    cells = pl.pallas_call(
        kernel,
        out_shape=jax.ShapeDtypeStruct((3, C, Rpad, Ppad), jnp.float32),
        grid=(3,),                                            # one step per cell
        in_specs=[
            pl.BlockSpec(memory_space=pltpu.MemorySpace.SMEM),     # theta (3, L)
            pl.BlockSpec((C, Rpad, Ppad), lambda i: (0, 0, 0)),    # padded input
            pl.BlockSpec((Rpad, Ppad), lambda i: (0, 0)),          # halo mask
        ],
        out_specs=pl.BlockSpec((1, C, Rpad, Ppad), lambda i: (i, 0, 0, 0)),
        compiler_params=pltpu.CompilerParams(
            dimension_semantics=("parallel",)),               # v7x: 2 TCs split cells
    )(theta, xp, mask)

    # alpha already applied in-kernel -> 3-way add fuses with the crop/transpose
    # epilogue; no second pallas_call.  (sum_k alpha_k = 1, so the residual is
    # preserved exactly.)
    out_p = jnp.sum(cells, axis=0)[:, :R, :P].reshape(C, N, Dp, Hp, Wp)
    out = out_p[:, :, 1:1 + D, 1:1 + H, 1:1 + W]
    return jnp.transpose(out, (1, 0, 2, 3, 4))

# NOTE: at production volume sizes, tile R = N*Dp across the grid with a 1-row
# halo and stream BN statistics (two-pass) instead of keeping the whole padded
# volume resident in VMEM (matters first on v7x, 64 MiB physical VMEM).


# ------------------------------ pure-JAX reference ---------------------------

def _reference_forward(x, params):
    def conv3d(y, w, b):
        pad = [((k - 1) // 2, (k - 1) // 2) for k in w.shape[2:]]
        out = jax.lax.conv_general_dilated(
            y, w, window_strides=(1, 1, 1), padding=pad,
            dimension_numbers=("NCDHW", "OIDHW", "NCDHW"))
        return out + b.reshape(1, -1, 1, 1, 1)

    def block(y, p):
        y = conv3d(y, p["w1"], p["b1"])
        y = conv3d(y, p["w2"], p["b2"])
        y = conv3d(y, p["w3"], p["b3"])
        mean = jnp.mean(y, axis=(0, 2, 3, 4), keepdims=True)
        var = jnp.mean((y - mean) ** 2, axis=(0, 2, 3, 4), keepdims=True)
        y = (y - mean) * jax.lax.rsqrt(var + BN_EPS)
        y = y * p["gamma"].reshape(1, -1, 1, 1, 1) + p["beta"].reshape(1, -1, 1, 1, 1)
        return jnp.maximum(y, 0.0)

    def cell(y, left, right):
        x1 = block(y, left)
        x2 = block(x1, right)
        return y + jnp.concatenate([x1, x2], axis=1)

    a = jax.nn.softmax(params["alpha"])
    c1 = cell(x, params["2d_left"], params["2d_right"])
    c2 = cell(x, params["3d_left"], params["3d_right"])
    c3 = cell(x, params["p3d_left"], params["p3d_right"])
    return a[0] * c1 + a[1] * c2 + a[2] * c3


# ------------------------------ parameter init -------------------------------

def init_params(in_c, key):
    assert in_c % 2 == 0
    c = in_c // 2
    keys = iter(jax.random.split(key, 64))

    def conv(co, ci, k):
        w = 0.1 * jax.random.normal(next(keys), (co, ci) + k, jnp.float32)
        b = 0.05 * jax.random.normal(next(keys), (co,), jnp.float32)
        return w, b

    def block(ci, k2):
        w1, b1 = conv(c, ci, (1, 1, 1))
        w2, b2 = conv(c, c, k2)
        w3, b3 = conv(c, c, (1, 1, 1))
        return dict(w1=w1, b1=b1, w2=w2, b2=b2, w3=w3, b3=b3,
                    gamma=jnp.ones((c,), jnp.float32),
                    beta=jnp.zeros((c,), jnp.float32))

    # Kernel sizes (static shapes) carry the padding info; params hold only
    # arrays, so nothing shape-related is traced under jit.
    return {
        "2d_left":   block(in_c, (3, 3, 1)),
        "2d_right":  block(c,    (1, 1, 1)),
        "3d_left":   block(in_c, (3, 3, 3)),
        "3d_right":  block(c,    (3, 3, 3)),
        "p3d_left":  block(in_c, (3, 3, 1)),
        "p3d_right": block(c,    (1, 1, 3)),
        "alpha":     jnp.zeros((3,), jnp.float32),   # matches torch.zeros((3,))
    }


# ---------------------------------- main -------------------------------------

if __name__ == "__main__":
    key = jax.random.PRNGKey(0)
    k_param, k_x = jax.random.split(key)

    in_c = 4                      # Decoder(in_c=4, out_c=4)
    N, D, H, W = 2, 8, 8, 8
    x = jax.random.normal(k_x, (N, in_c, D, H, W), jnp.float32)
    params = init_params(in_c, k_param)

    fwd = jax.jit(decoder_forward)
    out = jax.block_until_ready(fwd(x, params))

    assert out.shape == (N, in_c, D, H, W)
    assert out.dtype == jnp.float32

    ref = _reference_forward(x, params)
    max_err = float(jnp.max(jnp.abs(out - ref)))
    assert jnp.allclose(out, ref, atol=2e-3, rtol=2e-3), max_err

    print("KERNEL_OK")
</pallas_src>

<mosaic_0001>
module attributes {stable_mosaic.version = 11 : i64} {
  func.func @kernel(%arg0: i32, %arg1: memref<3x257xf32, #tpu.memory_space<smem>>, %arg2: memref<4x24x128xf32, #tpu.memory_space<vmem>>, %arg3: memref<24x128xf32, #tpu.memory_space<vmem>>, %arg4: memref<1x4x24x128xf32, #tpu.memory_space<vmem>>) attributes {dimension_semantics = [#tpu.dimension_semantics<parallel>], iteration_bounds = array<i64: 3>, scalar_prefetch = 0 : i64, scratch_operands = 0 : i64, tpu.core_type = #tpu.core_type<tc>, window_params = [{transform_indices = @transform_0, window_bounds = array<i64: 3, 257>}, {pipeline_mode = #tpu.pipeline_mode<synchronous>, transform_indices = @transform_1, window_bounds = array<i64: 4, 24, 128>}, {pipeline_mode = #tpu.pipeline_mode<synchronous>, transform_indices = @transform_2, window_bounds = array<i64: 24, 128>}, {transform_indices = @transform_3, window_bounds = array<i64: 1, 4, 24, 128>}]} {
    %c0 = arith.constant 0 : index
    %c0_0 = arith.constant 0 : index
    %0 = vector.load %arg3[%c0, %c0_0] : memref<24x128xf32, #tpu.memory_space<vmem>>, vector<24x128xf32>
    %c0_1 = arith.constant 0 : index
    %c0_2 = arith.constant 0 : index
    %c0_3 = arith.constant 0 : index
    %1 = vector.load %arg2[%c0_1, %c0_2, %c0_3] : memref<4x24x128xf32, #tpu.memory_space<vmem>>, vector<1x24x128xf32>
    %2 = vector.shape_cast %1 : vector<1x24x128xf32> to vector<24x128xf32>
    %c1 = arith.constant 1 : index
    %c0_4 = arith.constant 0 : index
    %c0_5 = arith.constant 0 : index
    %3 = vector.load %arg2[%c1, %c0_4, %c0_5] : memref<4x24x128xf32, #tpu.memory_space<vmem>>, vector<1x24x128xf32>
    %4 = vector.shape_cast %3 : vector<1x24x128xf32> to vector<24x128xf32>
    %c2 = arith.constant 2 : index
    %c0_6 = arith.constant 0 : index
    %c0_7 = arith.constant 0 : index
    %5 = vector.load %arg2[%c2, %c0_6, %c0_7] : memref<4x24x128xf32, #tpu.memory_space<vmem>>, vector<1x24x128xf32>
    %6 = vector.shape_cast %5 : vector<1x24x128xf32> to vector<24x128xf32>
    %c3 = arith.constant 3 : index
    %c0_8 = arith.constant 0 : index
    %c0_9 = arith.constant 0 : index
    %7 = vector.load %arg2[%c3, %c0_8, %c0_9] : memref<4x24x128xf32, #tpu.memory_space<vmem>>, vector<1x24x128xf32>
    %8 = vector.shape_cast %7 : vector<1x24x128xf32> to vector<24x128xf32>
    %c0_i32 = arith.constant 0 : i32
    %9 = arith.cmpi eq, %arg0, %c0_i32 : i32
    %10 = arith.extui %9 : i1 to i32
    %c0_i32_10 = arith.constant 0 : i32
    %11 = arith.cmpi ne, %10, %c0_i32_10 : i32
    scf.if %11 {
      %c0_13 = arith.constant 0 : index
      %c0_14 = arith.constant 0 : index
      %18 = memref.load %arg1[%c0_13, %c0_14] : memref<3x257xf32, #tpu.memory_space<smem>>
      %19 = vector.broadcast %18 : f32 to vector<24x128xf32>
      %20 = arith.mulf %19, %2 : vector<24x128xf32>
      %c0_15 = arith.constant 0 : index
      %c1_16 = arith.constant 1 : index
      %21 = memref.load %arg1[%c0_15, %c1_16] : memref<3x257xf32, #tpu.memory_space<smem>>
      %22 = vector.broadcast %21 : f32 to vector<24x128xf32>
      %23 = arith.mulf %22, %4 : vector<24x128xf32>
      %24 = arith.addf %20, %23 : vector<24x128xf32>
      %c0_17 = arith.constant 0 : index
      %c2_18 = arith.constant 2 : index
      %25 = memref.load %arg1[%c0_17, %c2_18] : memref<3x257xf32, #tpu.memory_space<smem>>
      %26 = vector.broadcast %25 : f32 to vector<24x128xf32>
      %27 = arith.mulf %26, %6 : vector<24x128xf32>
      %28 = arith.addf %24, %27 : vector<24x128xf32>
      %c0_19 = arith.constant 0 : index
      %c3_20 = arith.constant 3 : index
      %29 = memref.load %arg1[%c0_19, %c3_20] : memref<3x257xf32, #tpu.memory_space<smem>>
      %30 = vector.broadcast %29 : f32 to vector<24x128xf32>
      %31 = arith.mulf %30, %8 : vector<24x128xf32>
      %32 = arith.addf %28, %31 : vector<24x128xf32>
      %c0_21 = arith.constant 0 : index
      %c8 = arith.constant 8 : index
      %33 = memref.load %arg1[%c0_21, %c8] : memref<3x257xf32, #tpu.memory_space<smem>>
      %34 = vector.broadcast %33 : f32 to vector<24x128xf32>
      %35 = arith.addf %32, %34 : vector<24x128xf32>
      %c0_22 = arith.constant 0 : index
      %c4 = arith.constant 4 : index
      %36 = memref.load %arg1[%c0_22, %c4] : memref<3x257xf32, #tpu.memory_space<smem>>
      %37 = vector.broadcast %36 : f32 to vector<24x128xf32>
      %38 = arith.mulf %37, %2 : vector<24x128xf32>
      %c0_23 = arith.constant 0 : index
      %c5 = arith.constant 5 : index
      %39 = memref.load %arg1[%c0_23, %c5] : memref<3x257xf32, #tpu.memory_space<smem>>
      %40 = vector.broadcast %39 : f32 to vector<24x128xf32>
      %41 = arith.mulf %40, %4 : vector<24x128xf32>
      %42 = arith.addf %38, %41 : vector<24x128xf32>
      %c0_24 = arith.constant 0 : index
      %c6 = arith.constant 6 : index
      %43 = memref.load %arg1[%c0_24, %c6] : memref<3x257xf32, #tpu.memory_space<smem>>
      %44 = vector.broadcast %43 : f32 to vector<24x128xf32>
      %45 = arith.mulf %44, %6 : vector<24x128xf32>
      %46 = arith.addf %42, %45 : vector<24x128xf32>
      %c0_25 = arith.constant 0 : index
      %c7 = arith.constant 7 : index
      %47 = memref.load %arg1[%c0_25, %c7] : memref<3x257xf32, #tpu.memory_space<smem>>
      %48 = vector.broadcast %47 : f32 to vector<24x128xf32>
      %49 = arith.mulf %48, %8 : vector<24x128xf32>
      %50 = arith.addf %46, %49 : vector<24x128xf32>
      %c0_26 = arith.constant 0 : index
      %c9 = arith.constant 9 : index
      %51 = memref.load %arg1[%c0_26, %c9] : memref<3x257xf32, #tpu.memory_space<smem>>
      %52 = vector.broadcast %51 : f32 to vector<24x128xf32>
      %53 = arith.addf %50, %52 : vector<24x128xf32>
      %54 = arith.mulf %35, %0 : vector<24x128xf32>
      %55 = arith.mulf %53, %0 : vector<24x128xf32>
      %cst = arith.constant 0.000000e+00 : f32
      %56 = vector.broadcast %cst : f32 to vector<1x128xf32>
      %57 = vector.extract_strided_slice %54 {offsets = [0, 0], sizes = [23, 128], strides = [1, 1]} : vector<24x128xf32> to vector<23x128xf32>
      %58 = tpu.concatenate %56, %57 in 0 : vector<1x128xf32>, vector<23x128xf32> -> vector<24x128xf32>
      %cst_27 = arith.constant 0.000000e+00 : f32
      %59 = vector.broadcast %cst_27 : f32 to vector<1x128xf32>
      %60 = vector.extract_strided_slice %55 {offsets = [0, 0], sizes = [23, 128], strides = [1, 1]} : vector<24x128xf32> to vector<23x128xf32>
      %61 = tpu.concatenate %59, %60 in 0 : vector<1x128xf32>, vector<23x128xf32> -> vector<24x128xf32>
      %c10_i32 = arith.constant 10 : i32
      %62 = tpu.dynamic_rotate %58 by %c10_i32 dim 1 : vector<24x128xf32>, i32 -> vector<24x128xf32>
      %c10_i32_28 = arith.constant 10 : i32
      %63 = tpu.dynamic_rotate %61 by %c10_i32_28 dim 1 : vector<24x128xf32>, i32 -> vector<24x128xf32>
      %c0_29 = arith.constant 0 : index
      %c10 = arith.constant 10 : index
      %64 = memref.load %arg1[%c0_29, %c10] : memref<3x257xf32, #tpu.memory_space<smem>>
      %65 = vector.broadcast %64 : f32 to vector<24x128xf32>
      %66 = arith.mulf %65, %62 : vector<24x128xf32>
      %c0_30 = arith.constant 0 : index
      %c19 = arith.constant 19 : index
      %67 = memref.load %arg1[%c0_30, %c19] : memref<3x257xf32, #tpu.memory_space<smem>>
      %68 = vector.broadcast %67 : f32 to vector<24x128xf32>
      %69 = arith.mulf %68, %63 : vector<24x128xf32>
      %70 = arith.addf %66, %69 : vector<24x128xf32>
      %c0_31 = arith.constant 0 : index
      %c28 = arith.constant 28 : index
      %71 = memref.load %arg1[%c0_31, %c28] : memref<3x257xf32, #tpu.memory_space<smem>>
      %72 = vector.broadcast %71 : f32 to vector<24x128xf32>
      %73 = arith.mulf %72, %62 : vector<24x128xf32>
      %c0_32 = arith.constant 0 : index
      %c37 = arith.constant 37 : index
      %74 = memref.load %arg1[%c0_32, %c37] : memref<3x257xf32, #tpu.memory_space<smem>>
      %75 = vector.broadcast %74 : f32 to vector<24x128xf32>
      %76 = arith.mulf %75, %63 : vector<24x128xf32>
      %77 = arith.addf %73, %76 : vector<24x128xf32>
      %c0_33 = arith.constant 0 : index
      %c11 = arith.constant 11 : index
      %78 = memref.load %arg1[%c0_33, %c11] : memref<3x257xf32, #tpu.memory_space<smem>>
      %79 = vector.broadcast %78 : f32 to vector<24x128xf32>
      %80 = arith.mulf %79, %58 : vector<24x128xf32>
      %81 = arith.addf %70, %80 : vector<24x128xf32>
      %c0_34 = arith.constant 0 : index
      %c20 = arith.constant 20 : index
      %82 = memref.load %arg1[%c0_34, %c20] : memref<3x257xf32, #tpu.memory_space<smem>>
      %83 = vector.broadcast %82 : f32 to vector<24x128xf32>
      %84 = arith.mulf %83, %61 : vector<24x128xf32>
      %85 = arith.addf %81, %84 : vector<24x128xf32>
      %c0_35 = arith.constant 0 : index
      %c29 = arith.constant 29 : index
      %86 = memref.load %arg1[%c0_35, %c29] : memref<3x257xf32, #tpu.memory_space<smem>>
      %87 = vector.broadcast %86 : f32 to vector<24x128xf32>
      %88 = arith.mulf %87, %58 : vector<24x128xf32>
      %89 = arith.addf %77, %88 : vector<24x128xf32>
      %c0_36 = arith.constant 0 : index
      %c38 = arith.constant 38 : index
      %90 = memref.load %arg1[%c0_36, %c38] : memref<3x257xf32, #tpu.memory_space<smem>>
      %91 = vector.broadcast %90 : f32 to vector<24x128xf32>
      %92 = arith.mulf %91, %61 : vector<24x128xf32>
      %93 = arith.addf %89, %92 : vector<24x128xf32>
      %c118_i32 = arith.constant 118 : i32
      %94 = tpu.dynamic_rotate %58 by %c118_i32 dim 1 : vector<24x128xf32>, i32 -> vector<24x128xf32>
      %c118_i32_37 = arith.constant 118 : i32
      %95 = tpu.dynamic_rotate %61 by %c118_i32_37 dim 1 : vector<24x128xf32>, i32 -> vector<24x128xf32>
      %c0_38 = arith.constant 0 : index
      %c12 = arith.constant 12 : index
      %96 = memref.load %arg1[%c0_38, %c12] : memref<3x257xf32, #tpu.memory_space<smem>>
      %97 = vector.broadcast %96 : f32 to vector<24x128xf32>
      %98 = arith.mulf %97, %94 : vector<24x128xf32>
      %99 = arith.addf %85, %98 : vector<24x128xf32>
      %c0_39 = arith.constant 0 : index
      %c21 = arith.constant 21 : index
      %100 = memref.load %arg1[%c0_39, %c21] : memref<3x257xf32, #tpu.memory_space<smem>>
      %101 = vector.broadcast %100 : f32 to vector<24x128xf32>
      %102 = arith.mulf %101, %95 : vector<24x128xf32>
      %103 = arith.addf %99, %102 : vector<24x128xf32>
      %c0_40 = arith.constant 0 : index
      %c30 = arith.constant 30 : index
      %104 = memref.load %arg1[%c0_40, %c30] : memref<3x257xf32, #tpu.memory_space<smem>>
      %105 = vector.broadcast %104 : f32 to vector<24x128xf32>
      %106 = arith.mulf %105, %94 : vector<24x128xf32>
      %107 = arith.addf %93, %106 : vector<24x128xf32>
      %c0_41 = arith.constant 0 : index
      %c39 = arith.constant 39 : index
      %108 = memref.load %arg1[%c0_41, %c39] : memref<3x257xf32, #tpu.memory_space<smem>>
      %109 = vector.broadcast %108 : f32 to vector<24x128xf32>
      %110 = arith.mulf %109, %95 : vector<24x128xf32>
      %111 = arith.addf %107, %110 : vector<24x128xf32>
      %c10_i32_42 = arith.constant 10 : i32
      %112 = tpu.dynamic_rotate %54 by %c10_i32_42 dim 1 : vector<24x128xf32>, i32 -> vector<24x128xf32>
      %c10_i32_43 = arith.constant 10 : i32
      %113 = tpu.dynamic_rotate %55 by %c10_i32_43 dim 1 : vector<24x128xf32>, i32 -> vector<24x128xf32>
      %c0_44 = arith.constant 0 : index
      %c13 = arith.constant 13 : index
      %114 = memref.load %arg1[%c0_44, %c13] : memref<3x257xf32, #tpu.memory_space<smem>>
      %115 = vector.broadcast %114 : f32 to vector<24x128xf32>
      %116 = arith.mulf %115, %112 : vector<24x128xf32>
      %117 = arith.addf %103, %116 : vector<24x128xf32>
      %c0_45 = arith.constant 0 : index
      %c22 = arith.constant 22 : index
      %118 = memref.load %arg1[%c0_45, %c22] : memref<3x257xf32, #tpu.memory_space<smem>>
      %119 = vector.broadcast %118 : f32 to vector<24x128xf32>
      %120 = arith.mulf %119, %113 : vector<24x128xf32>
      %121 = arith.addf %117, %120 : vector<24x128xf32>
      %c0_46 = arith.constant 0 : index
      %c31 = arith.constant 31 : index
      %122 = memref.load %arg1[%c0_46, %c31] : memref<3x257xf32, #tpu.memory_space<smem>>
      %123 = vector.broadcast %122 : f32 to vector<24x128xf32>
      %124 = arith.mulf %123, %112 : vector<24x128xf32>
      %125 = arith.addf %111, %124 : vector<24x128xf32>
      %c0_47 = arith.constant 0 : index
      %c40 = arith.constant 40 : index
      %126 = memref.load %arg1[%c0_47, %c40] : memref<3x257xf32, #tpu.memory_space<smem>>
      %127 = vector.broadcast %126 : f32 to vector<24x128xf32>
      %128 = arith.mulf %127, %113 : vector<24x128xf32>
      %129 = arith.addf %125, %128 : vector<24x128xf32>
      %c0_48 = arith.constant 0 : index
      %c14 = arith.constant 14 : index
      %130 = memref.load %arg1[%c0_48, %c14] : memref<3x257xf32, #tpu.memory_space<smem>>
      %131 = vector.broadcast %130 : f32 to vector<24x128xf32>
      %132 = arith.mulf %131, %54 : vector<24x128xf32>
      %133 = arith.addf %121, %132 : vector<24x128xf32>
      %c0_49 = arith.constant 0 : index
      %c23 = arith.constant 23 : index
      %134 = memref.load %arg1[%c0_49, %c23] : memref<3x257xf32, #tpu.memory_space<smem>>
      %135 = vector.broadcast %134 : f32 to vector<24x128xf32>
      %136 = arith.mulf %135, %55 : vector<24x128xf32>
      %137 = arith.addf %133, %136 : vector<24x128xf32>
      %c0_50 = arith.constant 0 : index
      %c32 = arith.constant 32 : index
      %138 = memref.load %arg1[%c0_50, %c32] : memref<3x257xf32, #tpu.memory_space<smem>>
      %139 = vector.broadcast %138 : f32 to vector<24x128xf32>
      %140 = arith.mulf %139, %54 : vector<24x128xf32>
      %141 = arith.addf %129, %140 : vector<24x128xf32>
      %c0_51 = arith.constant 0 : index
      %c41 = arith.constant 41 : index
      %142 = memref.load %arg1[%c0_51, %c41] : memref<3x257xf32, #tpu.memory_space<smem>>
      %143 = vector.broadcast %142 : f32 to vector<24x128xf32>
      %144 = arith.mulf %143, %55 : vector<24x128xf32>
      %145 = arith.addf %141, %144 : vector<24x128xf32>
      %c118_i32_52 = arith.constant 118 : i32
      %146 = tpu.dynamic_rotate %54 by %c118_i32_52 dim 1 : vector<24x128xf32>, i32 -> vector<24x128xf32>
      %c118_i32_53 = arith.constant 118 : i32
      %147 = tpu.dynamic_rotate %55 by %c118_i32_53 dim 1 : vector<24x128xf32>, i32 -> vector<24x128xf32>
      %c0_54 = arith.constant 0 : index
      %c15 = arith.constant 15 : index
      %148 = memref.load %arg1[%c0_54, %c15] : memref<3x257xf32, #tpu.memory_space<smem>>
      %149 = vector.broadcast %148 : f32 to vector<24x128xf32>
      %150 = arith.mulf %149, %146 : vector<24x128xf32>
      %151 = arith.addf %137, %150 : vector<24x128xf32>
      %c0_55 = arith.constant 0 : index
      %c24 = arith.constant 24 : index
      %152 = memref.load %arg1[%c0_55, %c24] : memref<3x257xf32, #tpu.memory_space<smem>>
      %153 = vector.broadcast %152 : f32 to vector<24x128xf32>
      %154 = arith.mulf %153, %147 : vector<24x128xf32>
      %155 = arith.addf %151, %154 : vector<24x128xf32>
      %c0_56 = arith.constant 0 : index
      %c33 = arith.constant 33 : index
      %156 = memref.load %arg1[%c0_56, %c33] : memref<3x257xf32, #tpu.memory_space<smem>>
      %157 = vector.broadcast %156 : f32 to vector<24x128xf32>
      %158 = arith.mulf %157, %146 : vector<24x128xf32>
      %159 = arith.addf %145, %158 : vector<24x128xf32>
      %c0_57 = arith.constant 0 : index
      %c42 = arith.constant 42 : index
      %160 = memref.load %arg1[%c0_57, %c42] : memref<3x257xf32, #tpu.memory_space<smem>>
      %161 = vector.broadcast %160 : f32 to vector<24x128xf32>
      %162 = arith.mulf %161, %147 : vector<24x128xf32>
      %163 = arith.addf %159, %162 : vector<24x128xf32>
      %164 = vector.extract_strided_slice %54 {offsets = [1, 0], sizes = [23, 128], strides = [1, 1]} : vector<24x128xf32> to vector<23x128xf32>
      %cst_58 = arith.constant 0.000000e+00 : f32
      %165 = vector.broadcast %cst_58 : f32 to vector<1x128xf32>
      %166 = tpu.concatenate %164, %165 in 0 : vector<23x128xf32>, vector<1x128xf32> -> vector<24x128xf32>
      %167 = vector.extract_strided_slice %55 {offsets = [1, 0], sizes = [23, 128], strides = [1, 1]} : vector<24x128xf32> to vector<23x128xf32>
      %cst_59 = arith.constant 0.000000e+00 : f32
      %168 = vector.broadcast %cst_59 : f32 to vector<1x128xf32>
      %169 = tpu.concatenate %167, %168 in 0 : vector<23x128xf32>, vector<1x128xf32> -> vector<24x128xf32>
      %c10_i32_60 = arith.constant 10 : i32
      %170 = tpu.dynamic_rotate %166 by %c10_i32_60 dim 1 : vector<24x128xf32>, i32 -> vector<24x128xf32>
      %c10_i32_61 = arith.constant 10 : i32
      %171 = tpu.dynamic_rotate %169 by %c10_i32_61 dim 1 : vector<24x128xf32>, i32 -> vector<24x128xf32>
      %c0_62 = arith.constant 0 : index
      %c16 = arith.constant 16 : index
      %172 = memref.load %arg1[%c0_62, %c16] : memref<3x257xf32, #tpu.memory_space<smem>>
      %173 = vector.broadcast %172 : f32 to vector<24x128xf32>
      %174 = arith.mulf %173, %170 : vector<24x128xf32>
      %175 = arith.addf %155, %174 : vector<24x128xf32>
      %c0_63 = arith.constant 0 : index
      %c25 = arith.constant 25 : index
      %176 = memref.load %arg1[%c0_63, %c25] : memref<3x257xf32, #tpu.memory_space<smem>>
      %177 = vector.broadcast %176 : f32 to vector<24x128xf32>
      %178 = arith.mulf %177, %171 : vector<24x128xf32>
      %179 = arith.addf %175, %178 : vector<24x128xf32>
      %c0_64 = arith.constant 0 : index
      %c34 = arith.constant 34 : index
      %180 = memref.load %arg1[%c0_64, %c34] : memref<3x257xf32, #tpu.memory_space<smem>>
      %181 = vector.broadcast %180 : f32 to vector<24x128xf32>
      %182 = arith.mulf %181, %170 : vector<24x128xf32>
      %183 = arith.addf %163, %182 : vector<24x128xf32>
      %c0_65 = arith.constant 0 : index
      %c43 = arith.constant 43 : index
      %184 = memref.load %arg1[%c0_65, %c43] : memref<3x257xf32, #tpu.memory_space<smem>>
      %185 = vector.broadcast %184 : f32 to vector<24x128xf32>
      %186 = arith.mulf %185, %171 : vector<24x128xf32>
      %187 = arith.addf %183, %186 : vector<24x128xf32>
      %c0_66 = arith.constant 0 : index
      %c17 = arith.constant 17 : index
      %188 = memref.load %arg1[%c0_66, %c17] : memref<3x257xf32, #tpu.memory_space<smem>>
      %189 = vector.broadcast %188 : f32 to vector<24x128xf32>
      %190 = arith.mulf %189, %166 : vector<24x128xf32>
      %191 = arith.addf %179, %190 : vector<24x128xf32>
      %c0_67 = arith.constant 0 : index
      %c26 = arith.constant 26 : index
      %192 = memref.load %arg1[%c0_67, %c26] : memref<3x257xf32, #tpu.memory_space<smem>>
      %193 = vector.broadcast %192 : f32 to vector<24x128xf32>
      %194 = arith.mulf %193, %169 : vector<24x128xf32>
      %195 = arith.addf %191, %194 : vector<24x128xf32>
      %c0_68 = arith.constant 0 : index
      %c35 = arith.constant 35 : index
      %196 = memref.load %arg1[%c0_68, %c35] : memref<3x257xf32, #tpu.memory_space<smem>>
      %197 = vector.broadcast %196 : f32 to vector<24x128xf32>
      %198 = arith.mulf %197, %166 : vector<24x128xf32>
      %199 = arith.addf %187, %198 : vector<24x128xf32>
      %c0_69 = arith.constant 0 : index
      %c44 = arith.constant 44 : index
      %200 = memref.load %arg1[%c0_69, %c44] : memref<3x257xf32, #tpu.memory_space<smem>>
      %201 = vector.broadcast %200 : f32 to vector<24x128xf32>
      %202 = arith.mulf %201, %169 : vector<24x128xf32>
      %203 = arith.addf %199, %202 : vector<24x128xf32>
      %c118_i32_70 = arith.constant 118 : i32
      %204 = tpu.dynamic_rotate %166 by %c118_i32_70 dim 1 : vector<24x128xf32>, i32 -> vector<24x128xf32>
      %c118_i32_71 = arith.constant 118 : i32
      %205 = tpu.dynamic_rotate %169 by %c118_i32_71 dim 1 : vector<24x128xf32>, i32 -> vector<24x128xf32>
      %c0_72 = arith.constant 0 : index
      %c18 = arith.constant 18 : index
      %206 = memref.load %arg1[%c0_72, %c18] : memref<3x257xf32, #tpu.memory_space<smem>>
      %207 = vector.broadcast %206 : f32 to vector<24x128xf32>
      %208 = arith.mulf %207, %204 : vector<24x128xf32>
      %209 = arith.addf %195, %208 : vector<24x128xf32>
      %c0_73 = arith.constant 0 : index
      %c27 = arith.constant 27 : index
      %210 = memref.load %arg1[%c0_73, %c27] : memref<3x257xf32, #tpu.memory_space<smem>>
      %211 = vector.broadcast %210 : f32 to vector<24x128xf32>
      %212 = arith.mulf %211, %205 : vector<24x128xf32>
      %213 = arith.addf %209, %212 : vector<24x128xf32>
      %c0_74 = arith.constant 0 : index
      %c36 = arith.constant 36 : index
      %214 = memref.load %arg1[%c0_74, %c36] : memref<3x257xf32, #tpu.memory_space<smem>>
      %215 = vector.broadcast %214 : f32 to vector<24x128xf32>
      %216 = arith.mulf %215, %204 : vector<24x128xf32>
      %217 = arith.addf %203, %216 : vector<24x128xf32>
      %c0_75 = arith.constant 0 : index
      %c45 = arith.constant 45 : index
      %218 = memref.load %arg1[%c0_75, %c45] : memref<3x257xf32, #tpu.memory_space<smem>>
      %219 = vector.broadcast %218 : f32 to vector<24x128xf32>
      %220 = arith.mulf %219, %205 : vector<24x128xf32>
      %221 = arith.addf %217, %220 : vector<24x128xf32>
      %c0_76 = arith.constant 0 : index
      %c46 = arith.constant 46 : index
      %222 = memref.load %arg1[%c0_76, %c46] : memref<3x257xf32, #tpu.memory_space<smem>>
      %223 = vector.broadcast %222 : f32 to vector<24x128xf32>
      %224 = arith.addf %213, %223 : vector<24x128xf32>
      %c0_77 = arith.constant 0 : index
      %c47 = arith.constant 47 : index
      %225 = memref.load %arg1[%c0_77, %c47] : memref<3x257xf32, #tpu.memory_space<smem>>
      %226 = vector.broadcast %225 : f32 to vector<24x128xf32>
      %227 = arith.addf %221, %226 : vector<24x128xf32>
      %c0_78 = arith.constant 0 : index
      %c48 = arith.constant 48 : index
      %228 = memref.load %arg1[%c0_78, %c48] : memref<3x257xf32, #tpu.memory_space<smem>>
      %229 = vector.broadcast %228 : f32 to vector<24x128xf32>
      %230 = arith.mulf %229, %224 : vector<24x128xf32>
      %c0_79 = arith.constant 0 : index
      %c49 = arith.constant 49 : index
      %231 = memref.load %arg1[%c0_79, %c49] : memref<3x257xf32, #tpu.memory_space<smem>>
      %232 = vector.broadcast %231 : f32 to vector<24x128xf32>
      %233 = arith.mulf %232, %227 : vector<24x128xf32>
      %234 = arith.addf %230, %233 : vector<24x128xf32>
      %c0_80 = arith.constant 0 : index
      %c52 = arith.constant 52 : index
      %235 = memref.load %arg1[%c0_80, %c52] : memref<3x257xf32, #tpu.memory_space<smem>>
      %236 = vector.broadcast %235 : f32 to vector<24x128xf32>
      %237 = arith.addf %234, %236 : vector<24x128xf32>
      %c0_81 = arith.constant 0 : index
      %c50 = arith.constant 50 : index
      %238 = memref.load %arg1[%c0_81, %c50] : memref<3x257xf32, #tpu.memory_space<smem>>
      %239 = vector.broadcast %238 : f32 to vector<24x128xf32>
      %240 = arith.mulf %239, %224 : vector<24x128xf32>
      %c0_82 = arith.constant 0 : index
      %c51 = arith.constant 51 : index
      %241 = memref.load %arg1[%c0_82, %c51] : memref<3x257xf32, #tpu.memory_space<smem>>
      %242 = vector.broadcast %241 : f32 to vector<24x128xf32>
      %243 = arith.mulf %242, %227 : vector<24x128xf32>
      %244 = arith.addf %240, %243 : vector<24x128xf32>
      %c0_83 = arith.constant 0 : index
      %c53 = arith.constant 53 : index
      %245 = memref.load %arg1[%c0_83, %c53] : memref<3x257xf32, #tpu.memory_space<smem>>
      %246 = vector.broadcast %245 : f32 to vector<24x128xf32>
      %247 = arith.addf %244, %246 : vector<24x128xf32>
      %248 = arith.mulf %237, %0 : vector<24x128xf32>
      %249 = arith.mulf %247, %0 : vector<24x128xf32>
      %250 = vector.shape_cast %248 : vector<24x128xf32> to vector<1x24x128xf32>
      %cst_84 = arith.constant dense<0.000000e+00> : vector<1xf32>
      %251 = vector.multi_reduction <add>, %250, %cst_84 [1, 2] : vector<1x24x128xf32> to vector<1xf32>
      %252 = vector.shape_cast %251 : vector<1xf32> to vector<1x1x1xf32>
      %253 = vector.extract %252[0, 0, 0] : f32 from vector<1x1x1xf32>
      %cst_85 = arith.constant 9.765625E-4 : f32
      %254 = arith.mulf %253, %cst_85 : f32
      %255 = arith.mulf %248, %248 : vector<24x128xf32>
      %256 = vector.shape_cast %255 : vector<24x128xf32> to vector<1x24x128xf32>
      %cst_86 = arith.constant dense<0.000000e+00> : vector<1xf32>
      %257 = vector.multi_reduction <add>, %256, %cst_86 [1, 2] : vector<1x24x128xf32> to vector<1xf32>
      %258 = vector.shape_cast %257 : vector<1xf32> to vector<1x1x1xf32>
      %259 = vector.extract %258[0, 0, 0] : f32 from vector<1x1x1xf32>
      %cst_87 = arith.constant 9.765625E-4 : f32
      %260 = arith.mulf %259, %cst_87 : f32
      %261 = arith.mulf %254, %254 : f32
      %262 = arith.subf %260, %261 : f32
      %c0_88 = arith.constant 0 : index
      %c54 = arith.constant 54 : index
      %263 = memref.load %arg1[%c0_88, %c54] : memref<3x257xf32, #tpu.memory_space<smem>>
      %cst_89 = arith.constant 9.99999974E-6 : f32
      %264 = arith.addf %262, %cst_89 : f32
      %265 = math.rsqrt %264 : f32
      %266 = arith.mulf %263, %265 : f32
      %c0_90 = arith.constant 0 : index
      %c56 = arith.constant 56 : index
      %267 = memref.load %arg1[%c0_90, %c56] : memref<3x257xf32, #tpu.memory_space<smem>>
      %268 = arith.mulf %254, %266 : f32
      %269 = arith.subf %267, %268 : f32
      %270 = vector.broadcast %266 : f32 to vector<24x128xf32>
      %271 = arith.mulf %248, %270 : vector<24x128xf32>
      %272 = vector.broadcast %269 : f32 to vector<24x128xf32>
      %273 = arith.addf %271, %272 : vector<24x128xf32>
      %cst_91 = arith.constant 0.000000e+00 : f32
      %274 = vector.broadcast %cst_91 : f32 to vector<24x128xf32>
      %275 = arith.maximumf %273, %274 : vector<24x128xf32>
      %276 = arith.mulf %275, %0 : vector<24x128xf32>
      %277 = vector.shape_cast %249 : vector<24x128xf32> to vector<1x24x128xf32>
      %cst_92 = arith.constant dense<0.000000e+00> : vector<1xf32>
      %278 = vector.multi_reduction <add>, %277, %cst_92 [1, 2] : vector<1x24x128xf32> to vector<1xf32>
      %279 = vector.shape_cast %278 : vector<1xf32> to vector<1x1x1xf32>
      %280 = vector.extract %279[0, 0, 0] : f32 from vector<1x1x1xf32>
      %cst_93 = arith.constant 9.765625E-4 : f32
      %281 = arith.mulf %280, %cst_93 : f32
      %282 = arith.mulf %249, %249 : vector<24x128xf32>
      %283 = vector.shape_cast %282 : vector<24x128xf32> to vector<1x24x128xf32>
      %cst_94 = arith.constant dense<0.000000e+00> : vector<1xf32>
      %284 = vector.multi_reduction <add>, %283, %cst_94 [1, 2] : vector<1x24x128xf32> to vector<1xf32>
      %285 = vector.shape_cast %284 : vector<1xf32> to vector<1x1x1xf32>
      %286 = vector.extract %285[0, 0, 0] : f32 from vector<1x1x1xf32>
      %cst_95 = arith.constant 9.765625E-4 : f32
      %287 = arith.mulf %286, %cst_95 : f32
      %288 = arith.mulf %281, %281 : f32
      %289 = arith.subf %287, %288 : f32
      %c0_96 = arith.constant 0 : index
      %c55 = arith.constant 55 : index
      %290 = memref.load %arg1[%c0_96, %c55] : memref<3x257xf32, #tpu.memory_space<smem>>
      %cst_97 = arith.constant 9.99999974E-6 : f32
      %291 = arith.addf %289, %cst_97 : f32
      %292 = math.rsqrt %291 : f32
      %293 = arith.mulf %290, %292 : f32
      %c0_98 = arith.constant 0 : index
      %c57 = arith.constant 57 : index
      %294 = memref.load %arg1[%c0_98, %c57] : memref<3x257xf32, #tpu.memory_space<smem>>
      %295 = arith.mulf %281, %293 : f32
      %296 = arith.subf %294, %295 : f32
      %297 = vector.broadcast %293 : f32 to vector<24x128xf32>
      %298 = arith.mulf %249, %297 : vector<24x128xf32>
      %299 = vector.broadcast %296 : f32 to vector<24x128xf32>
      %300 = arith.addf %298, %299 : vector<24x128xf32>
      %cst_99 = arith.constant 0.000000e+00 : f32
      %301 = vector.broadcast %cst_99 : f32 to vector<24x128xf32>
      %302 = arith.maximumf %300, %301 : vector<24x128xf32>
      %303 = arith.mulf %302, %0 : vector<24x128xf32>
      %c0_100 = arith.constant 0 : index
      %c58 = arith.constant 58 : index
      %304 = memref.load %arg1[%c0_100, %c58] : memref<3x257xf32, #tpu.memory_space<smem>>
      %305 = vector.broadcast %304 : f32 to vector<24x128xf32>
      %306 = arith.mulf %305, %276 : vector<24x128xf32>
      %c0_101 = arith.constant 0 : index
      %c59 = arith.constant 59 : index
      %307 = memref.load %arg1[%c0_101, %c59] : memref<3x257xf32, #tpu.memory_space<smem>>
      %308 = vector.broadcast %307 : f32 to vector<24x128xf32>
      %309 = arith.mulf %308, %303 : vector<24x128xf32>
      %310 = arith.addf %306, %309 : vector<24x128xf32>
      %c0_102 = arith.constant 0 : index
      %c62 = arith.constant 62 : index
      %311 = memref.load %arg1[%c0_102, %c62] : memref<3x257xf32, #tpu.memory_space<smem>>
      %312 = vector.broadcast %311 : f32 to vector<24x128xf32>
      %313 = arith.addf %310, %312 : vector<24x128xf32>
      %c0_103 = arith.constant 0 : index
      %c60 = arith.constant 60 : index
      %314 = memref.load %arg1[%c0_103, %c60] : memref<3x257xf32, #tpu.memory_space<smem>>
      %315 = vector.broadcast %314 : f32 to vector<24x128xf32>
      %316 = arith.mulf %315, %276 : vector<24x128xf32>
      %c0_104 = arith.constant 0 : index
      %c61 = arith.constant 61 : index
      %317 = memref.load %arg1[%c0_104, %c61] : memref<3x257xf32, #tpu.memory_space<smem>>
      %318 = vector.broadcast %317 : f32 to vector<24x128xf32>
      %319 = arith.mulf %318, %303 : vector<24x128xf32>
      %320 = arith.addf %316, %319 : vector<24x128xf32>
      %c0_105 = arith.constant 0 : index
      %c63 = arith.constant 63 : index
      %321 = memref.load %arg1[%c0_105, %c63] : memref<3x257xf32, #tpu.memory_space<smem>>
      %322 = vector.broadcast %321 : f32 to vector<24x128xf32>
      %323 = arith.addf %320, %322 : vector<24x128xf32>
      %c0_106 = arith.constant 0 : index
      %c64 = arith.constant 64 : index
      %324 = memref.load %arg1[%c0_106, %c64] : memref<3x257xf32, #tpu.memory_space<smem>>
      %325 = vector.broadcast %324 : f32 to vector<24x128xf32>
      %326 = arith.mulf %325, %313 : vector<24x128xf32>
      %c0_107 = arith.constant 0 : index
      %c65 = arith.constant 65 : index
      %327 = memref.load %arg1[%c0_107, %c65] : memref<3x257xf32, #tpu.memory_space<smem>>
      %328 = vector.broadcast %327 : f32 to vector<24x128xf32>
      %329 = arith.mulf %328, %323 : vector<24x128xf32>
      %330 = arith.addf %326, %329 : vector<24x128xf32>
      %c0_108 = arith.constant 0 : index
      %c66 = arith.constant 66 : index
      %331 = memref.load %arg1[%c0_108, %c66] : memref<3x257xf32, #tpu.memory_space<smem>>
      %332 = vector.broadcast %331 : f32 to vector<24x128xf32>
      %333 = arith.mulf %332, %313 : vector<24x128xf32>
      %c0_109 = arith.constant 0 : index
      %c67 = arith.constant 67 : index
      %334 = memref.load %arg1[%c0_109, %c67] : memref<3x257xf32, #tpu.memory_space<smem>>
      %335 = vector.broadcast %334 : f32 to vector<24x128xf32>
      %336 = arith.mulf %335, %323 : vector<24x128xf32>
      %337 = arith.addf %333, %336 : vector<24x128xf32>
      %c0_110 = arith.constant 0 : index
      %c68 = arith.constant 68 : index
      %338 = memref.load %arg1[%c0_110, %c68] : memref<3x257xf32, #tpu.memory_space<smem>>
      %339 = vector.broadcast %338 : f32 to vector<24x128xf32>
      %340 = arith.addf %330, %339 : vector<24x128xf32>
      %c0_111 = arith.constant 0 : index
      %c69 = arith.constant 69 : index
      %341 = memref.load %arg1[%c0_111, %c69] : memref<3x257xf32, #tpu.memory_space<smem>>
      %342 = vector.broadcast %341 : f32 to vector<24x128xf32>
      %343 = arith.addf %337, %342 : vector<24x128xf32>
      %c0_112 = arith.constant 0 : index
      %c70 = arith.constant 70 : index
      %344 = memref.load %arg1[%c0_112, %c70] : memref<3x257xf32, #tpu.memory_space<smem>>
      %345 = vector.broadcast %344 : f32 to vector<24x128xf32>
      %346 = arith.mulf %345, %340 : vector<24x128xf32>
      %c0_113 = arith.constant 0 : index
      %c71 = arith.constant 71 : index
      %347 = memref.load %arg1[%c0_113, %c71] : memref<3x257xf32, #tpu.memory_space<smem>>
      %348 = vector.broadcast %347 : f32 to vector<24x128xf32>
      %349 = arith.mulf %348, %343 : vector<24x128xf32>
      %350 = arith.addf %346, %349 : vector<24x128xf32>
      %c0_114 = arith.constant 0 : index
      %c74 = arith.constant 74 : index
      %351 = memref.load %arg1[%c0_114, %c74] : memref<3x257xf32, #tpu.memory_space<smem>>
      %352 = vector.broadcast %351 : f32 to vector<24x128xf32>
      %353 = arith.addf %350, %352 : vector<24x128xf32>
      %c0_115 = arith.constant 0 : index
      %c72 = arith.constant 72 : index
      %354 = memref.load %arg1[%c0_115, %c72] : memref<3x257xf32, #tpu.memory_space<smem>>
      %355 = vector.broadcast %354 : f32 to vector<24x128xf32>
      %356 = arith.mulf %355, %340 : vector<24x128xf32>
      %c0_116 = arith.constant 0 : index
      %c73 = arith.constant 73 : index
      %357 = memref.load %arg1[%c0_116, %c73] : memref<3x257xf32, #tpu.memory_space<smem>>
      %358 = vector.broadcast %357 : f32 to vector<24x128xf32>
      %359 = arith.mulf %358, %343 : vector<24x128xf32>
      %360 = arith.addf %356, %359 : vector<24x128xf32>
      %c0_117 = arith.constant 0 : index
      %c75 = arith.constant 75 : index
      %361 = memref.load %arg1[%c0_117, %c75] : memref<3x257xf32, #tpu.memory_space<smem>>
      %362 = vector.broadcast %361 : f32 to vector<24x128xf32>
      %363 = arith.addf %360, %362 : vector<24x128xf32>
      %364 = arith.mulf %353, %0 : vector<24x128xf32>
      %365 = arith.mulf %363, %0 : vector<24x128xf32>
      %366 = vector.shape_cast %364 : vector<24x128xf32> to vector<1x24x128xf32>
      %cst_118 = arith.constant dense<0.000000e+00> : vector<1xf32>
      %367 = vector.multi_reduction <add>, %366, %cst_118 [1, 2] : vector<1x24x128xf32> to vector<1xf32>
      %368 = vector.shape_cast %367 : vector<1xf32> to vector<1x1x1xf32>
      %369 = vector.extract %368[0, 0, 0] : f32 from vector<1x1x1xf32>
      %cst_119 = arith.constant 9.765625E-4 : f32
      %370 = arith.mulf %369, %cst_119 : f32
      %371 = arith.mulf %364, %364 : vector<24x128xf32>
      %372 = vector.shape_cast %371 : vector<24x128xf32> to vector<1x24x128xf32>
      %cst_120 = arith.constant dense<0.000000e+00> : vector<1xf32>
      %373 = vector.multi_reduction <add>, %372, %cst_120 [1, 2] : vector<1x24x128xf32> to vector<1xf32>
      %374 = vector.shape_cast %373 : vector<1xf32> to vector<1x1x1xf32>
      %375 = vector.extract %374[0, 0, 0] : f32 from vector<1x1x1xf32>
      %cst_121 = arith.constant 9.765625E-4 : f32
      %376 = arith.mulf %375, %cst_121 : f32
      %377 = arith.mulf %370, %370 : f32
      %378 = arith.subf %376, %377 : f32
      %c0_122 = arith.constant 0 : index
      %c76 = arith.constant 76 : index
      %379 = memref.load %arg1[%c0_122, %c76] : memref<3x257xf32, #tpu.memory_space<smem>>
      %cst_123 = arith.constant 9.99999974E-6 : f32
      %380 = arith.addf %378, %cst_123 : f32
      %381 = math.rsqrt %380 : f32
      %382 = arith.mulf %379, %381 : f32
      %c0_124 = arith.constant 0 : index
      %c78 = arith.constant 78 : index
      %383 = memref.load %arg1[%c0_124, %c78] : memref<3x257xf32, #tpu.memory_space<smem>>
      %384 = arith.mulf %370, %382 : f32
      %385 = arith.subf %383, %384 : f32
      %386 = vector.broadcast %382 : f32 to vector<24x128xf32>
      %387 = arith.mulf %364, %386 : vector<24x128xf32>
      %388 = vector.broadcast %385 : f32 to vector<24x128xf32>
      %389 = arith.addf %387, %388 : vector<24x128xf32>
      %cst_125 = arith.constant 0.000000e+00 : f32
      %390 = vector.broadcast %cst_125 : f32 to vector<24x128xf32>
      %391 = arith.maximumf %389, %390 : vector<24x128xf32>
      %392 = arith.mulf %391, %0 : vector<24x128xf32>
      %393 = vector.shape_cast %365 : vector<24x128xf32> to vector<1x24x128xf32>
      %cst_126 = arith.constant dense<0.000000e+00> : vector<1xf32>
      %394 = vector.multi_reduction <add>, %393, %cst_126 [1, 2] : vector<1x24x128xf32> to vector<1xf32>
      %395 = vector.shape_cast %394 : vector<1xf32> to vector<1x1x1xf32>
      %396 = vector.extract %395[0, 0, 0] : f32 from vector<1x1x1xf32>
      %cst_127 = arith.constant 9.765625E-4 : f32
      %397 = arith.mulf %396, %cst_127 : f32
      %398 = arith.mulf %365, %365 : vector<24x128xf32>
      %399 = vector.shape_cast %398 : vector<24x128xf32> to vector<1x24x128xf32>
      %cst_128 = arith.constant dense<0.000000e+00> : vector<1xf32>
      %400 = vector.multi_reduction <add>, %399, %cst_128 [1, 2] : vector<1x24x128xf32> to vector<1xf32>
      %401 = vector.shape_cast %400 : vector<1xf32> to vector<1x1x1xf32>
      %402 = vector.extract %401[0, 0, 0] : f32 from vector<1x1x1xf32>
      %cst_129 = arith.constant 9.765625E-4 : f32
      %403 = arith.mulf %402, %cst_129 : f32
      %404 = arith.mulf %397, %397 : f32
      %405 = arith.subf %403, %404 : f32
      %c0_130 = arith.constant 0 : index
      %c77 = arith.constant 77 : index
      %406 = memref.load %arg1[%c0_130, %c77] : memref<3x257xf32, #tpu.memory_space<smem>>
      %cst_131 = arith.constant 9.99999974E-6 : f32
      %407 = arith.addf %405, %cst_131 : f32
      %408 = math.rsqrt %407 : f32
      %409 = arith.mulf %406, %408 : f32
      %c0_132 = arith.constant 0 : index
      %c79 = arith.constant 79 : index
      %410 = memref.load %arg1[%c0_132, %c79] : memref<3x257xf32, #tpu.memory_space<smem>>
      %411 = arith.mulf %397, %409 : f32
      %412 = arith.subf %410, %411 : f32
      %413 = vector.broadcast %409 : f32 to vector<24x128xf32>
      %414 = arith.mulf %365, %413 : vector<24x128xf32>
      %415 = vector.broadcast %412 : f32 to vector<24x128xf32>
      %416 = arith.addf %414, %415 : vector<24x128xf32>
      %cst_133 = arith.constant 0.000000e+00 : f32
      %417 = vector.broadcast %cst_133 : f32 to vector<24x128xf32>
      %418 = arith.maximumf %416, %417 : vector<24x128xf32>
      %419 = arith.mulf %418, %0 : vector<24x128xf32>
      %c0_134 = arith.constant 0 : index
      %c80 = arith.constant 80 : index
      %420 = memref.load %arg1[%c0_134, %c80] : memref<3x257xf32, #tpu.memory_space<smem>>
      %421 = arith.addf %2, %276 : vector<24x128xf32>
      %422 = vector.broadcast %420 : f32 to vector<24x128xf32>
      %423 = arith.mulf %422, %421 : vector<24x128xf32>
      %c0_135 = arith.constant 0 : index
      %c0_136 = arith.constant 0 : index
      %c0_137 = arith.constant 0 : index
      %c0_138 = arith.constant 0 : index
      %424 = vector.load %arg4[%c0_135, %c0_136, %c0_137, %c0_138] : memref<1x4x24x128xf32, #tpu.memory_space<vmem>>, vector<1x1x24x128xf32>
      %425 = vector.shape_cast %424 : vector<1x1x24x128xf32> to vector<24x128xf32>
      %426 = vector.shape_cast %423 : vector<24x128xf32> to vector<1x1x24x128xf32>
      tpu.vector_store %arg4[%c0_135, %c0_136, %c0_137, %c0_138], %426 {strides = array<i32>} : memref<1x4x24x128xf32, #tpu.memory_space<vmem>>, vector<1x1x24x128xf32>,
      %427 = arith.addf %4, %303 : vector<24x128xf32>
      %428 = vector.broadcast %420 : f32 to vector<24x128xf32>
      %429 = arith.mulf %428, %427 : vector<24x128xf32>
      %c0_139 = arith.constant 0 : index
      %c1_140 = arith.constant 1 : index
      %c0_141 = arith.constant 0 : index
      %c0_142 = arith.constant 0 : index
      %430 = vector.load %arg4[%c0_139, %c1_140, %c0_141, %c0_142] : memref<1x4x24x128xf32, #tpu.memory_space<vmem>>, vector<1x1x24x128xf32>
      %431 = vector.shape_cast %430 : vector<1x1x24x128xf32> to vector<24x128xf32>
      %432 = vector.shape_cast %429 : vector<24x128xf32> to vector<1x1x24x128xf32>
      tpu.vector_store %arg4[%c0_139, %c1_140, %c0_141, %c0_142], %432 {strides = array<i32>} : memref<1x4x24x128xf32, #tpu.memory_space<vmem>>, vector<1x1x24x128xf32>,
      %433 = arith.addf %6, %392 : vector<24x128xf32>
      %434 = vector.broadcast %420 : f32 to vector<24x128xf32>
      %435 = arith.mulf %434, %433 : vector<24x128xf32>
      %c0_143 = arith.constant 0 : index
      %c2_144 = arith.constant 2 : index
      %c0_145 = arith.constant 0 : index
      %c0_146 = arith.constant 0 : index
      %436 = vector.load %arg4[%c0_143, %c2_144, %c0_145, %c0_146] : memref<1x4x24x128xf32, #tpu.memory_space<vmem>>, vector<1x1x24x128xf32>
      %437 = vector.shape_cast %436 : vector<1x1x24x128xf32> to vector<24x128xf32>
      %438 = vector.shape_cast %435 : vector<24x128xf32> to vector<1x1x24x128xf32>
      tpu.vector_store %arg4[%c0_143, %c2_144, %c0_145, %c0_146], %438 {strides = array<i32>} : memref<1x4x24x128xf32, #tpu.memory_space<vmem>>, vector<1x1x24x128xf32>,
      %439 = arith.addf %8, %419 : vector<24x128xf32>
      %440 = vector.broadcast %420 : f32 to vector<24x128xf32>
      %441 = arith.mulf %440, %439 : vector<24x128xf32>
      %c0_147 = arith.constant 0 : index
      %c3_148 = arith.constant 3 : index
      %c0_149 = arith.constant 0 : index
      %c0_150 = arith.constant 0 : index
      %442 = vector.load %arg4[%c0_147, %c3_148, %c0_149, %c0_150] : memref<1x4x24x128xf32, #tpu.memory_space<vmem>>, vector<1x1x24x128xf32>
      %443 = vector.shape_cast %442 : vector<1x1x24x128xf32> to vector<24x128xf32>
      %444 = vector.shape_cast %441 : vector<24x128xf32> to vector<1x1x24x128xf32>
      tpu.vector_store %arg4[%c0_147, %c3_148, %c0_149, %c0_150], %444 {strides = array<i32>} : memref<1x4x24x128xf32, #tpu.memory_space<vmem>>, vector<1x1x24x128xf32>,
    } else {
    }
    %c1_i32 = arith.constant 1 : i32
    %12 = arith.cmpi eq, %arg0, %c1_i32 : i32
    %13 = arith.extui %12 : i1 to i32
    %c0_i32_11 = arith.constant 0 : i32
    %14 = arith.cmpi ne, %13, %c0_i32_11 : i32
    scf.if %14 {
      %c1_13 = arith.constant 1 : index
      %c0_14 = arith.constant 0 : index
      %18 = memref.load %arg1[%c1_13, %c0_14] : memref<3x257xf32, #tpu.memory_space<smem>>
      %19 = vector.broadcast %18 : f32 to vector<24x128xf32>
      %20 = arith.mulf %19, %2 : vector<24x128xf32>
      %c1_15 = arith.constant 1 : index
      %c1_16 = arith.constant 1 : index
      %21 = memref.load %arg1[%c1_15, %c1_16] : memref<3x257xf32, #tpu.memory_space<smem>>
      %22 = vector.broadcast %21 : f32 to vector<24x128xf32>
      %23 = arith.mulf %22, %4 : vector<24x128xf32>
      %24 = arith.addf %20, %23 : vector<24x128xf32>
      %c1_17 = arith.constant 1 : index
      %c2_18 = arith.constant 2 : index
      %25 = memref.load %arg1[%c1_17, %c2_18] : memref<3x257xf32, #tpu.memory_space<smem>>
      %26 = vector.broadcast %25 : f32 to vector<24x128xf32>
      %27 = arith.mulf %26, %6 : vector<24x128xf32>
      %28 = arith.addf %24, %27 : vector<24x128xf32>
      %c1_19 = arith.constant 1 : index
      %c3_20 = arith.constant 3 : index
      %29 = memref.load %arg1[%c1_19, %c3_20] : memref<3x257xf32, #tpu.memory_space<smem>>
      %30 = vector.broadcast %29 : f32 to vector<24x128xf32>
      %31 = arith.mulf %30, %8 : vector<24x128xf32>
      %32 = arith.addf %28, %31 : vector<24x128xf32>
      %c1_21 = arith.constant 1 : index
      %c8 = arith.constant 8 : index
      %33 = memref.load %arg1[%c1_21, %c8] : memref<3x257xf32, #tpu.memory_space<smem>>
      %34 = vector.broadcast %33 : f32 to vector<24x128xf32>
      %35 = arith.addf %32, %34 : vector<24x128xf32>
      %c1_22 = arith.constant 1 : index
      %c4 = arith.constant 4 : index
      %36 = memref.load %arg1[%c1_22, %c4] : memref<3x257xf32, #tpu.memory_space<smem>>
      %37 = vector.broadcast %36 : f32 to vector<24x128xf32>
      %38 = arith.mulf %37, %2 : vector<24x128xf32>
      %c1_23 = arith.constant 1 : index
      %c5 = arith.constant 5 : index
      %39 = memref.load %arg1[%c1_23, %c5] : memref<3x257xf32, #tpu.memory_space<smem>>
      %40 = vector.broadcast %39 : f32 to vector<24x128xf32>
      %41 = arith.mulf %40, %4 : vector<24x128xf32>
      %42 = arith.addf %38, %41 : vector<24x128xf32>
      %c1_24 = arith.constant 1 : index
      %c6 = arith.constant 6 : index
      %43 = memref.load %arg1[%c1_24, %c6] : memref<3x257xf32, #tpu.memory_space<smem>>
      %44 = vector.broadcast %43 : f32 to vector<24x128xf32>
      %45 = arith.mulf %44, %6 : vector<24x128xf32>
      %46 = arith.addf %42, %45 : vector<24x128xf32>
      %c1_25 = arith.constant 1 : index
      %c7 = arith.constant 7 : index
      %47 = memref.load %arg1[%c1_25, %c7] : memref<3x257xf32, #tpu.memory_space<smem>>
      %48 = vector.broadcast %47 : f32 to vector<24x128xf32>
      %49 = arith.mulf %48, %8 : vector<24x128xf32>
      %50 = arith.addf %46, %49 : vector<24x128xf32>
      %c1_26 = arith.constant 1 : index
      %c9 = arith.constant 9 : index
      %51 = memref.load %arg1[%c1_26, %c9] : memref<3x257xf32, #tpu.memory_space<smem>>
      %52 = vector.broadcast %51 : f32 to vector<24x128xf32>
      %53 = arith.addf %50, %52 : vector<24x128xf32>
      %54 = arith.mulf %35, %0 : vector<24x128xf32>
      %55 = arith.mulf %53, %0 : vector<24x128xf32>
      %cst = arith.constant 0.000000e+00 : f32
      %56 = vector.broadcast %cst : f32 to vector<1x128xf32>
      %57 = vector.extract_strided_slice %54 {offsets = [0, 0], sizes = [23, 128], strides = [1, 1]} : vector<24x128xf32> to vector<23x128xf32>
      %58 = tpu.concatenate %56, %57 in 0 : vector<1x128xf32>, vector<23x128xf32> -> vector<24x128xf32>
      %cst_27 = arith.constant 0.000000e+00 : f32
      %59 = vector.broadcast %cst_27 : f32 to vector<1x128xf32>
      %60 = vector.extract_strided_slice %55 {offsets = [0, 0], sizes = [23, 128], strides = [1, 1]} : vector<24x128xf32> to vector<23x128xf32>
      %61 = tpu.concatenate %59, %60 in 0 : vector<1x128xf32>, vector<23x128xf32> -> vector<24x128xf32>
      %c11_i32 = arith.constant 11 : i32
      %62 = tpu.dynamic_rotate %58 by %c11_i32 dim 1 : vector<24x128xf32>, i32 -> vector<24x128xf32>
      %c11_i32_28 = arith.constant 11 : i32
      %63 = tpu.dynamic_rotate %61 by %c11_i32_28 dim 1 : vector<24x128xf32>, i32 -> vector<24x128xf32>
      %c1_29 = arith.constant 1 : index
      %c10 = arith.constant 10 : index
      %64 = memref.load %arg1[%c1_29, %c10] : memref<3x257xf32, #tpu.memory_space<smem>>
      %65 = vector.broadcast %64 : f32 to vector<24x128xf32>
      %66 = arith.mulf %65, %62 : vector<24x128xf32>
      %c1_30 = arith.constant 1 : index
      %c37 = arith.constant 37 : index
      %67 = memref.load %arg1[%c1_30, %c37] : memref<3x257xf32, #tpu.memory_space<smem>>
      %68 = vector.broadcast %67 : f32 to vector<24x128xf32>
      %69 = arith.mulf %68, %63 : vector<24x128xf32>
      %70 = arith.addf %66, %69 : vector<24x128xf32>
      %c1_31 = arith.constant 1 : index
      %c64 = arith.constant 64 : index
      %71 = memref.load %arg1[%c1_31, %c64] : memref<3x257xf32, #tpu.memory_space<smem>>
      %72 = vector.broadcast %71 : f32 to vector<24x128xf32>
      %73 = arith.mulf %72, %62 : vector<24x128xf32>
      %c1_32 = arith.constant 1 : index
      %c91 = arith.constant 91 : index
      %74 = memref.load %arg1[%c1_32, %c91] : memref<3x257xf32, #tpu.memory_space<smem>>
      %75 = vector.broadcast %74 : f32 to vector<24x128xf32>
      %76 = arith.mulf %75, %63 : vector<24x128xf32>
      %77 = arith.addf %73, %76 : vector<24x128xf32>
      %c10_i32 = arith.constant 10 : i32
      %78 = tpu.dynamic_rotate %58 by %c10_i32 dim 1 : vector<24x128xf32>, i32 -> vector<24x128xf32>
      %c10_i32_33 = arith.constant 10 : i32
      %79 = tpu.dynamic_rotate %61 by %c10_i32_33 dim 1 : vector<24x128xf32>, i32 -> vector<24x128xf32>
      %c1_34 = arith.constant 1 : index
      %c11 = arith.constant 11 : index
      %80 = memref.load %arg1[%c1_34, %c11] : memref<3x257xf32, #tpu.memory_space<smem>>
      %81 = vector.broadcast %80 : f32 to vector<24x128xf32>
      %82 = arith.mulf %81, %78 : vector<24x128xf32>
      %83 = arith.addf %70, %82 : vector<24x128xf32>
      %c1_35 = arith.constant 1 : index
      %c38 = arith.constant 38 : index
      %84 = memref.load %arg1[%c1_35, %c38] : memref<3x257xf32, #tpu.memory_space<smem>>
      %85 = vector.broadcast %84 : f32 to vector<24x128xf32>
      %86 = arith.mulf %85, %79 : vector<24x128xf32>
      %87 = arith.addf %83, %86 : vector<24x128xf32>
      %c1_36 = arith.constant 1 : index
      %c65 = arith.constant 65 : index
      %88 = memref.load %arg1[%c1_36, %c65] : memref<3x257xf32, #tpu.memory_space<smem>>
      %89 = vector.broadcast %88 : f32 to vector<24x128xf32>
      %90 = arith.mulf %89, %78 : vector<24x128xf32>
      %91 = arith.addf %77, %90 : vector<24x128xf32>
      %c1_37 = arith.constant 1 : index
      %c92 = arith.constant 92 : index
      %92 = memref.load %arg1[%c1_37, %c92] : memref<3x257xf32, #tpu.memory_space<smem>>
      %93 = vector.broadcast %92 : f32 to vector<24x128xf32>
      %94 = arith.mulf %93, %79 : vector<24x128xf32>
      %95 = arith.addf %91, %94 : vector<24x128xf32>
      %c9_i32 = arith.constant 9 : i32
      %96 = tpu.dynamic_rotate %58 by %c9_i32 dim 1 : vector<24x128xf32>, i32 -> vector<24x128xf32>
      %c9_i32_38 = arith.constant 9 : i32
      %97 = tpu.dynamic_rotate %61 by %c9_i32_38 dim 1 : vector<24x128xf32>, i32 -> vector<24x128xf32>
      %c1_39 = arith.constant 1 : index
      %c12 = arith.constant 12 : index
      %98 = memref.load %arg1[%c1_39, %c12] : memref<3x257xf32, #tpu.memory_space<smem>>
      %99 = vector.broadcast %98 : f32 to vector<24x128xf32>
      %100 = arith.mulf %99, %96 : vector<24x128xf32>
      %101 = arith.addf %87, %100 : vector<24x128xf32>
      %c1_40 = arith.constant 1 : index
      %c39 = arith.constant 39 : index
      %102 = memref.load %arg1[%c1_40, %c39] : memref<3x257xf32, #tpu.memory_space<smem>>
      %103 = vector.broadcast %102 : f32 to vector<24x128xf32>
      %104 = arith.mulf %103, %97 : vector<24x128xf32>
      %105 = arith.addf %101, %104 : vector<24x128xf32>
      %c1_41 = arith.constant 1 : index
      %c66 = arith.constant 66 : index
      %106 = memref.load %arg1[%c1_41, %c66] : memref<3x257xf32, #tpu.memory_space<smem>>
      %107 = vector.broadcast %106 : f32 to vector<24x128xf32>
      %108 = arith.mulf %107, %96 : vector<24x128xf32>
      %109 = arith.addf %95, %108 : vector<24x128xf32>
      %c1_42 = arith.constant 1 : index
      %c93 = arith.constant 93 : index
      %110 = memref.load %arg1[%c1_42, %c93] : memref<3x257xf32, #tpu.memory_space<smem>>
      %111 = vector.broadcast %110 : f32 to vector<24x128xf32>
      %112 = arith.mulf %111, %97 : vector<24x128xf32>
      %113 = arith.addf %109, %112 : vector<24x128xf32>
      %c1_i32_43 = arith.constant 1 : i32
      %114 = tpu.dynamic_rotate %58 by %c1_i32_43 dim 1 : vector<24x128xf32>, i32 -> vector<24x128xf32>
      %c1_i32_44 = arith.constant 1 : i32
      %115 = tpu.dynamic_rotate %61 by %c1_i32_44 dim 1 : vector<24x128xf32>, i32 -> vector<24x128xf32>
      %c1_45 = arith.constant 1 : index
      %c13 = arith.constant 13 : index
      %116 = memref.load %arg1[%c1_45, %c13] : memref<3x257xf32, #tpu.memory_space<smem>>
      %117 = vector.broadcast %116 : f32 to vector<24x128xf32>
      %118 = arith.mulf %117, %114 : vector<24x128xf32>
      %119 = arith.addf %105, %118 : vector<24x128xf32>
      %c1_46 = arith.constant 1 : index
      %c40 = arith.constant 40 : index
      %120 = memref.load %arg1[%c1_46, %c40] : memref<3x257xf32, #tpu.memory_space<smem>>
      %121 = vector.broadcast %120 : f32 to vector<24x128xf32>
      %122 = arith.mulf %121, %115 : vector<24x128xf32>
      %123 = arith.addf %119, %122 : vector<24x128xf32>
      %c1_47 = arith.constant 1 : index
      %c67 = arith.constant 67 : index
      %124 = memref.load %arg1[%c1_47, %c67] : memref<3x257xf32, #tpu.memory_space<smem>>
      %125 = vector.broadcast %124 : f32 to vector<24x128xf32>
      %126 = arith.mulf %125, %114 : vector<24x128xf32>
      %127 = arith.addf %113, %126 : vector<24x128xf32>
      %c1_48 = arith.constant 1 : index
      %c94 = arith.constant 94 : index
      %128 = memref.load %arg1[%c1_48, %c94] : memref<3x257xf32, #tpu.memory_space<smem>>
      %129 = vector.broadcast %128 : f32 to vector<24x128xf32>
      %130 = arith.mulf %129, %115 : vector<24x128xf32>
      %131 = arith.addf %127, %130 : vector<24x128xf32>
      %c1_49 = arith.constant 1 : index
      %c14 = arith.constant 14 : index
      %132 = memref.load %arg1[%c1_49, %c14] : memref<3x257xf32, #tpu.memory_space<smem>>
      %133 = vector.broadcast %132 : f32 to vector<24x128xf32>
      %134 = arith.mulf %133, %58 : vector<24x128xf32>
      %135 = arith.addf %123, %134 : vector<24x128xf32>
      %c1_50 = arith.constant 1 : index
      %c41 = arith.constant 41 : index
      %136 = memref.load %arg1[%c1_50, %c41] : memref<3x257xf32, #tpu.memory_space<smem>>
      %137 = vector.broadcast %136 : f32 to vector<24x128xf32>
      %138 = arith.mulf %137, %61 : vector<24x128xf32>
      %139 = arith.addf %135, %138 : vector<24x128xf32>
      %c1_51 = arith.constant 1 : index
      %c68 = arith.constant 68 : index
      %140 = memref.load %arg1[%c1_51, %c68] : memref<3x257xf32, #tpu.memory_space<smem>>
      %141 = vector.broadcast %140 : f32 to vector<24x128xf32>
      %142 = arith.mulf %141, %58 : vector<24x128xf32>
      %143 = arith.addf %131, %142 : vector<24x128xf32>
      %c1_52 = arith.constant 1 : index
      %c95 = arith.constant 95 : index
      %144 = memref.load %arg1[%c1_52, %c95] : memref<3x257xf32, #tpu.memory_space<smem>>
      %145 = vector.broadcast %144 : f32 to vector<24x128xf32>
      %146 = arith.mulf %145, %61 : vector<24x128xf32>
      %147 = arith.addf %143, %146 : vector<24x128xf32>
      %c127_i32 = arith.constant 127 : i32
      %148 = tpu.dynamic_rotate %58 by %c127_i32 dim 1 : vector<24x128xf32>, i32 -> vector<24x128xf32>
      %c127_i32_53 = arith.constant 127 : i32
      %149 = tpu.dynamic_rotate %61 by %c127_i32_53 dim 1 : vector<24x128xf32>, i32 -> vector<24x128xf32>
      %c1_54 = arith.constant 1 : index
      %c15 = arith.constant 15 : index
      %150 = memref.load %arg1[%c1_54, %c15] : memref<3x257xf32, #tpu.memory_space<smem>>
      %151 = vector.broadcast %150 : f32 to vector<24x128xf32>
      %152 = arith.mulf %151, %148 : vector<24x128xf32>
      %153 = arith.addf %139, %152 : vector<24x128xf32>
      %c1_55 = arith.constant 1 : index
      %c42 = arith.constant 42 : index
      %154 = memref.load %arg1[%c1_55, %c42] : memref<3x257xf32, #tpu.memory_space<smem>>
      %155 = vector.broadcast %154 : f32 to vector<24x128xf32>
      %156 = arith.mulf %155, %149 : vector<24x128xf32>
      %157 = arith.addf %153, %156 : vector<24x128xf32>
      %c1_56 = arith.constant 1 : index
      %c69 = arith.constant 69 : index
      %158 = memref.load %arg1[%c1_56, %c69] : memref<3x257xf32, #tpu.memory_space<smem>>
      %159 = vector.broadcast %158 : f32 to vector<24x128xf32>
      %160 = arith.mulf %159, %148 : vector<24x128xf32>
      %161 = arith.addf %147, %160 : vector<24x128xf32>
      %c1_57 = arith.constant 1 : index
      %c96 = arith.constant 96 : index
      %162 = memref.load %arg1[%c1_57, %c96] : memref<3x257xf32, #tpu.memory_space<smem>>
      %163 = vector.broadcast %162 : f32 to vector<24x128xf32>
      %164 = arith.mulf %163, %149 : vector<24x128xf32>
      %165 = arith.addf %161, %164 : vector<24x128xf32>
      %c119_i32 = arith.constant 119 : i32
      %166 = tpu.dynamic_rotate %58 by %c119_i32 dim 1 : vector<24x128xf32>, i32 -> vector<24x128xf32>
      %c119_i32_58 = arith.constant 119 : i32
      %167 = tpu.dynamic_rotate %61 by %c119_i32_58 dim 1 : vector<24x128xf32>, i32 -> vector<24x128xf32>
      %c1_59 = arith.constant 1 : index
      %c16 = arith.constant 16 : index
      %168 = memref.load %arg1[%c1_59, %c16] : memref<3x257xf32, #tpu.memory_space<smem>>
      %169 = vector.broadcast %168 : f32 to vector<24x128xf32>
      %170 = arith.mulf %169, %166 : vector<24x128xf32>
      %171 = arith.addf %157, %170 : vector<24x128xf32>
      %c1_60 = arith.constant 1 : index
      %c43 = arith.constant 43 : index
      %172 = memref.load %arg1[%c1_60, %c43] : memref<3x257xf32, #tpu.memory_space<smem>>
      %173 = vector.broadcast %172 : f32 to vector<24x128xf32>
      %174 = arith.mulf %173, %167 : vector<24x128xf32>
      %175 = arith.addf %171, %174 : vector<24x128xf32>
      %c1_61 = arith.constant 1 : index
      %c70 = arith.constant 70 : index
      %176 = memref.load %arg1[%c1_61, %c70] : memref<3x257xf32, #tpu.memory_space<smem>>
      %177 = vector.broadcast %176 : f32 to vector<24x128xf32>
      %178 = arith.mulf %177, %166 : vector<24x128xf32>
      %179 = arith.addf %165, %178 : vector<24x128xf32>
      %c1_62 = arith.constant 1 : index
      %c97 = arith.constant 97 : index
      %180 = memref.load %arg1[%c1_62, %c97] : memref<3x257xf32, #tpu.memory_space<smem>>
      %181 = vector.broadcast %180 : f32 to vector<24x128xf32>
      %182 = arith.mulf %181, %167 : vector<24x128xf32>
      %183 = arith.addf %179, %182 : vector<24x128xf32>
      %c118_i32 = arith.constant 118 : i32
      %184 = tpu.dynamic_rotate %58 by %c118_i32 dim 1 : vector<24x128xf32>, i32 -> vector<24x128xf32>
      %c118_i32_63 = arith.constant 118 : i32
      %185 = tpu.dynamic_rotate %61 by %c118_i32_63 dim 1 : vector<24x128xf32>, i32 -> vector<24x128xf32>
      %c1_64 = arith.constant 1 : index
      %c17 = arith.constant 17 : index
      %186 = memref.load %arg1[%c1_64, %c17] : memref<3x257xf32, #tpu.memory_space<smem>>
      %187 = vector.broadcast %186 : f32 to vector<24x128xf32>
      %188 = arith.mulf %187, %184 : vector<24x128xf32>
      %189 = arith.addf %175, %188 : vector<24x128xf32>
      %c1_65 = arith.constant 1 : index
      %c44 = arith.constant 44 : index
      %190 = memref.load %arg1[%c1_65, %c44] : memref<3x257xf32, #tpu.memory_space<smem>>
      %191 = vector.broadcast %190 : f32 to vector<24x128xf32>
      %192 = arith.mulf %191, %185 : vector<24x128xf32>
      %193 = arith.addf %189, %192 : vector<24x128xf32>
      %c1_66 = arith.constant 1 : index
      %c71 = arith.constant 71 : index
      %194 = memref.load %arg1[%c1_66, %c71] : memref<3x257xf32, #tpu.memory_space<smem>>
      %195 = vector.broadcast %194 : f32 to vector<24x128xf32>
      %196 = arith.mulf %195, %184 : vector<24x128xf32>
      %197 = arith.addf %183, %196 : vector<24x128xf32>
      %c1_67 = arith.constant 1 : index
      %c98 = arith.constant 98 : index
      %198 = memref.load %arg1[%c1_67, %c98] : memref<3x257xf32, #tpu.memory_space<smem>>
      %199 = vector.broadcast %198 : f32 to vector<24x128xf32>
      %200 = arith.mulf %199, %185 : vector<24x128xf32>
      %201 = arith.addf %197, %200 : vector<24x128xf32>
      %c117_i32 = arith.constant 117 : i32
      %202 = tpu.dynamic_rotate %58 by %c117_i32 dim 1 : vector<24x128xf32>, i32 -> vector<24x128xf32>
      %c117_i32_68 = arith.constant 117 : i32
      %203 = tpu.dynamic_rotate %61 by %c117_i32_68 dim 1 : vector<24x128xf32>, i32 -> vector<24x128xf32>
      %c1_69 = arith.constant 1 : index
      %c18 = arith.constant 18 : index
      %204 = memref.load %arg1[%c1_69, %c18] : memref<3x257xf32, #tpu.memory_space<smem>>
      %205 = vector.broadcast %204 : f32 to vector<24x128xf32>
      %206 = arith.mulf %205, %202 : vector<24x128xf32>
      %207 = arith.addf %193, %206 : vector<24x128xf32>
      %c1_70 = arith.constant 1 : index
      %c45 = arith.constant 45 : index
      %208 = memref.load %arg1[%c1_70, %c45] : memref<3x257xf32, #tpu.memory_space<smem>>
      %209 = vector.broadcast %208 : f32 to vector<24x128xf32>
      %210 = arith.mulf %209, %203 : vector<24x128xf32>
      %211 = arith.addf %207, %210 : vector<24x128xf32>
      %c1_71 = arith.constant 1 : index
      %c72 = arith.constant 72 : index
      %212 = memref.load %arg1[%c1_71, %c72] : memref<3x257xf32, #tpu.memory_space<smem>>
      %213 = vector.broadcast %212 : f32 to vector<24x128xf32>
      %214 = arith.mulf %213, %202 : vector<24x128xf32>
      %215 = arith.addf %201, %214 : vector<24x128xf32>
      %c1_72 = arith.constant 1 : index
      %c99 = arith.constant 99 : index
      %216 = memref.load %arg1[%c1_72, %c99] : memref<3x257xf32, #tpu.memory_space<smem>>
      %217 = vector.broadcast %216 : f32 to vector<24x128xf32>
      %218 = arith.mulf %217, %203 : vector<24x128xf32>
      %219 = arith.addf %215, %218 : vector<24x128xf32>
      %c11_i32_73 = arith.constant 11 : i32
      %220 = tpu.dynamic_rotate %54 by %c11_i32_73 dim 1 : vector<24x128xf32>, i32 -> vector<24x128xf32>
      %c11_i32_74 = arith.constant 11 : i32
      %221 = tpu.dynamic_rotate %55 by %c11_i32_74 dim 1 : vector<24x128xf32>, i32 -> vector<24x128xf32>
      %c1_75 = arith.constant 1 : index
      %c19 = arith.constant 19 : index
      %222 = memref.load %arg1[%c1_75, %c19] : memref<3x257xf32, #tpu.memory_space<smem>>
      %223 = vector.broadcast %222 : f32 to vector<24x128xf32>
      %224 = arith.mulf %223, %220 : vector<24x128xf32>
      %225 = arith.addf %211, %224 : vector<24x128xf32>
      %c1_76 = arith.constant 1 : index
      %c46 = arith.constant 46 : index
      %226 = memref.load %arg1[%c1_76, %c46] : memref<3x257xf32, #tpu.memory_space<smem>>
      %227 = vector.broadcast %226 : f32 to vector<24x128xf32>
      %228 = arith.mulf %227, %221 : vector<24x128xf32>
      %229 = arith.addf %225, %228 : vector<24x128xf32>
      %c1_77 = arith.constant 1 : index
      %c73 = arith.constant 73 : index
      %230 = memref.load %arg1[%c1_77, %c73] : memref<3x257xf32, #tpu.memory_space<smem>>
      %231 = vector.broadcast %230 : f32 to vector<24x128xf32>
      %232 = arith.mulf %231, %220 : vector<24x128xf32>
      %233 = arith.addf %219, %232 : vector<24x128xf32>
      %c1_78 = arith.constant 1 : index
      %c100 = arith.constant 100 : index
      %234 = memref.load %arg1[%c1_78, %c100] : memref<3x257xf32, #tpu.memory_space<smem>>
      %235 = vector.broadcast %234 : f32 to vector<24x128xf32>
      %236 = arith.mulf %235, %221 : vector<24x128xf32>
      %237 = arith.addf %233, %236 : vector<24x128xf32>
      %c10_i32_79 = arith.constant 10 : i32
      %238 = tpu.dynamic_rotate %54 by %c10_i32_79 dim 1 : vector<24x128xf32>, i32 -> vector<24x128xf32>
      %c10_i32_80 = arith.constant 10 : i32
      %239 = tpu.dynamic_rotate %55 by %c10_i32_80 dim 1 : vector<24x128xf32>, i32 -> vector<24x128xf32>
      %c1_81 = arith.constant 1 : index
      %c20 = arith.constant 20 : index
      %240 = memref.load %arg1[%c1_81, %c20] : memref<3x257xf32, #tpu.memory_space<smem>>
      %241 = vector.broadcast %240 : f32 to vector<24x128xf32>
      %242 = arith.mulf %241, %238 : vector<24x128xf32>
      %243 = arith.addf %229, %242 : vector<24x128xf32>
      %c1_82 = arith.constant 1 : index
      %c47 = arith.constant 47 : index
      %244 = memref.load %arg1[%c1_82, %c47] : memref<3x257xf32, #tpu.memory_space<smem>>
      %245 = vector.broadcast %244 : f32 to vector<24x128xf32>
      %246 = arith.mulf %245, %239 : vector<24x128xf32>
      %247 = arith.addf %243, %246 : vector<24x128xf32>
      %c1_83 = arith.constant 1 : index
      %c74 = arith.constant 74 : index
      %248 = memref.load %arg1[%c1_83, %c74] : memref<3x257xf32, #tpu.memory_space<smem>>
      %249 = vector.broadcast %248 : f32 to vector<24x128xf32>
      %250 = arith.mulf %249, %238 : vector<24x128xf32>
      %251 = arith.addf %237, %250 : vector<24x128xf32>
      %c1_84 = arith.constant 1 : index
      %c101 = arith.constant 101 : index
      %252 = memref.load %arg1[%c1_84, %c101] : memref<3x257xf32, #tpu.memory_space<smem>>
      %253 = vector.broadcast %252 : f32 to vector<24x128xf32>
      %254 = arith.mulf %253, %239 : vector<24x128xf32>
      %255 = arith.addf %251, %254 : vector<24x128xf32>
      %c9_i32_85 = arith.constant 9 : i32
      %256 = tpu.dynamic_rotate %54 by %c9_i32_85 dim 1 : vector<24x128xf32>, i32 -> vector<24x128xf32>
      %c9_i32_86 = arith.constant 9 : i32
      %257 = tpu.dynamic_rotate %55 by %c9_i32_86 dim 1 : vector<24x128xf32>, i32 -> vector<24x128xf32>
      %c1_87 = arith.constant 1 : index
      %c21 = arith.constant 21 : index
      %258 = memref.load %arg1[%c1_87, %c21] : memref<3x257xf32, #tpu.memory_space<smem>>
      %259 = vector.broadcast %258 : f32 to vector<24x128xf32>
      %260 = arith.mulf %259, %256 : vector<24x128xf32>
      %261 = arith.addf %247, %260 : vector<24x128xf32>
      %c1_88 = arith.constant 1 : index
      %c48 = arith.constant 48 : index
      %262 = memref.load %arg1[%c1_88, %c48] : memref<3x257xf32, #tpu.memory_space<smem>>
      %263 = vector.broadcast %262 : f32 to vector<24x128xf32>
      %264 = arith.mulf %263, %257 : vector<24x128xf32>
      %265 = arith.addf %261, %264 : vector<24x128xf32>
      %c1_89 = arith.constant 1 : index
      %c75 = arith.constant 75 : index
      %266 = memref.load %arg1[%c1_89, %c75] : memref<3x257xf32, #tpu.memory_space<smem>>
      %267 = vector.broadcast %266 : f32 to vector<24x128xf32>
      %268 = arith.mulf %267, %256 : vector<24x128xf32>
      %269 = arith.addf %255, %268 : vector<24x128xf32>
      %c1_90 = arith.constant 1 : index
      %c102 = arith.constant 102 : index
      %270 = memref.load %arg1[%c1_90, %c102] : memref<3x257xf32, #tpu.memory_space<smem>>
      %271 = vector.broadcast %270 : f32 to vector<24x128xf32>
      %272 = arith.mulf %271, %257 : vector<24x128xf32>
      %273 = arith.addf %269, %272 : vector<24x128xf32>
      %c1_i32_91 = arith.constant 1 : i32
      %274 = tpu.dynamic_rotate %54 by %c1_i32_91 dim 1 : vector<24x128xf32>, i32 -> vector<24x128xf32>
      %c1_i32_92 = arith.constant 1 : i32
      %275 = tpu.dynamic_rotate %55 by %c1_i32_92 dim 1 : vector<24x128xf32>, i32 -> vector<24x128xf32>
      %c1_93 = arith.constant 1 : index
      %c22 = arith.constant 22 : index
      %276 = memref.load %arg1[%c1_93, %c22] : memref<3x257xf32, #tpu.memory_space<smem>>
      %277 = vector.broadcast %276 : f32 to vector<24x128xf32>
      %278 = arith.mulf %277, %274 : vector<24x128xf32>
      %279 = arith.addf %265, %278 : vector<24x128xf32>
      %c1_94 = arith.constant 1 : index
      %c49 = arith.constant 49 : index
      %280 = memref.load %arg1[%c1_94, %c49] : memref<3x257xf32, #tpu.memory_space<smem>>
      %281 = vector.broadcast %280 : f32 to vector<24x128xf32>
      %282 = arith.mulf %281, %275 : vector<24x128xf32>
      %283 = arith.addf %279, %282 : vector<24x128xf32>
      %c1_95 = arith.constant 1 : index
      %c76 = arith.constant 76 : index
      %284 = memref.load %arg1[%c1_95, %c76] : memref<3x257xf32, #tpu.memory_space<smem>>
      %285 = vector.broadcast %284 : f32 to vector<24x128xf32>
      %286 = arith.mulf %285, %274 : vector<24x128xf32>
      %287 = arith.addf %273, %286 : vector<24x128xf32>
      %c1_96 = arith.constant 1 : index
      %c103 = arith.constant 103 : index
      %288 = memref.load %arg1[%c1_96, %c103] : memref<3x257xf32, #tpu.memory_space<smem>>
      %289 = vector.broadcast %288 : f32 to vector<24x128xf32>
      %290 = arith.mulf %289, %275 : vector<24x128xf32>
      %291 = arith.addf %287, %290 : vector<24x128xf32>
      %c1_97 = arith.constant 1 : index
      %c23 = arith.constant 23 : index
      %292 = memref.load %arg1[%c1_97, %c23] : memref<3x257xf32, #tpu.memory_space<smem>>
      %293 = vector.broadcast %292 : f32 to vector<24x128xf32>
      %294 = arith.mulf %293, %54 : vector<24x128xf32>
      %295 = arith.addf %283, %294 : vector<24x128xf32>
      %c1_98 = arith.constant 1 : index
      %c50 = arith.constant 50 : index
      %296 = memref.load %arg1[%c1_98, %c50] : memref<3x257xf32, #tpu.memory_space<smem>>
      %297 = vector.broadcast %296 : f32 to vector<24x128xf32>
      %298 = arith.mulf %297, %55 : vector<24x128xf32>
      %299 = arith.addf %295, %298 : vector<24x128xf32>
      %c1_99 = arith.constant 1 : index
      %c77 = arith.constant 77 : index
      %300 = memref.load %arg1[%c1_99, %c77] : memref<3x257xf32, #tpu.memory_space<smem>>
      %301 = vector.broadcast %300 : f32 to vector<24x128xf32>
      %302 = arith.mulf %301, %54 : vector<24x128xf32>
      %303 = arith.addf %291, %302 : vector<24x128xf32>
      %c1_100 = arith.constant 1 : index
      %c104 = arith.constant 104 : index
      %304 = memref.load %arg1[%c1_100, %c104] : memref<3x257xf32, #tpu.memory_space<smem>>
      %305 = vector.broadcast %304 : f32 to vector<24x128xf32>
      %306 = arith.mulf %305, %55 : vector<24x128xf32>
      %307 = arith.addf %303, %306 : vector<24x128xf32>
      %c127_i32_101 = arith.constant 127 : i32
      %308 = tpu.dynamic_rotate %54 by %c127_i32_101 dim 1 : vector<24x128xf32>, i32 -> vector<24x128xf32>
      %c127_i32_102 = arith.constant 127 : i32
      %309 = tpu.dynamic_rotate %55 by %c127_i32_102 dim 1 : vector<24x128xf32>, i32 -> vector<24x128xf32>
      %c1_103 = arith.constant 1 : index
      %c24 = arith.constant 24 : index
      %310 = memref.load %arg1[%c1_103, %c24] : memref<3x257xf32, #tpu.memory_space<smem>>
      %311 = vector.broadcast %310 : f32 to vector<24x128xf32>
      %312 = arith.mulf %311, %308 : vector<24x128xf32>
      %313 = arith.addf %299, %312 : vector<24x128xf32>
      %c1_104 = arith.constant 1 : index
      %c51 = arith.constant 51 : index
      %314 = memref.load %arg1[%c1_104, %c51] : memref<3x257xf32, #tpu.memory_space<smem>>
      %315 = vector.broadcast %314 : f32 to vector<24x128xf32>
      %316 = arith.mulf %315, %309 : vector<24x128xf32>
      %317 = arith.addf %313, %316 : vector<24x128xf32>
      %c1_105 = arith.constant 1 : index
      %c78 = arith.constant 78 : index
      %318 = memref.load %arg1[%c1_105, %c78] : memref<3x257xf32, #tpu.memory_space<smem>>
      %319 = vector.broadcast %318 : f32 to vector<24x128xf32>
      %320 = arith.mulf %319, %308 : vector<24x128xf32>
      %321 = arith.addf %307, %320 : vector<24x128xf32>
      %c1_106 = arith.constant 1 : index
      %c105 = arith.constant 105 : index
      %322 = memref.load %arg1[%c1_106, %c105] : memref<3x257xf32, #tpu.memory_space<smem>>
      %323 = vector.broadcast %322 : f32 to vector<24x128xf32>
      %324 = arith.mulf %323, %309 : vector<24x128xf32>
      %325 = arith.addf %321, %324 : vector<24x128xf32>
      %c119_i32_107 = arith.constant 119 : i32
      %326 = tpu.dynamic_rotate %54 by %c119_i32_107 dim 1 : vector<24x128xf32>, i32 -> vector<24x128xf32>
      %c119_i32_108 = arith.constant 119 : i32
      %327 = tpu.dynamic_rotate %55 by %c119_i32_108 dim 1 : vector<24x128xf32>, i32 -> vector<24x128xf32>
      %c1_109 = arith.constant 1 : index
      %c25 = arith.constant 25 : index
      %328 = memref.load %arg1[%c1_109, %c25] : memref<3x257xf32, #tpu.memory_space<smem>>
      %329 = vector.broadcast %328 : f32 to vector<24x128xf32>
      %330 = arith.mulf %329, %326 : vector<24x128xf32>
      %331 = arith.addf %317, %330 : vector<24x128xf32>
      %c1_110 = arith.constant 1 : index
      %c52 = arith.constant 52 : index
      %332 = memref.load %arg1[%c1_110, %c52] : memref<3x257xf32, #tpu.memory_space<smem>>
      %333 = vector.broadcast %332 : f32 to vector<24x128xf32>
      %334 = arith.mulf %333, %327 : vector<24x128xf32>
      %335 = arith.addf %331, %334 : vector<24x128xf32>
      %c1_111 = arith.constant 1 : index
      %c79 = arith.constant 79 : index
      %336 = memref.load %arg1[%c1_111, %c79] : memref<3x257xf32, #tpu.memory_space<smem>>
      %337 = vector.broadcast %336 : f32 to vector<24x128xf32>
      %338 = arith.mulf %337, %326 : vector<24x128xf32>
      %339 = arith.addf %325, %338 : vector<24x128xf32>
      %c1_112 = arith.constant 1 : index
      %c106 = arith.constant 106 : index
      %340 = memref.load %arg1[%c1_112, %c106] : memref<3x257xf32, #tpu.memory_space<smem>>
      %341 = vector.broadcast %340 : f32 to vector<24x128xf32>
      %342 = arith.mulf %341, %327 : vector<24x128xf32>
      %343 = arith.addf %339, %342 : vector<24x128xf32>
      %c118_i32_113 = arith.constant 118 : i32
      %344 = tpu.dynamic_rotate %54 by %c118_i32_113 dim 1 : vector<24x128xf32>, i32 -> vector<24x128xf32>
      %c118_i32_114 = arith.constant 118 : i32
      %345 = tpu.dynamic_rotate %55 by %c118_i32_114 dim 1 : vector<24x128xf32>, i32 -> vector<24x128xf32>
      %c1_115 = arith.constant 1 : index
      %c26 = arith.constant 26 : index
      %346 = memref.load %arg1[%c1_115, %c26] : memref<3x257xf32, #tpu.memory_space<smem>>
      %347 = vector.broadcast %346 : f32 to vector<24x128xf32>
      %348 = arith.mulf %347, %344 : vector<24x128xf32>
      %349 = arith.addf %335, %348 : vector<24x128xf32>
      %c1_116 = arith.constant 1 : index
      %c53 = arith.constant 53 : index
      %350 = memref.load %arg1[%c1_116, %c53] : memref<3x257xf32, #tpu.memory_space<smem>>
      %351 = vector.broadcast %350 : f32 to vector<24x128xf32>
      %352 = arith.mulf %351, %345 : vector<24x128xf32>
      %353 = arith.addf %349, %352 : vector<24x128xf32>
      %c1_117 = arith.constant 1 : index
      %c80 = arith.constant 80 : index
      %354 = memref.load %arg1[%c1_117, %c80] : memref<3x257xf32, #tpu.memory_space<smem>>
      %355 = vector.broadcast %354 : f32 to vector<24x128xf32>
      %356 = arith.mulf %355, %344 : vector<24x128xf32>
      %357 = arith.addf %343, %356 : vector<24x128xf32>
      %c1_118 = arith.constant 1 : index
      %c107 = arith.constant 107 : index
      %358 = memref.load %arg1[%c1_118, %c107] : memref<3x257xf32, #tpu.memory_space<smem>>
      %359 = vector.broadcast %358 : f32 to vector<24x128xf32>
      %360 = arith.mulf %359, %345 : vector<24x128xf32>
      %361 = arith.addf %357, %360 : vector<24x128xf32>
      %c117_i32_119 = arith.constant 117 : i32
      %362 = tpu.dynamic_rotate %54 by %c117_i32_119 dim 1 : vector<24x128xf32>, i32 -> vector<24x128xf32>
      %c117_i32_120 = arith.constant 117 : i32
      %363 = tpu.dynamic_rotate %55 by %c117_i32_120 dim 1 : vector<24x128xf32>, i32 -> vector<24x128xf32>
      %c1_121 = arith.constant 1 : index
      %c27 = arith.constant 27 : index
      %364 = memref.load %arg1[%c1_121, %c27] : memref<3x257xf32, #tpu.memory_space<smem>>
      %365 = vector.broadcast %364 : f32 to vector<24x128xf32>
      %366 = arith.mulf %365, %362 : vector<24x128xf32>
      %367 = arith.addf %353, %366 : vector<24x128xf32>
      %c1_122 = arith.constant 1 : index
      %c54 = arith.constant 54 : index
      %368 = memref.load %arg1[%c1_122, %c54] : memref<3x257xf32, #tpu.memory_space<smem>>
      %369 = vector.broadcast %368 : f32 to vector<24x128xf32>
      %370 = arith.mulf %369, %363 : vector<24x128xf32>
      %371 = arith.addf %367, %370 : vector<24x128xf32>
      %c1_123 = arith.constant 1 : index
      %c81 = arith.constant 81 : index
      %372 = memref.load %arg1[%c1_123, %c81] : memref<3x257xf32, #tpu.memory_space<smem>>
      %373 = vector.broadcast %372 : f32 to vector<24x128xf32>
      %374 = arith.mulf %373, %362 : vector<24x128xf32>
      %375 = arith.addf %361, %374 : vector<24x128xf32>
      %c1_124 = arith.constant 1 : index
      %c108 = arith.constant 108 : index
      %376 = memref.load %arg1[%c1_124, %c108] : memref<3x257xf32, #tpu.memory_space<smem>>
      %377 = vector.broadcast %376 : f32 to vector<24x128xf32>
      %378 = arith.mulf %377, %363 : vector<24x128xf32>
      %379 = arith.addf %375, %378 : vector<24x128xf32>
      %380 = vector.extract_strided_slice %54 {offsets = [1, 0], sizes = [23, 128], strides = [1, 1]} : vector<24x128xf32> to vector<23x128xf32>
      %cst_125 = arith.constant 0.000000e+00 : f32
      %381 = vector.broadcast %cst_125 : f32 to vector<1x128xf32>
      %382 = tpu.concatenate %380, %381 in 0 : vector<23x128xf32>, vector<1x128xf32> -> vector<24x128xf32>
      %383 = vector.extract_strided_slice %55 {offsets = [1, 0], sizes = [23, 128], strides = [1, 1]} : vector<24x128xf32> to vector<23x128xf32>
      %cst_126 = arith.constant 0.000000e+00 : f32
      %384 = vector.broadcast %cst_126 : f32 to vector<1x128xf32>
      %385 = tpu.concatenate %383, %384 in 0 : vector<23x128xf32>, vector<1x128xf32> -> vector<24x128xf32>
      %c11_i32_127 = arith.constant 11 : i32
      %386 = tpu.dynamic_rotate %382 by %c11_i32_127 dim 1 : vector<24x128xf32>, i32 -> vector<24x128xf32>
      %c11_i32_128 = arith.constant 11 : i32
      %387 = tpu.dynamic_rotate %385 by %c11_i32_128 dim 1 : vector<24x128xf32>, i32 -> vector<24x128xf32>
      %c1_129 = arith.constant 1 : index
      %c28 = arith.constant 28 : index
      %388 = memref.load %arg1[%c1_129, %c28] : memref<3x257xf32, #tpu.memory_space<smem>>
      %389 = vector.broadcast %388 : f32 to vector<24x128xf32>
      %390 = arith.mulf %389, %386 : vector<24x128xf32>
      %391 = arith.addf %371, %390 : vector<24x128xf32>
      %c1_130 = arith.constant 1 : index
      %c55 = arith.constant 55 : index
      %392 = memref.load %arg1[%c1_130, %c55] : memref<3x257xf32, #tpu.memory_space<smem>>
      %393 = vector.broadcast %392 : f32 to vector<24x128xf32>
      %394 = arith.mulf %393, %387 : vector<24x128xf32>
      %395 = arith.addf %391, %394 : vector<24x128xf32>
      %c1_131 = arith.constant 1 : index
      %c82 = arith.constant 82 : index
      %396 = memref.load %arg1[%c1_131, %c82] : memref<3x257xf32, #tpu.memory_space<smem>>
      %397 = vector.broadcast %396 : f32 to vector<24x128xf32>
      %398 = arith.mulf %397, %386 : vector<24x128xf32>
      %399 = arith.addf %379, %398 : vector<24x128xf32>
      %c1_132 = arith.constant 1 : index
      %c109 = arith.constant 109 : index
      %400 = memref.load %arg1[%c1_132, %c109] : memref<3x257xf32, #tpu.memory_space<smem>>
      %401 = vector.broadcast %400 : f32 to vector<24x128xf32>
      %402 = arith.mulf %401, %387 : vector<24x128xf32>
      %403 = arith.addf %399, %402 : vector<24x128xf32>
      %c10_i32_133 = arith.constant 10 : i32
      %404 = tpu.dynamic_rotate %382 by %c10_i32_133 dim 1 : vector<24x128xf32>, i32 -> vector<24x128xf32>
      %c10_i32_134 = arith.constant 10 : i32
      %405 = tpu.dynamic_rotate %385 by %c10_i32_134 dim 1 : vector<24x128xf32>, i32 -> vector<24x128xf32>
      %c1_135 = arith.constant 1 : index
      %c29 = arith.constant 29 : index
      %406 = memref.load %arg1[%c1_135, %c29] : memref<3x257xf32, #tpu.memory_space<smem>>
      %407 = vector.broadcast %406 : f32 to vector<24x128xf32>
      %408 = arith.mulf %407, %404 : vector<24x128xf32>
      %409 = arith.addf %395, %408 : vector<24x128xf32>
      %c1_136 = arith.constant 1 : index
      %c56 = arith.constant 56 : index
      %410 = memref.load %arg1[%c1_136, %c56] : memref<3x257xf32, #tpu.memory_space<smem>>
      %411 = vector.broadcast %410 : f32 to vector<24x128xf32>
      %412 = arith.mulf %411, %405 : vector<24x128xf32>
      %413 = arith.addf %409, %412 : vector<24x128xf32>
      %c1_137 = arith.constant 1 : index
      %c83 = arith.constant 83 : index
      %414 = memref.load %arg1[%c1_137, %c83] : memref<3x257xf32, #tpu.memory_space<smem>>
      %415 = vector.broadcast %414 : f32 to vector<24x128xf32>
      %416 = arith.mulf %415, %404 : vector<24x128xf32>
      %417 = arith.addf %403, %416 : vector<24x128xf32>
      %c1_138 = arith.constant 1 : index
      %c110 = arith.constant 110 : index
      %418 = memref.load %arg1[%c1_138, %c110] : memref<3x257xf32, #tpu.memory_space<smem>>
      %419 = vector.broadcast %418 : f32 to vector<24x128xf32>
      %420 = arith.mulf %419, %405 : vector<24x128xf32>
      %421 = arith.addf %417, %420 : vector<24x128xf32>
      %c9_i32_139 = arith.constant 9 : i32
      %422 = tpu.dynamic_rotate %382 by %c9_i32_139 dim 1 : vector<24x128xf32>, i32 -> vector<24x128xf32>
      %c9_i32_140 = arith.constant 9 : i32
      %423 = tpu.dynamic_rotate %385 by %c9_i32_140 dim 1 : vector<24x128xf32>, i32 -> vector<24x128xf32>
      %c1_141 = arith.constant 1 : index
      %c30 = arith.constant 30 : index
      %424 = memref.load %arg1[%c1_141, %c30] : memref<3x257xf32, #tpu.memory_space<smem>>
      %425 = vector.broadcast %424 : f32 to vector<24x128xf32>
      %426 = arith.mulf %425, %422 : vector<24x128xf32>
      %427 = arith.addf %413, %426 : vector<24x128xf32>
      %c1_142 = arith.constant 1 : index
      %c57 = arith.constant 57 : index
      %428 = memref.load %arg1[%c1_142, %c57] : memref<3x257xf32, #tpu.memory_space<smem>>
      %429 = vector.broadcast %428 : f32 to vector<24x128xf32>
      %430 = arith.mulf %429, %423 : vector<24x128xf32>
      %431 = arith.addf %427, %430 : vector<24x128xf32>
      %c1_143 = arith.constant 1 : index
      %c84 = arith.constant 84 : index
      %432 = memref.load %arg1[%c1_143, %c84] : memref<3x257xf32, #tpu.memory_space<smem>>
      %433 = vector.broadcast %432 : f32 to vector<24x128xf32>
      %434 = arith.mulf %433, %422 : vector<24x128xf32>
      %435 = arith.addf %421, %434 : vector<24x128xf32>
      %c1_144 = arith.constant 1 : index
      %c111 = arith.constant 111 : index
      %436 = memref.load %arg1[%c1_144, %c111] : memref<3x257xf32, #tpu.memory_space<smem>>
      %437 = vector.broadcast %436 : f32 to vector<24x128xf32>
      %438 = arith.mulf %437, %423 : vector<24x128xf32>
      %439 = arith.addf %435, %438 : vector<24x128xf32>
      %c1_i32_145 = arith.constant 1 : i32
      %440 = tpu.dynamic_rotate %382 by %c1_i32_145 dim 1 : vector<24x128xf32>, i32 -> vector<24x128xf32>
      %c1_i32_146 = arith.constant 1 : i32
      %441 = tpu.dynamic_rotate %385 by %c1_i32_146 dim 1 : vector<24x128xf32>, i32 -> vector<24x128xf32>
      %c1_147 = arith.constant 1 : index
      %c31 = arith.constant 31 : index
      %442 = memref.load %arg1[%c1_147, %c31] : memref<3x257xf32, #tpu.memory_space<smem>>
      %443 = vector.broadcast %442 : f32 to vector<24x128xf32>
      %444 = arith.mulf %443, %440 : vector<24x128xf32>
      %445 = arith.addf %431, %444 : vector<24x128xf32>
      %c1_148 = arith.constant 1 : index
      %c58 = arith.constant 58 : index
      %446 = memref.load %arg1[%c1_148, %c58] : memref<3x257xf32, #tpu.memory_space<smem>>
      %447 = vector.broadcast %446 : f32 to vector<24x128xf32>
      %448 = arith.mulf %447, %441 : vector<24x128xf32>
      %449 = arith.addf %445, %448 : vector<24x128xf32>
      %c1_149 = arith.constant 1 : index
      %c85 = arith.constant 85 : index
      %450 = memref.load %arg1[%c1_149, %c85] : memref<3x257xf32, #tpu.memory_space<smem>>
      %451 = vector.broadcast %450 : f32 to vector<24x128xf32>
      %452 = arith.mulf %451, %440 : vector<24x128xf32>
      %453 = arith.addf %439, %452 : vector<24x128xf32>
      %c1_150 = arith.constant 1 : index
      %c112 = arith.constant 112 : index
      %454 = memref.load %arg1[%c1_150, %c112] : memref<3x257xf32, #tpu.memory_space<smem>>
      %455 = vector.broadcast %454 : f32 to vector<24x128xf32>
      %456 = arith.mulf %455, %441 : vector<24x128xf32>
      %457 = arith.addf %453, %456 : vector<24x128xf32>
      %c1_151 = arith.constant 1 : index
      %c32 = arith.constant 32 : index
      %458 = memref.load %arg1[%c1_151, %c32] : memref<3x257xf32, #tpu.memory_space<smem>>
      %459 = vector.broadcast %458 : f32 to vector<24x128xf32>
      %460 = arith.mulf %459, %382 : vector<24x128xf32>
      %461 = arith.addf %449, %460 : vector<24x128xf32>
      %c1_152 = arith.constant 1 : index
      %c59 = arith.constant 59 : index
      %462 = memref.load %arg1[%c1_152, %c59] : memref<3x257xf32, #tpu.memory_space<smem>>
      %463 = vector.broadcast %462 : f32 to vector<24x128xf32>
      %464 = arith.mulf %463, %385 : vector<24x128xf32>
      %465 = arith.addf %461, %464 : vector<24x128xf32>
      %c1_153 = arith.constant 1 : index
      %c86 = arith.constant 86 : index
      %466 = memref.load %arg1[%c1_153, %c86] : memref<3x257xf32, #tpu.memory_space<smem>>
      %467 = vector.broadcast %466 : f32 to vector<24x128xf32>
      %468 = arith.mulf %467, %382 : vector<24x128xf32>
      %469 = arith.addf %457, %468 : vector<24x128xf32>
      %c1_154 = arith.constant 1 : index
      %c113 = arith.constant 113 : index
      %470 = memref.load %arg1[%c1_154, %c113] : memref<3x257xf32, #tpu.memory_space<smem>>
      %471 = vector.broadcast %470 : f32 to vector<24x128xf32>
      %472 = arith.mulf %471, %385 : vector<24x128xf32>
      %473 = arith.addf %469, %472 : vector<24x128xf32>
      %c127_i32_155 = arith.constant 127 : i32
      %474 = tpu.dynamic_rotate %382 by %c127_i32_155 dim 1 : vector<24x128xf32>, i32 -> vector<24x128xf32>
      %c127_i32_156 = arith.constant 127 : i32
      %475 = tpu.dynamic_rotate %385 by %c127_i32_156 dim 1 : vector<24x128xf32>, i32 -> vector<24x128xf32>
      %c1_157 = arith.constant 1 : index
      %c33 = arith.constant 33 : index
      %476 = memref.load %arg1[%c1_157, %c33] : memref<3x257xf32, #tpu.memory_space<smem>>
      %477 = vector.broadcast %476 : f32 to vector<24x128xf32>
      %478 = arith.mulf %477, %474 : vector<24x128xf32>
      %479 = arith.addf %465, %478 : vector<24x128xf32>
      %c1_158 = arith.constant 1 : index
      %c60 = arith.constant 60 : index
      %480 = memref.load %arg1[%c1_158, %c60] : memref<3x257xf32, #tpu.memory_space<smem>>
      %481 = vector.broadcast %480 : f32 to vector<24x128xf32>
      %482 = arith.mulf %481, %475 : vector<24x128xf32>
      %483 = arith.addf %479, %482 : vector<24x128xf32>
      %c1_159 = arith.constant 1 : index
      %c87 = arith.constant 87 : index
      %484 = memref.load %arg1[%c1_159, %c87] : memref<3x257xf32, #tpu.memory_space<smem>>
      %485 = vector.broadcast %484 : f32 to vector<24x128xf32>
      %486 = arith.mulf %485, %474 : vector<24x128xf32>
      %487 = arith.addf %473, %486 : vector<24x128xf32>
      %c1_160 = arith.constant 1 : index
      %c114 = arith.constant 114 : index
      %488 = memref.load %arg1[%c1_160, %c114] : memref<3x257xf32, #tpu.memory_space<smem>>
      %489 = vector.broadcast %488 : f32 to vector<24x128xf32>
      %490 = arith.mulf %489, %475 : vector<24x128xf32>
      %491 = arith.addf %487, %490 : vector<24x128xf32>
      %c119_i32_161 = arith.constant 119 : i32
      %492 = tpu.dynamic_rotate %382 by %c119_i32_161 dim 1 : vector<24x128xf32>, i32 -> vector<24x128xf32>
      %c119_i32_162 = arith.constant 119 : i32
      %493 = tpu.dynamic_rotate %385 by %c119_i32_162 dim 1 : vector<24x128xf32>, i32 -> vector<24x128xf32>
      %c1_163 = arith.constant 1 : index
      %c34 = arith.constant 34 : index
      %494 = memref.load %arg1[%c1_163, %c34] : memref<3x257xf32, #tpu.memory_space<smem>>
      %495 = vector.broadcast %494 : f32 to vector<24x128xf32>
      %496 = arith.mulf %495, %492 : vector<24x128xf32>
      %497 = arith.addf %483, %496 : vector<24x128xf32>
      %c1_164 = arith.constant 1 : index
      %c61 = arith.constant 61 : index
      %498 = memref.load %arg1[%c1_164, %c61] : memref<3x257xf32, #tpu.memory_space<smem>>
      %499 = vector.broadcast %498 : f32 to vector<24x128xf32>
      %500 = arith.mulf %499, %493 : vector<24x128xf32>
      %501 = arith.addf %497, %500 : vector<24x128xf32>
      %c1_165 = arith.constant 1 : index
      %c88 = arith.constant 88 : index
      %502 = memref.load %arg1[%c1_165, %c88] : memref<3x257xf32, #tpu.memory_space<smem>>
      %503 = vector.broadcast %502 : f32 to vector<24x128xf32>
      %504 = arith.mulf %503, %492 : vector<24x128xf32>
      %505 = arith.addf %491, %504 : vector<24x128xf32>
      %c1_166 = arith.constant 1 : index
      %c115 = arith.constant 115 : index
      %506 = memref.load %arg1[%c1_166, %c115] : memref<3x257xf32, #tpu.memory_space<smem>>
      %507 = vector.broadcast %506 : f32 to vector<24x128xf32>
      %508 = arith.mulf %507, %493 : vector<24x128xf32>
      %509 = arith.addf %505, %508 : vector<24x128xf32>
      %c118_i32_167 = arith.constant 118 : i32
      %510 = tpu.dynamic_rotate %382 by %c118_i32_167 dim 1 : vector<24x128xf32>, i32 -> vector<24x128xf32>
      %c118_i32_168 = arith.constant 118 : i32
      %511 = tpu.dynamic_rotate %385 by %c118_i32_168 dim 1 : vector<24x128xf32>, i32 -> vector<24x128xf32>
      %c1_169 = arith.constant 1 : index
      %c35 = arith.constant 35 : index
      %512 = memref.load %arg1[%c1_169, %c35] : memref<3x257xf32, #tpu.memory_space<smem>>
      %513 = vector.broadcast %512 : f32 to vector<24x128xf32>
      %514 = arith.mulf %513, %510 : vector<24x128xf32>
      %515 = arith.addf %501, %514 : vector<24x128xf32>
      %c1_170 = arith.constant 1 : index
      %c62 = arith.constant 62 : index
      %516 = memref.load %arg1[%c1_170, %c62] : memref<3x257xf32, #tpu.memory_space<smem>>
      %517 = vector.broadcast %516 : f32 to vector<24x128xf32>
      %518 = arith.mulf %517, %511 : vector<24x128xf32>
      %519 = arith.addf %515, %518 : vector<24x128xf32>
      %c1_171 = arith.constant 1 : index
      %c89 = arith.constant 89 : index
      %520 = memref.load %arg1[%c1_171, %c89] : memref<3x257xf32, #tpu.memory_space<smem>>
      %521 = vector.broadcast %520 : f32 to vector<24x128xf32>
      %522 = arith.mulf %521, %510 : vector<24x128xf32>
      %523 = arith.addf %509, %522 : vector<24x128xf32>
      %c1_172 = arith.constant 1 : index
      %c116 = arith.constant 116 : index
      %524 = memref.load %arg1[%c1_172, %c116] : memref<3x257xf32, #tpu.memory_space<smem>>
      %525 = vector.broadcast %524 : f32 to vector<24x128xf32>
      %526 = arith.mulf %525, %511 : vector<24x128xf32>
      %527 = arith.addf %523, %526 : vector<24x128xf32>
      %c117_i32_173 = arith.constant 117 : i32
      %528 = tpu.dynamic_rotate %382 by %c117_i32_173 dim 1 : vector<24x128xf32>, i32 -> vector<24x128xf32>
      %c117_i32_174 = arith.constant 117 : i32
      %529 = tpu.dynamic_rotate %385 by %c117_i32_174 dim 1 : vector<24x128xf32>, i32 -> vector<24x128xf32>
      %c1_175 = arith.constant 1 : index
      %c36 = arith.constant 36 : index
      %530 = memref.load %arg1[%c1_175, %c36] : memref<3x257xf32, #tpu.memory_space<smem>>
      %531 = vector.broadcast %530 : f32 to vector<24x128xf32>
      %532 = arith.mulf %531, %528 : vector<24x128xf32>
      %533 = arith.addf %519, %532 : vector<24x128xf32>
      %c1_176 = arith.constant 1 : index
      %c63 = arith.constant 63 : index
      %534 = memref.load %arg1[%c1_176, %c63] : memref<3x257xf32, #tpu.memory_space<smem>>
      %535 = vector.broadcast %534 : f32 to vector<24x128xf32>
      %536 = arith.mulf %535, %529 : vector<24x128xf32>
      %537 = arith.addf %533, %536 : vector<24x128xf32>
      %c1_177 = arith.constant 1 : index
      %c90 = arith.constant 90 : index
      %538 = memref.load %arg1[%c1_177, %c90] : memref<3x257xf32, #tpu.memory_space<smem>>
      %539 = vector.broadcast %538 : f32 to vector<24x128xf32>
      %540 = arith.mulf %539, %528 : vector<24x128xf32>
      %541 = arith.addf %527, %540 : vector<24x128xf32>
      %c1_178 = arith.constant 1 : index
      %c117 = arith.constant 117 : index
      %542 = memref.load %arg1[%c1_178, %c117] : memref<3x257xf32, #tpu.memory_space<smem>>
      %543 = vector.broadcast %542 : f32 to vector<24x128xf32>
      %544 = arith.mulf %543, %529 : vector<24x128xf32>
      %545 = arith.addf %541, %544 : vector<24x128xf32>
      %c1_179 = arith.constant 1 : index
      %c118 = arith.constant 118 : index
      %546 = memref.load %arg1[%c1_179, %c118] : memref<3x257xf32, #tpu.memory_space<smem>>
      %547 = vector.broadcast %546 : f32 to vector<24x128xf32>
      %548 = arith.addf %537, %547 : vector<24x128xf32>
      %c1_180 = arith.constant 1 : index
      %c119 = arith.constant 119 : index
      %549 = memref.load %arg1[%c1_180, %c119] : memref<3x257xf32, #tpu.memory_space<smem>>
      %550 = vector.broadcast %549 : f32 to vector<24x128xf32>
      %551 = arith.addf %545, %550 : vector<24x128xf32>
      %c1_181 = arith.constant 1 : index
      %c120 = arith.constant 120 : index
      %552 = memref.load %arg1[%c1_181, %c120] : memref<3x257xf32, #tpu.memory_space<smem>>
      %553 = vector.broadcast %552 : f32 to vector<24x128xf32>
      %554 = arith.mulf %553, %548 : vector<24x128xf32>
      %c1_182 = arith.constant 1 : index
      %c121 = arith.constant 121 : index
      %555 = memref.load %arg1[%c1_182, %c121] : memref<3x257xf32, #tpu.memory_space<smem>>
      %556 = vector.broadcast %555 : f32 to vector<24x128xf32>
      %557 = arith.mulf %556, %551 : vector<24x128xf32>
      %558 = arith.addf %554, %557 : vector<24x128xf32>
      %c1_183 = arith.constant 1 : index
      %c124 = arith.constant 124 : index
      %559 = memref.load %arg1[%c1_183, %c124] : memref<3x257xf32, #tpu.memory_space<smem>>
      %560 = vector.broadcast %559 : f32 to vector<24x128xf32>
      %561 = arith.addf %558, %560 : vector<24x128xf32>
      %c1_184 = arith.constant 1 : index
      %c122 = arith.constant 122 : index
      %562 = memref.load %arg1[%c1_184, %c122] : memref<3x257xf32, #tpu.memory_space<smem>>
      %563 = vector.broadcast %562 : f32 to vector<24x128xf32>
      %564 = arith.mulf %563, %548 : vector<24x128xf32>
      %c1_185 = arith.constant 1 : index
      %c123 = arith.constant 123 : index
      %565 = memref.load %arg1[%c1_185, %c123] : memref<3x257xf32, #tpu.memory_space<smem>>
      %566 = vector.broadcast %565 : f32 to vector<24x128xf32>
      %567 = arith.mulf %566, %551 : vector<24x128xf32>
      %568 = arith.addf %564, %567 : vector<24x128xf32>
      %c1_186 = arith.constant 1 : index
      %c125 = arith.constant 125 : index
      %569 = memref.load %arg1[%c1_186, %c125] : memref<3x257xf32, #tpu.memory_space<smem>>
      %570 = vector.broadcast %569 : f32 to vector<24x128xf32>
      %571 = arith.addf %568, %570 : vector<24x128xf32>
      %572 = arith.mulf %561, %0 : vector<24x128xf32>
      %573 = arith.mulf %571, %0 : vector<24x128xf32>
      %574 = vector.shape_cast %572 : vector<24x128xf32> to vector<1x24x128xf32>
      %cst_187 = arith.constant dense<0.000000e+00> : vector<1xf32>
      %575 = vector.multi_reduction <add>, %574, %cst_187 [1, 2] : vector<1x24x128xf32> to vector<1xf32>
      %576 = vector.shape_cast %575 : vector<1xf32> to vector<1x1x1xf32>
      %577 = vector.extract %576[0, 0, 0] : f32 from vector<1x1x1xf32>
      %cst_188 = arith.constant 9.765625E-4 : f32
      %578 = arith.mulf %577, %cst_188 : f32
      %579 = arith.mulf %572, %572 : vector<24x128xf32>
      %580 = vector.shape_cast %579 : vector<24x128xf32> to vector<1x24x128xf32>
      %cst_189 = arith.constant dense<0.000000e+00> : vector<1xf32>
      %581 = vector.multi_reduction <add>, %580, %cst_189 [1, 2] : vector<1x24x128xf32> to vector<1xf32>
      %582 = vector.shape_cast %581 : vector<1xf32> to vector<1x1x1xf32>
      %583 = vector.extract %582[0, 0, 0] : f32 from vector<1x1x1xf32>
      %cst_190 = arith.constant 9.765625E-4 : f32
      %584 = arith.mulf %583, %cst_190 : f32
      %585 = arith.mulf %578, %578 : f32
      %586 = arith.subf %584, %585 : f32
      %c1_191 = arith.constant 1 : index
      %c126 = arith.constant 126 : index
      %587 = memref.load %arg1[%c1_191, %c126] : memref<3x257xf32, #tpu.memory_space<smem>>
      %cst_192 = arith.constant 9.99999974E-6 : f32
      %588 = arith.addf %586, %cst_192 : f32
      %589 = math.rsqrt %588 : f32
      %590 = arith.mulf %587, %589 : f32
      %c1_193 = arith.constant 1 : index
      %c128 = arith.constant 128 : index
      %591 = memref.load %arg1[%c1_193, %c128] : memref<3x257xf32, #tpu.memory_space<smem>>
      %592 = arith.mulf %578, %590 : f32
      %593 = arith.subf %591, %592 : f32
      %594 = vector.broadcast %590 : f32 to vector<24x128xf32>
      %595 = arith.mulf %572, %594 : vector<24x128xf32>
      %596 = vector.broadcast %593 : f32 to vector<24x128xf32>
      %597 = arith.addf %595, %596 : vector<24x128xf32>
      %cst_194 = arith.constant 0.000000e+00 : f32
      %598 = vector.broadcast %cst_194 : f32 to vector<24x128xf32>
      %599 = arith.maximumf %597, %598 : vector<24x128xf32>
      %600 = arith.mulf %599, %0 : vector<24x128xf32>
      %601 = vector.shape_cast %573 : vector<24x128xf32> to vector<1x24x128xf32>
      %cst_195 = arith.constant dense<0.000000e+00> : vector<1xf32>
      %602 = vector.multi_reduction <add>, %601, %cst_195 [1, 2] : vector<1x24x128xf32> to vector<1xf32>
      %603 = vector.shape_cast %602 : vector<1xf32> to vector<1x1x1xf32>
      %604 = vector.extract %603[0, 0, 0] : f32 from vector<1x1x1xf32>
      %cst_196 = arith.constant 9.765625E-4 : f32
      %605 = arith.mulf %604, %cst_196 : f32
      %606 = arith.mulf %573, %573 : vector<24x128xf32>
      %607 = vector.shape_cast %606 : vector<24x128xf32> to vector<1x24x128xf32>
      %cst_197 = arith.constant dense<0.000000e+00> : vector<1xf32>
      %608 = vector.multi_reduction <add>, %607, %cst_197 [1, 2] : vector<1x24x128xf32> to vector<1xf32>
      %609 = vector.shape_cast %608 : vector<1xf32> to vector<1x1x1xf32>
      %610 = vector.extract %609[0, 0, 0] : f32 from vector<1x1x1xf32>
      %cst_198 = arith.constant 9.765625E-4 : f32
      %611 = arith.mulf %610, %cst_198 : f32
      %612 = arith.mulf %605, %605 : f32
      %613 = arith.subf %611, %612 : f32
      %c1_199 = arith.constant 1 : index
      %c127 = arith.constant 127 : index
      %614 = memref.load %arg1[%c1_199, %c127] : memref<3x257xf32, #tpu.memory_space<smem>>
      %cst_200 = arith.constant 9.99999974E-6 : f32
      %615 = arith.addf %613, %cst_200 : f32
      %616 = math.rsqrt %615 : f32
      %617 = arith.mulf %614, %616 : f32
      %c1_201 = arith.constant 1 : index
      %c129 = arith.constant 129 : index
      %618 = memref.load %arg1[%c1_201, %c129] : memref<3x257xf32, #tpu.memory_space<smem>>
      %619 = arith.mulf %605, %617 : f32
      %620 = arith.subf %618, %619 : f32
      %621 = vector.broadcast %617 : f32 to vector<24x128xf32>
      %622 = arith.mulf %573, %621 : vector<24x128xf32>
      %623 = vector.broadcast %620 : f32 to vector<24x128xf32>
      %624 = arith.addf %622, %623 : vector<24x128xf32>
      %cst_202 = arith.constant 0.000000e+00 : f32
      %625 = vector.broadcast %cst_202 : f32 to vector<24x128xf32>
      %626 = arith.maximumf %624, %625 : vector<24x128xf32>
      %627 = arith.mulf %626, %0 : vector<24x128xf32>
      %c1_203 = arith.constant 1 : index
      %c130 = arith.constant 130 : index
      %628 = memref.load %arg1[%c1_203, %c130] : memref<3x257xf32, #tpu.memory_space<smem>>
      %629 = vector.broadcast %628 : f32 to vector<24x128xf32>
      %630 = arith.mulf %629, %600 : vector<24x128xf32>
      %c1_204 = arith.constant 1 : index
      %c131 = arith.constant 131 : index
      %631 = memref.load %arg1[%c1_204, %c131] : memref<3x257xf32, #tpu.memory_space<smem>>
      %632 = vector.broadcast %631 : f32 to vector<24x128xf32>
      %633 = arith.mulf %632, %627 : vector<24x128xf32>
      %634 = arith.addf %630, %633 : vector<24x128xf32>
      %c1_205 = arith.constant 1 : index
      %c134 = arith.constant 134 : index
      %635 = memref.load %arg1[%c1_205, %c134] : memref<3x257xf32, #tpu.memory_space<smem>>
      %636 = vector.broadcast %635 : f32 to vector<24x128xf32>
      %637 = arith.addf %634, %636 : vector<24x128xf32>
      %c1_206 = arith.constant 1 : index
      %c132 = arith.constant 132 : index
      %638 = memref.load %arg1[%c1_206, %c132] : memref<3x257xf32, #tpu.memory_space<smem>>
      %639 = vector.broadcast %638 : f32 to vector<24x128xf32>
      %640 = arith.mulf %639, %600 : vector<24x128xf32>
      %c1_207 = arith.constant 1 : index
      %c133 = arith.constant 133 : index
      %641 = memref.load %arg1[%c1_207, %c133] : memref<3x257xf32, #tpu.memory_space<smem>>
      %642 = vector.broadcast %641 : f32 to vector<24x128xf32>
      %643 = arith.mulf %642, %627 : vector<24x128xf32>
      %644 = arith.addf %640, %643 : vector<24x128xf32>
      %c1_208 = arith.constant 1 : index
      %c135 = arith.constant 135 : index
      %645 = memref.load %arg1[%c1_208, %c135] : memref<3x257xf32, #tpu.memory_space<smem>>
      %646 = vector.broadcast %645 : f32 to vector<24x128xf32>
      %647 = arith.addf %644, %646 : vector<24x128xf32>
      %648 = arith.mulf %637, %0 : vector<24x128xf32>
      %649 = arith.mulf %647, %0 : vector<24x128xf32>
      %cst_209 = arith.constant 0.000000e+00 : f32
      %650 = vector.broadcast %cst_209 : f32 to vector<1x128xf32>
      %651 = vector.extract_strided_slice %648 {offsets = [0, 0], sizes = [23, 128], strides = [1, 1]} : vector<24x128xf32> to vector<23x128xf32>
      %652 = tpu.concatenate %650, %651 in 0 : vector<1x128xf32>, vector<23x128xf32> -> vector<24x128xf32>
      %cst_210 = arith.constant 0.000000e+00 : f32
      %653 = vector.broadcast %cst_210 : f32 to vector<1x128xf32>
      %654 = vector.extract_strided_slice %649 {offsets = [0, 0], sizes = [23, 128], strides = [1, 1]} : vector<24x128xf32> to vector<23x128xf32>
      %655 = tpu.concatenate %653, %654 in 0 : vector<1x128xf32>, vector<23x128xf32> -> vector<24x128xf32>
      %c11_i32_211 = arith.constant 11 : i32
      %656 = tpu.dynamic_rotate %652 by %c11_i32_211 dim 1 : vector<24x128xf32>, i32 -> vector<24x128xf32>
      %c11_i32_212 = arith.constant 11 : i32
      %657 = tpu.dynamic_rotate %655 by %c11_i32_212 dim 1 : vector<24x128xf32>, i32 -> vector<24x128xf32>
      %c1_213 = arith.constant 1 : index
      %c136 = arith.constant 136 : index
      %658 = memref.load %arg1[%c1_213, %c136] : memref<3x257xf32, #tpu.memory_space<smem>>
      %659 = vector.broadcast %658 : f32 to vector<24x128xf32>
      %660 = arith.mulf %659, %656 : vector<24x128xf32>
      %c1_214 = arith.constant 1 : index
      %c163 = arith.constant 163 : index
      %661 = memref.load %arg1[%c1_214, %c163] : memref<3x257xf32, #tpu.memory_space<smem>>
      %662 = vector.broadcast %661 : f32 to vector<24x128xf32>
      %663 = arith.mulf %662, %657 : vector<24x128xf32>
      %664 = arith.addf %660, %663 : vector<24x128xf32>
      %c1_215 = arith.constant 1 : index
      %c190 = arith.constant 190 : index
      %665 = memref.load %arg1[%c1_215, %c190] : memref<3x257xf32, #tpu.memory_space<smem>>
      %666 = vector.broadcast %665 : f32 to vector<24x128xf32>
      %667 = arith.mulf %666, %656 : vector<24x128xf32>
      %c1_216 = arith.constant 1 : index
      %c217 = arith.constant 217 : index
      %668 = memref.load %arg1[%c1_216, %c217] : memref<3x257xf32, #tpu.memory_space<smem>>
      %669 = vector.broadcast %668 : f32 to vector<24x128xf32>
      %670 = arith.mulf %669, %657 : vector<24x128xf32>
      %671 = arith.addf %667, %670 : vector<24x128xf32>
      %c10_i32_217 = arith.constant 10 : i32
      %672 = tpu.dynamic_rotate %652 by %c10_i32_217 dim 1 : vector<24x128xf32>, i32 -> vector<24x128xf32>
      %c10_i32_218 = arith.constant 10 : i32
      %673 = tpu.dynamic_rotate %655 by %c10_i32_218 dim 1 : vector<24x128xf32>, i32 -> vector<24x128xf32>
      %c1_219 = arith.constant 1 : index
      %c137 = arith.constant 137 : index
      %674 = memref.load %arg1[%c1_219, %c137] : memref<3x257xf32, #tpu.memory_space<smem>>
      %675 = vector.broadcast %674 : f32 to vector<24x128xf32>
      %676 = arith.mulf %675, %672 : vector<24x128xf32>
      %677 = arith.addf %664, %676 : vector<24x128xf32>
      %c1_220 = arith.constant 1 : index
      %c164 = arith.constant 164 : index
      %678 = memref.load %arg1[%c1_220, %c164] : memref<3x257xf32, #tpu.memory_space<smem>>
      %679 = vector.broadcast %678 : f32 to vector<24x128xf32>
      %680 = arith.mulf %679, %673 : vector<24x128xf32>
      %681 = arith.addf %677, %680 : vector<24x128xf32>
      %c1_221 = arith.constant 1 : index
      %c191 = arith.constant 191 : index
      %682 = memref.load %arg1[%c1_221, %c191] : memref<3x257xf32, #tpu.memory_space<smem>>
      %683 = vector.broadcast %682 : f32 to vector<24x128xf32>
      %684 = arith.mulf %683, %672 : vector<24x128xf32>
      %685 = arith.addf %671, %684 : vector<24x128xf32>
      %c1_222 = arith.constant 1 : index
      %c218 = arith.constant 218 : index
      %686 = memref.load %arg1[%c1_222, %c218] : memref<3x257xf32, #tpu.memory_space<smem>>
      %687 = vector.broadcast %686 : f32 to vector<24x128xf32>
      %688 = arith.mulf %687, %673 : vector<24x128xf32>
      %689 = arith.addf %685, %688 : vector<24x128xf32>
      %c9_i32_223 = arith.constant 9 : i32
      %690 = tpu.dynamic_rotate %652 by %c9_i32_223 dim 1 : vector<24x128xf32>, i32 -> vector<24x128xf32>
      %c9_i32_224 = arith.constant 9 : i32
      %691 = tpu.dynamic_rotate %655 by %c9_i32_224 dim 1 : vector<24x128xf32>, i32 -> vector<24x128xf32>
      %c1_225 = arith.constant 1 : index
      %c138 = arith.constant 138 : index
      %692 = memref.load %arg1[%c1_225, %c138] : memref<3x257xf32, #tpu.memory_space<smem>>
      %693 = vector.broadcast %692 : f32 to vector<24x128xf32>
      %694 = arith.mulf %693, %690 : vector<24x128xf32>
      %695 = arith.addf %681, %694 : vector<24x128xf32>
      %c1_226 = arith.constant 1 : index
      %c165 = arith.constant 165 : index
      %696 = memref.load %arg1[%c1_226, %c165] : memref<3x257xf32, #tpu.memory_space<smem>>
      %697 = vector.broadcast %696 : f32 to vector<24x128xf32>
      %698 = arith.mulf %697, %691 : vector<24x128xf32>
      %699 = arith.addf %695, %698 : vector<24x128xf32>
      %c1_227 = arith.constant 1 : index
      %c192 = arith.constant 192 : index
      %700 = memref.load %arg1[%c1_227, %c192] : memref<3x257xf32, #tpu.memory_space<smem>>
      %701 = vector.broadcast %700 : f32 to vector<24x128xf32>
      %702 = arith.mulf %701, %690 : vector<24x128xf32>
      %703 = arith.addf %689, %702 : vector<24x128xf32>
      %c1_228 = arith.constant 1 : index
      %c219 = arith.constant 219 : index
      %704 = memref.load %arg1[%c1_228, %c219] : memref<3x257xf32, #tpu.memory_space<smem>>
      %705 = vector.broadcast %704 : f32 to vector<24x128xf32>
      %706 = arith.mulf %705, %691 : vector<24x128xf32>
      %707 = arith.addf %703, %706 : vector<24x128xf32>
      %c1_i32_229 = arith.constant 1 : i32
      %708 = tpu.dynamic_rotate %652 by %c1_i32_229 dim 1 : vector<24x128xf32>, i32 -> vector<24x128xf32>
      %c1_i32_230 = arith.constant 1 : i32
      %709 = tpu.dynamic_rotate %655 by %c1_i32_230 dim 1 : vector<24x128xf32>, i32 -> vector<24x128xf32>
      %c1_231 = arith.constant 1 : index
      %c139 = arith.constant 139 : index
      %710 = memref.load %arg1[%c1_231, %c139] : memref<3x257xf32, #tpu.memory_space<smem>>
      %711 = vector.broadcast %710 : f32 to vector<24x128xf32>
      %712 = arith.mulf %711, %708 : vector<24x128xf32>
      %713 = arith.addf %699, %712 : vector<24x128xf32>
      %c1_232 = arith.constant 1 : index
      %c166 = arith.constant 166 : index
      %714 = memref.load %arg1[%c1_232, %c166] : memref<3x257xf32, #tpu.memory_space<smem>>
      %715 = vector.broadcast %714 : f32 to vector<24x128xf32>
      %716 = arith.mulf %715, %709 : vector<24x128xf32>
      %717 = arith.addf %713, %716 : vector<24x128xf32>
      %c1_233 = arith.constant 1 : index
      %c193 = arith.constant 193 : index
      %718 = memref.load %arg1[%c1_233, %c193] : memref<3x257xf32, #tpu.memory_space<smem>>
      %719 = vector.broadcast %718 : f32 to vector<24x128xf32>
      %720 = arith.mulf %719, %708 : vector<24x128xf32>
      %721 = arith.addf %707, %720 : vector<24x128xf32>
      %c1_234 = arith.constant 1 : index
      %c220 = arith.constant 220 : index
      %722 = memref.load %arg1[%c1_234, %c220] : memref<3x257xf32, #tpu.memory_space<smem>>
      %723 = vector.broadcast %722 : f32 to vector<24x128xf32>
      %724 = arith.mulf %723, %709 : vector<24x128xf32>
      %725 = arith.addf %721, %724 : vector<24x128xf32>
      %c1_235 = arith.constant 1 : index
      %c140 = arith.constant 140 : index
      %726 = memref.load %arg1[%c1_235, %c140] : memref<3x257xf32, #tpu.memory_space<smem>>
      %727 = vector.broadcast %726 : f32 to vector<24x128xf32>
      %728 = arith.mulf %727, %652 : vector<24x128xf32>
      %729 = arith.addf %717, %728 : vector<24x128xf32>
      %c1_236 = arith.constant 1 : index
      %c167 = arith.constant 167 : index
      %730 = memref.load %arg1[%c1_236, %c167] : memref<3x257xf32, #tpu.memory_space<smem>>
      %731 = vector.broadcast %730 : f32 to vector<24x128xf32>
      %732 = arith.mulf %731, %655 : vector<24x128xf32>
      %733 = arith.addf %729, %732 : vector<24x128xf32>
      %c1_237 = arith.constant 1 : index
      %c194 = arith.constant 194 : index
      %734 = memref.load %arg1[%c1_237, %c194] : memref<3x257xf32, #tpu.memory_space<smem>>
      %735 = vector.broadcast %734 : f32 to vector<24x128xf32>
      %736 = arith.mulf %735, %652 : vector<24x128xf32>
      %737 = arith.addf %725, %736 : vector<24x128xf32>
      %c1_238 = arith.constant 1 : index
      %c221 = arith.constant 221 : index
      %738 = memref.load %arg1[%c1_238, %c221] : memref<3x257xf32, #tpu.memory_space<smem>>
      %739 = vector.broadcast %738 : f32 to vector<24x128xf32>
      %740 = arith.mulf %739, %655 : vector<24x128xf32>
      %741 = arith.addf %737, %740 : vector<24x128xf32>
      %c127_i32_239 = arith.constant 127 : i32
      %742 = tpu.dynamic_rotate %652 by %c127_i32_239 dim 1 : vector<24x128xf32>, i32 -> vector<24x128xf32>
      %c127_i32_240 = arith.constant 127 : i32
      %743 = tpu.dynamic_rotate %655 by %c127_i32_240 dim 1 : vector<24x128xf32>, i32 -> vector<24x128xf32>
      %c1_241 = arith.constant 1 : index
      %c141 = arith.constant 141 : index
      %744 = memref.load %arg1[%c1_241, %c141] : memref<3x257xf32, #tpu.memory_space<smem>>
      %745 = vector.broadcast %744 : f32 to vector<24x128xf32>
      %746 = arith.mulf %745, %742 : vector<24x128xf32>
      %747 = arith.addf %733, %746 : vector<24x128xf32>
      %c1_242 = arith.constant 1 : index
      %c168 = arith.constant 168 : index
      %748 = memref.load %arg1[%c1_242, %c168] : memref<3x257xf32, #tpu.memory_space<smem>>
      %749 = vector.broadcast %748 : f32 to vector<24x128xf32>
      %750 = arith.mulf %749, %743 : vector<24x128xf32>
      %751 = arith.addf %747, %750 : vector<24x128xf32>
      %c1_243 = arith.constant 1 : index
      %c195 = arith.constant 195 : index
      %752 = memref.load %arg1[%c1_243, %c195] : memref<3x257xf32, #tpu.memory_space<smem>>
      %753 = vector.broadcast %752 : f32 to vector<24x128xf32>
      %754 = arith.mulf %753, %742 : vector<24x128xf32>
      %755 = arith.addf %741, %754 : vector<24x128xf32>
      %c1_244 = arith.constant 1 : index
      %c222 = arith.constant 222 : index
      %756 = memref.load %arg1[%c1_244, %c222] : memref<3x257xf32, #tpu.memory_space<smem>>
      %757 = vector.broadcast %756 : f32 to vector<24x128xf32>
      %758 = arith.mulf %757, %743 : vector<24x128xf32>
      %759 = arith.addf %755, %758 : vector<24x128xf32>
      %c119_i32_245 = arith.constant 119 : i32
      %760 = tpu.dynamic_rotate %652 by %c119_i32_245 dim 1 : vector<24x128xf32>, i32 -> vector<24x128xf32>
      %c119_i32_246 = arith.constant 119 : i32
      %761 = tpu.dynamic_rotate %655 by %c119_i32_246 dim 1 : vector<24x128xf32>, i32 -> vector<24x128xf32>
      %c1_247 = arith.constant 1 : index
      %c142 = arith.constant 142 : index
      %762 = memref.load %arg1[%c1_247, %c142] : memref<3x257xf32, #tpu.memory_space<smem>>
      %763 = vector.broadcast %762 : f32 to vector<24x128xf32>
      %764 = arith.mulf %763, %760 : vector<24x128xf32>
      %765 = arith.addf %751, %764 : vector<24x128xf32>
      %c1_248 = arith.constant 1 : index
      %c169 = arith.constant 169 : index
      %766 = memref.load %arg1[%c1_248, %c169] : memref<3x257xf32, #tpu.memory_space<smem>>
      %767 = vector.broadcast %766 : f32 to vector<24x128xf32>
      %768 = arith.mulf %767, %761 : vector<24x128xf32>
      %769 = arith.addf %765, %768 : vector<24x128xf32>
      %c1_249 = arith.constant 1 : index
      %c196 = arith.constant 196 : index
      %770 = memref.load %arg1[%c1_249, %c196] : memref<3x257xf32, #tpu.memory_space<smem>>
      %771 = vector.broadcast %770 : f32 to vector<24x128xf32>
      %772 = arith.mulf %771, %760 : vector<24x128xf32>
      %773 = arith.addf %759, %772 : vector<24x128xf32>
      %c1_250 = arith.constant 1 : index
      %c223 = arith.constant 223 : index
      %774 = memref.load %arg1[%c1_250, %c223] : memref<3x257xf32, #tpu.memory_space<smem>>
      %775 = vector.broadcast %774 : f32 to vector<24x128xf32>
      %776 = arith.mulf %775, %761 : vector<24x128xf32>
      %777 = arith.addf %773, %776 : vector<24x128xf32>
      %c118_i32_251 = arith.constant 118 : i32
      %778 = tpu.dynamic_rotate %652 by %c118_i32_251 dim 1 : vector<24x128xf32>, i32 -> vector<24x128xf32>
      %c118_i32_252 = arith.constant 118 : i32
      %779 = tpu.dynamic_rotate %655 by %c118_i32_252 dim 1 : vector<24x128xf32>, i32 -> vector<24x128xf32>
      %c1_253 = arith.constant 1 : index
      %c143 = arith.constant 143 : index
      %780 = memref.load %arg1[%c1_253, %c143] : memref<3x257xf32, #tpu.memory_space<smem>>
      %781 = vector.broadcast %780 : f32 to vector<24x128xf32>
      %782 = arith.mulf %781, %778 : vector<24x128xf32>
      %783 = arith.addf %769, %782 : vector<24x128xf32>
      %c1_254 = arith.constant 1 : index
      %c170 = arith.constant 170 : index
      %784 = memref.load %arg1[%c1_254, %c170] : memref<3x257xf32, #tpu.memory_space<smem>>
      %785 = vector.broadcast %784 : f32 to vector<24x128xf32>
      %786 = arith.mulf %785, %779 : vector<24x128xf32>
      %787 = arith.addf %783, %786 : vector<24x128xf32>
      %c1_255 = arith.constant 1 : index
      %c197 = arith.constant 197 : index
      %788 = memref.load %arg1[%c1_255, %c197] : memref<3x257xf32, #tpu.memory_space<smem>>
      %789 = vector.broadcast %788 : f32 to vector<24x128xf32>
      %790 = arith.mulf %789, %778 : vector<24x128xf32>
      %791 = arith.addf %777, %790 : vector<24x128xf32>
      %c1_256 = arith.constant 1 : index
      %c224 = arith.constant 224 : index
      %792 = memref.load %arg1[%c1_256, %c224] : memref<3x257xf32, #tpu.memory_space<smem>>
      %793 = vector.broadcast %792 : f32 to vector<24x128xf32>
      %794 = arith.mulf %793, %779 : vector<24x128xf32>
      %795 = arith.addf %791, %794 : vector<24x128xf32>
      %c117_i32_257 = arith.constant 117 : i32
      %796 = tpu.dynamic_rotate %652 by %c117_i32_257 dim 1 : vector<24x128xf32>, i32 -> vector<24x128xf32>
      %c117_i32_258 = arith.constant 117 : i32
      %797 = tpu.dynamic_rotate %655 by %c117_i32_258 dim 1 : vector<24x128xf32>, i32 -> vector<24x128xf32>
      %c1_259 = arith.constant 1 : index
      %c144 = arith.constant 144 : index
      %798 = memref.load %arg1[%c1_259, %c144] : memref<3x257xf32, #tpu.memory_space<smem>>
      %799 = vector.broadcast %798 : f32 to vector<24x128xf32>
      %800 = arith.mulf %799, %796 : vector<24x128xf32>
      %801 = arith.addf %787, %800 : vector<24x128xf32>
      %c1_260 = arith.constant 1 : index
      %c171 = arith.constant 171 : index
      %802 = memref.load %arg1[%c1_260, %c171] : memref<3x257xf32, #tpu.memory_space<smem>>
      %803 = vector.broadcast %802 : f32 to vector<24x128xf32>
      %804 = arith.mulf %803, %797 : vector<24x128xf32>
      %805 = arith.addf %801, %804 : vector<24x128xf32>
      %c1_261 = arith.constant 1 : index
      %c198 = arith.constant 198 : index
      %806 = memref.load %arg1[%c1_261, %c198] : memref<3x257xf32, #tpu.memory_space<smem>>
      %807 = vector.broadcast %806 : f32 to vector<24x128xf32>
      %808 = arith.mulf %807, %796 : vector<24x128xf32>
      %809 = arith.addf %795, %808 : vector<24x128xf32>
      %c1_262 = arith.constant 1 : index
      %c225 = arith.constant 225 : index
      %810 = memref.load %arg1[%c1_262, %c225] : memref<3x257xf32, #tpu.memory_space<smem>>
      %811 = vector.broadcast %810 : f32 to vector<24x128xf32>
      %812 = arith.mulf %811, %797 : vector<24x128xf32>
      %813 = arith.addf %809, %812 : vector<24x128xf32>
      %c11_i32_263 = arith.constant 11 : i32
      %814 = tpu.dynamic_rotate %648 by %c11_i32_263 dim 1 : vector<24x128xf32>, i32 -> vector<24x128xf32>
      %c11_i32_264 = arith.constant 11 : i32
      %815 = tpu.dynamic_rotate %649 by %c11_i32_264 dim 1 : vector<24x128xf32>, i32 -> vector<24x128xf32>
      %c1_265 = arith.constant 1 : index
      %c145 = arith.constant 145 : index
      %816 = memref.load %arg1[%c1_265, %c145] : memref<3x257xf32, #tpu.memory_space<smem>>
      %817 = vector.broadcast %816 : f32 to vector<24x128xf32>
      %818 = arith.mulf %817, %814 : vector<24x128xf32>
      %819 = arith.addf %805, %818 : vector<24x128xf32>
      %c1_266 = arith.constant 1 : index
      %c172 = arith.constant 172 : index
      %820 = memref.load %arg1[%c1_266, %c172] : memref<3x257xf32, #tpu.memory_space<smem>>
      %821 = vector.broadcast %820 : f32 to vector<24x128xf32>
      %822 = arith.mulf %821, %815 : vector<24x128xf32>
      %823 = arith.addf %819, %822 : vector<24x128xf32>
      %c1_267 = arith.constant 1 : index
      %c199 = arith.constant 199 : index
      %824 = memref.load %arg1[%c1_267, %c199] : memref<3x257xf32, #tpu.memory_space<smem>>
      %825 = vector.broadcast %824 : f32 to vector<24x128xf32>
      %826 = arith.mulf %825, %814 : vector<24x128xf32>
      %827 = arith.addf %813, %826 : vector<24x128xf32>
      %c1_268 = arith.constant 1 : index
      %c226 = arith.constant 226 : index
      %828 = memref.load %arg1[%c1_268, %c226] : memref<3x257xf32, #tpu.memory_space<smem>>
      %829 = vector.broadcast %828 : f32 to vector<24x128xf32>
      %830 = arith.mulf %829, %815 : vector<24x128xf32>
      %831 = arith.addf %827, %830 : vector<24x128xf32>
      %c10_i32_269 = arith.constant 10 : i32
      %832 = tpu.dynamic_rotate %648 by %c10_i32_269 dim 1 : vector<24x128xf32>, i32 -> vector<24x128xf32>
      %c10_i32_270 = arith.constant 10 : i32
      %833 = tpu.dynamic_rotate %649 by %c10_i32_270 dim 1 : vector<24x128xf32>, i32 -> vector<24x128xf32>
      %c1_271 = arith.constant 1 : index
      %c146 = arith.constant 146 : index
      %834 = memref.load %arg1[%c1_271, %c146] : memref<3x257xf32, #tpu.memory_space<smem>>
      %835 = vector.broadcast %834 : f32 to vector<24x128xf32>
      %836 = arith.mulf %835, %832 : vector<24x128xf32>
      %837 = arith.addf %823, %836 : vector<24x128xf32>
      %c1_272 = arith.constant 1 : index
      %c173 = arith.constant 173 : index
      %838 = memref.load %arg1[%c1_272, %c173] : memref<3x257xf32, #tpu.memory_space<smem>>
      %839 = vector.broadcast %838 : f32 to vector<24x128xf32>
      %840 = arith.mulf %839, %833 : vector<24x128xf32>
      %841 = arith.addf %837, %840 : vector<24x128xf32>
      %c1_273 = arith.constant 1 : index
      %c200 = arith.constant 200 : index
      %842 = memref.load %arg1[%c1_273, %c200] : memref<3x257xf32, #tpu.memory_space<smem>>
      %843 = vector.broadcast %842 : f32 to vector<24x128xf32>
      %844 = arith.mulf %843, %832 : vector<24x128xf32>
      %845 = arith.addf %831, %844 : vector<24x128xf32>
      %c1_274 = arith.constant 1 : index
      %c227 = arith.constant 227 : index
      %846 = memref.load %arg1[%c1_274, %c227] : memref<3x257xf32, #tpu.memory_space<smem>>
      %847 = vector.broadcast %846 : f32 to vector<24x128xf32>
      %848 = arith.mulf %847, %833 : vector<24x128xf32>
      %849 = arith.addf %845, %848 : vector<24x128xf32>
      %c9_i32_275 = arith.constant 9 : i32
      %850 = tpu.dynamic_rotate %648 by %c9_i32_275 dim 1 : vector<24x128xf32>, i32 -> vector<24x128xf32>
      %c9_i32_276 = arith.constant 9 : i32
      %851 = tpu.dynamic_rotate %649 by %c9_i32_276 dim 1 : vector<24x128xf32>, i32 -> vector<24x128xf32>
      %c1_277 = arith.constant 1 : index
      %c147 = arith.constant 147 : index
      %852 = memref.load %arg1[%c1_277, %c147] : memref<3x257xf32, #tpu.memory_space<smem>>
      %853 = vector.broadcast %852 : f32 to vector<24x128xf32>
      %854 = arith.mulf %853, %850 : vector<24x128xf32>
      %855 = arith.addf %841, %854 : vector<24x128xf32>
      %c1_278 = arith.constant 1 : index
      %c174 = arith.constant 174 : index
      %856 = memref.load %arg1[%c1_278, %c174] : memref<3x257xf32, #tpu.memory_space<smem>>
      %857 = vector.broadcast %856 : f32 to vector<24x128xf32>
      %858 = arith.mulf %857, %851 : vector<24x128xf32>
      %859 = arith.addf %855, %858 : vector<24x128xf32>
      %c1_279 = arith.constant 1 : index
      %c201 = arith.constant 201 : index
      %860 = memref.load %arg1[%c1_279, %c201] : memref<3x257xf32, #tpu.memory_space<smem>>
      %861 = vector.broadcast %860 : f32 to vector<24x128xf32>
      %862 = arith.mulf %861, %850 : vector<24x128xf32>
      %863 = arith.addf %849, %862 : vector<24x128xf32>
      %c1_280 = arith.constant 1 : index
      %c228 = arith.constant 228 : index
      %864 = memref.load %arg1[%c1_280, %c228] : memref<3x257xf32, #tpu.memory_space<smem>>
      %865 = vector.broadcast %864 : f32 to vector<24x128xf32>
      %866 = arith.mulf %865, %851 : vector<24x128xf32>
      %867 = arith.addf %863, %866 : vector<24x128xf32>
      %c1_i32_281 = arith.constant 1 : i32
      %868 = tpu.dynamic_rotate %648 by %c1_i32_281 dim 1 : vector<24x128xf32>, i32 -> vector<24x128xf32>
      %c1_i32_282 = arith.constant 1 : i32
      %869 = tpu.dynamic_rotate %649 by %c1_i32_282 dim 1 : vector<24x128xf32>, i32 -> vector<24x128xf32>
      %c1_283 = arith.constant 1 : index
      %c148 = arith.constant 148 : index
      %870 = memref.load %arg1[%c1_283, %c148] : memref<3x257xf32, #tpu.memory_space<smem>>
      %871 = vector.broadcast %870 : f32 to vector<24x128xf32>
      %872 = arith.mulf %871, %868 : vector<24x128xf32>
      %873 = arith.addf %859, %872 : vector<24x128xf32>
      %c1_284 = arith.constant 1 : index
      %c175 = arith.constant 175 : index
      %874 = memref.load %arg1[%c1_284, %c175] : memref<3x257xf32, #tpu.memory_space<smem>>
      %875 = vector.broadcast %874 : f32 to vector<24x128xf32>
      %876 = arith.mulf %875, %869 : vector<24x128xf32>
      %877 = arith.addf %873, %876 : vector<24x128xf32>
      %c1_285 = arith.constant 1 : index
      %c202 = arith.constant 202 : index
      %878 = memref.load %arg1[%c1_285, %c202] : memref<3x257xf32, #tpu.memory_space<smem>>
      %879 = vector.broadcast %878 : f32 to vector<24x128xf32>
      %880 = arith.mulf %879, %868 : vector<24x128xf32>
      %881 = arith.addf %867, %880 : vector<24x128xf32>
      %c1_286 = arith.constant 1 : index
      %c229 = arith.constant 229 : index
      %882 = memref.load %arg1[%c1_286, %c229] : memref<3x257xf32, #tpu.memory_space<smem>>
      %883 = vector.broadcast %882 : f32 to vector<24x128xf32>
      %884 = arith.mulf %883, %869 : vector<24x128xf32>
      %885 = arith.addf %881, %884 : vector<24x128xf32>
      %c1_287 = arith.constant 1 : index
      %c149 = arith.constant 149 : index
      %886 = memref.load %arg1[%c1_287, %c149] : memref<3x257xf32, #tpu.memory_space<smem>>
      %887 = vector.broadcast %886 : f32 to vector<24x128xf32>
      %888 = arith.mulf %887, %648 : vector<24x128xf32>
      %889 = arith.addf %877, %888 : vector<24x128xf32>
      %c1_288 = arith.constant 1 : index
      %c176 = arith.constant 176 : index
      %890 = memref.load %arg1[%c1_288, %c176] : memref<3x257xf32, #tpu.memory_space<smem>>
      %891 = vector.broadcast %890 : f32 to vector<24x128xf32>
      %892 = arith.mulf %891, %649 : vector<24x128xf32>
      %893 = arith.addf %889, %892 : vector<24x128xf32>
      %c1_289 = arith.constant 1 : index
      %c203 = arith.constant 203 : index
      %894 = memref.load %arg1[%c1_289, %c203] : memref<3x257xf32, #tpu.memory_space<smem>>
      %895 = vector.broadcast %894 : f32 to vector<24x128xf32>
      %896 = arith.mulf %895, %648 : vector<24x128xf32>
      %897 = arith.addf %885, %896 : vector<24x128xf32>
      %c1_290 = arith.constant 1 : index
      %c230 = arith.constant 230 : index
      %898 = memref.load %arg1[%c1_290, %c230] : memref<3x257xf32, #tpu.memory_space<smem>>
      %899 = vector.broadcast %898 : f32 to vector<24x128xf32>
      %900 = arith.mulf %899, %649 : vector<24x128xf32>
      %901 = arith.addf %897, %900 : vector<24x128xf32>
      %c127_i32_291 = arith.constant 127 : i32
      %902 = tpu.dynamic_rotate %648 by %c127_i32_291 dim 1 : vector<24x128xf32>, i32 -> vector<24x128xf32>
      %c127_i32_292 = arith.constant 127 : i32
      %903 = tpu.dynamic_rotate %649 by %c127_i32_292 dim 1 : vector<24x128xf32>, i32 -> vector<24x128xf32>
      %c1_293 = arith.constant 1 : index
      %c150 = arith.constant 150 : index
      %904 = memref.load %arg1[%c1_293, %c150] : memref<3x257xf32, #tpu.memory_space<smem>>
      %905 = vector.broadcast %904 : f32 to vector<24x128xf32>
      %906 = arith.mulf %905, %902 : vector<24x128xf32>
      %907 = arith.addf %893, %906 : vector<24x128xf32>
      %c1_294 = arith.constant 1 : index
      %c177 = arith.constant 177 : index
      %908 = memref.load %arg1[%c1_294, %c177] : memref<3x257xf32, #tpu.memory_space<smem>>
      %909 = vector.broadcast %908 : f32 to vector<24x128xf32>
      %910 = arith.mulf %909, %903 : vector<24x128xf32>
      %911 = arith.addf %907, %910 : vector<24x128xf32>
      %c1_295 = arith.constant 1 : index
      %c204 = arith.constant 204 : index
      %912 = memref.load %arg1[%c1_295, %c204] : memref<3x257xf32, #tpu.memory_space<smem>>
      %913 = vector.broadcast %912 : f32 to vector<24x128xf32>
      %914 = arith.mulf %913, %902 : vector<24x128xf32>
      %915 = arith.addf %901, %914 : vector<24x128xf32>
      %c1_296 = arith.constant 1 : index
      %c231 = arith.constant 231 : index
      %916 = memref.load %arg1[%c1_296, %c231] : memref<3x257xf32, #tpu.memory_space<smem>>
      %917 = vector.broadcast %916 : f32 to vector<24x128xf32>
      %918 = arith.mulf %917, %903 : vector<24x128xf32>
      %919 = arith.addf %915, %918 : vector<24x128xf32>
      %c119_i32_297 = arith.constant 119 : i32
      %920 = tpu.dynamic_rotate %648 by %c119_i32_297 dim 1 : vector<24x128xf32>, i32 -> vector<24x128xf32>
      %c119_i32_298 = arith.constant 119 : i32
      %921 = tpu.dynamic_rotate %649 by %c119_i32_298 dim 1 : vector<24x128xf32>, i32 -> vector<24x128xf32>
      %c1_299 = arith.constant 1 : index
      %c151 = arith.constant 151 : index
      %922 = memref.load %arg1[%c1_299, %c151] : memref<3x257xf32, #tpu.memory_space<smem>>
      %923 = vector.broadcast %922 : f32 to vector<24x128xf32>
      %924 = arith.mulf %923, %920 : vector<24x128xf32>
      %925 = arith.addf %911, %924 : vector<24x128xf32>
      %c1_300 = arith.constant 1 : index
      %c178 = arith.constant 178 : index
      %926 = memref.load %arg1[%c1_300, %c178] : memref<3x257xf32, #tpu.memory_space<smem>>
      %927 = vector.broadcast %926 : f32 to vector<24x128xf32>
      %928 = arith.mulf %927, %921 : vector<24x128xf32>
      %929 = arith.addf %925, %928 : vector<24x128xf32>
      %c1_301 = arith.constant 1 : index
      %c205 = arith.constant 205 : index
      %930 = memref.load %arg1[%c1_301, %c205] : memref<3x257xf32, #tpu.memory_space<smem>>
      %931 = vector.broadcast %930 : f32 to vector<24x128xf32>
      %932 = arith.mulf %931, %920 : vector<24x128xf32>
      %933 = arith.addf %919, %932 : vector<24x128xf32>
      %c1_302 = arith.constant 1 : index
      %c232 = arith.constant 232 : index
      %934 = memref.load %arg1[%c1_302, %c232] : memref<3x257xf32, #tpu.memory_space<smem>>
      %935 = vector.broadcast %934 : f32 to vector<24x128xf32>
      %936 = arith.mulf %935, %921 : vector<24x128xf32>
      %937 = arith.addf %933, %936 : vector<24x128xf32>
      %c118_i32_303 = arith.constant 118 : i32
      %938 = tpu.dynamic_rotate %648 by %c118_i32_303 dim 1 : vector<24x128xf32>, i32 -> vector<24x128xf32>
      %c118_i32_304 = arith.constant 118 : i32
      %939 = tpu.dynamic_rotate %649 by %c118_i32_304 dim 1 : vector<24x128xf32>, i32 -> vector<24x128xf32>
      %c1_305 = arith.constant 1 : index
      %c152 = arith.constant 152 : index
      %940 = memref.load %arg1[%c1_305, %c152] : memref<3x257xf32, #tpu.memory_space<smem>>
      %941 = vector.broadcast %940 : f32 to vector<24x128xf32>
      %942 = arith.mulf %941, %938 : vector<24x128xf32>
      %943 = arith.addf %929, %942 : vector<24x128xf32>
      %c1_306 = arith.constant 1 : index
      %c179 = arith.constant 179 : index
      %944 = memref.load %arg1[%c1_306, %c179] : memref<3x257xf32, #tpu.memory_space<smem>>
      %945 = vector.broadcast %944 : f32 to vector<24x128xf32>
      %946 = arith.mulf %945, %939 : vector<24x128xf32>
      %947 = arith.addf %943, %946 : vector<24x128xf32>
      %c1_307 = arith.constant 1 : index
      %c206 = arith.constant 206 : index
      %948 = memref.load %arg1[%c1_307, %c206] : memref<3x257xf32, #tpu.memory_space<smem>>
      %949 = vector.broadcast %948 : f32 to vector<24x128xf32>
      %950 = arith.mulf %949, %938 : vector<24x128xf32>
      %951 = arith.addf %937, %950 : vector<24x128xf32>
      %c1_308 = arith.constant 1 : index
      %c233 = arith.constant 233 : index
      %952 = memref.load %arg1[%c1_308, %c233] : memref<3x257xf32, #tpu.memory_space<smem>>
      %953 = vector.broadcast %952 : f32 to vector<24x128xf32>
      %954 = arith.mulf %953, %939 : vector<24x128xf32>
      %955 = arith.addf %951, %954 : vector<24x128xf32>
      %c117_i32_309 = arith.constant 117 : i32
      %956 = tpu.dynamic_rotate %648 by %c117_i32_309 dim 1 : vector<24x128xf32>, i32 -> vector<24x128xf32>
      %c117_i32_310 = arith.constant 117 : i32
      %957 = tpu.dynamic_rotate %649 by %c117_i32_310 dim 1 : vector<24x128xf32>, i32 -> vector<24x128xf32>
      %c1_311 = arith.constant 1 : index
      %c153 = arith.constant 153 : index
      %958 = memref.load %arg1[%c1_311, %c153] : memref<3x257xf32, #tpu.memory_space<smem>>
      %959 = vector.broadcast %958 : f32 to vector<24x128xf32>
      %960 = arith.mulf %959, %956 : vector<24x128xf32>
      %961 = arith.addf %947, %960 : vector<24x128xf32>
      %c1_312 = arith.constant 1 : index
      %c180 = arith.constant 180 : index
      %962 = memref.load %arg1[%c1_312, %c180] : memref<3x257xf32, #tpu.memory_space<smem>>
      %963 = vector.broadcast %962 : f32 to vector<24x128xf32>
      %964 = arith.mulf %963, %957 : vector<24x128xf32>
      %965 = arith.addf %961, %964 : vector<24x128xf32>
      %c1_313 = arith.constant 1 : index
      %c207 = arith.constant 207 : index
      %966 = memref.load %arg1[%c1_313, %c207] : memref<3x257xf32, #tpu.memory_space<smem>>
      %967 = vector.broadcast %966 : f32 to vector<24x128xf32>
      %968 = arith.mulf %967, %956 : vector<24x128xf32>
      %969 = arith.addf %955, %968 : vector<24x128xf32>
      %c1_314 = arith.constant 1 : index
      %c234 = arith.constant 234 : index
      %970 = memref.load %arg1[%c1_314, %c234] : memref<3x257xf32, #tpu.memory_space<smem>>
      %971 = vector.broadcast %970 : f32 to vector<24x128xf32>
      %972 = arith.mulf %971, %957 : vector<24x128xf32>
      %973 = arith.addf %969, %972 : vector<24x128xf32>
      %974 = vector.extract_strided_slice %648 {offsets = [1, 0], sizes = [23, 128], strides = [1, 1]} : vector<24x128xf32> to vector<23x128xf32>
      %cst_315 = arith.constant 0.000000e+00 : f32
      %975 = vector.broadcast %cst_315 : f32 to vector<1x128xf32>
      %976 = tpu.concatenate %974, %975 in 0 : vector<23x128xf32>, vector<1x128xf32> -> vector<24x128xf32>
      %977 = vector.extract_strided_slice %649 {offsets = [1, 0], sizes = [23, 128], strides = [1, 1]} : vector<24x128xf32> to vector<23x128xf32>
      %cst_316 = arith.constant 0.000000e+00 : f32
      %978 = vector.broadcast %cst_316 : f32 to vector<1x128xf32>
      %979 = tpu.concatenate %977, %978 in 0 : vector<23x128xf32>, vector<1x128xf32> -> vector<24x128xf32>
      %c11_i32_317 = arith.constant 11 : i32
      %980 = tpu.dynamic_rotate %976 by %c11_i32_317 dim 1 : vector<24x128xf32>, i32 -> vector<24x128xf32>
      %c11_i32_318 = arith.constant 11 : i32
      %981 = tpu.dynamic_rotate %979 by %c11_i32_318 dim 1 : vector<24x128xf32>, i32 -> vector<24x128xf32>
      %c1_319 = arith.constant 1 : index
      %c154 = arith.constant 154 : index
      %982 = memref.load %arg1[%c1_319, %c154] : memref<3x257xf32, #tpu.memory_space<smem>>
      %983 = vector.broadcast %982 : f32 to vector<24x128xf32>
      %984 = arith.mulf %983, %980 : vector<24x128xf32>
      %985 = arith.addf %965, %984 : vector<24x128xf32>
      %c1_320 = arith.constant 1 : index
      %c181 = arith.constant 181 : index
      %986 = memref.load %arg1[%c1_320, %c181] : memref<3x257xf32, #tpu.memory_space<smem>>
      %987 = vector.broadcast %986 : f32 to vector<24x128xf32>
      %988 = arith.mulf %987, %981 : vector<24x128xf32>
      %989 = arith.addf %985, %988 : vector<24x128xf32>
      %c1_321 = arith.constant 1 : index
      %c208 = arith.constant 208 : index
      %990 = memref.load %arg1[%c1_321, %c208] : memref<3x257xf32, #tpu.memory_space<smem>>
      %991 = vector.broadcast %990 : f32 to vector<24x128xf32>
      %992 = arith.mulf %991, %980 : vector<24x128xf32>
      %993 = arith.addf %973, %992 : vector<24x128xf32>
      %c1_322 = arith.constant 1 : index
      %c235 = arith.constant 235 : index
      %994 = memref.load %arg1[%c1_322, %c235] : memref<3x257xf32, #tpu.memory_space<smem>>
      %995 = vector.broadcast %994 : f32 to vector<24x128xf32>
      %996 = arith.mulf %995, %981 : vector<24x128xf32>
      %997 = arith.addf %993, %996 : vector<24x128xf32>
      %c10_i32_323 = arith.constant 10 : i32
      %998 = tpu.dynamic_rotate %976 by %c10_i32_323 dim 1 : vector<24x128xf32>, i32 -> vector<24x128xf32>
      %c10_i32_324 = arith.constant 10 : i32
      %999 = tpu.dynamic_rotate %979 by %c10_i32_324 dim 1 : vector<24x128xf32>, i32 -> vector<24x128xf32>
      %c1_325 = arith.constant 1 : index
      %c155 = arith.constant 155 : index
      %1000 = memref.load %arg1[%c1_325, %c155] : memref<3x257xf32, #tpu.memory_space<smem>>
      %1001 = vector.broadcast %1000 : f32 to vector<24x128xf32>
      %1002 = arith.mulf %1001, %998 : vector<24x128xf32>
      %1003 = arith.addf %989, %1002 : vector<24x128xf32>
      %c1_326 = arith.constant 1 : index
      %c182 = arith.constant 182 : index
      %1004 = memref.load %arg1[%c1_326, %c182] : memref<3x257xf32, #tpu.memory_space<smem>>
      %1005 = vector.broadcast %1004 : f32 to vector<24x128xf32>
      %1006 = arith.mulf %1005, %999 : vector<24x128xf32>
      %1007 = arith.addf %1003, %1006 : vector<24x128xf32>
      %c1_327 = arith.constant 1 : index
      %c209 = arith.constant 209 : index
      %1008 = memref.load %arg1[%c1_327, %c209] : memref<3x257xf32, #tpu.memory_space<smem>>
      %1009 = vector.broadcast %1008 : f32 to vector<24x128xf32>
      %1010 = arith.mulf %1009, %998 : vector<24x128xf32>
      %1011 = arith.addf %997, %1010 : vector<24x128xf32>
      %c1_328 = arith.constant 1 : index
      %c236 = arith.constant 236 : index
      %1012 = memref.load %arg1[%c1_328, %c236] : memref<3x257xf32, #tpu.memory_space<smem>>
      %1013 = vector.broadcast %1012 : f32 to vector<24x128xf32>
      %1014 = arith.mulf %1013, %999 : vector<24x128xf32>
      %1015 = arith.addf %1011, %1014 : vector<24x128xf32>
      %c9_i32_329 = arith.constant 9 : i32
      %1016 = tpu.dynamic_rotate %976 by %c9_i32_329 dim 1 : vector<24x128xf32>, i32 -> vector<24x128xf32>
      %c9_i32_330 = arith.constant 9 : i32
      %1017 = tpu.dynamic_rotate %979 by %c9_i32_330 dim 1 : vector<24x128xf32>, i32 -> vector<24x128xf32>
      %c1_331 = arith.constant 1 : index
      %c156 = arith.constant 156 : index
      %1018 = memref.load %arg1[%c1_331, %c156] : memref<3x257xf32, #tpu.memory_space<smem>>
      %1019 = vector.broadcast %1018 : f32 to vector<24x128xf32>
      %1020 = arith.mulf %1019, %1016 : vector<24x128xf32>
      %1021 = arith.addf %1007, %1020 : vector<24x128xf32>
      %c1_332 = arith.constant 1 : index
      %c183 = arith.constant 183 : index
      %1022 = memref.load %arg1[%c1_332, %c183] : memref<3x257xf32, #tpu.memory_space<smem>>
      %1023 = vector.broadcast %1022 : f32 to vector<24x128xf32>
      %1024 = arith.mulf %1023, %1017 : vector<24x128xf32>
      %1025 = arith.addf %1021, %1024 : vector<24x128xf32>
      %c1_333 = arith.constant 1 : index
      %c210 = arith.constant 210 : index
      %1026 = memref.load %arg1[%c1_333, %c210] : memref<3x257xf32, #tpu.memory_space<smem>>
      %1027 = vector.broadcast %1026 : f32 to vector<24x128xf32>
      %1028 = arith.mulf %1027, %1016 : vector<24x128xf32>
      %1029 = arith.addf %1015, %1028 : vector<24x128xf32>
      %c1_334 = arith.constant 1 : index
      %c237 = arith.constant 237 : index
      %1030 = memref.load %arg1[%c1_334, %c237] : memref<3x257xf32, #tpu.memory_space<smem>>
      %1031 = vector.broadcast %1030 : f32 to vector<24x128xf32>
      %1032 = arith.mulf %1031, %1017 : vector<24x128xf32>
      %1033 = arith.addf %1029, %1032 : vector<24x128xf32>
      %c1_i32_335 = arith.constant 1 : i32
      %1034 = tpu.dynamic_rotate %976 by %c1_i32_335 dim 1 : vector<24x128xf32>, i32 -> vector<24x128xf32>
      %c1_i32_336 = arith.constant 1 : i32
      %1035 = tpu.dynamic_rotate %979 by %c1_i32_336 dim 1 : vector<24x128xf32>, i32 -> vector<24x128xf32>
      %c1_337 = arith.constant 1 : index
      %c157 = arith.constant 157 : index
      %1036 = memref.load %arg1[%c1_337, %c157] : memref<3x257xf32, #tpu.memory_space<smem>>
      %1037 = vector.broadcast %1036 : f32 to vector<24x128xf32>
      %1038 = arith.mulf %1037, %1034 : vector<24x128xf32>
      %1039 = arith.addf %1025, %1038 : vector<24x128xf32>
      %c1_338 = arith.constant 1 : index
      %c184 = arith.constant 184 : index
      %1040 = memref.load %arg1[%c1_338, %c184] : memref<3x257xf32, #tpu.memory_space<smem>>
      %1041 = vector.broadcast %1040 : f32 to vector<24x128xf32>
      %1042 = arith.mulf %1041, %1035 : vector<24x128xf32>
      %1043 = arith.addf %1039, %1042 : vector<24x128xf32>
      %c1_339 = arith.constant 1 : index
      %c211 = arith.constant 211 : index
      %1044 = memref.load %arg1[%c1_339, %c211] : memref<3x257xf32, #tpu.memory_space<smem>>
      %1045 = vector.broadcast %1044 : f32 to vector<24x128xf32>
      %1046 = arith.mulf %1045, %1034 : vector<24x128xf32>
      %1047 = arith.addf %1033, %1046 : vector<24x128xf32>
      %c1_340 = arith.constant 1 : index
      %c238 = arith.constant 238 : index
      %1048 = memref.load %arg1[%c1_340, %c238] : memref<3x257xf32, #tpu.memory_space<smem>>
      %1049 = vector.broadcast %1048 : f32 to vector<24x128xf32>
      %1050 = arith.mulf %1049, %1035 : vector<24x128xf32>
      %1051 = arith.addf %1047, %1050 : vector<24x128xf32>
      %c1_341 = arith.constant 1 : index
      %c158 = arith.constant 158 : index
      %1052 = memref.load %arg1[%c1_341, %c158] : memref<3x257xf32, #tpu.memory_space<smem>>
      %1053 = vector.broadcast %1052 : f32 to vector<24x128xf32>
      %1054 = arith.mulf %1053, %976 : vector<24x128xf32>
      %1055 = arith.addf %1043, %1054 : vector<24x128xf32>
      %c1_342 = arith.constant 1 : index
      %c185 = arith.constant 185 : index
      %1056 = memref.load %arg1[%c1_342, %c185] : memref<3x257xf32, #tpu.memory_space<smem>>
      %1057 = vector.broadcast %1056 : f32 to vector<24x128xf32>
      %1058 = arith.mulf %1057, %979 : vector<24x128xf32>
      %1059 = arith.addf %1055, %1058 : vector<24x128xf32>
      %c1_343 = arith.constant 1 : index
      %c212 = arith.constant 212 : index
      %1060 = memref.load %arg1[%c1_343, %c212] : memref<3x257xf32, #tpu.memory_space<smem>>
      %1061 = vector.broadcast %1060 : f32 to vector<24x128xf32>
      %1062 = arith.mulf %1061, %976 : vector<24x128xf32>
      %1063 = arith.addf %1051, %1062 : vector<24x128xf32>
      %c1_344 = arith.constant 1 : index
      %c239 = arith.constant 239 : index
      %1064 = memref.load %arg1[%c1_344, %c239] : memref<3x257xf32, #tpu.memory_space<smem>>
      %1065 = vector.broadcast %1064 : f32 to vector<24x128xf32>
      %1066 = arith.mulf %1065, %979 : vector<24x128xf32>
      %1067 = arith.addf %1063, %1066 : vector<24x128xf32>
      %c127_i32_345 = arith.constant 127 : i32
      %1068 = tpu.dynamic_rotate %976 by %c127_i32_345 dim 1 : vector<24x128xf32>, i32 -> vector<24x128xf32>
      %c127_i32_346 = arith.constant 127 : i32
      %1069 = tpu.dynamic_rotate %979 by %c127_i32_346 dim 1 : vector<24x128xf32>, i32 -> vector<24x128xf32>
      %c1_347 = arith.constant 1 : index
      %c159 = arith.constant 159 : index
      %1070 = memref.load %arg1[%c1_347, %c159] : memref<3x257xf32, #tpu.memory_space<smem>>
      %1071 = vector.broadcast %1070 : f32 to vector<24x128xf32>
      %1072 = arith.mulf %1071, %1068 : vector<24x128xf32>
      %1073 = arith.addf %1059, %1072 : vector<24x128xf32>
      %c1_348 = arith.constant 1 : index
      %c186 = arith.constant 186 : index
      %1074 = memref.load %arg1[%c1_348, %c186] : memref<3x257xf32, #tpu.memory_space<smem>>
      %1075 = vector.broadcast %1074 : f32 to vector<24x128xf32>
      %1076 = arith.mulf %1075, %1069 : vector<24x128xf32>
      %1077 = arith.addf %1073, %1076 : vector<24x128xf32>
      %c1_349 = arith.constant 1 : index
      %c213 = arith.constant 213 : index
      %1078 = memref.load %arg1[%c1_349, %c213] : memref<3x257xf32, #tpu.memory_space<smem>>
      %1079 = vector.broadcast %1078 : f32 to vector<24x128xf32>
      %1080 = arith.mulf %1079, %1068 : vector<24x128xf32>
      %1081 = arith.addf %1067, %1080 : vector<24x128xf32>
      %c1_350 = arith.constant 1 : index
      %c240 = arith.constant 240 : index
      %1082 = memref.load %arg1[%c1_350, %c240] : memref<3x257xf32, #tpu.memory_space<smem>>
      %1083 = vector.broadcast %1082 : f32 to vector<24x128xf32>
      %1084 = arith.mulf %1083, %1069 : vector<24x128xf32>
      %1085 = arith.addf %1081, %1084 : vector<24x128xf32>
      %c119_i32_351 = arith.constant 119 : i32
      %1086 = tpu.dynamic_rotate %976 by %c119_i32_351 dim 1 : vector<24x128xf32>, i32 -> vector<24x128xf32>
      %c119_i32_352 = arith.constant 119 : i32
      %1087 = tpu.dynamic_rotate %979 by %c119_i32_352 dim 1 : vector<24x128xf32>, i32 -> vector<24x128xf32>
      %c1_353 = arith.constant 1 : index
      %c160 = arith.constant 160 : index
      %1088 = memref.load %arg1[%c1_353, %c160] : memref<3x257xf32, #tpu.memory_space<smem>>
      %1089 = vector.broadcast %1088 : f32 to vector<24x128xf32>
      %1090 = arith.mulf %1089, %1086 : vector<24x128xf32>
      %1091 = arith.addf %1077, %1090 : vector<24x128xf32>
      %c1_354 = arith.constant 1 : index
      %c187 = arith.constant 187 : index
      %1092 = memref.load %arg1[%c1_354, %c187] : memref<3x257xf32, #tpu.memory_space<smem>>
      %1093 = vector.broadcast %1092 : f32 to vector<24x128xf32>
      %1094 = arith.mulf %1093, %1087 : vector<24x128xf32>
      %1095 = arith.addf %1091, %1094 : vector<24x128xf32>
      %c1_355 = arith.constant 1 : index
      %c214 = arith.constant 214 : index
      %1096 = memref.load %arg1[%c1_355, %c214] : memref<3x257xf32, #tpu.memory_space<smem>>
      %1097 = vector.broadcast %1096 : f32 to vector<24x128xf32>
      %1098 = arith.mulf %1097, %1086 : vector<24x128xf32>
      %1099 = arith.addf %1085, %1098 : vector<24x128xf32>
      %c1_356 = arith.constant 1 : index
      %c241 = arith.constant 241 : index
      %1100 = memref.load %arg1[%c1_356, %c241] : memref<3x257xf32, #tpu.memory_space<smem>>
      %1101 = vector.broadcast %1100 : f32 to vector<24x128xf32>
      %1102 = arith.mulf %1101, %1087 : vector<24x128xf32>
      %1103 = arith.addf %1099, %1102 : vector<24x128xf32>
      %c118_i32_357 = arith.constant 118 : i32
      %1104 = tpu.dynamic_rotate %976 by %c118_i32_357 dim 1 : vector<24x128xf32>, i32 -> vector<24x128xf32>
      %c118_i32_358 = arith.constant 118 : i32
      %1105 = tpu.dynamic_rotate %979 by %c118_i32_358 dim 1 : vector<24x128xf32>, i32 -> vector<24x128xf32>
      %c1_359 = arith.constant 1 : index
      %c161 = arith.constant 161 : index
      %1106 = memref.load %arg1[%c1_359, %c161] : memref<3x257xf32, #tpu.memory_space<smem>>
      %1107 = vector.broadcast %1106 : f32 to vector<24x128xf32>
      %1108 = arith.mulf %1107, %1104 : vector<24x128xf32>
      %1109 = arith.addf %1095, %1108 : vector<24x128xf32>
      %c1_360 = arith.constant 1 : index
      %c188 = arith.constant 188 : index
      %1110 = memref.load %arg1[%c1_360, %c188] : memref<3x257xf32, #tpu.memory_space<smem>>
      %1111 = vector.broadcast %1110 : f32 to vector<24x128xf32>
      %1112 = arith.mulf %1111, %1105 : vector<24x128xf32>
      %1113 = arith.addf %1109, %1112 : vector<24x128xf32>
      %c1_361 = arith.constant 1 : index
      %c215 = arith.constant 215 : index
      %1114 = memref.load %arg1[%c1_361, %c215] : memref<3x257xf32, #tpu.memory_space<smem>>
      %1115 = vector.broadcast %1114 : f32 to vector<24x128xf32>
      %1116 = arith.mulf %1115, %1104 : vector<24x128xf32>
      %1117 = arith.addf %1103, %1116 : vector<24x128xf32>
      %c1_362 = arith.constant 1 : index
      %c242 = arith.constant 242 : index
      %1118 = memref.load %arg1[%c1_362, %c242] : memref<3x257xf32, #tpu.memory_space<smem>>
      %1119 = vector.broadcast %1118 : f32 to vector<24x128xf32>
      %1120 = arith.mulf %1119, %1105 : vector<24x128xf32>
      %1121 = arith.addf %1117, %1120 : vector<24x128xf32>
      %c117_i32_363 = arith.constant 117 : i32
      %1122 = tpu.dynamic_rotate %976 by %c117_i32_363 dim 1 : vector<24x128xf32>, i32 -> vector<24x128xf32>
      %c117_i32_364 = arith.constant 117 : i32
      %1123 = tpu.dynamic_rotate %979 by %c117_i32_364 dim 1 : vector<24x128xf32>, i32 -> vector<24x128xf32>
      %c1_365 = arith.constant 1 : index
      %c162 = arith.constant 162 : index
      %1124 = memref.load %arg1[%c1_365, %c162] : memref<3x257xf32, #tpu.memory_space<smem>>
      %1125 = vector.broadcast %1124 : f32 to vector<24x128xf32>
      %1126 = arith.mulf %1125, %1122 : vector<24x128xf32>
      %1127 = arith.addf %1113, %1126 : vector<24x128xf32>
      %c1_366 = arith.constant 1 : index
      %c189 = arith.constant 189 : index
      %1128 = memref.load %arg1[%c1_366, %c189] : memref<3x257xf32, #tpu.memory_space<smem>>
      %1129 = vector.broadcast %1128 : f32 to vector<24x128xf32>
      %1130 = arith.mulf %1129, %1123 : vector<24x128xf32>
      %1131 = arith.addf %1127, %1130 : vector<24x128xf32>
      %c1_367 = arith.constant 1 : index
      %c216 = arith.constant 216 : index
      %1132 = memref.load %arg1[%c1_367, %c216] : memref<3x257xf32, #tpu.memory_space<smem>>
      %1133 = vector.broadcast %1132 : f32 to vector<24x128xf32>
      %1134 = arith.mulf %1133, %1122 : vector<24x128xf32>
      %1135 = arith.addf %1121, %1134 : vector<24x128xf32>
      %c1_368 = arith.constant 1 : index
      %c243 = arith.constant 243 : index
      %1136 = memref.load %arg1[%c1_368, %c243] : memref<3x257xf32, #tpu.memory_space<smem>>
      %1137 = vector.broadcast %1136 : f32 to vector<24x128xf32>
      %1138 = arith.mulf %1137, %1123 : vector<24x128xf32>
      %1139 = arith.addf %1135, %1138 : vector<24x128xf32>
      %c1_369 = arith.constant 1 : index
      %c244 = arith.constant 244 : index
      %1140 = memref.load %arg1[%c1_369, %c244] : memref<3x257xf32, #tpu.memory_space<smem>>
      %1141 = vector.broadcast %1140 : f32 to vector<24x128xf32>
      %1142 = arith.addf %1131, %1141 : vector<24x128xf32>
      %c1_370 = arith.constant 1 : index
      %c245 = arith.constant 245 : index
      %1143 = memref.load %arg1[%c1_370, %c245] : memref<3x257xf32, #tpu.memory_space<smem>>
      %1144 = vector.broadcast %1143 : f32 to vector<24x128xf32>
      %1145 = arith.addf %1139, %1144 : vector<24x128xf32>
      %c1_371 = arith.constant 1 : index
      %c246 = arith.constant 246 : index
      %1146 = memref.load %arg1[%c1_371, %c246] : memref<3x257xf32, #tpu.memory_space<smem>>
      %1147 = vector.broadcast %1146 : f32 to vector<24x128xf32>
      %1148 = arith.mulf %1147, %1142 : vector<24x128xf32>
      %c1_372 = arith.constant 1 : index
      %c247 = arith.constant 247 : index
      %1149 = memref.load %arg1[%c1_372, %c247] : memref<3x257xf32, #tpu.memory_space<smem>>
      %1150 = vector.broadcast %1149 : f32 to vector<24x128xf32>
      %1151 = arith.mulf %1150, %1145 : vector<24x128xf32>
      %1152 = arith.addf %1148, %1151 : vector<24x128xf32>
      %c1_373 = arith.constant 1 : index
      %c250 = arith.constant 250 : index
      %1153 = memref.load %arg1[%c1_373, %c250] : memref<3x257xf32, #tpu.memory_space<smem>>
      %1154 = vector.broadcast %1153 : f32 to vector<24x128xf32>
      %1155 = arith.addf %1152, %1154 : vector<24x128xf32>
      %c1_374 = arith.constant 1 : index
      %c248 = arith.constant 248 : index
      %1156 = memref.load %arg1[%c1_374, %c248] : memref<3x257xf32, #tpu.memory_space<smem>>
      %1157 = vector.broadcast %1156 : f32 to vector<24x128xf32>
      %1158 = arith.mulf %1157, %1142 : vector<24x128xf32>
      %c1_375 = arith.constant 1 : index
      %c249 = arith.constant 249 : index
      %1159 = memref.load %arg1[%c1_375, %c249] : memref<3x257xf32, #tpu.memory_space<smem>>
      %1160 = vector.broadcast %1159 : f32 to vector<24x128xf32>
      %1161 = arith.mulf %1160, %1145 : vector<24x128xf32>
      %1162 = arith.addf %1158, %1161 : vector<24x128xf32>
      %c1_376 = arith.constant 1 : index
      %c251 = arith.constant 251 : index
      %1163 = memref.load %arg1[%c1_376, %c251] : memref<3x257xf32, #tpu.memory_space<smem>>
      %1164 = vector.broadcast %1163 : f32 to vector<24x128xf32>
      %1165 = arith.addf %1162, %1164 : vector<24x128xf32>
      %1166 = arith.mulf %1155, %0 : vector<24x128xf32>
      %1167 = arith.mulf %1165, %0 : vector<24x128xf32>
      %1168 = vector.shape_cast %1166 : vector<24x128xf32> to vector<1x24x128xf32>
      %cst_377 = arith.constant dense<0.000000e+00> : vector<1xf32>
      %1169 = vector.multi_reduction <add>, %1168, %cst_377 [1, 2] : vector<1x24x128xf32> to vector<1xf32>
      %1170 = vector.shape_cast %1169 : vector<1xf32> to vector<1x1x1xf32>
      %1171 = vector.extract %1170[0, 0, 0] : f32 from vector<1x1x1xf32>
      %cst_378 = arith.constant 9.765625E-4 : f32
      %1172 = arith.mulf %1171, %cst_378 : f32
      %1173 = arith.mulf %1166, %1166 : vector<24x128xf32>
      %1174 = vector.shape_cast %1173 : vector<24x128xf32> to vector<1x24x128xf32>
      %cst_379 = arith.constant dense<0.000000e+00> : vector<1xf32>
      %1175 = vector.multi_reduction <add>, %1174, %cst_379 [1, 2] : vector<1x24x128xf32> to vector<1xf32>
      %1176 = vector.shape_cast %1175 : vector<1xf32> to vector<1x1x1xf32>
      %1177 = vector.extract %1176[0, 0, 0] : f32 from vector<1x1x1xf32>
      %cst_380 = arith.constant 9.765625E-4 : f32
      %1178 = arith.mulf %1177, %cst_380 : f32
      %1179 = arith.mulf %1172, %1172 : f32
      %1180 = arith.subf %1178, %1179 : f32
      %c1_381 = arith.constant 1 : index
      %c252 = arith.constant 252 : index
      %1181 = memref.load %arg1[%c1_381, %c252] : memref<3x257xf32, #tpu.memory_space<smem>>
      %cst_382 = arith.constant 9.99999974E-6 : f32
      %1182 = arith.addf %1180, %cst_382 : f32
      %1183 = math.rsqrt %1182 : f32
      %1184 = arith.mulf %1181, %1183 : f32
      %c1_383 = arith.constant 1 : index
      %c254 = arith.constant 254 : index
      %1185 = memref.load %arg1[%c1_383, %c254] : memref<3x257xf32, #tpu.memory_space<smem>>
      %1186 = arith.mulf %1172, %1184 : f32
      %1187 = arith.subf %1185, %1186 : f32
      %1188 = vector.broadcast %1184 : f32 to vector<24x128xf32>
      %1189 = arith.mulf %1166, %1188 : vector<24x128xf32>
      %1190 = vector.broadcast %1187 : f32 to vector<24x128xf32>
      %1191 = arith.addf %1189, %1190 : vector<24x128xf32>
      %cst_384 = arith.constant 0.000000e+00 : f32
      %1192 = vector.broadcast %cst_384 : f32 to vector<24x128xf32>
      %1193 = arith.maximumf %1191, %1192 : vector<24x128xf32>
      %1194 = arith.mulf %1193, %0 : vector<24x128xf32>
      %1195 = vector.shape_cast %1167 : vector<24x128xf32> to vector<1x24x128xf32>
      %cst_385 = arith.constant dense<0.000000e+00> : vector<1xf32>
      %1196 = vector.multi_reduction <add>, %1195, %cst_385 [1, 2] : vector<1x24x128xf32> to vector<1xf32>
      %1197 = vector.shape_cast %1196 : vector<1xf32> to vector<1x1x1xf32>
      %1198 = vector.extract %1197[0, 0, 0] : f32 from vector<1x1x1xf32>
      %cst_386 = arith.constant 9.765625E-4 : f32
      %1199 = arith.mulf %1198, %cst_386 : f32
      %1200 = arith.mulf %1167, %1167 : vector<24x128xf32>
      %1201 = vector.shape_cast %1200 : vector<24x128xf32> to vector<1x24x128xf32>
      %cst_387 = arith.constant dense<0.000000e+00> : vector<1xf32>
      %1202 = vector.multi_reduction <add>, %1201, %cst_387 [1, 2] : vector<1x24x128xf32> to vector<1xf32>
      %1203 = vector.shape_cast %1202 : vector<1xf32> to vector<1x1x1xf32>
      %1204 = vector.extract %1203[0, 0, 0] : f32 from vector<1x1x1xf32>
      %cst_388 = arith.constant 9.765625E-4 : f32
      %1205 = arith.mulf %1204, %cst_388 : f32
      %1206 = arith.mulf %1199, %1199 : f32
      %1207 = arith.subf %1205, %1206 : f32
      %c1_389 = arith.constant 1 : index
      %c253 = arith.constant 253 : index
      %1208 = memref.load %arg1[%c1_389, %c253] : memref<3x257xf32, #tpu.memory_space<smem>>
      %cst_390 = arith.constant 9.99999974E-6 : f32
      %1209 = arith.addf %1207, %cst_390 : f32
      %1210 = math.rsqrt %1209 : f32
      %1211 = arith.mulf %1208, %1210 : f32
      %c1_391 = arith.constant 1 : index
      %c255 = arith.constant 255 : index
      %1212 = memref.load %arg1[%c1_391, %c255] : memref<3x257xf32, #tpu.memory_space<smem>>
      %1213 = arith.mulf %1199, %1211 : f32
      %1214 = arith.subf %1212, %1213 : f32
      %1215 = vector.broadcast %1211 : f32 to vector<24x128xf32>
      %1216 = arith.mulf %1167, %1215 : vector<24x128xf32>
      %1217 = vector.broadcast %1214 : f32 to vector<24x128xf32>
      %1218 = arith.addf %1216, %1217 : vector<24x128xf32>
      %cst_392 = arith.constant 0.000000e+00 : f32
      %1219 = vector.broadcast %cst_392 : f32 to vector<24x128xf32>
      %1220 = arith.maximumf %1218, %1219 : vector<24x128xf32>
      %1221 = arith.mulf %1220, %0 : vector<24x128xf32>
      %c1_393 = arith.constant 1 : index
      %c256 = arith.constant 256 : index
      %1222 = memref.load %arg1[%c1_393, %c256] : memref<3x257xf32, #tpu.memory_space<smem>>
      %1223 = arith.addf %2, %600 : vector<24x128xf32>
      %1224 = vector.broadcast %1222 : f32 to vector<24x128xf32>
      %1225 = arith.mulf %1224, %1223 : vector<24x128xf32>
      %c0_394 = arith.constant 0 : index
      %c0_395 = arith.constant 0 : index
      %c0_396 = arith.constant 0 : index
      %c0_397 = arith.constant 0 : index
      %1226 = vector.load %arg4[%c0_394, %c0_395, %c0_396, %c0_397] : memref<1x4x24x128xf32, #tpu.memory_space<vmem>>, vector<1x1x24x128xf32>
      %1227 = vector.shape_cast %1226 : vector<1x1x24x128xf32> to vector<24x128xf32>
      %1228 = vector.shape_cast %1225 : vector<24x128xf32> to vector<1x1x24x128xf32>
      tpu.vector_store %arg4[%c0_394, %c0_395, %c0_396, %c0_397], %1228 {strides = array<i32>} : memref<1x4x24x128xf32, #tpu.memory_space<vmem>>, vector<1x1x24x128xf32>,
      %1229 = arith.addf %4, %627 : vector<24x128xf32>
      %1230 = vector.broadcast %1222 : f32 to vector<24x128xf32>
      %1231 = arith.mulf %1230, %1229 : vector<24x128xf32>
      %c0_398 = arith.constant 0 : index
      %c1_399 = arith.constant 1 : index
      %c0_400 = arith.constant 0 : index
      %c0_401 = arith.constant 0 : index
      %1232 = vector.load %arg4[%c0_398, %c1_399, %c0_400, %c0_401] : memref<1x4x24x128xf32, #tpu.memory_space<vmem>>, vector<1x1x24x128xf32>
      %1233 = vector.shape_cast %1232 : vector<1x1x24x128xf32> to vector<24x128xf32>
      %1234 = vector.shape_cast %1231 : vector<24x128xf32> to vector<1x1x24x128xf32>
      tpu.vector_store %arg4[%c0_398, %c1_399, %c0_400, %c0_401], %1234 {strides = array<i32>} : memref<1x4x24x128xf32, #tpu.memory_space<vmem>>, vector<1x1x24x128xf32>,
      %1235 = arith.addf %6, %1194 : vector<24x128xf32>
      %1236 = vector.broadcast %1222 : f32 to vector<24x128xf32>
      %1237 = arith.mulf %1236, %1235 : vector<24x128xf32>
      %c0_402 = arith.constant 0 : index
      %c2_403 = arith.constant 2 : index
      %c0_404 = arith.constant 0 : index
      %c0_405 = arith.constant 0 : index
      %1238 = vector.load %arg4[%c0_402, %c2_403, %c0_404, %c0_405] : memref<1x4x24x128xf32, #tpu.memory_space<vmem>>, vector<1x1x24x128xf32>
      %1239 = vector.shape_cast %1238 : vector<1x1x24x128xf32> to vector<24x128xf32>
      %1240 = vector.shape_cast %1237 : vector<24x128xf32> to vector<1x1x24x128xf32>
      tpu.vector_store %arg4[%c0_402, %c2_403, %c0_404, %c0_405], %1240 {strides = array<i32>} : memref<1x4x24x128xf32, #tpu.memory_space<vmem>>, vector<1x1x24x128xf32>,
      %1241 = arith.addf %8, %1221 : vector<24x128xf32>
      %1242 = vector.broadcast %1222 : f32 to vector<24x128xf32>
      %1243 = arith.mulf %1242, %1241 : vector<24x128xf32>
      %c0_406 = arith.constant 0 : index
      %c3_407 = arith.constant 3 : index
      %c0_408 = arith.constant 0 : index
      %c0_409 = arith.constant 0 : index
      %1244 = vector.load %arg4[%c0_406, %c3_407, %c0_408, %c0_409] : memref<1x4x24x128xf32, #tpu.memory_space<vmem>>, vector<1x1x24x128xf32>
      %1245 = vector.shape_cast %1244 : vector<1x1x24x128xf32> to vector<24x128xf32>
      %1246 = vector.shape_cast %1243 : vector<24x128xf32> to vector<1x1x24x128xf32>
      tpu.vector_store %arg4[%c0_406, %c3_407, %c0_408, %c0_409], %1246 {strides = array<i32>} : memref<1x4x24x128xf32, #tpu.memory_space<vmem>>, vector<1x1x24x128xf32>,
    } else {
    }
    %c2_i32 = arith.constant 2 : i32
    %15 = arith.cmpi eq, %arg0, %c2_i32 : i32
    %16 = arith.extui %15 : i1 to i32
    %c0_i32_12 = arith.constant 0 : i32
    %17 = arith.cmpi ne, %16, %c0_i32_12 : i32
    scf.if %17 {
      %c2_13 = arith.constant 2 : index
      %c0_14 = arith.constant 0 : index
      %18 = memref.load %arg1[%c2_13, %c0_14] : memref<3x257xf32, #tpu.memory_space<smem>>
      %19 = vector.broadcast %18 : f32 to vector<24x128xf32>
      %20 = arith.mulf %19, %2 : vector<24x128xf32>
      %c2_15 = arith.constant 2 : index
      %c1_16 = arith.constant 1 : index
      %21 = memref.load %arg1[%c2_15, %c1_16] : memref<3x257xf32, #tpu.memory_space<smem>>
      %22 = vector.broadcast %21 : f32 to vector<24x128xf32>
      %23 = arith.mulf %22, %4 : vector<24x128xf32>
      %24 = arith.addf %20, %23 : vector<24x128xf32>
      %c2_17 = arith.constant 2 : index
      %c2_18 = arith.constant 2 : index
      %25 = memref.load %arg1[%c2_17, %c2_18] : memref<3x257xf32, #tpu.memory_space<smem>>
      %26 = vector.broadcast %25 : f32 to vector<24x128xf32>
      %27 = arith.mulf %26, %6 : vector<24x128xf32>
      %28 = arith.addf %24, %27 : vector<24x128xf32>
      %c2_19 = arith.constant 2 : index
      %c3_20 = arith.constant 3 : index
      %29 = memref.load %arg1[%c2_19, %c3_20] : memref<3x257xf32, #tpu.memory_space<smem>>
      %30 = vector.broadcast %29 : f32 to vector<24x128xf32>
      %31 = arith.mulf %30, %8 : vector<24x128xf32>
      %32 = arith.addf %28, %31 : vector<24x128xf32>
      %c2_21 = arith.constant 2 : index
      %c8 = arith.constant 8 : index
      %33 = memref.load %arg1[%c2_21, %c8] : memref<3x257xf32, #tpu.memory_space<smem>>
      %34 = vector.broadcast %33 : f32 to vector<24x128xf32>
      %35 = arith.addf %32, %34 : vector<24x128xf32>
      %c2_22 = arith.constant 2 : index
      %c4 = arith.constant 4 : index
      %36 = memref.load %arg1[%c2_22, %c4] : memref<3x257xf32, #tpu.memory_space<smem>>
      %37 = vector.broadcast %36 : f32 to vector<24x128xf32>
      %38 = arith.mulf %37, %2 : vector<24x128xf32>
      %c2_23 = arith.constant 2 : index
      %c5 = arith.constant 5 : index
      %39 = memref.load %arg1[%c2_23, %c5] : memref<3x257xf32, #tpu.memory_space<smem>>
      %40 = vector.broadcast %39 : f32 to vector<24x128xf32>
      %41 = arith.mulf %40, %4 : vector<24x128xf32>
      %42 = arith.addf %38, %41 : vector<24x128xf32>
      %c2_24 = arith.constant 2 : index
      %c6 = arith.constant 6 : index
      %43 = memref.load %arg1[%c2_24, %c6] : memref<3x257xf32, #tpu.memory_space<smem>>
      %44 = vector.broadcast %43 : f32 to vector<24x128xf32>
      %45 = arith.mulf %44, %6 : vector<24x128xf32>
      %46 = arith.addf %42, %45 : vector<24x128xf32>
      %c2_25 = arith.constant 2 : index
      %c7 = arith.constant 7 : index
      %47 = memref.load %arg1[%c2_25, %c7] : memref<3x257xf32, #tpu.memory_space<smem>>
      %48 = vector.broadcast %47 : f32 to vector<24x128xf32>
      %49 = arith.mulf %48, %8 : vector<24x128xf32>
      %50 = arith.addf %46, %49 : vector<24x128xf32>
      %c2_26 = arith.constant 2 : index
      %c9 = arith.constant 9 : index
      %51 = memref.load %arg1[%c2_26, %c9] : memref<3x257xf32, #tpu.memory_space<smem>>
      %52 = vector.broadcast %51 : f32 to vector<24x128xf32>
      %53 = arith.addf %50, %52 : vector<24x128xf32>
      %54 = arith.mulf %35, %0 : vector<24x128xf32>
      %55 = arith.mulf %53, %0 : vector<24x128xf32>
      %cst = arith.constant 0.000000e+00 : f32
      %56 = vector.broadcast %cst : f32 to vector<1x128xf32>
      %57 = vector.extract_strided_slice %54 {offsets = [0, 0], sizes = [23, 128], strides = [1, 1]} : vector<24x128xf32> to vector<23x128xf32>
      %58 = tpu.concatenate %56, %57 in 0 : vector<1x128xf32>, vector<23x128xf32> -> vector<24x128xf32>
      %cst_27 = arith.constant 0.000000e+00 : f32
      %59 = vector.broadcast %cst_27 : f32 to vector<1x128xf32>
      %60 = vector.extract_strided_slice %55 {offsets = [0, 0], sizes = [23, 128], strides = [1, 1]} : vector<24x128xf32> to vector<23x128xf32>
      %61 = tpu.concatenate %59, %60 in 0 : vector<1x128xf32>, vector<23x128xf32> -> vector<24x128xf32>
      %c10_i32 = arith.constant 10 : i32
      %62 = tpu.dynamic_rotate %58 by %c10_i32 dim 1 : vector<24x128xf32>, i32 -> vector<24x128xf32>
      %c10_i32_28 = arith.constant 10 : i32
      %63 = tpu.dynamic_rotate %61 by %c10_i32_28 dim 1 : vector<24x128xf32>, i32 -> vector<24x128xf32>
      %c2_29 = arith.constant 2 : index
      %c10 = arith.constant 10 : index
      %64 = memref.load %arg1[%c2_29, %c10] : memref<3x257xf32, #tpu.memory_space<smem>>
      %65 = vector.broadcast %64 : f32 to vector<24x128xf32>
      %66 = arith.mulf %65, %62 : vector<24x128xf32>
      %c2_30 = arith.constant 2 : index
      %c19 = arith.constant 19 : index
      %67 = memref.load %arg1[%c2_30, %c19] : memref<3x257xf32, #tpu.memory_space<smem>>
      %68 = vector.broadcast %67 : f32 to vector<24x128xf32>
      %69 = arith.mulf %68, %63 : vector<24x128xf32>
      %70 = arith.addf %66, %69 : vector<24x128xf32>
      %c2_31 = arith.constant 2 : index
      %c28 = arith.constant 28 : index
      %71 = memref.load %arg1[%c2_31, %c28] : memref<3x257xf32, #tpu.memory_space<smem>>
      %72 = vector.broadcast %71 : f32 to vector<24x128xf32>
      %73 = arith.mulf %72, %62 : vector<24x128xf32>
      %c2_32 = arith.constant 2 : index
      %c37 = arith.constant 37 : index
      %74 = memref.load %arg1[%c2_32, %c37] : memref<3x257xf32, #tpu.memory_space<smem>>
      %75 = vector.broadcast %74 : f32 to vector<24x128xf32>
      %76 = arith.mulf %75, %63 : vector<24x128xf32>
      %77 = arith.addf %73, %76 : vector<24x128xf32>
      %c2_33 = arith.constant 2 : index
      %c11 = arith.constant 11 : index
      %78 = memref.load %arg1[%c2_33, %c11] : memref<3x257xf32, #tpu.memory_space<smem>>
      %79 = vector.broadcast %78 : f32 to vector<24x128xf32>
      %80 = arith.mulf %79, %58 : vector<24x128xf32>
      %81 = arith.addf %70, %80 : vector<24x128xf32>
      %c2_34 = arith.constant 2 : index
      %c20 = arith.constant 20 : index
      %82 = memref.load %arg1[%c2_34, %c20] : memref<3x257xf32, #tpu.memory_space<smem>>
      %83 = vector.broadcast %82 : f32 to vector<24x128xf32>
      %84 = arith.mulf %83, %61 : vector<24x128xf32>
      %85 = arith.addf %81, %84 : vector<24x128xf32>
      %c2_35 = arith.constant 2 : index
      %c29 = arith.constant 29 : index
      %86 = memref.load %arg1[%c2_35, %c29] : memref<3x257xf32, #tpu.memory_space<smem>>
      %87 = vector.broadcast %86 : f32 to vector<24x128xf32>
      %88 = arith.mulf %87, %58 : vector<24x128xf32>
      %89 = arith.addf %77, %88 : vector<24x128xf32>
      %c2_36 = arith.constant 2 : index
      %c38 = arith.constant 38 : index
      %90 = memref.load %arg1[%c2_36, %c38] : memref<3x257xf32, #tpu.memory_space<smem>>
      %91 = vector.broadcast %90 : f32 to vector<24x128xf32>
      %92 = arith.mulf %91, %61 : vector<24x128xf32>
      %93 = arith.addf %89, %92 : vector<24x128xf32>
      %c118_i32 = arith.constant 118 : i32
      %94 = tpu.dynamic_rotate %58 by %c118_i32 dim 1 : vector<24x128xf32>, i32 -> vector<24x128xf32>
      %c118_i32_37 = arith.constant 118 : i32
      %95 = tpu.dynamic_rotate %61 by %c118_i32_37 dim 1 : vector<24x128xf32>, i32 -> vector<24x128xf32>
      %c2_38 = arith.constant 2 : index
      %c12 = arith.constant 12 : index
      %96 = memref.load %arg1[%c2_38, %c12] : memref<3x257xf32, #tpu.memory_space<smem>>
      %97 = vector.broadcast %96 : f32 to vector<24x128xf32>
      %98 = arith.mulf %97, %94 : vector<24x128xf32>
      %99 = arith.addf %85, %98 : vector<24x128xf32>
      %c2_39 = arith.constant 2 : index
      %c21 = arith.constant 21 : index
      %100 = memref.load %arg1[%c2_39, %c21] : memref<3x257xf32, #tpu.memory_space<smem>>
      %101 = vector.broadcast %100 : f32 to vector<24x128xf32>
      %102 = arith.mulf %101, %95 : vector<24x128xf32>
      %103 = arith.addf %99, %102 : vector<24x128xf32>
      %c2_40 = arith.constant 2 : index
      %c30 = arith.constant 30 : index
      %104 = memref.load %arg1[%c2_40, %c30] : memref<3x257xf32, #tpu.memory_space<smem>>
      %105 = vector.broadcast %104 : f32 to vector<24x128xf32>
      %106 = arith.mulf %105, %94 : vector<24x128xf32>
      %107 = arith.addf %93, %106 : vector<24x128xf32>
      %c2_41 = arith.constant 2 : index
      %c39 = arith.constant 39 : index
      %108 = memref.load %arg1[%c2_41, %c39] : memref<3x257xf32, #tpu.memory_space<smem>>
      %109 = vector.broadcast %108 : f32 to vector<24x128xf32>
      %110 = arith.mulf %109, %95 : vector<24x128xf32>
      %111 = arith.addf %107, %110 : vector<24x128xf32>
      %c10_i32_42 = arith.constant 10 : i32
      %112 = tpu.dynamic_rotate %54 by %c10_i32_42 dim 1 : vector<24x128xf32>, i32 -> vector<24x128xf32>
      %c10_i32_43 = arith.constant 10 : i32
      %113 = tpu.dynamic_rotate %55 by %c10_i32_43 dim 1 : vector<24x128xf32>, i32 -> vector<24x128xf32>
      %c2_44 = arith.constant 2 : index
      %c13 = arith.constant 13 : index
      %114 = memref.load %arg1[%c2_44, %c13] : memref<3x257xf32, #tpu.memory_space<smem>>
      %115 = vector.broadcast %114 : f32 to vector<24x128xf32>
      %116 = arith.mulf %115, %112 : vector<24x128xf32>
      %117 = arith.addf %103, %116 : vector<24x128xf32>
      %c2_45 = arith.constant 2 : index
      %c22 = arith.constant 22 : index
      %118 = memref.load %arg1[%c2_45, %c22] : memref<3x257xf32, #tpu.memory_space<smem>>
      %119 = vector.broadcast %118 : f32 to vector<24x128xf32>
      %120 = arith.mulf %119, %113 : vector<24x128xf32>
      %121 = arith.addf %117, %120 : vector<24x128xf32>
      %c2_46 = arith.constant 2 : index
      %c31 = arith.constant 31 : index
      %122 = memref.load %arg1[%c2_46, %c31] : memref<3x257xf32, #tpu.memory_space<smem>>
      %123 = vector.broadcast %122 : f32 to vector<24x128xf32>
      %124 = arith.mulf %123, %112 : vector<24x128xf32>
      %125 = arith.addf %111, %124 : vector<24x128xf32>
      %c2_47 = arith.constant 2 : index
      %c40 = arith.constant 40 : index
      %126 = memref.load %arg1[%c2_47, %c40] : memref<3x257xf32, #tpu.memory_space<smem>>
      %127 = vector.broadcast %126 : f32 to vector<24x128xf32>
      %128 = arith.mulf %127, %113 : vector<24x128xf32>
      %129 = arith.addf %125, %128 : vector<24x128xf32>
      %c2_48 = arith.constant 2 : index
      %c14 = arith.constant 14 : index
      %130 = memref.load %arg1[%c2_48, %c14] : memref<3x257xf32, #tpu.memory_space<smem>>
      %131 = vector.broadcast %130 : f32 to vector<24x128xf32>
      %132 = arith.mulf %131, %54 : vector<24x128xf32>
      %133 = arith.addf %121, %132 : vector<24x128xf32>
      %c2_49 = arith.constant 2 : index
      %c23 = arith.constant 23 : index
      %134 = memref.load %arg1[%c2_49, %c23] : memref<3x257xf32, #tpu.memory_space<smem>>
      %135 = vector.broadcast %134 : f32 to vector<24x128xf32>
      %136 = arith.mulf %135, %55 : vector<24x128xf32>
      %137 = arith.addf %133, %136 : vector<24x128xf32>
      %c2_50 = arith.constant 2 : index
      %c32 = arith.constant 32 : index
      %138 = memref.load %arg1[%c2_50, %c32] : memref<3x257xf32, #tpu.memory_space<smem>>
      %139 = vector.broadcast %138 : f32 to vector<24x128xf32>
      %140 = arith.mulf %139, %54 : vector<24x128xf32>
      %141 = arith.addf %129, %140 : vector<24x128xf32>
      %c2_51 = arith.constant 2 : index
      %c41 = arith.constant 41 : index
      %142 = memref.load %arg1[%c2_51, %c41] : memref<3x257xf32, #tpu.memory_space<smem>>
      %143 = vector.broadcast %142 : f32 to vector<24x128xf32>
      %144 = arith.mulf %143, %55 : vector<24x128xf32>
      %145 = arith.addf %141, %144 : vector<24x128xf32>
      %c118_i32_52 = arith.constant 118 : i32
      %146 = tpu.dynamic_rotate %54 by %c118_i32_52 dim 1 : vector<24x128xf32>, i32 -> vector<24x128xf32>
      %c118_i32_53 = arith.constant 118 : i32
      %147 = tpu.dynamic_rotate %55 by %c118_i32_53 dim 1 : vector<24x128xf32>, i32 -> vector<24x128xf32>
      %c2_54 = arith.constant 2 : index
      %c15 = arith.constant 15 : index
      %148 = memref.load %arg1[%c2_54, %c15] : memref<3x257xf32, #tpu.memory_space<smem>>
      %149 = vector.broadcast %148 : f32 to vector<24x128xf32>
      %150 = arith.mulf %149, %146 : vector<24x128xf32>
      %151 = arith.addf %137, %150 : vector<24x128xf32>
      %c2_55 = arith.constant 2 : index
      %c24 = arith.constant 24 : index
      %152 = memref.load %arg1[%c2_55, %c24] : memref<3x257xf32, #tpu.memory_space<smem>>
      %153 = vector.broadcast %152 : f32 to vector<24x128xf32>
      %154 = arith.mulf %153, %147 : vector<24x128xf32>
      %155 = arith.addf %151, %154 : vector<24x128xf32>
      %c2_56 = arith.constant 2 : index
      %c33 = arith.constant 33 : index
      %156 = memref.load %arg1[%c2_56, %c33] : memref<3x257xf32, #tpu.memory_space<smem>>
      %157 = vector.broadcast %156 : f32 to vector<24x128xf32>
      %158 = arith.mulf %157, %146 : vector<24x128xf32>
      %159 = arith.addf %145, %158 : vector<24x128xf32>
      %c2_57 = arith.constant 2 : index
      %c42 = arith.constant 42 : index
      %160 = memref.load %arg1[%c2_57, %c42] : memref<3x257xf32, #tpu.memory_space<smem>>
      %161 = vector.broadcast %160 : f32 to vector<24x128xf32>
      %162 = arith.mulf %161, %147 : vector<24x128xf32>
      %163 = arith.addf %159, %162 : vector<24x128xf32>
      %164 = vector.extract_strided_slice %54 {offsets = [1, 0], sizes = [23, 128], strides = [1, 1]} : vector<24x128xf32> to vector<23x128xf32>
      %cst_58 = arith.constant 0.000000e+00 : f32
      %165 = vector.broadcast %cst_58 : f32 to vector<1x128xf32>
      %166 = tpu.concatenate %164, %165 in 0 : vector<23x128xf32>, vector<1x128xf32> -> vector<24x128xf32>
      %167 = vector.extract_strided_slice %55 {offsets = [1, 0], sizes = [23, 128], strides = [1, 1]} : vector<24x128xf32> to vector<23x128xf32>
      %cst_59 = arith.constant 0.000000e+00 : f32
      %168 = vector.broadcast %cst_59 : f32 to vector<1x128xf32>
      %169 = tpu.concatenate %167, %168 in 0 : vector<23x128xf32>, vector<1x128xf32> -> vector<24x128xf32>
      %c10_i32_60 = arith.constant 10 : i32
      %170 = tpu.dynamic_rotate %166 by %c10_i32_60 dim 1 : vector<24x128xf32>, i32 -> vector<24x128xf32>
      %c10_i32_61 = arith.constant 10 : i32
      %171 = tpu.dynamic_rotate %169 by %c10_i32_61 dim 1 : vector<24x128xf32>, i32 -> vector<24x128xf32>
      %c2_62 = arith.constant 2 : index
      %c16 = arith.constant 16 : index
      %172 = memref.load %arg1[%c2_62, %c16] : memref<3x257xf32, #tpu.memory_space<smem>>
      %173 = vector.broadcast %172 : f32 to vector<24x128xf32>
      %174 = arith.mulf %173, %170 : vector<24x128xf32>
      %175 = arith.addf %155, %174 : vector<24x128xf32>
      %c2_63 = arith.constant 2 : index
      %c25 = arith.constant 25 : index
      %176 = memref.load %arg1[%c2_63, %c25] : memref<3x257xf32, #tpu.memory_space<smem>>
      %177 = vector.broadcast %176 : f32 to vector<24x128xf32>
      %178 = arith.mulf %177, %171 : vector<24x128xf32>
      %179 = arith.addf %175, %178 : vector<24x128xf32>
      %c2_64 = arith.constant 2 : index
      %c34 = arith.constant 34 : index
      %180 = memref.load %arg1[%c2_64, %c34] : memref<3x257xf32, #tpu.memory_space<smem>>
      %181 = vector.broadcast %180 : f32 to vector<24x128xf32>
      %182 = arith.mulf %181, %170 : vector<24x128xf32>
      %183 = arith.addf %163, %182 : vector<24x128xf32>
      %c2_65 = arith.constant 2 : index
      %c43 = arith.constant 43 : index
      %184 = memref.load %arg1[%c2_65, %c43] : memref<3x257xf32, #tpu.memory_space<smem>>
      %185 = vector.broadcast %184 : f32 to vector<24x128xf32>
      %186 = arith.mulf %185, %171 : vector<24x128xf32>
      %187 = arith.addf %183, %186 : vector<24x128xf32>
      %c2_66 = arith.constant 2 : index
      %c17 = arith.constant 17 : index
      %188 = memref.load %arg1[%c2_66, %c17] : memref<3x257xf32, #tpu.memory_space<smem>>
      %189 = vector.broadcast %188 : f32 to vector<24x128xf32>
      %190 = arith.mulf %189, %166 : vector<24x128xf32>
      %191 = arith.addf %179, %190 : vector<24x128xf32>
      %c2_67 = arith.constant 2 : index
      %c26 = arith.constant 26 : index
      %192 = memref.load %arg1[%c2_67, %c26] : memref<3x257xf32, #tpu.memory_space<smem>>
      %193 = vector.broadcast %192 : f32 to vector<24x128xf32>
      %194 = arith.mulf %193, %169 : vector<24x128xf32>
      %195 = arith.addf %191, %194 : vector<24x128xf32>
      %c2_68 = arith.constant 2 : index
      %c35 = arith.constant 35 : index
      %196 = memref.load %arg1[%c2_68, %c35] : memref<3x257xf32, #tpu.memory_space<smem>>
      %197 = vector.broadcast %196 : f32 to vector<24x128xf32>
      %198 = arith.mulf %197, %166 : vector<24x128xf32>
      %199 = arith.addf %187, %198 : vector<24x128xf32>
      %c2_69 = arith.constant 2 : index
      %c44 = arith.constant 44 : index
      %200 = memref.load %arg1[%c2_69, %c44] : memref<3x257xf32, #tpu.memory_space<smem>>
      %201 = vector.broadcast %200 : f32 to vector<24x128xf32>
      %202 = arith.mulf %201, %169 : vector<24x128xf32>
      %203 = arith.addf %199, %202 : vector<24x128xf32>
      %c118_i32_70 = arith.constant 118 : i32
      %204 = tpu.dynamic_rotate %166 by %c118_i32_70 dim 1 : vector<24x128xf32>, i32 -> vector<24x128xf32>
      %c118_i32_71 = arith.constant 118 : i32
      %205 = tpu.dynamic_rotate %169 by %c118_i32_71 dim 1 : vector<24x128xf32>, i32 -> vector<24x128xf32>
      %c2_72 = arith.constant 2 : index
      %c18 = arith.constant 18 : index
      %206 = memref.load %arg1[%c2_72, %c18] : memref<3x257xf32, #tpu.memory_space<smem>>
      %207 = vector.broadcast %206 : f32 to vector<24x128xf32>
      %208 = arith.mulf %207, %204 : vector<24x128xf32>
      %209 = arith.addf %195, %208 : vector<24x128xf32>
      %c2_73 = arith.constant 2 : index
      %c27 = arith.constant 27 : index
      %210 = memref.load %arg1[%c2_73, %c27] : memref<3x257xf32, #tpu.memory_space<smem>>
      %211 = vector.broadcast %210 : f32 to vector<24x128xf32>
      %212 = arith.mulf %211, %205 : vector<24x128xf32>
      %213 = arith.addf %209, %212 : vector<24x128xf32>
      %c2_74 = arith.constant 2 : index
      %c36 = arith.constant 36 : index
      %214 = memref.load %arg1[%c2_74, %c36] : memref<3x257xf32, #tpu.memory_space<smem>>
      %215 = vector.broadcast %214 : f32 to vector<24x128xf32>
      %216 = arith.mulf %215, %204 : vector<24x128xf32>
      %217 = arith.addf %203, %216 : vector<24x128xf32>
      %c2_75 = arith.constant 2 : index
      %c45 = arith.constant 45 : index
      %218 = memref.load %arg1[%c2_75, %c45] : memref<3x257xf32, #tpu.memory_space<smem>>
      %219 = vector.broadcast %218 : f32 to vector<24x128xf32>
      %220 = arith.mulf %219, %205 : vector<24x128xf32>
      %221 = arith.addf %217, %220 : vector<24x128xf32>
      %c2_76 = arith.constant 2 : index
      %c46 = arith.constant 46 : index
      %222 = memref.load %arg1[%c2_76, %c46] : memref<3x257xf32, #tpu.memory_space<smem>>
      %223 = vector.broadcast %222 : f32 to vector<24x128xf32>
      %224 = arith.addf %213, %223 : vector<24x128xf32>
      %c2_77 = arith.constant 2 : index
      %c47 = arith.constant 47 : index
      %225 = memref.load %arg1[%c2_77, %c47] : memref<3x257xf32, #tpu.memory_space<smem>>
      %226 = vector.broadcast %225 : f32 to vector<24x128xf32>
      %227 = arith.addf %221, %226 : vector<24x128xf32>
      %c2_78 = arith.constant 2 : index
      %c48 = arith.constant 48 : index
      %228 = memref.load %arg1[%c2_78, %c48] : memref<3x257xf32, #tpu.memory_space<smem>>
      %229 = vector.broadcast %228 : f32 to vector<24x128xf32>
      %230 = arith.mulf %229, %224 : vector<24x128xf32>
      %c2_79 = arith.constant 2 : index
      %c49 = arith.constant 49 : index
      %231 = memref.load %arg1[%c2_79, %c49] : memref<3x257xf32, #tpu.memory_space<smem>>
      %232 = vector.broadcast %231 : f32 to vector<24x128xf32>
      %233 = arith.mulf %232, %227 : vector<24x128xf32>
      %234 = arith.addf %230, %233 : vector<24x128xf32>
      %c2_80 = arith.constant 2 : index
      %c52 = arith.constant 52 : index
      %235 = memref.load %arg1[%c2_80, %c52] : memref<3x257xf32, #tpu.memory_space<smem>>
      %236 = vector.broadcast %235 : f32 to vector<24x128xf32>
      %237 = arith.addf %234, %236 : vector<24x128xf32>
      %c2_81 = arith.constant 2 : index
      %c50 = arith.constant 50 : index
      %238 = memref.load %arg1[%c2_81, %c50] : memref<3x257xf32, #tpu.memory_space<smem>>
      %239 = vector.broadcast %238 : f32 to vector<24x128xf32>
      %240 = arith.mulf %239, %224 : vector<24x128xf32>
      %c2_82 = arith.constant 2 : index
      %c51 = arith.constant 51 : index
      %241 = memref.load %arg1[%c2_82, %c51] : memref<3x257xf32, #tpu.memory_space<smem>>
      %242 = vector.broadcast %241 : f32 to vector<24x128xf32>
      %243 = arith.mulf %242, %227 : vector<24x128xf32>
      %244 = arith.addf %240, %243 : vector<24x128xf32>
      %c2_83 = arith.constant 2 : index
      %c53 = arith.constant 53 : index
      %245 = memref.load %arg1[%c2_83, %c53] : memref<3x257xf32, #tpu.memory_space<smem>>
      %246 = vector.broadcast %245 : f32 to vector<24x128xf32>
      %247 = arith.addf %244, %246 : vector<24x128xf32>
      %248 = arith.mulf %237, %0 : vector<24x128xf32>
      %249 = arith.mulf %247, %0 : vector<24x128xf32>
      %250 = vector.shape_cast %248 : vector<24x128xf32> to vector<1x24x128xf32>
      %cst_84 = arith.constant dense<0.000000e+00> : vector<1xf32>
      %251 = vector.multi_reduction <add>, %250, %cst_84 [1, 2] : vector<1x24x128xf32> to vector<1xf32>
      %252 = vector.shape_cast %251 : vector<1xf32> to vector<1x1x1xf32>
      %253 = vector.extract %252[0, 0, 0] : f32 from vector<1x1x1xf32>
      %cst_85 = arith.constant 9.765625E-4 : f32
      %254 = arith.mulf %253, %cst_85 : f32
      %255 = arith.mulf %248, %248 : vector<24x128xf32>
      %256 = vector.shape_cast %255 : vector<24x128xf32> to vector<1x24x128xf32>
      %cst_86 = arith.constant dense<0.000000e+00> : vector<1xf32>
      %257 = vector.multi_reduction <add>, %256, %cst_86 [1, 2] : vector<1x24x128xf32> to vector<1xf32>
      %258 = vector.shape_cast %257 : vector<1xf32> to vector<1x1x1xf32>
      %259 = vector.extract %258[0, 0, 0] : f32 from vector<1x1x1xf32>
      %cst_87 = arith.constant 9.765625E-4 : f32
      %260 = arith.mulf %259, %cst_87 : f32
      %261 = arith.mulf %254, %254 : f32
      %262 = arith.subf %260, %261 : f32
      %c2_88 = arith.constant 2 : index
      %c54 = arith.constant 54 : index
      %263 = memref.load %arg1[%c2_88, %c54] : memref<3x257xf32, #tpu.memory_space<smem>>
      %cst_89 = arith.constant 9.99999974E-6 : f32
      %264 = arith.addf %262, %cst_89 : f32
      %265 = math.rsqrt %264 : f32
      %266 = arith.mulf %263, %265 : f32
      %c2_90 = arith.constant 2 : index
      %c56 = arith.constant 56 : index
      %267 = memref.load %arg1[%c2_90, %c56] : memref<3x257xf32, #tpu.memory_space<smem>>
      %268 = arith.mulf %254, %266 : f32
      %269 = arith.subf %267, %268 : f32
      %270 = vector.broadcast %266 : f32 to vector<24x128xf32>
      %271 = arith.mulf %248, %270 : vector<24x128xf32>
      %272 = vector.broadcast %269 : f32 to vector<24x128xf32>
      %273 = arith.addf %271, %272 : vector<24x128xf32>
      %cst_91 = arith.constant 0.000000e+00 : f32
      %274 = vector.broadcast %cst_91 : f32 to vector<24x128xf32>
      %275 = arith.maximumf %273, %274 : vector<24x128xf32>
      %276 = arith.mulf %275, %0 : vector<24x128xf32>
      %277 = vector.shape_cast %249 : vector<24x128xf32> to vector<1x24x128xf32>
      %cst_92 = arith.constant dense<0.000000e+00> : vector<1xf32>
      %278 = vector.multi_reduction <add>, %277, %cst_92 [1, 2] : vector<1x24x128xf32> to vector<1xf32>
      %279 = vector.shape_cast %278 : vector<1xf32> to vector<1x1x1xf32>
      %280 = vector.extract %279[0, 0, 0] : f32 from vector<1x1x1xf32>
      %cst_93 = arith.constant 9.765625E-4 : f32
      %281 = arith.mulf %280, %cst_93 : f32
      %282 = arith.mulf %249, %249 : vector<24x128xf32>
      %283 = vector.shape_cast %282 : vector<24x128xf32> to vector<1x24x128xf32>
      %cst_94 = arith.constant dense<0.000000e+00> : vector<1xf32>
      %284 = vector.multi_reduction <add>, %283, %cst_94 [1, 2] : vector<1x24x128xf32> to vector<1xf32>
      %285 = vector.shape_cast %284 : vector<1xf32> to vector<1x1x1xf32>
      %286 = vector.extract %285[0, 0, 0] : f32 from vector<1x1x1xf32>
      %cst_95 = arith.constant 9.765625E-4 : f32
      %287 = arith.mulf %286, %cst_95 : f32
      %288 = arith.mulf %281, %281 : f32
      %289 = arith.subf %287, %288 : f32
      %c2_96 = arith.constant 2 : index
      %c55 = arith.constant 55 : index
      %290 = memref.load %arg1[%c2_96, %c55] : memref<3x257xf32, #tpu.memory_space<smem>>
      %cst_97 = arith.constant 9.99999974E-6 : f32
      %291 = arith.addf %289, %cst_97 : f32
      %292 = math.rsqrt %291 : f32
      %293 = arith.mulf %290, %292 : f32
      %c2_98 = arith.constant 2 : index
      %c57 = arith.constant 57 : index
      %294 = memref.load %arg1[%c2_98, %c57] : memref<3x257xf32, #tpu.memory_space<smem>>
      %295 = arith.mulf %281, %293 : f32
      %296 = arith.subf %294, %295 : f32
      %297 = vector.broadcast %293 : f32 to vector<24x128xf32>
      %298 = arith.mulf %249, %297 : vector<24x128xf32>
      %299 = vector.broadcast %296 : f32 to vector<24x128xf32>
      %300 = arith.addf %298, %299 : vector<24x128xf32>
      %cst_99 = arith.constant 0.000000e+00 : f32
      %301 = vector.broadcast %cst_99 : f32 to vector<24x128xf32>
      %302 = arith.maximumf %300, %301 : vector<24x128xf32>
      %303 = arith.mulf %302, %0 : vector<24x128xf32>
      %c2_100 = arith.constant 2 : index
      %c58 = arith.constant 58 : index
      %304 = memref.load %arg1[%c2_100, %c58] : memref<3x257xf32, #tpu.memory_space<smem>>
      %305 = vector.broadcast %304 : f32 to vector<24x128xf32>
      %306 = arith.mulf %305, %276 : vector<24x128xf32>
      %c2_101 = arith.constant 2 : index
      %c59 = arith.constant 59 : index
      %307 = memref.load %arg1[%c2_101, %c59] : memref<3x257xf32, #tpu.memory_space<smem>>
      %308 = vector.broadcast %307 : f32 to vector<24x128xf32>
      %309 = arith.mulf %308, %303 : vector<24x128xf32>
      %310 = arith.addf %306, %309 : vector<24x128xf32>
      %c2_102 = arith.constant 2 : index
      %c62 = arith.constant 62 : index
      %311 = memref.load %arg1[%c2_102, %c62] : memref<3x257xf32, #tpu.memory_space<smem>>
      %312 = vector.broadcast %311 : f32 to vector<24x128xf32>
      %313 = arith.addf %310, %312 : vector<24x128xf32>
      %c2_103 = arith.constant 2 : index
      %c60 = arith.constant 60 : index
      %314 = memref.load %arg1[%c2_103, %c60] : memref<3x257xf32, #tpu.memory_space<smem>>
      %315 = vector.broadcast %314 : f32 to vector<24x128xf32>
      %316 = arith.mulf %315, %276 : vector<24x128xf32>
      %c2_104 = arith.constant 2 : index
      %c61 = arith.constant 61 : index
      %317 = memref.load %arg1[%c2_104, %c61] : memref<3x257xf32, #tpu.memory_space<smem>>
      %318 = vector.broadcast %317 : f32 to vector<24x128xf32>
      %319 = arith.mulf %318, %303 : vector<24x128xf32>
      %320 = arith.addf %316, %319 : vector<24x128xf32>
      %c2_105 = arith.constant 2 : index
      %c63 = arith.constant 63 : index
      %321 = memref.load %arg1[%c2_105, %c63] : memref<3x257xf32, #tpu.memory_space<smem>>
      %322 = vector.broadcast %321 : f32 to vector<24x128xf32>
      %323 = arith.addf %320, %322 : vector<24x128xf32>
      %324 = arith.mulf %313, %0 : vector<24x128xf32>
      %325 = arith.mulf %323, %0 : vector<24x128xf32>
      %c1_i32_106 = arith.constant 1 : i32
      %326 = tpu.dynamic_rotate %324 by %c1_i32_106 dim 1 : vector<24x128xf32>, i32 -> vector<24x128xf32>
      %c1_i32_107 = arith.constant 1 : i32
      %327 = tpu.dynamic_rotate %325 by %c1_i32_107 dim 1 : vector<24x128xf32>, i32 -> vector<24x128xf32>
      %c2_108 = arith.constant 2 : index
      %c64 = arith.constant 64 : index
      %328 = memref.load %arg1[%c2_108, %c64] : memref<3x257xf32, #tpu.memory_space<smem>>
      %329 = vector.broadcast %328 : f32 to vector<24x128xf32>
      %330 = arith.mulf %329, %326 : vector<24x128xf32>
      %c2_109 = arith.constant 2 : index
      %c67 = arith.constant 67 : index
      %331 = memref.load %arg1[%c2_109, %c67] : memref<3x257xf32, #tpu.memory_space<smem>>
      %332 = vector.broadcast %331 : f32 to vector<24x128xf32>
      %333 = arith.mulf %332, %327 : vector<24x128xf32>
      %334 = arith.addf %330, %333 : vector<24x128xf32>
      %c2_110 = arith.constant 2 : index
      %c70 = arith.constant 70 : index
      %335 = memref.load %arg1[%c2_110, %c70] : memref<3x257xf32, #tpu.memory_space<smem>>
      %336 = vector.broadcast %335 : f32 to vector<24x128xf32>
      %337 = arith.mulf %336, %326 : vector<24x128xf32>
      %c2_111 = arith.constant 2 : index
      %c73 = arith.constant 73 : index
      %338 = memref.load %arg1[%c2_111, %c73] : memref<3x257xf32, #tpu.memory_space<smem>>
      %339 = vector.broadcast %338 : f32 to vector<24x128xf32>
      %340 = arith.mulf %339, %327 : vector<24x128xf32>
      %341 = arith.addf %337, %340 : vector<24x128xf32>
      %c2_112 = arith.constant 2 : index
      %c65 = arith.constant 65 : index
      %342 = memref.load %arg1[%c2_112, %c65] : memref<3x257xf32, #tpu.memory_space<smem>>
      %343 = vector.broadcast %342 : f32 to vector<24x128xf32>
      %344 = arith.mulf %343, %324 : vector<24x128xf32>
      %345 = arith.addf %334, %344 : vector<24x128xf32>
      %c2_113 = arith.constant 2 : index
      %c68 = arith.constant 68 : index
      %346 = memref.load %arg1[%c2_113, %c68] : memref<3x257xf32, #tpu.memory_space<smem>>
      %347 = vector.broadcast %346 : f32 to vector<24x128xf32>
      %348 = arith.mulf %347, %325 : vector<24x128xf32>
      %349 = arith.addf %345, %348 : vector<24x128xf32>
      %c2_114 = arith.constant 2 : index
      %c71 = arith.constant 71 : index
      %350 = memref.load %arg1[%c2_114, %c71] : memref<3x257xf32, #tpu.memory_space<smem>>
      %351 = vector.broadcast %350 : f32 to vector<24x128xf32>
      %352 = arith.mulf %351, %324 : vector<24x128xf32>
      %353 = arith.addf %341, %352 : vector<24x128xf32>
      %c2_115 = arith.constant 2 : index
      %c74 = arith.constant 74 : index
      %354 = memref.load %arg1[%c2_115, %c74] : memref<3x257xf32, #tpu.memory_space<smem>>
      %355 = vector.broadcast %354 : f32 to vector<24x128xf32>
      %356 = arith.mulf %355, %325 : vector<24x128xf32>
      %357 = arith.addf %353, %356 : vector<24x128xf32>
      %c127_i32 = arith.constant 127 : i32
      %358 = tpu.dynamic_rotate %324 by %c127_i32 dim 1 : vector<24x128xf32>, i32 -> vector<24x128xf32>
      %c127_i32_116 = arith.constant 127 : i32
      %359 = tpu.dynamic_rotate %325 by %c127_i32_116 dim 1 : vector<24x128xf32>, i32 -> vector<24x128xf32>
      %c2_117 = arith.constant 2 : index
      %c66 = arith.constant 66 : index
      %360 = memref.load %arg1[%c2_117, %c66] : memref<3x257xf32, #tpu.memory_space<smem>>
      %361 = vector.broadcast %360 : f32 to vector<24x128xf32>
      %362 = arith.mulf %361, %358 : vector<24x128xf32>
      %363 = arith.addf %349, %362 : vector<24x128xf32>
      %c2_118 = arith.constant 2 : index
      %c69 = arith.constant 69 : index
      %364 = memref.load %arg1[%c2_118, %c69] : memref<3x257xf32, #tpu.memory_space<smem>>
      %365 = vector.broadcast %364 : f32 to vector<24x128xf32>
      %366 = arith.mulf %365, %359 : vector<24x128xf32>
      %367 = arith.addf %363, %366 : vector<24x128xf32>
      %c2_119 = arith.constant 2 : index
      %c72 = arith.constant 72 : index
      %368 = memref.load %arg1[%c2_119, %c72] : memref<3x257xf32, #tpu.memory_space<smem>>
      %369 = vector.broadcast %368 : f32 to vector<24x128xf32>
      %370 = arith.mulf %369, %358 : vector<24x128xf32>
      %371 = arith.addf %357, %370 : vector<24x128xf32>
      %c2_120 = arith.constant 2 : index
      %c75 = arith.constant 75 : index
      %372 = memref.load %arg1[%c2_120, %c75] : memref<3x257xf32, #tpu.memory_space<smem>>
      %373 = vector.broadcast %372 : f32 to vector<24x128xf32>
      %374 = arith.mulf %373, %359 : vector<24x128xf32>
      %375 = arith.addf %371, %374 : vector<24x128xf32>
      %c2_121 = arith.constant 2 : index
      %c76 = arith.constant 76 : index
      %376 = memref.load %arg1[%c2_121, %c76] : memref<3x257xf32, #tpu.memory_space<smem>>
      %377 = vector.broadcast %376 : f32 to vector<24x128xf32>
      %378 = arith.addf %367, %377 : vector<24x128xf32>
      %c2_122 = arith.constant 2 : index
      %c77 = arith.constant 77 : index
      %379 = memref.load %arg1[%c2_122, %c77] : memref<3x257xf32, #tpu.memory_space<smem>>
      %380 = vector.broadcast %379 : f32 to vector<24x128xf32>
      %381 = arith.addf %375, %380 : vector<24x128xf32>
      %c2_123 = arith.constant 2 : index
      %c78 = arith.constant 78 : index
      %382 = memref.load %arg1[%c2_123, %c78] : memref<3x257xf32, #tpu.memory_space<smem>>
      %383 = vector.broadcast %382 : f32 to vector<24x128xf32>
      %384 = arith.mulf %383, %378 : vector<24x128xf32>
      %c2_124 = arith.constant 2 : index
      %c79 = arith.constant 79 : index
      %385 = memref.load %arg1[%c2_124, %c79] : memref<3x257xf32, #tpu.memory_space<smem>>
      %386 = vector.broadcast %385 : f32 to vector<24x128xf32>
      %387 = arith.mulf %386, %381 : vector<24x128xf32>
      %388 = arith.addf %384, %387 : vector<24x128xf32>
      %c2_125 = arith.constant 2 : index
      %c82 = arith.constant 82 : index
      %389 = memref.load %arg1[%c2_125, %c82] : memref<3x257xf32, #tpu.memory_space<smem>>
      %390 = vector.broadcast %389 : f32 to vector<24x128xf32>
      %391 = arith.addf %388, %390 : vector<24x128xf32>
      %c2_126 = arith.constant 2 : index
      %c80 = arith.constant 80 : index
      %392 = memref.load %arg1[%c2_126, %c80] : memref<3x257xf32, #tpu.memory_space<smem>>
      %393 = vector.broadcast %392 : f32 to vector<24x128xf32>
      %394 = arith.mulf %393, %378 : vector<24x128xf32>
      %c2_127 = arith.constant 2 : index
      %c81 = arith.constant 81 : index
      %395 = memref.load %arg1[%c2_127, %c81] : memref<3x257xf32, #tpu.memory_space<smem>>
      %396 = vector.broadcast %395 : f32 to vector<24x128xf32>
      %397 = arith.mulf %396, %381 : vector<24x128xf32>
      %398 = arith.addf %394, %397 : vector<24x128xf32>
      %c2_128 = arith.constant 2 : index
      %c83 = arith.constant 83 : index
      %399 = memref.load %arg1[%c2_128, %c83] : memref<3x257xf32, #tpu.memory_space<smem>>
      %400 = vector.broadcast %399 : f32 to vector<24x128xf32>
      %401 = arith.addf %398, %400 : vector<24x128xf32>
      %402 = arith.mulf %391, %0 : vector<24x128xf32>
      %403 = arith.mulf %401, %0 : vector<24x128xf32>
      %404 = vector.shape_cast %402 : vector<24x128xf32> to vector<1x24x128xf32>
      %cst_129 = arith.constant dense<0.000000e+00> : vector<1xf32>
      %405 = vector.multi_reduction <add>, %404, %cst_129 [1, 2] : vector<1x24x128xf32> to vector<1xf32>
      %406 = vector.shape_cast %405 : vector<1xf32> to vector<1x1x1xf32>
      %407 = vector.extract %406[0, 0, 0] : f32 from vector<1x1x1xf32>
      %cst_130 = arith.constant 9.765625E-4 : f32
      %408 = arith.mulf %407, %cst_130 : f32
      %409 = arith.mulf %402, %402 : vector<24x128xf32>
      %410 = vector.shape_cast %409 : vector<24x128xf32> to vector<1x24x128xf32>
      %cst_131 = arith.constant dense<0.000000e+00> : vector<1xf32>
      %411 = vector.multi_reduction <add>, %410, %cst_131 [1, 2] : vector<1x24x128xf32> to vector<1xf32>
      %412 = vector.shape_cast %411 : vector<1xf32> to vector<1x1x1xf32>
      %413 = vector.extract %412[0, 0, 0] : f32 from vector<1x1x1xf32>
      %cst_132 = arith.constant 9.765625E-4 : f32
      %414 = arith.mulf %413, %cst_132 : f32
      %415 = arith.mulf %408, %408 : f32
      %416 = arith.subf %414, %415 : f32
      %c2_133 = arith.constant 2 : index
      %c84 = arith.constant 84 : index
      %417 = memref.load %arg1[%c2_133, %c84] : memref<3x257xf32, #tpu.memory_space<smem>>
      %cst_134 = arith.constant 9.99999974E-6 : f32
      %418 = arith.addf %416, %cst_134 : f32
      %419 = math.rsqrt %418 : f32
      %420 = arith.mulf %417, %419 : f32
      %c2_135 = arith.constant 2 : index
      %c86 = arith.constant 86 : index
      %421 = memref.load %arg1[%c2_135, %c86] : memref<3x257xf32, #tpu.memory_space<smem>>
      %422 = arith.mulf %408, %420 : f32
      %423 = arith.subf %421, %422 : f32
      %424 = vector.broadcast %420 : f32 to vector<24x128xf32>
      %425 = arith.mulf %402, %424 : vector<24x128xf32>
      %426 = vector.broadcast %423 : f32 to vector<24x128xf32>
      %427 = arith.addf %425, %426 : vector<24x128xf32>
      %cst_136 = arith.constant 0.000000e+00 : f32
      %428 = vector.broadcast %cst_136 : f32 to vector<24x128xf32>
      %429 = arith.maximumf %427, %428 : vector<24x128xf32>
      %430 = arith.mulf %429, %0 : vector<24x128xf32>
      %431 = vector.shape_cast %403 : vector<24x128xf32> to vector<1x24x128xf32>
      %cst_137 = arith.constant dense<0.000000e+00> : vector<1xf32>
      %432 = vector.multi_reduction <add>, %431, %cst_137 [1, 2] : vector<1x24x128xf32> to vector<1xf32>
      %433 = vector.shape_cast %432 : vector<1xf32> to vector<1x1x1xf32>
      %434 = vector.extract %433[0, 0, 0] : f32 from vector<1x1x1xf32>
      %cst_138 = arith.constant 9.765625E-4 : f32
      %435 = arith.mulf %434, %cst_138 : f32
      %436 = arith.mulf %403, %403 : vector<24x128xf32>
      %437 = vector.shape_cast %436 : vector<24x128xf32> to vector<1x24x128xf32>
      %cst_139 = arith.constant dense<0.000000e+00> : vector<1xf32>
      %438 = vector.multi_reduction <add>, %437, %cst_139 [1, 2] : vector<1x24x128xf32> to vector<1xf32>
      %439 = vector.shape_cast %438 : vector<1xf32> to vector<1x1x1xf32>
      %440 = vector.extract %439[0, 0, 0] : f32 from vector<1x1x1xf32>
      %cst_140 = arith.constant 9.765625E-4 : f32
      %441 = arith.mulf %440, %cst_140 : f32
      %442 = arith.mulf %435, %435 : f32
      %443 = arith.subf %441, %442 : f32
      %c2_141 = arith.constant 2 : index
      %c85 = arith.constant 85 : index
      %444 = memref.load %arg1[%c2_141, %c85] : memref<3x257xf32, #tpu.memory_space<smem>>
      %cst_142 = arith.constant 9.99999974E-6 : f32
      %445 = arith.addf %443, %cst_142 : f32
      %446 = math.rsqrt %445 : f32
      %447 = arith.mulf %444, %446 : f32
      %c2_143 = arith.constant 2 : index
      %c87 = arith.constant 87 : index
      %448 = memref.load %arg1[%c2_143, %c87] : memref<3x257xf32, #tpu.memory_space<smem>>
      %449 = arith.mulf %435, %447 : f32
      %450 = arith.subf %448, %449 : f32
      %451 = vector.broadcast %447 : f32 to vector<24x128xf32>
      %452 = arith.mulf %403, %451 : vector<24x128xf32>
      %453 = vector.broadcast %450 : f32 to vector<24x128xf32>
      %454 = arith.addf %452, %453 : vector<24x128xf32>
      %cst_144 = arith.constant 0.000000e+00 : f32
      %455 = vector.broadcast %cst_144 : f32 to vector<24x128xf32>
      %456 = arith.maximumf %454, %455 : vector<24x128xf32>
      %457 = arith.mulf %456, %0 : vector<24x128xf32>
      %c2_145 = arith.constant 2 : index
      %c88 = arith.constant 88 : index
      %458 = memref.load %arg1[%c2_145, %c88] : memref<3x257xf32, #tpu.memory_space<smem>>
      %459 = arith.addf %2, %276 : vector<24x128xf32>
      %460 = vector.broadcast %458 : f32 to vector<24x128xf32>
      %461 = arith.mulf %460, %459 : vector<24x128xf32>
      %c0_146 = arith.constant 0 : index
      %c0_147 = arith.constant 0 : index
      %c0_148 = arith.constant 0 : index
      %c0_149 = arith.constant 0 : index
      %462 = vector.load %arg4[%c0_146, %c0_147, %c0_148, %c0_149] : memref<1x4x24x128xf32, #tpu.memory_space<vmem>>, vector<1x1x24x128xf32>
      %463 = vector.shape_cast %462 : vector<1x1x24x128xf32> to vector<24x128xf32>
      %464 = vector.shape_cast %461 : vector<24x128xf32> to vector<1x1x24x128xf32>
      tpu.vector_store %arg4[%c0_146, %c0_147, %c0_148, %c0_149], %464 {strides = array<i32>} : memref<1x4x24x128xf32, #tpu.memory_space<vmem>>, vector<1x1x24x128xf32>,
      %465 = arith.addf %4, %303 : vector<24x128xf32>
      %466 = vector.broadcast %458 : f32 to vector<24x128xf32>
      %467 = arith.mulf %466, %465 : vector<24x128xf32>
      %c0_150 = arith.constant 0 : index
      %c1_151 = arith.constant 1 : index
      %c0_152 = arith.constant 0 : index
      %c0_153 = arith.constant 0 : index
      %468 = vector.load %arg4[%c0_150, %c1_151, %c0_152, %c0_153] : memref<1x4x24x128xf32, #tpu.memory_space<vmem>>, vector<1x1x24x128xf32>
      %469 = vector.shape_cast %468 : vector<1x1x24x128xf32> to vector<24x128xf32>
      %470 = vector.shape_cast %467 : vector<24x128xf32> to vector<1x1x24x128xf32>
      tpu.vector_store %arg4[%c0_150, %c1_151, %c0_152, %c0_153], %470 {strides = array<i32>} : memref<1x4x24x128xf32, #tpu.memory_space<vmem>>, vector<1x1x24x128xf32>,
      %471 = arith.addf %6, %430 : vector<24x128xf32>
      %472 = vector.broadcast %458 : f32 to vector<24x128xf32>
      %473 = arith.mulf %472, %471 : vector<24x128xf32>
      %c0_154 = arith.constant 0 : index
      %c2_155 = arith.constant 2 : index
      %c0_156 = arith.constant 0 : index
      %c0_157 = arith.constant 0 : index
      %474 = vector.load %arg4[%c0_154, %c2_155, %c0_156, %c0_157] : memref<1x4x24x128xf32, #tpu.memory_space<vmem>>, vector<1x1x24x128xf32>
      %475 = vector.shape_cast %474 : vector<1x1x24x128xf32> to vector<24x128xf32>
      %476 = vector.shape_cast %473 : vector<24x128xf32> to vector<1x1x24x128xf32>
      tpu.vector_store %arg4[%c0_154, %c2_155, %c0_156, %c0_157], %476 {strides = array<i32>} : memref<1x4x24x128xf32, #tpu.memory_space<vmem>>, vector<1x1x24x128xf32>,
      %477 = arith.addf %8, %457 : vector<24x128xf32>
      %478 = vector.broadcast %458 : f32 to vector<24x128xf32>
      %479 = arith.mulf %478, %477 : vector<24x128xf32>
      %c0_158 = arith.constant 0 : index
      %c3_159 = arith.constant 3 : index
      %c0_160 = arith.constant 0 : index
      %c0_161 = arith.constant 0 : index
      %480 = vector.load %arg4[%c0_158, %c3_159, %c0_160, %c0_161] : memref<1x4x24x128xf32, #tpu.memory_space<vmem>>, vector<1x1x24x128xf32>
      %481 = vector.shape_cast %480 : vector<1x1x24x128xf32> to vector<24x128xf32>
      %482 = vector.shape_cast %479 : vector<24x128xf32> to vector<1x1x24x128xf32>
      tpu.vector_store %arg4[%c0_158, %c3_159, %c0_160, %c0_161], %482 {strides = array<i32>} : memref<1x4x24x128xf32, #tpu.memory_space<vmem>>, vector<1x1x24x128xf32>,
    } else {
    }
    return
  }
  func.func @transform_0(%arg0: i32) -> (i32, i32) {
    %c0_i32 = arith.constant 0 : i32
    %c0_i32_0 = arith.constant 0 : i32
    %c0_i32_1 = arith.constant 0 : i32
    return %c0_i32, %c0_i32_0 : i32, i32
  }
  func.func @transform_1(%arg0: i32) -> (i32, i32, i32) {
    %c0_i32 = arith.constant 0 : i32
    %c0_i32_0 = arith.constant 0 : i32
    %c0_i32_1 = arith.constant 0 : i32
    %c0_i32_2 = arith.constant 0 : i32
    return %c0_i32, %c0_i32_0, %c0_i32_1 : i32, i32, i32
  }
  func.func @transform_2(%arg0: i32) -> (i32, i32) {
    %c0_i32 = arith.constant 0 : i32
    %c0_i32_0 = arith.constant 0 : i32
    %c0_i32_1 = arith.constant 0 : i32
    return %c0_i32, %c0_i32_0 : i32, i32
  }
  func.func @transform_3(%arg0: i32) -> (i32, i32, i32, i32) {
    %c0_i32 = arith.constant 0 : i32
    %c0_i32_0 = arith.constant 0 : i32
    %c0_i32_1 = arith.constant 0 : i32
    %c0_i32_2 = arith.constant 0 : i32
    return %arg0, %c0_i32, %c0_i32_0, %c0_i32_1 : i32, i32, i32, i32
  }
}

</mosaic_0001>

<llo_original>
// kernel: decoder_forward.1
$region0: #{decoder_forward.1}
  #allocation0 [shape = 'u32[]', space=smem, size = 0x4, offset = 0x4, fixed_abs, tag = 'smem constant byte address 0x4 - core index']
  #allocation1 [shape = 'u32[144,128]{1,0:T(1,128)}', space=vmem, size = 0x12000, scoped, tag = 'internal scratch']
  %s0 = inlined_call_operand.vmem [shape: f32[3,257], index: 0, kind: input, shape index: {}]
  %s1 = inlined_call_operand.vmem [shape: f32[4,24,128], index: 1, kind: input, shape index: {}]
  %s2 = inlined_call_operand.vmem [shape: f32[24,128], index: 2, kind: input, shape index: {}]
  %s3 = inlined_call_operand.vmem [shape: f32[3,4,24,128], index: 3, kind: output, shape index: {}]
  %s4 = sld [smem:[#allocation0]]
  $region61: #{decoder_forward.1} parent=0
    _
  %s6 = ssub.s32 1, %s4
  %s7 = scalar_select 0, %s6, %s4
  $region1: #{decoder_forward.1} parent=0
    #allocation2 [shape = 'u8[6144]{0}', space=smem, size = 0x1800, scoped, tag = 'input window, operand 0, single buffered']
    #allocation3 [shape = 's32[2]{0}', space=sflag, size = 0x8, scoped, tag = 'scoped memory for decoder_forward.1']
    %8 = vsyncpa [#allocation3], 0
    loop: start=0, step=1, limit=5
    $region2: #{decoder_forward.1} parent=1 // loop_pre_header
      _
    $region3: #{decoder_forward.1} parent=1 // loop_header
      %s10 = sphi 0, %s14
      %p11 = scmp.ge.s32.totalorder %s10, 5
      %s18 = sphi 0, %s18
      %s20 = sphi 0, %s18
      %s21 = sphi 0, %s20
      %s35 = sphi 0, %s21
      %s39 = sphi 0, %s39
      %s41 = sphi 0, %s39
      %s42 = sphi 0, %s41
      %s56 = sphi 0, %s42
      %s60 = sphi 0, %s60
      %s62 = sphi 0, %s60
      %s63 = sphi 0, %s62
      %s77 = sphi 0, %s63
      %s83 = sphi 0, %s85
      %s86 = sphi 0, %s83
      %s87 = sphi 0, %s86
      %s103 = sphi 0, %s87
    $region4: #{decoder_forward.1} parent=1 // loop_header_branch
      %13 = sbr.rel (%p11) target = $region8
    $region5: #{decoder_forward.1} parent=1 // loop_body
      %s15 = ssub.s32 %s10, 1
      %s16 = ssub.s32 %s10, 2
      %s17 = sadd.s32 %s10, 1
      %s19 = sadd.s32 %s18, 1
      %p22 = scmp.eq.s32.totalorder %s10, 2
      %p23 = scmp.ne.s32.totalorder %s18, %s20
      %p24 = scmp.eq.s32.totalorder %s10, 0
      %p25 = por %p23, %p24
      %p26 = scmp.ne.s32.totalorder %s18, %s20
      %p27 = scmp.eq.s32.totalorder %s15, 2
      %p28 = por %p26, %p27
      %p29 = scmp.ne.s32.totalorder %s20, %s21
      %p30 = scmp.eq.s32.totalorder %s15, 0
      %p31 = por %p29, %p30
      %p32 = scmp.ne.s32.totalorder %s20, %s21
      %p33 = scmp.eq.s32.totalorder %s16, 2
      %p34 = por %p32, %p33
      %p36 = scmp.ne.s32.totalorder %s21, %s35
      %p37 = scmp.eq.s32.totalorder %s16, 0
      %p38 = por %p36, %p37
      %s40 = sadd.s32 %s39, 1
      %p43 = scmp.eq.s32.totalorder %s10, 2
      %p44 = scmp.ne.s32.totalorder %s39, %s41
      %p45 = scmp.eq.s32.totalorder %s10, 0
      %p46 = por %p44, %p45
      %p47 = scmp.ne.s32.totalorder %s39, %s41
      %p48 = scmp.eq.s32.totalorder %s15, 2
      %p49 = por %p47, %p48
      %p50 = scmp.ne.s32.totalorder %s41, %s42
      %p51 = scmp.eq.s32.totalorder %s15, 0
      %p52 = por %p50, %p51
      %p53 = scmp.ne.s32.totalorder %s41, %s42
      %p54 = scmp.eq.s32.totalorder %s16, 2
      %p55 = por %p53, %p54
      %p57 = scmp.ne.s32.totalorder %s42, %s56
      %p58 = scmp.eq.s32.totalorder %s16, 0
      %p59 = por %p57, %p58
      %s61 = sadd.s32 %s60, 1
      %p64 = scmp.eq.s32.totalorder %s10, 2
      %p65 = scmp.ne.s32.totalorder %s60, %s62
      %p66 = scmp.eq.s32.totalorder %s10, 0
      %p67 = por %p65, %p66
      %p68 = scmp.ne.s32.totalorder %s60, %s62
      %p69 = scmp.eq.s32.totalorder %s15, 2
      %p70 = por %p68, %p69
      %p71 = scmp.ne.s32.totalorder %s62, %s63
      %p72 = scmp.eq.s32.totalorder %s15, 0
      %p73 = por %p71, %p72
      %p74 = scmp.ne.s32.totalorder %s62, %s63
      %p75 = scmp.eq.s32.totalorder %s16, 2
      %p76 = por %p74, %p75
      %p78 = scmp.ne.s32.totalorder %s63, %s77
      %p79 = scmp.eq.s32.totalorder %s16, 0
      %p80 = por %p78, %p79
      %s81 = ssub.s32 %s10, %s17
      %p82 = scmp.eq.s32.totalorder %s81, 0
      %s84 = sadd.s32 %s83, 1
      %s85 = scalar_select %p82, %s83, %s84
      %p88 = pneg %p82
      %p89 = scmp.eq.s32.totalorder %s10, 2
      %p90 = por %p88, %p89
      %p91 = scmp.ne.s32.totalorder %s83, %s86
      %p92 = scmp.eq.s32.totalorder %s10, 0
      %p93 = por %p91, %p92
      %p94 = scmp.ne.s32.totalorder %s83, %s86
      %p95 = scmp.eq.s32.totalorder %s15, 2
      %p96 = por %p94, %p95
      %p97 = scmp.ne.s32.totalorder %s86, %s87
      %p98 = scmp.eq.s32.totalorder %s15, 0
      %p99 = por %p97, %p98
      %p100 = scmp.ne.s32.totalorder %s86, %s87
      %p101 = scmp.eq.s32.totalorder %s16, 2
      %p102 = por %p100, %p101
      %p104 = scmp.ne.s32.totalorder %s87, %s103
      %p105 = scmp.eq.s32.totalorder %s16, 0
      %p106 = por %p104, %p105
      %p107 = scmp.le.s32.totalorder 1, %s10
      %p108 = scmp.lt.s32.totalorder %s10, 4
      %p109 = pnand %p107, %p108
      %p110 = pneg %p109
      // Predicated region
      $region9: #{decoder_forward.1} parent=5 // pred_check
        _
      $region10: #{decoder_forward.1} parent=5 // pred_check_branch
        %112 = sbr.rel (%p109) target = $region12
      $region11: #{decoder_forward.1} parent=5 // pred_region
        %s113 = ssub.s32 %s10, 1
        // Predicated region
        $region13: #{decoder_forward.1} parent=11 // pred_check
          %p114 = pneg %p31
        $region14: #{decoder_forward.1} parent=11 // pred_check_branch
          %116 = sbr.rel (%p114) target = $region16
        $region15: #{decoder_forward.1} parent=11 // pred_region
          %s118 = ssub.s32 192, 192
          %119 = vsyncadd [#allocation3], %s118
          %s121 = sshll.u32 %s0, 4
          %s122 = int_to_ptr.vmem [resolvable:$true] %s121
          %124 = dma.vmem_to_smem %s122, 192, [#allocation2], [#allocation3]
        $region16: #{decoder_forward.1} parent=11 // pred_fallthru
          _
        // Predicated region
        $region17: #{decoder_forward.1} parent=11 // pred_check
          %p125 = pneg %p52
        $region18: #{decoder_forward.1} parent=11 // pred_check_branch
          %127 = sbr.rel (%p125) target = $region20
        $region19: #{decoder_forward.1} parent=11 // pred_region
          _
        $region20: #{decoder_forward.1} parent=11 // pred_fallthru
          _
        // Predicated region
        $region21: #{decoder_forward.1} parent=11 // pred_check
          %p128 = pneg %p73
        $region22: #{decoder_forward.1} parent=11 // pred_check_branch
          %130 = sbr.rel (%p128) target = $region24
        $region23: #{decoder_forward.1} parent=11 // pred_region
          _
        $region24: #{decoder_forward.1} parent=11 // pred_fallthru
          _
      $region12: #{decoder_forward.1} parent=5 // pred_fallthru
        _
      %p131 = scmp.lt.s32.totalorder %s10, 3
      // Predicated region
      $region25: #{decoder_forward.1} parent=5 // pred_check
        %p132 = pneg %p131
      $region26: #{decoder_forward.1} parent=5 // pred_check_branch
        %134 = sbr.rel (%p132) target = $region28
      $region27: #{decoder_forward.1} parent=5 // pred_region
        _
      $region28: #{decoder_forward.1} parent=5 // pred_fallthru
        _
      %p135 = scmp.le.s32.totalorder 1, %s10
      %p136 = scmp.lt.s32.totalorder %s10, 4
      %p137 = pnand %p135, %p136
      %p138 = pneg %p137
      // Predicated region
      $region29: #{decoder_forward.1} parent=5 // pred_check
        _
      $region30: #{decoder_forward.1} parent=5 // pred_check_branch
        %140 = sbr.rel (%p137) target = $region32
      $region31: #{decoder_forward.1} parent=5 // pred_region
        %s141 = ssub.s32 %s10, 1
        // Predicated region
        $region33: #{decoder_forward.1} parent=31 // pred_check
          %p142 = pneg %p31
        $region34: #{decoder_forward.1} parent=31 // pred_check_branch
          %144 = sbr.rel (%p142) target = $region36
        $region35: #{decoder_forward.1} parent=31 // pred_region
          %145 = dma.done [#allocation3], 192
        $region36: #{decoder_forward.1} parent=31 // pred_fallthru
          _
        %146 = sfence
        %p147 = pneg %p31
        %p148 = pneg %p28
        %p149 = pneg %p52
        %p150 = pneg %p49
        %p151 = pneg %p73
        %p152 = pneg %p70
        %p153 = pneg %p99
        %p154 = pneg %p96
        %p155 = scmp.lt.s32.totalorder %s15, 2
        %s156 = scalar_select %p155, %s15, 2
        %s157 = smul.addr %s156, 12
        %s158 = smul.addr %s157, 8
        %s159 = scalar_lea.vmem %s3, %s158
        %p160 = scmp.lt.s32.totalorder %s15, 2
        %s161 = scalar_select %p160, %s15, 2
        %s162 = smul.addr %s161, 12
        %s163 = smul.addr %s162, 8
        %s164 = scalar_lea.vmem %s3, %s163
        %v165 = vld [vmem:[%s2] sm:$0xff]
        %v166 = vld [vmem:[%s2 + $0x8] sm:$0xff]
        %v167 = vld [vmem:[%s2 + $0x10] sm:$0xff]
        %v168 = vld [vmem:[%s1] sm:$0xff]
        %v169 = vld [vmem:[%s1 + $0x8] sm:$0xff]
        %v170 = vld [vmem:[%s1 + $0x10] sm:$0xff]
        %s171 = scalar_lea.vmem %s1, 24
        %v172 = vld [vmem:[%s171] sm:$0xff]
        %v173 = vld [vmem:[%s171 + $0x8] sm:$0xff]
        %v174 = vld [vmem:[%s171 + $0x10] sm:$0xff]
        %s175 = scalar_lea.vmem %s1, 48
        %v176 = vld [vmem:[%s175] sm:$0xff]
        %v177 = vld [vmem:[%s175 + $0x8] sm:$0xff]
        %v178 = vld [vmem:[%s175 + $0x10] sm:$0xff]
        %s179 = scalar_lea.vmem %s1, 72
        %v180 = vld [vmem:[%s179] sm:$0xff]
        %v181 = vld [vmem:[%s179 + $0x8] sm:$0xff]
        %v182 = vld [vmem:[%s179 + $0x10] sm:$0xff]
        %p183 = scmp.eq.s32.totalorder %s15, 0
        // Predicated region
        $region37: #{decoder_forward.1} parent=31 // pred_check
          %p184 = pneg %p183
        $region38: #{decoder_forward.1} parent=31 // pred_check_branch
          %186 = sbr.rel (%p184) target = $region40
        $region39: #{decoder_forward.1} parent=31 // pred_region
          %s187 = sld [smem:[#allocation2]]
          %v188 = vstv %s187
          %v189 = vmul.f32 %v188, %v168
          %v190 = vmul.f32 %v188, %v169
          %v191 = vmul.f32 %v188, %v170
          %s192 = sld [smem:[#allocation2 + $0x1]]
          %v193 = vstv %s192
          %v194 = vmul.f32 %v193, %v172
          %v195 = vmul.f32 %v193, %v173
          %v196 = vmul.f32 %v193, %v174
          %v197 = vadd.f32 %v189, %v194
          %v198 = vadd.f32 %v190, %v195
          %v199 = vadd.f32 %v191, %v196
          %s200 = sld [smem:[#allocation2 + $0x2]]
          %v201 = vstv %s200
          %v202 = vmul.f32 %v201, %v176
          %v203 = vmul.f32 %v201, %v177
          %v204 = vmul.f32 %v201, %v178
          %v205 = vadd.f32 %v197, %v202
          %v206 = vadd.f32 %v198, %v203
          %v207 = vadd.f32 %v199, %v204
          %s208 = sld [smem:[#allocation2 + $0x3]]
          %v209 = vstv %s208
          %v210 = vmul.f32 %v209, %v180
          %v211 = vmul.f32 %v209, %v181
          %v212 = vmul.f32 %v209, %v182
          %v213 = vadd.f32 %v205, %v210
          %v214 = vadd.f32 %v206, %v211
          %v215 = vadd.f32 %v207, %v212
          %s216 = sld [smem:[#allocation2 + $0x8]]
          %v217 = vstv %s216
          %v218 = vadd.f32 %v213, %v217
          %v219 = vadd.f32 %v214, %v217
          %v220 = vadd.f32 %v215, %v217
          %s221 = sld [smem:[#allocation2 + $0x4]]
          %v222 = vstv %s221
          %v223 = vmul.f32 %v222, %v168
          %v224 = vmul.f32 %v222, %v169
          %v225 = vmul.f32 %v222, %v170
          %s226 = sld [smem:[#allocation2 + $0x5]]
          %v227 = vstv %s226
          %v228 = vmul.f32 %v227, %v172
          %v229 = vmul.f32 %v227, %v173
          %v230 = vmul.f32 %v227, %v174
          %v231 = vadd.f32 %v223, %v228
          %v232 = vadd.f32 %v224, %v229
          %v233 = vadd.f32 %v225, %v230
          %s234 = sld [smem:[#allocation2 + $0x6]]
          %v235 = vstv %s234
          %v236 = vmul.f32 %v235, %v176
          %v237 = vmul.f32 %v235, %v177
          %v238 = vmul.f32 %v235, %v178
          %v239 = vadd.f32 %v231, %v236
          %v240 = vadd.f32 %v232, %v237
          %v241 = vadd.f32 %v233, %v238
          %s242 = sld [smem:[#allocation2 + $0x7]]
          %v243 = vstv %s242
          %v244 = vmul.f32 %v243, %v180
          %v245 = vmul.f32 %v243, %v181
          %v246 = vmul.f32 %v243, %v182
          %v247 = vadd.f32 %v239, %v244
          %v248 = vadd.f32 %v240, %v245
          %v249 = vadd.f32 %v241, %v246
          %s250 = sld [smem:[#allocation2 + $0x9]]
          %v251 = vstv %s250
          %v252 = vadd.f32 %v247, %v251
          %v253 = vadd.f32 %v248, %v251
          %v254 = vadd.f32 %v249, %v251
          %v255 = vmul.f32 %v218, %v165
          %v256 = vmul.f32 %v219, %v166
          %v257 = vmul.f32 %v220, %v167
          %v258 = vmul.f32 %v252, %v165
          %v259 = vmul.f32 %v253, %v166
          %v260 = vmul.f32 %v254, %v167
          %vm264 = vcmask 1040384
          %v265 = vrot.slane %v255, 7
          %v266 = vrot.slane %v256, 7
          %v267 = vsel %vm264, %v265, %v266
          %v268 = vrot.slane %v257, 7
          %v269 = vsel %vm264, %v266, %v268
          %v273 = vsel %vm264, 0.0, %v265
          %v277 = vrot.slane %v258, 7
          %v278 = vrot.slane %v259, 7
          %v279 = vsel %vm264, %v277, %v278
          %v280 = vrot.slane %v260, 7
          %v281 = vsel %vm264, %v278, %v280
          %v285 = vsel %vm264, 0.0, %v277
          %286 = vrot.lane.b32.xlu0 %v273, 10
          %v287 = vpop.permute.xlu0 %286
          %288 = vrot.lane.b32.xlu0 %v267, 10
          %v289 = vpop.permute.xlu0 %288
          %290 = vrot.lane.b32.xlu0 %v269, 10
          %v291 = vpop.permute.xlu0 %290
          %292 = vrot.lane.b32.xlu0 %v285, 10
          %v293 = vpop.permute.xlu0 %292
          %294 = vrot.lane.b32.xlu0 %v279, 10
          %v295 = vpop.permute.xlu0 %294
          %296 = vrot.lane.b32.xlu0 %v281, 10
          %v297 = vpop.permute.xlu0 %296
          %s298 = sld [smem:[#allocation2 + $0xa]]
          %v299 = vstv %s298
          %v300 = vmul.f32 %v299, %v287
          %v301 = vmul.f32 %v299, %v289
          %v302 = vmul.f32 %v299, %v291
          %s303 = sld [smem:[#allocation2 + $0x13]]
          %v304 = vstv %s303
          %v305 = vmul.f32 %v304, %v293
          %v306 = vmul.f32 %v304, %v295
          %v307 = vmul.f32 %v304, %v297
          %v308 = vadd.f32 %v300, %v305
          %v309 = vadd.f32 %v301, %v306
          %v310 = vadd.f32 %v302, %v307
          %s311 = sld [smem:[#allocation2 + $0x1c]]
          %v312 = vstv %s311
          %v313 = vmul.f32 %v312, %v287
          %v314 = vmul.f32 %v312, %v289
          %v315 = vmul.f32 %v312, %v291
          %s316 = sld [smem:[#allocation2 + $0x25]]
          %v317 = vstv %s316
          %v318 = vmul.f32 %v317, %v293
          %v319 = vmul.f32 %v317, %v295
          %v320 = vmul.f32 %v317, %v297
          %v321 = vadd.f32 %v313, %v318
          %v322 = vadd.f32 %v314, %v319
          %v323 = vadd.f32 %v315, %v320
          %s324 = sld [smem:[#allocation2 + $0xb]]
          %v325 = vstv %s324
          %v326 = vmul.f32 %v325, %v273
          %v327 = vmul.f32 %v325, %v267
          %v328 = vmul.f32 %v325, %v269
          %v329 = vadd.f32 %v308, %v326
          %v330 = vadd.f32 %v309, %v327
          %v331 = vadd.f32 %v310, %v328
          %s332 = sld [smem:[#allocation2 + $0x14]]
          %v333 = vstv %s332
          %v334 = vmul.f32 %v333, %v285
          %v335 = vmul.f32 %v333, %v279
          %v336 = vmul.f32 %v333, %v281
          %v337 = vadd.f32 %v329, %v334
          %v338 = vadd.f32 %v330, %v335
          %v339 = vadd.f32 %v331, %v336
          %s340 = sld [smem:[#allocation2 + $0x1d]]
          %v341 = vstv %s340
          %v342 = vmul.f32 %v341, %v273
          %v343 = vmul.f32 %v341, %v267
          %v344 = vmul.f32 %v341, %v269
          %v345 = vadd.f32 %v321, %v342
          %v346 = vadd.f32 %v322, %v343
          %v347 = vadd.f32 %v323, %v344
          %s348 = sld [smem:[#allocation2 + $0x26]]
          %v349 = vstv %s348
          %v350 = vmul.f32 %v349, %v285
          %v351 = vmul.f32 %v349, %v279
          %v352 = vmul.f32 %v349, %v281
          %v353 = vadd.f32 %v345, %v350
          %v354 = vadd.f32 %v346, %v351
          %v355 = vadd.f32 %v347, %v352
          %356 = vrot.lane.b32.xlu0 %v273, 118
          %v357 = vpop.permute.xlu0 %356
          %358 = vrot.lane.b32.xlu0 %v267, 118
          %v359 = vpop.permute.xlu0 %358
          %360 = vrot.lane.b32.xlu0 %v269, 118
          %v361 = vpop.permute.xlu0 %360
          %362 = vrot.lane.b32.xlu0 %v285, 118
          %v363 = vpop.permute.xlu0 %362
          %364 = vrot.lane.b32.xlu0 %v279, 118
          %v365 = vpop.permute.xlu0 %364
          %366 = vrot.lane.b32.xlu0 %v281, 118
          %v367 = vpop.permute.xlu0 %366
          %s368 = sld [smem:[#allocation2 + $0xc]]
          %v369 = vstv %s368
          %v370 = vmul.f32 %v369, %v357
          %v371 = vmul.f32 %v369, %v359
          %v372 = vmul.f32 %v369, %v361
          %v373 = vadd.f32 %v337, %v370
          %v374 = vadd.f32 %v338, %v371
          %v375 = vadd.f32 %v339, %v372
          %s376 = sld [smem:[#allocation2 + $0x15]]
          %v377 = vstv %s376
          %v378 = vmul.f32 %v377, %v363
          %v379 = vmul.f32 %v377, %v365
          %v380 = vmul.f32 %v377, %v367
          %v381 = vadd.f32 %v373, %v378
          %v382 = vadd.f32 %v374, %v379
          %v383 = vadd.f32 %v375, %v380
          %s384 = sld [smem:[#allocation2 + $0x1e]]
          %v385 = vstv %s384
          %v386 = vmul.f32 %v385, %v357
          %v387 = vmul.f32 %v385, %v359
          %v388 = vmul.f32 %v385, %v361
          %v389 = vadd.f32 %v353, %v386
          %v390 = vadd.f32 %v354, %v387
          %v391 = vadd.f32 %v355, %v388
          %s392 = sld [smem:[#allocation2 + $0x27]]
          %v393 = vstv %s392
          %v394 = vmul.f32 %v393, %v363
          %v395 = vmul.f32 %v393, %v365
          %v396 = vmul.f32 %v393, %v367
          %v397 = vadd.f32 %v389, %v394
          %v398 = vadd.f32 %v390, %v395
          %v399 = vadd.f32 %v391, %v396
          %400 = vrot.lane.b32.xlu0 %v255, 10
          %v401 = vpop.permute.xlu0 %400
          %402 = vrot.lane.b32.xlu0 %v256, 10
          %v403 = vpop.permute.xlu0 %402
          %404 = vrot.lane.b32.xlu0 %v257, 10
          %v405 = vpop.permute.xlu0 %404
          %406 = vrot.lane.b32.xlu0 %v258, 10
          %v407 = vpop.permute.xlu0 %406
          %408 = vrot.lane.b32.xlu0 %v259, 10
          %v409 = vpop.permute.xlu0 %408
          %410 = vrot.lane.b32.xlu0 %v260, 10
          %v411 = vpop.permute.xlu0 %410
          %s412 = sld [smem:[#allocation2 + $0xd]]
          %v413 = vstv %s412
          %v414 = vmul.f32 %v413, %v401
          %v415 = vmul.f32 %v413, %v403
          %v416 = vmul.f32 %v413, %v405
          %v417 = vadd.f32 %v381, %v414
          %v418 = vadd.f32 %v382, %v415
          %v419 = vadd.f32 %v383, %v416
          %s420 = sld [smem:[#allocation2 + $0x16]]
          %v421 = vstv %s420
          %v422 = vmul.f32 %v421, %v407
          %v423 = vmul.f32 %v421, %v409
          %v424 = vmul.f32 %v421, %v411
          %v425 = vadd.f32 %v417, %v422
          %v426 = vadd.f32 %v418, %v423
          %v427 = vadd.f32 %v419, %v424
          %s428 = sld [smem:[#allocation2 + $0x1f]]
          %v429 = vstv %s428
          %v430 = vmul.f32 %v429, %v401
          %v431 = vmul.f32 %v429, %v403
          %v432 = vmul.f32 %v429, %v405
          %v433 = vadd.f32 %v397, %v430
          %v434 = vadd.f32 %v398, %v431
          %v435 = vadd.f32 %v399, %v432
          %s436 = sld [smem:[#allocation2 + $0x28]]
          %v437 = vstv %s436
          %v438 = vmul.f32 %v437, %v407
          %v439 = vmul.f32 %v437, %v409
          %v440 = vmul.f32 %v437, %v411
          %v441 = vadd.f32 %v433, %v438
          %v442 = vadd.f32 %v434, %v439
          %v443 = vadd.f32 %v435, %v440
          %s444 = sld [smem:[#allocation2 + $0xe]]
          %v445 = vstv %s444
          %v446 = vmul.f32 %v445, %v255
          %v447 = vmul.f32 %v445, %v256
          %v448 = vmul.f32 %v445, %v257
          %v449 = vadd.f32 %v425, %v446
          %v450 = vadd.f32 %v426, %v447
          %v451 = vadd.f32 %v427, %v448
          %s452 = sld [smem:[#allocation2 + $0x17]]
          %v453 = vstv %s452
          %v454 = vmul.f32 %v453, %v258
          %v455 = vmul.f32 %v453, %v259
          %v456 = vmul.f32 %v453, %v260
          %v457 = vadd.f32 %v449, %v454
          %v458 = vadd.f32 %v450, %v455
          %v459 = vadd.f32 %v451, %v456
          %s460 = sld [smem:[#allocation2 + $0x20]]
          %v461 = vstv %s460
          %v462 = vmul.f32 %v461, %v255
          %v463 = vmul.f32 %v461, %v256
          %v464 = vmul.f32 %v461, %v257
          %v465 = vadd.f32 %v441, %v462
          %v466 = vadd.f32 %v442, %v463
          %v467 = vadd.f32 %v443, %v464
          %s468 = sld [smem:[#allocation2 + $0x29]]
          %v469 = vstv %s468
          %v470 = vmul.f32 %v469, %v258
          %v471 = vmul.f32 %v469, %v259
          %v472 = vmul.f32 %v469, %v260
          %v473 = vadd.f32 %v465, %v470
          %v474 = vadd.f32 %v466, %v471
          %v475 = vadd.f32 %v467, %v472
          %476 = vrot.lane.b32.xlu0 %v255, 118
          %v477 = vpop.permute.xlu0 %476
          %478 = vrot.lane.b32.xlu0 %v256, 118
          %v479 = vpop.permute.xlu0 %478
          %480 = vrot.lane.b32.xlu0 %v257, 118
          %v481 = vpop.permute.xlu0 %480
          %482 = vrot.lane.b32.xlu0 %v258, 118
          %v483 = vpop.permute.xlu0 %482
          %484 = vrot.lane.b32.xlu0 %v259, 118
          %v485 = vpop.permute.xlu0 %484
          %486 = vrot.lane.b32.xlu0 %v260, 118
          %v487 = vpop.permute.xlu0 %486
          %s488 = sld [smem:[#allocation2 + $0xf]]
          %v489 = vstv %s488
          %v490 = vmul.f32 %v489, %v477
          %v491 = vmul.f32 %v489, %v479
          %v492 = vmul.f32 %v489, %v481
          %v493 = vadd.f32 %v457, %v490
          %v494 = vadd.f32 %v458, %v491
          %v495 = vadd.f32 %v459, %v492
          %s496 = sld [smem:[#allocation2 + $0x18]]
          %v497 = vstv %s496
          %v498 = vmul.f32 %v497, %v483
          %v499 = vmul.f32 %v497, %v485
          %v500 = vmul.f32 %v497, %v487
          %v501 = vadd.f32 %v493, %v498
          %v502 = vadd.f32 %v494, %v499
          %v503 = vadd.f32 %v495, %v500
          %s504 = sld [smem:[#allocation2 + $0x21]]
          %v505 = vstv %s504
          %v506 = vmul.f32 %v505, %v477
          %v507 = vmul.f32 %v505, %v479
          %v508 = vmul.f32 %v505, %v481
          %v509 = vadd.f32 %v473, %v506
          %v510 = vadd.f32 %v474, %v507
          %v511 = vadd.f32 %v475, %v508
          %s512 = sld [smem:[#allocation2 + $0x2a]]
          %v513 = vstv %s512
          %v514 = vmul.f32 %v513, %v483
          %v515 = vmul.f32 %v513, %v485
          %v516 = vmul.f32 %v513, %v487
          %v517 = vadd.f32 %v509, %v514
          %v518 = vadd.f32 %v510, %v515
          %v519 = vadd.f32 %v511, %v516
          %vm520 = vcmask 1046528
          %v521 = vrot.slane %v255, 1
          %v522 = vrot.slane %v256, 1
          %v523 = vsel %vm520, %v521, %v522
          %v524 = vrot.slane %v257, 1
          %v525 = vsel %vm520, %v522, %v524
          %v529 = vsel %vm520, %v524, 0.0
          %v530 = vrot.slane %v258, 1
          %v531 = vrot.slane %v259, 1
          %v532 = vsel %vm520, %v530, %v531
          %v533 = vrot.slane %v260, 1
          %v534 = vsel %vm520, %v531, %v533
          %v538 = vsel %vm520, %v533, 0.0
          %539 = vrot.lane.b32.xlu0 %v523, 10
          %v540 = vpop.permute.xlu0 %539
          %541 = vrot.lane.b32.xlu0 %v525, 10
          %v542 = vpop.permute.xlu0 %541
          %543 = vrot.lane.b32.xlu0 %v529, 10
          %v544 = vpop.permute.xlu0 %543
          %545 = vrot.lane.b32.xlu0 %v532, 10
          %v546 = vpop.permute.xlu0 %545
          %547 = vrot.lane.b32.xlu0 %v534, 10
          %v548 = vpop.permute.xlu0 %547
          %549 = vrot.lane.b32.xlu0 %v538, 10
          %v550 = vpop.permute.xlu0 %549
          %s551 = sld [smem:[#allocation2 + $0x10]]
          %v552 = vstv %s551
          %v553 = vmul.f32 %v552, %v540
          %v554 = vmul.f32 %v552, %v542
          %v555 = vmul.f32 %v552, %v544
          %v556 = vadd.f32 %v501, %v553
          %v557 = vadd.f32 %v502, %v554
          %v558 = vadd.f32 %v503, %v555
          %s559 = sld [smem:[#allocation2 + $0x19]]
          %v560 = vstv %s559
          %v561 = vmul.f32 %v560, %v546
          %v562 = vmul.f32 %v560, %v548
          %v563 = vmul.f32 %v560, %v550
          %v564 = vadd.f32 %v556, %v561
          %v565 = vadd.f32 %v557, %v562
          %v566 = vadd.f32 %v558, %v563
          %s567 = sld [smem:[#allocation2 + $0x22]]
          %v568 = vstv %s567
          %v569 = vmul.f32 %v568, %v540
          %v570 = vmul.f32 %v568, %v542
          %v571 = vmul.f32 %v568, %v544
          %v572 = vadd.f32 %v517, %v569
          %v573 = vadd.f32 %v518, %v570
          %v574 = vadd.f32 %v519, %v571
          %s575 = sld [smem:[#allocation2 + $0x2b]]
          %v576 = vstv %s575
          %v577 = vmul.f32 %v576, %v546
          %v578 = vmul.f32 %v576, %v548
          %v579 = vmul.f32 %v576, %v550
          %v580 = vadd.f32 %v572, %v577
          %v581 = vadd.f32 %v573, %v578
          %v582 = vadd.f32 %v574, %v579
          %s583 = sld [smem:[#allocation2 + $0x11]]
          %v584 = vstv %s583
          %v585 = vmul.f32 %v584, %v523
          %v586 = vmul.f32 %v584, %v525
          %v587 = vmul.f32 %v584, %v529
          %v588 = vadd.f32 %v564, %v585
          %v589 = vadd.f32 %v565, %v586
          %v590 = vadd.f32 %v566, %v587
          %s591 = sld [smem:[#allocation2 + $0x1a]]
          %v592 = vstv %s591
          %v593 = vmul.f32 %v592, %v532
          %v594 = vmul.f32 %v592, %v534
          %v595 = vmul.f32 %v592, %v538
          %v596 = vadd.f32 %v588, %v593
          %v597 = vadd.f32 %v589, %v594
          %v598 = vadd.f32 %v590, %v595
          %s599 = sld [smem:[#allocation2 + $0x23]]
          %v600 = vstv %s599
          %v601 = vmul.f32 %v600, %v523
          %v602 = vmul.f32 %v600, %v525
          %v603 = vmul.f32 %v600, %v529
          %v604 = vadd.f32 %v580, %v601
          %v605 = vadd.f32 %v581, %v602
          %v606 = vadd.f32 %v582, %v603
          %s607 = sld [smem:[#allocation2 + $0x2c]]
          %v608 = vstv %s607
          %v609 = vmul.f32 %v608, %v532
          %v610 = vmul.f32 %v608, %v534
          %v611 = vmul.f32 %v608, %v538
          %v612 = vadd.f32 %v604, %v609
          %v613 = vadd.f32 %v605, %v610
          %v614 = vadd.f32 %v606, %v611
          %615 = vrot.lane.b32.xlu0 %v523, 118
          %v616 = vpop.permute.xlu0 %615
          %617 = vrot.lane.b32.xlu0 %v525, 118
          %v618 = vpop.permute.xlu0 %617
          %619 = vrot.lane.b32.xlu0 %v529, 118
          %v620 = vpop.permute.xlu0 %619
          %621 = vrot.lane.b32.xlu0 %v532, 118
          %v622 = vpop.permute.xlu0 %621
          %623 = vrot.lane.b32.xlu0 %v534, 118
          %v624 = vpop.permute.xlu0 %623
          %625 = vrot.lane.b32.xlu0 %v538, 118
          %v626 = vpop.permute.xlu0 %625
          %s627 = sld [smem:[#allocation2 + $0x12]]
          %v628 = vstv %s627
          %v629 = vmul.f32 %v628, %v616
          %v630 = vmul.f32 %v628, %v618
          %v631 = vmul.f32 %v628, %v620
          %v632 = vadd.f32 %v596, %v629
          %v633 = vadd.f32 %v597, %v630
          %v634 = vadd.f32 %v598, %v631
          %s635 = sld [smem:[#allocation2 + $0x1b]]
          %v636 = vstv %s635
          %v637 = vmul.f32 %v636, %v622
          %v638 = vmul.f32 %v636, %v624
          %v639 = vmul.f32 %v636, %v626
          %v640 = vadd.f32 %v632, %v637
          %v641 = vadd.f32 %v633, %v638
          %v642 = vadd.f32 %v634, %v639
          %s643 = sld [smem:[#allocation2 + $0x24]]
          %v644 = vstv %s643
          %v645 = vmul.f32 %v644, %v616
          %v646 = vmul.f32 %v644, %v618
          %v647 = vmul.f32 %v644, %v620
          %v648 = vadd.f32 %v612, %v645
          %v649 = vadd.f32 %v613, %v646
          %v650 = vadd.f32 %v614, %v647
          %s651 = sld [smem:[#allocation2 + $0x2d]]
          %v652 = vstv %s651
          %v653 = vmul.f32 %v652, %v622
          %v654 = vmul.f32 %v652, %v624
          %v655 = vmul.f32 %v652, %v626
          %v656 = vadd.f32 %v648, %v653
          %v657 = vadd.f32 %v649, %v654
          %v658 = vadd.f32 %v650, %v655
          %s659 = sld [smem:[#allocation2 + $0x2e]]
          %v660 = vstv %s659
          %v661 = vadd.f32 %v640, %v660
          %v662 = vadd.f32 %v641, %v660
          %v663 = vadd.f32 %v642, %v660
          %s664 = sld [smem:[#allocation2 + $0x2f]]
          %v665 = vstv %s664
          %v666 = vadd.f32 %v656, %v665
          %v667 = vadd.f32 %v657, %v665
          %v668 = vadd.f32 %v658, %v665
          %s669 = sld [smem:[#allocation2 + $0x30]]
          %v670 = vstv %s669
          %v671 = vmul.f32 %v670, %v661
          %v672 = vmul.f32 %v670, %v662
          %v673 = vmul.f32 %v670, %v663
          %s674 = sld [smem:[#allocation2 + $0x31]]
          %v675 = vstv %s674
          %v676 = vmul.f32 %v675, %v666
          %v677 = vmul.f32 %v675, %v667
          %v678 = vmul.f32 %v675, %v668
          %v679 = vadd.f32 %v671, %v676
          %v680 = vadd.f32 %v672, %v677
          %v681 = vadd.f32 %v673, %v678
          %s682 = sld [smem:[#allocation2 + $0x34]]
          %v683 = vstv %s682
          %v684 = vadd.f32 %v679, %v683
          %v685 = vadd.f32 %v680, %v683
          %v686 = vadd.f32 %v681, %v683
          %s687 = sld [smem:[#allocation2 + $0x32]]
          %v688 = vstv %s687
          %v689 = vmul.f32 %v688, %v661
          %v690 = vmul.f32 %v688, %v662
          %v691 = vmul.f32 %v688, %v663
          %s692 = sld [smem:[#allocation2 + $0x33]]
          %v693 = vstv %s692
          %v694 = vmul.f32 %v693, %v666
          %v695 = vmul.f32 %v693, %v667
          %v696 = vmul.f32 %v693, %v668
          %v697 = vadd.f32 %v689, %v694
          %v698 = vadd.f32 %v690, %v695
          %v699 = vadd.f32 %v691, %v696
          %s700 = sld [smem:[#allocation2 + $0x35]]
          %v701 = vstv %s700
          %v702 = vadd.f32 %v697, %v701
          %v703 = vadd.f32 %v698, %v701
          %v704 = vadd.f32 %v699, %v701
          %v705 = vmul.f32 %v684, %v165
          %v706 = vmul.f32 %v685, %v166
          %v707 = vmul.f32 %v686, %v167
          %v708 = vmul.f32 %v702, %v165
          %v709 = vmul.f32 %v703, %v166
          %v710 = vmul.f32 %v704, %v167
          %v711 = vadd.f32 %v705, %v706
          %v712 = vadd.f32 %v711, %v707
          %713 = vadd.xlane.f32.xlu0 %v712
          %v714 = vpop.xlane.xlu0 %713
          %v715 = vrot.slane %v714, 4
          %v716 = vadd.f32 %v714, %v715
          %v717 = vrot.slane %v716, 2
          %v718 = vadd.f32 %v716, %v717
          %v719 = vrot.slane %v718, 1
          %v720 = vadd.f32 %v718, %v719
          %s721 = vtos %v720
          %s722 = smul.f32 %s721, 0.0009765625
          %v723 = vmul.f32 %v705, %v705
          %v724 = vmul.f32 %v706, %v706
          %v725 = vmul.f32 %v707, %v707
          %v726 = vadd.f32 %v723, %v724
          %v727 = vadd.f32 %v726, %v725
          %728 = vadd.xlane.f32.xlu0 %v727
          %v729 = vpop.xlane.xlu0 %728
          %v730 = vrot.slane %v729, 4
          %v731 = vadd.f32 %v729, %v730
          %v732 = vrot.slane %v731, 2
          %v733 = vadd.f32 %v731, %v732
          %v734 = vrot.slane %v733, 1
          %v735 = vadd.f32 %v733, %v734
          %s736 = vtos %v735
          %s737 = smul.f32 %s736, 0.0009765625
          %s738 = smul.f32 %s722, %s722
          %s739 = ssub.f32 %s737, %s738
          %s740 = sld [smem:[#allocation2 + $0x36]]
          %s741 = sadd.f32 %s739, 1e-05
          %v742 = vstv %s741
          %v743 = vrsqrt.pop %v742
          %s744 = vtos %v743
          %s745 = smul.f32 %s740, %s744
          %s746 = sld [smem:[#allocation2 + $0x38]]
          %s747 = smul.f32 %s722, %s745
          %s748 = ssub.f32 %s746, %s747
          %v749 = vstv %s745
          %v750 = vmul.f32 %v705, %v749
          %v751 = vmul.f32 %v706, %v749
          %v752 = vmul.f32 %v707, %v749
          %v753 = vstv %s748
          %v754 = vadd.f32 %v750, %v753
          %v755 = vadd.f32 %v751, %v753
          %v756 = vadd.f32 %v752, %v753
          %v757 = vmax.f32 %v754, 0.0
          %v758 = vmax.f32 %v755, 0.0
          %v759 = vmax.f32 %v756, 0.0
          %v760 = vmul.f32 %v757, %v165
          %v761 = vmul.f32 %v758, %v166
          %v762 = vmul.f32 %v759, %v167
          %v763 = vadd.f32 %v708, %v709
          %v764 = vadd.f32 %v763, %v710
          %765 = vadd.xlane.f32.xlu0 %v764
          %v766 = vpop.xlane.xlu0 %765
          %v767 = vrot.slane %v766, 4
          %v768 = vadd.f32 %v766, %v767
          %v769 = vrot.slane %v768, 2
          %v770 = vadd.f32 %v768, %v769
          %v771 = vrot.slane %v770, 1
          %v772 = vadd.f32 %v770, %v771
          %s773 = vtos %v772
          %s774 = smul.f32 %s773, 0.0009765625
          %v775 = vmul.f32 %v708, %v708
          %v776 = vmul.f32 %v709, %v709
          %v777 = vmul.f32 %v710, %v710
          %v778 = vadd.f32 %v775, %v776
          %v779 = vadd.f32 %v778, %v777
          %780 = vadd.xlane.f32.xlu0 %v779
          %v781 = vpop.xlane.xlu0 %780
          %v782 = vrot.slane %v781, 4
          %v783 = vadd.f32 %v781, %v782
          %v784 = vrot.slane %v783, 2
          %v785 = vadd.f32 %v783, %v784
          %v786 = vrot.slane %v785, 1
          %v787 = vadd.f32 %v785, %v786
          %s788 = vtos %v787
          %s789 = smul.f32 %s788, 0.0009765625
          %s790 = smul.f32 %s774, %s774
          %s791 = ssub.f32 %s789, %s790
          %s792 = sld [smem:[#allocation2 + $0x37]]
          %s793 = sadd.f32 %s791, 1e-05
          %v794 = vstv %s793
          %v795 = vrsqrt.pop %v794
          %s796 = vtos %v795
          %s797 = smul.f32 %s792, %s796
          %s798 = sld [smem:[#allocation2 + $0x39]]
          %s799 = smul.f32 %s774, %s797
          %s800 = ssub.f32 %s798, %s799
          %v801 = vstv %s797
          %v802 = vmul.f32 %v708, %v801
          %v803 = vmul.f32 %v709, %v801
          %v804 = vmul.f32 %v710, %v801
          %v805 = vstv %s800
          %v806 = vadd.f32 %v802, %v805
          %v807 = vadd.f32 %v803, %v805
          %v808 = vadd.f32 %v804, %v805
          %v809 = vmax.f32 %v806, 0.0
          %v810 = vmax.f32 %v807, 0.0
          %v811 = vmax.f32 %v808, 0.0
          %v812 = vmul.f32 %v809, %v165
          %v813 = vmul.f32 %v810, %v166
          %v814 = vmul.f32 %v811, %v167
          %s815 = sld [smem:[#allocation2 + $0x3a]]
          %v816 = vstv %s815
          %v817 = vmul.f32 %v816, %v760
          %v818 = vmul.f32 %v816, %v761
          %v819 = vmul.f32 %v816, %v762
          %s820 = sld [smem:[#allocation2 + $0x3b]]
          %v821 = vstv %s820
          %v822 = vmul.f32 %v821, %v812
          %v823 = vmul.f32 %v821, %v813
          %v824 = vmul.f32 %v821, %v814
          %v825 = vadd.f32 %v817, %v822
          %v826 = vadd.f32 %v818, %v823
          %v827 = vadd.f32 %v819, %v824
          %s828 = sld [smem:[#allocation2 + $0x3e]]
          %v829 = vstv %s828
          %v830 = vadd.f32 %v825, %v829
          %v831 = vadd.f32 %v826, %v829
          %v832 = vadd.f32 %v827, %v829
          %s833 = sld [smem:[#allocation2 + $0x3c]]
          %v834 = vstv %s833
          %v835 = vmul.f32 %v834, %v760
          %v836 = vmul.f32 %v834, %v761
          %v837 = vmul.f32 %v834, %v762
          %s838 = sld [smem:[#allocation2 + $0x3d]]
          %v839 = vstv %s838
          %v840 = vmul.f32 %v839, %v812
          %v841 = vmul.f32 %v839, %v813
          %v842 = vmul.f32 %v839, %v814
          %v843 = vadd.f32 %v835, %v840
          %v844 = vadd.f32 %v836, %v841
          %v845 = vadd.f32 %v837, %v842
          %s846 = sld [smem:[#allocation2 + $0x3f]]
          %v847 = vstv %s846
          %v848 = vadd.f32 %v843, %v847
          %v849 = vadd.f32 %v844, %v847
          %v850 = vadd.f32 %v845, %v847
          %s851 = sld [smem:[#allocation2 + $0x40]]
          %v852 = vstv %s851
          %v853 = vmul.f32 %v852, %v830
          %v854 = vmul.f32 %v852, %v831
          %v855 = vmul.f32 %v852, %v832
          %s856 = sld [smem:[#allocation2 + $0x41]]
          %v857 = vstv %s856
          %v858 = vmul.f32 %v857, %v848
          %v859 = vmul.f32 %v857, %v849
          %v860 = vmul.f32 %v857, %v850
          %v861 = vadd.f32 %v853, %v858
          %v862 = vadd.f32 %v854, %v859
          %v863 = vadd.f32 %v855, %v860
          %s864 = sld [smem:[#allocation2 + $0x42]]
          %v865 = vstv %s864
          %v866 = vmul.f32 %v865, %v830
          %v867 = vmul.f32 %v865, %v831
          %v868 = vmul.f32 %v865, %v832
          %s869 = sld [smem:[#allocation2 + $0x43]]
          %v870 = vstv %s869
          %v871 = vmul.f32 %v870, %v848
          %v872 = vmul.f32 %v870, %v849
          %v873 = vmul.f32 %v870, %v850
          %v874 = vadd.f32 %v866, %v871
          %v875 = vadd.f32 %v867, %v872
          %v876 = vadd.f32 %v868, %v873
          %s877 = sld [smem:[#allocation2 + $0x44]]
          %v878 = vstv %s877
          %v879 = vadd.f32 %v861, %v878
          %v880 = vadd.f32 %v862, %v878
          %v881 = vadd.f32 %v863, %v878
          %s882 = sld [smem:[#allocation2 + $0x45]]
          %v883 = vstv %s882
          %v884 = vadd.f32 %v874, %v883
          %v885 = vadd.f32 %v875, %v883
          %v886 = vadd.f32 %v876, %v883
          %s887 = sld [smem:[#allocation2 + $0x46]]
          %v888 = vstv %s887
          %v889 = vmul.f32 %v888, %v879
          %v890 = vmul.f32 %v888, %v880
          %v891 = vmul.f32 %v888, %v881
          %s892 = sld [smem:[#allocation2 + $0x47]]
          %v893 = vstv %s892
          %v894 = vmul.f32 %v893, %v884
          %v895 = vmul.f32 %v893, %v885
          %v896 = vmul.f32 %v893, %v886
          %v897 = vadd.f32 %v889, %v894
          %v898 = vadd.f32 %v890, %v895
          %v899 = vadd.f32 %v891, %v896
          %s900 = sld [smem:[#allocation2 + $0x4a]]
          %v901 = vstv %s900
          %v902 = vadd.f32 %v897, %v901
          %v903 = vadd.f32 %v898, %v901
          %v904 = vadd.f32 %v899, %v901
          %s905 = sld [smem:[#allocation2 + $0x48]]
          %v906 = vstv %s905
          %v907 = vmul.f32 %v906, %v879
          %v908 = vmul.f32 %v906, %v880
          %v909 = vmul.f32 %v906, %v881
          %s910 = sld [smem:[#allocation2 + $0x49]]
          %v911 = vstv %s910
          %v912 = vmul.f32 %v911, %v884
          %v913 = vmul.f32 %v911, %v885
          %v914 = vmul.f32 %v911, %v886
          %v915 = vadd.f32 %v907, %v912
          %v916 = vadd.f32 %v908, %v913
          %v917 = vadd.f32 %v909, %v914
          %s918 = sld [smem:[#allocation2 + $0x4b]]
          %v919 = vstv %s918
          %v920 = vadd.f32 %v915, %v919
          %v921 = vadd.f32 %v916, %v919
          %v922 = vadd.f32 %v917, %v919
          %v923 = vmul.f32 %v902, %v165
          %v924 = vmul.f32 %v903, %v166
          %v925 = vmul.f32 %v904, %v167
          %v926 = vmul.f32 %v920, %v165
          %v927 = vmul.f32 %v921, %v166
          %v928 = vmul.f32 %v922, %v167
          %v929 = vadd.f32 %v923, %v924
          %v930 = vadd.f32 %v929, %v925
          %931 = vadd.xlane.f32.xlu0 %v930
          %v932 = vpop.xlane.xlu0 %931
          %v933 = vrot.slane %v932, 4
          %v934 = vadd.f32 %v932, %v933
          %v935 = vrot.slane %v934, 2
          %v936 = vadd.f32 %v934, %v935
          %v937 = vrot.slane %v936, 1
          %v938 = vadd.f32 %v936, %v937
          %s939 = vtos %v938
          %s940 = smul.f32 %s939, 0.0009765625
          %v941 = vmul.f32 %v923, %v923
          %v942 = vmul.f32 %v924, %v924
          %v943 = vmul.f32 %v925, %v925
          %v944 = vadd.f32 %v941, %v942
          %v945 = vadd.f32 %v944, %v943
          %946 = vadd.xlane.f32.xlu0 %v945
          %v947 = vpop.xlane.xlu0 %946
          %v948 = vrot.slane %v947, 4
          %v949 = vadd.f32 %v947, %v948
          %v950 = vrot.slane %v949, 2
          %v951 = vadd.f32 %v949, %v950
          %v952 = vrot.slane %v951, 1
          %v953 = vadd.f32 %v951, %v952
          %s954 = vtos %v953
          %s955 = smul.f32 %s954, 0.0009765625
          %s956 = smul.f32 %s940, %s940
          %s957 = ssub.f32 %s955, %s956
          %s958 = sld [smem:[#allocation2 + $0x4c]]
          %s959 = sadd.f32 %s957, 1e-05
          %v960 = vstv %s959
          %v961 = vrsqrt.pop %v960
          %s962 = vtos %v961
          %s963 = smul.f32 %s958, %s962
          %s964 = sld [smem:[#allocation2 + $0x4e]]
          %s965 = smul.f32 %s940, %s963
          %s966 = ssub.f32 %s964, %s965
          %v967 = vstv %s963
          %v968 = vmul.f32 %v923, %v967
          %v969 = vmul.f32 %v924, %v967
          %v970 = vmul.f32 %v925, %v967
          %v971 = vstv %s966
          %v972 = vadd.f32 %v968, %v971
          %v973 = vadd.f32 %v969, %v971
          %v974 = vadd.f32 %v970, %v971
          %v975 = vmax.f32 %v972, 0.0
          %v976 = vmax.f32 %v973, 0.0
          %v977 = vmax.f32 %v974, 0.0
          %v978 = vmul.f32 %v975, %v165
          %v979 = vmul.f32 %v976, %v166
          %v980 = vmul.f32 %v977, %v167
          %v981 = vadd.f32 %v926, %v927
          %v982 = vadd.f32 %v981, %v928
          %983 = vadd.xlane.f32.xlu0 %v982
          %v984 = vpop.xlane.xlu0 %983
          %v985 = vrot.slane %v984, 4
          %v986 = vadd.f32 %v984, %v985
          %v987 = vrot.slane %v986, 2
          %v988 = vadd.f32 %v986, %v987
          %v989 = vrot.slane %v988, 1
          %v990 = vadd.f32 %v988, %v989
          %s991 = vtos %v990
          %s992 = smul.f32 %s991, 0.0009765625
          %v993 = vmul.f32 %v926, %v926
          %v994 = vmul.f32 %v927, %v927
          %v995 = vmul.f32 %v928, %v928
          %v996 = vadd.f32 %v993, %v994
          %v997 = vadd.f32 %v996, %v995
          %998 = vadd.xlane.f32.xlu0 %v997
          %v999 = vpop.xlane.xlu0 %998
          %v1000 = vrot.slane %v999, 4
          %v1001 = vadd.f32 %v999, %v1000
          %v1002 = vrot.slane %v1001, 2
          %v1003 = vadd.f32 %v1001, %v1002
          %v1004 = vrot.slane %v1003, 1
          %v1005 = vadd.f32 %v1003, %v1004
          %s1006 = vtos %v1005
          %s1007 = smul.f32 %s1006, 0.0009765625
          %s1008 = smul.f32 %s992, %s992
          %s1009 = ssub.f32 %s1007, %s1008
          %s1010 = sld [smem:[#allocation2 + $0x4d]]
          %s1011 = sadd.f32 %s1009, 1e-05
          %v1012 = vstv %s1011
          %v1013 = vrsqrt.pop %v1012
          %s1014 = vtos %v1013
          %s1015 = smul.f32 %s1010, %s1014
          %s1016 = sld [smem:[#allocation2 + $0x4f]]
          %s1017 = smul.f32 %s992, %s1015
          %s1018 = ssub.f32 %s1016, %s1017
          %v1019 = vstv %s1015
          %v1020 = vmul.f32 %v926, %v1019
          %v1021 = vmul.f32 %v927, %v1019
          %v1022 = vmul.f32 %v928, %v1019
          %v1023 = vstv %s1018
          %v1024 = vadd.f32 %v1020, %v1023
          %v1025 = vadd.f32 %v1021, %v1023
          %v1026 = vadd.f32 %v1022, %v1023
          %v1027 = vmax.f32 %v1024, 0.0
          %v1028 = vmax.f32 %v1025, 0.0
          %v1029 = vmax.f32 %v1026, 0.0
          %v1030 = vmul.f32 %v1027, %v165
          %v1031 = vmul.f32 %v1028, %v166
          %v1032 = vmul.f32 %v1029, %v167
          %s1033 = sld [smem:[#allocation2 + $0x50]]
          %v1034 = vadd.f32 %v168, %v760
          %v1035 = vadd.f32 %v169, %v761
          %v1036 = vadd.f32 %v170, %v762
          %v1037 = vstv %s1033
          %v1038 = vmul.f32 %v1037, %v1034
          %v1039 = vmul.f32 %v1037, %v1035
          %v1040 = vmul.f32 %v1037, %v1036
          %1041 = vst [vmem:[%s164] sm:$0xff] %v1038
          %1042 = vst [vmem:[%s164 + $0x8] sm:$0xff] %v1039
          %1043 = vst [vmem:[%s164 + $0x10] sm:$0xff] %v1040
          %v1044 = vadd.f32 %v172, %v812
          %v1045 = vadd.f32 %v173, %v813
          %v1046 = vadd.f32 %v174, %v814
          %v1047 = vmul.f32 %v1037, %v1044
          %v1048 = vmul.f32 %v1037, %v1045
          %v1049 = vmul.f32 %v1037, %v1046
          %s1050 = scalar_lea.vmem %s164, 24
          %1051 = vst [vmem:[%s1050] sm:$0xff] %v1047
          %1052 = vst [vmem:[%s1050 + $0x8] sm:$0xff] %v1048
          %1053 = vst [vmem:[%s1050 + $0x10] sm:$0xff] %v1049
          %v1054 = vadd.f32 %v176, %v978
          %v1055 = vadd.f32 %v177, %v979
          %v1056 = vadd.f32 %v178, %v980
          %v1057 = vmul.f32 %v1037, %v1054
          %v1058 = vmul.f32 %v1037, %v1055
          %v1059 = vmul.f32 %v1037, %v1056
          %s1060 = scalar_lea.vmem %s164, 48
          %1061 = vst [vmem:[%s1060] sm:$0xff] %v1057
          %1062 = vst [vmem:[%s1060 + $0x8] sm:$0xff] %v1058
          %1063 = vst [vmem:[%s1060 + $0x10] sm:$0xff] %v1059
          %v1064 = vadd.f32 %v180, %v1030
          %v1065 = vadd.f32 %v181, %v1031
          %v1066 = vadd.f32 %v182, %v1032
          %v1067 = vmul.f32 %v1037, %v1064
          %v1068 = vmul.f32 %v1037, %v1065
          %v1069 = vmul.f32 %v1037, %v1066
          %s1070 = scalar_lea.vmem %s164, 72
          %1071 = vst [vmem:[%s1070] sm:$0xff] %v1067
          %1072 = vst [vmem:[%s1070 + $0x8] sm:$0xff] %v1068
          %1073 = vst [vmem:[%s1070 + $0x10] sm:$0xff] %v1069
        $region40: #{decoder_forward.1} parent=31 // pred_fallthru
          _
        %p1074 = scmp.eq.s32.totalorder %s15, 1
        // Predicated region
        $region41: #{decoder_forward.1} parent=31 // pred_check
          %p1075 = pneg %p1074
        $region42: #{decoder_forward.1} parent=31 // pred_check_branch
          %1077 = sbr.rel (%p1075) target = $region44
        $region43: #{decoder_forward.1} parent=31 // pred_region
          %s1078 = sld [smem:[#allocation2 + $0x80]]
          %v1079 = vstv %s1078
          %v1080 = vmul.f32 %v1079, %v168
          %v1081 = vmul.f32 %v1079, %v169
          %v1082 = vmul.f32 %v1079, %v170
          %s1083 = sld [smem:[#allocation2 + $0x81]]
          %v1084 = vstv %s1083
          %v1085 = vmul.f32 %v1084, %v172
          %v1086 = vmul.f32 %v1084, %v173
          %v1087 = vmul.f32 %v1084, %v174
          %v1088 = vadd.f32 %v1080, %v1085
          %v1089 = vadd.f32 %v1081, %v1086
          %v1090 = vadd.f32 %v1082, %v1087
          %s1091 = sld [smem:[#allocation2 + $0x82]]
          %v1092 = vstv %s1091
          %v1093 = vmul.f32 %v1092, %v176
          %v1094 = vmul.f32 %v1092, %v177
          %v1095 = vmul.f32 %v1092, %v178
          %v1096 = vadd.f32 %v1088, %v1093
          %v1097 = vadd.f32 %v1089, %v1094
          %v1098 = vadd.f32 %v1090, %v1095
          %s1099 = sld [smem:[#allocation2 + $0x83]]
          %v1100 = vstv %s1099
          %v1101 = vmul.f32 %v1100, %v180
          %v1102 = vmul.f32 %v1100, %v181
          %v1103 = vmul.f32 %v1100, %v182
          %v1104 = vadd.f32 %v1096, %v1101
          %v1105 = vadd.f32 %v1097, %v1102
          %v1106 = vadd.f32 %v1098, %v1103
          %s1107 = sld [smem:[#allocation2 + $0x88]]
          %v1108 = vstv %s1107
          %v1109 = vadd.f32 %v1104, %v1108
          %v1110 = vadd.f32 %v1105, %v1108
          %v1111 = vadd.f32 %v1106, %v1108
          %s1112 = sld [smem:[#allocation2 + $0x84]]
          %v1113 = vstv %s1112
          %v1114 = vmul.f32 %v1113, %v168
          %v1115 = vmul.f32 %v1113, %v169
          %v1116 = vmul.f32 %v1113, %v170
          %s1117 = sld [smem:[#allocation2 + $0x85]]
          %v1118 = vstv %s1117
          %v1119 = vmul.f32 %v1118, %v172
          %v1120 = vmul.f32 %v1118, %v173
          %v1121 = vmul.f32 %v1118, %v174
          %v1122 = vadd.f32 %v1114, %v1119
          %v1123 = vadd.f32 %v1115, %v1120
          %v1124 = vadd.f32 %v1116, %v1121
          %s1125 = sld [smem:[#allocation2 + $0x86]]
          %v1126 = vstv %s1125
          %v1127 = vmul.f32 %v1126, %v176
          %v1128 = vmul.f32 %v1126, %v177
          %v1129 = vmul.f32 %v1126, %v178
          %v1130 = vadd.f32 %v1122, %v1127
          %v1131 = vadd.f32 %v1123, %v1128
          %v1132 = vadd.f32 %v1124, %v1129
          %s1133 = sld [smem:[#allocation2 + $0x87]]
          %v1134 = vstv %s1133
          %v1135 = vmul.f32 %v1134, %v180
          %v1136 = vmul.f32 %v1134, %v181
          %v1137 = vmul.f32 %v1134, %v182
          %v1138 = vadd.f32 %v1130, %v1135
          %v1139 = vadd.f32 %v1131, %v1136
          %v1140 = vadd.f32 %v1132, %v1137
          %s1141 = sld [smem:[#allocation2 + $0x89]]
          %v1142 = vstv %s1141
          %v1143 = vadd.f32 %v1138, %v1142
          %v1144 = vadd.f32 %v1139, %v1142
          %v1145 = vadd.f32 %v1140, %v1142
          %v1146 = vmul.f32 %v1109, %v165
          %v1147 = vmul.f32 %v1110, %v166
          %v1148 = vmul.f32 %v1111, %v167
          %v1149 = vmul.f32 %v1143, %v165
          %v1150 = vmul.f32 %v1144, %v166
          %v1151 = vmul.f32 %v1145, %v167
          %vm1155 = vcmask 1040384
          %v1156 = vrot.slane %v1146, 7
          %v1157 = vrot.slane %v1147, 7
          %v1158 = vsel %vm1155, %v1156, %v1157
          %v1159 = vrot.slane %v1148, 7
          %v1160 = vsel %vm1155, %v1157, %v1159
          %v1164 = vsel %vm1155, 0.0, %v1156
          %v1168 = vrot.slane %v1149, 7
          %v1169 = vrot.slane %v1150, 7
          %v1170 = vsel %vm1155, %v1168, %v1169
          %v1171 = vrot.slane %v1151, 7
          %v1172 = vsel %vm1155, %v1169, %v1171
          %v1176 = vsel %vm1155, 0.0, %v1168
          %1177 = vrot.lane.b32.xlu0 %v1164, 11
          %v1178 = vpop.permute.xlu0 %1177
          %1179 = vrot.lane.b32.xlu0 %v1158, 11
          %v1180 = vpop.permute.xlu0 %1179
          %1181 = vrot.lane.b32.xlu0 %v1160, 11
          %v1182 = vpop.permute.xlu0 %1181
          %1183 = vrot.lane.b32.xlu0 %v1176, 11
          %v1184 = vpop.permute.xlu0 %1183
          %1185 = vrot.lane.b32.xlu0 %v1170, 11
          %v1186 = vpop.permute.xlu0 %1185
          %1187 = vrot.lane.b32.xlu0 %v1172, 11
          %v1188 = vpop.permute.xlu0 %1187
          %s1189 = sld [smem:[#allocation2 + $0x8a]]
          %v1190 = vstv %s1189
          %v1191 = vmul.f32 %v1190, %v1178
          %v1192 = vmul.f32 %v1190, %v1180
          %v1193 = vmul.f32 %v1190, %v1182
          %s1194 = sld [smem:[#allocation2 + $0xa5]]
          %v1195 = vstv %s1194
          %v1196 = vmul.f32 %v1195, %v1184
          %v1197 = vmul.f32 %v1195, %v1186
          %v1198 = vmul.f32 %v1195, %v1188
          %v1199 = vadd.f32 %v1191, %v1196
          %v1200 = vadd.f32 %v1192, %v1197
          %v1201 = vadd.f32 %v1193, %v1198
          %s1202 = sld [smem:[#allocation2 + $0xc0]]
          %v1203 = vstv %s1202
          %v1204 = vmul.f32 %v1203, %v1178
          %v1205 = vmul.f32 %v1203, %v1180
          %v1206 = vmul.f32 %v1203, %v1182
          %s1207 = sld [smem:[#allocation2 + $0xdb]]
          %v1208 = vstv %s1207
          %v1209 = vmul.f32 %v1208, %v1184
          %v1210 = vmul.f32 %v1208, %v1186
          %v1211 = vmul.f32 %v1208, %v1188
          %v1212 = vadd.f32 %v1204, %v1209
          %v1213 = vadd.f32 %v1205, %v1210
          %v1214 = vadd.f32 %v1206, %v1211
          %1215 = vrot.lane.b32.xlu0 %v1164, 10
          %v1216 = vpop.permute.xlu0 %1215
          %1217 = vrot.lane.b32.xlu0 %v1158, 10
          %v1218 = vpop.permute.xlu0 %1217
          %1219 = vrot.lane.b32.xlu0 %v1160, 10
          %v1220 = vpop.permute.xlu0 %1219
          %1221 = vrot.lane.b32.xlu0 %v1176, 10
          %v1222 = vpop.permute.xlu0 %1221
          %1223 = vrot.lane.b32.xlu0 %v1170, 10
          %v1224 = vpop.permute.xlu0 %1223
          %1225 = vrot.lane.b32.xlu0 %v1172, 10
          %v1226 = vpop.permute.xlu0 %1225
          %s1227 = sld [smem:[#allocation2 + $0x8b]]
          %v1228 = vstv %s1227
          %v1229 = vmul.f32 %v1228, %v1216
          %v1230 = vmul.f32 %v1228, %v1218
          %v1231 = vmul.f32 %v1228, %v1220
          %v1232 = vadd.f32 %v1199, %v1229
          %v1233 = vadd.f32 %v1200, %v1230
          %v1234 = vadd.f32 %v1201, %v1231
          %s1235 = sld [smem:[#allocation2 + $0xa6]]
          %v1236 = vstv %s1235
          %v1237 = vmul.f32 %v1236, %v1222
          %v1238 = vmul.f32 %v1236, %v1224
          %v1239 = vmul.f32 %v1236, %v1226
          %v1240 = vadd.f32 %v1232, %v1237
          %v1241 = vadd.f32 %v1233, %v1238
          %v1242 = vadd.f32 %v1234, %v1239
          %s1243 = sld [smem:[#allocation2 + $0xc1]]
          %v1244 = vstv %s1243
          %v1245 = vmul.f32 %v1244, %v1216
          %v1246 = vmul.f32 %v1244, %v1218
          %v1247 = vmul.f32 %v1244, %v1220
          %v1248 = vadd.f32 %v1212, %v1245
          %v1249 = vadd.f32 %v1213, %v1246
          %v1250 = vadd.f32 %v1214, %v1247
          %s1251 = sld [smem:[#allocation2 + $0xdc]]
          %v1252 = vstv %s1251
          %v1253 = vmul.f32 %v1252, %v1222
          %v1254 = vmul.f32 %v1252, %v1224
          %v1255 = vmul.f32 %v1252, %v1226
          %v1256 = vadd.f32 %v1248, %v1253
          %v1257 = vadd.f32 %v1249, %v1254
          %v1258 = vadd.f32 %v1250, %v1255
          %1259 = vrot.lane.b32.xlu0 %v1164, 9
          %v1260 = vpop.permute.xlu0 %1259
          %1261 = vrot.lane.b32.xlu0 %v1158, 9
          %v1262 = vpop.permute.xlu0 %1261
          %1263 = vrot.lane.b32.xlu0 %v1160, 9
          %v1264 = vpop.permute.xlu0 %1263
          %1265 = vrot.lane.b32.xlu0 %v1176, 9
          %v1266 = vpop.permute.xlu0 %1265
          %1267 = vrot.lane.b32.xlu0 %v1170, 9
          %v1268 = vpop.permute.xlu0 %1267
          %1269 = vrot.lane.b32.xlu0 %v1172, 9
          %v1270 = vpop.permute.xlu0 %1269
          %s1271 = sld [smem:[#allocation2 + $0x8c]]
          %v1272 = vstv %s1271
          %v1273 = vmul.f32 %v1272, %v1260
          %v1274 = vmul.f32 %v1272, %v1262
          %v1275 = vmul.f32 %v1272, %v1264
          %v1276 = vadd.f32 %v1240, %v1273
          %v1277 = vadd.f32 %v1241, %v1274
          %v1278 = vadd.f32 %v1242, %v1275
          %s1279 = sld [smem:[#allocation2 + $0xa7]]
          %v1280 = vstv %s1279
          %v1281 = vmul.f32 %v1280, %v1266
          %v1282 = vmul.f32 %v1280, %v1268
          %v1283 = vmul.f32 %v1280, %v1270
          %v1284 = vadd.f32 %v1276, %v1281
          %v1285 = vadd.f32 %v1277, %v1282
          %v1286 = vadd.f32 %v1278, %v1283
          %s1287 = sld [smem:[#allocation2 + $0xc2]]
          %v1288 = vstv %s1287
          %v1289 = vmul.f32 %v1288, %v1260
          %v1290 = vmul.f32 %v1288, %v1262
          %v1291 = vmul.f32 %v1288, %v1264
          %v1292 = vadd.f32 %v1256, %v1289
          %v1293 = vadd.f32 %v1257, %v1290
          %v1294 = vadd.f32 %v1258, %v1291
          %s1295 = sld [smem:[#allocation2 + $0xdd]]
          %v1296 = vstv %s1295
          %v1297 = vmul.f32 %v1296, %v1266
          %v1298 = vmul.f32 %v1296, %v1268
          %v1299 = vmul.f32 %v1296, %v1270
          %v1300 = vadd.f32 %v1292, %v1297
          %v1301 = vadd.f32 %v1293, %v1298
          %v1302 = vadd.f32 %v1294, %v1299
          %1303 = vrot.lane.b32.xlu0 %v1164, 1
          %v1304 = vpop.permute.xlu0 %1303
          %1305 = vrot.lane.b32.xlu0 %v1158, 1
          %v1306 = vpop.permute.xlu0 %1305
          %1307 = vrot.lane.b32.xlu0 %v1160, 1
          %v1308 = vpop.permute.xlu0 %1307
          %1309 = vrot.lane.b32.xlu0 %v1176, 1
          %v1310 = vpop.permute.xlu0 %1309
          %1311 = vrot.lane.b32.xlu0 %v1170, 1
          %v1312 = vpop.permute.xlu0 %1311
          %1313 = vrot.lane.b32.xlu0 %v1172, 1
          %v1314 = vpop.permute.xlu0 %1313
          %s1315 = sld [smem:[#allocation2 + $0x8d]]
          %v1316 = vstv %s1315
          %v1317 = vmul.f32 %v1316, %v1304
          %v1318 = vmul.f32 %v1316, %v1306
          %v1319 = vmul.f32 %v1316, %v1308
          %v1320 = vadd.f32 %v1284, %v1317
          %v1321 = vadd.f32 %v1285, %v1318
          %v1322 = vadd.f32 %v1286, %v1319
          %s1323 = sld [smem:[#allocation2 + $0xa8]]
          %v1324 = vstv %s1323
          %v1325 = vmul.f32 %v1324, %v1310
          %v1326 = vmul.f32 %v1324, %v1312
          %v1327 = vmul.f32 %v1324, %v1314
          %v1328 = vadd.f32 %v1320, %v1325
          %v1329 = vadd.f32 %v1321, %v1326
          %v1330 = vadd.f32 %v1322, %v1327
          %s1331 = sld [smem:[#allocation2 + $0xc3]]
          %v1332 = vstv %s1331
          %v1333 = vmul.f32 %v1332, %v1304
          %v1334 = vmul.f32 %v1332, %v1306
          %v1335 = vmul.f32 %v1332, %v1308
          %v1336 = vadd.f32 %v1300, %v1333
          %v1337 = vadd.f32 %v1301, %v1334
          %v1338 = vadd.f32 %v1302, %v1335
          %s1339 = sld [smem:[#allocation2 + $0xde]]
          %v1340 = vstv %s1339
          %v1341 = vmul.f32 %v1340, %v1310
          %v1342 = vmul.f32 %v1340, %v1312
          %v1343 = vmul.f32 %v1340, %v1314
          %v1344 = vadd.f32 %v1336, %v1341
          %v1345 = vadd.f32 %v1337, %v1342
          %v1346 = vadd.f32 %v1338, %v1343
          %s1347 = sld [smem:[#allocation2 + $0x8e]]
          %v1348 = vstv %s1347
          %v1349 = vmul.f32 %v1348, %v1164
          %v1350 = vmul.f32 %v1348, %v1158
          %v1351 = vmul.f32 %v1348, %v1160
          %v1352 = vadd.f32 %v1328, %v1349
          %v1353 = vadd.f32 %v1329, %v1350
          %v1354 = vadd.f32 %v1330, %v1351
          %s1355 = sld [smem:[#allocation2 + $0xa9]]
          %v1356 = vstv %s1355
          %v1357 = vmul.f32 %v1356, %v1176
          %v1358 = vmul.f32 %v1356, %v1170
          %v1359 = vmul.f32 %v1356, %v1172
          %v1360 = vadd.f32 %v1352, %v1357
          %v1361 = vadd.f32 %v1353, %v1358
          %v1362 = vadd.f32 %v1354, %v1359
          %s1363 = sld [smem:[#allocation2 + $0xc4]]
          %v1364 = vstv %s1363
          %v1365 = vmul.f32 %v1364, %v1164
          %v1366 = vmul.f32 %v1364, %v1158
          %v1367 = vmul.f32 %v1364, %v1160
          %v1368 = vadd.f32 %v1344, %v1365
          %v1369 = vadd.f32 %v1345, %v1366
          %v1370 = vadd.f32 %v1346, %v1367
          %s1371 = sld [smem:[#allocation2 + $0xdf]]
          %v1372 = vstv %s1371
          %v1373 = vmul.f32 %v1372, %v1176
          %v1374 = vmul.f32 %v1372, %v1170
          %v1375 = vmul.f32 %v1372, %v1172
          %v1376 = vadd.f32 %v1368, %v1373
          %v1377 = vadd.f32 %v1369, %v1374
          %v1378 = vadd.f32 %v1370, %v1375
          %1379 = vrot.lane.b32.xlu0 %v1164, 127
          %v1380 = vpop.permute.xlu0 %1379
          %1381 = vrot.lane.b32.xlu0 %v1158, 127
          %v1382 = vpop.permute.xlu0 %1381
          %1383 = vrot.lane.b32.xlu0 %v1160, 127
          %v1384 = vpop.permute.xlu0 %1383
          %1385 = vrot.lane.b32.xlu0 %v1176, 127
          %v1386 = vpop.permute.xlu0 %1385
          %1387 = vrot.lane.b32.xlu0 %v1170, 127
          %v1388 = vpop.permute.xlu0 %1387
          %1389 = vrot.lane.b32.xlu0 %v1172, 127
          %v1390 = vpop.permute.xlu0 %1389
          %s1391 = sld [smem:[#allocation2 + $0x8f]]
          %v1392 = vstv %s1391
          %v1393 = vmul.f32 %v1392, %v1380
          %v1394 = vmul.f32 %v1392, %v1382
          %v1395 = vmul.f32 %v1392, %v1384
          %v1396 = vadd.f32 %v1360, %v1393
          %v1397 = vadd.f32 %v1361, %v1394
          %v1398 = vadd.f32 %v1362, %v1395
          %s1399 = sld [smem:[#allocation2 + $0xaa]]
          %v1400 = vstv %s1399
          %v1401 = vmul.f32 %v1400, %v1386
          %v1402 = vmul.f32 %v1400, %v1388
          %v1403 = vmul.f32 %v1400, %v1390
          %v1404 = vadd.f32 %v1396, %v1401
          %v1405 = vadd.f32 %v1397, %v1402
          %v1406 = vadd.f32 %v1398, %v1403
          %s1407 = sld [smem:[#allocation2 + $0xc5]]
          %v1408 = vstv %s1407
          %v1409 = vmul.f32 %v1408, %v1380
          %v1410 = vmul.f32 %v1408, %v1382
          %v1411 = vmul.f32 %v1408, %v1384
          %v1412 = vadd.f32 %v1376, %v1409
          %v1413 = vadd.f32 %v1377, %v1410
          %v1414 = vadd.f32 %v1378, %v1411
          %s1415 = sld [smem:[#allocation2 + $0xe0]]
          %v1416 = vstv %s1415
          %v1417 = vmul.f32 %v1416, %v1386
          %v1418 = vmul.f32 %v1416, %v1388
          %v1419 = vmul.f32 %v1416, %v1390
          %v1420 = vadd.f32 %v1412, %v1417
          %v1421 = vadd.f32 %v1413, %v1418
          %v1422 = vadd.f32 %v1414, %v1419
          %1423 = vrot.lane.b32.xlu0 %v1164, 119
          %v1424 = vpop.permute.xlu0 %1423
          %1425 = vrot.lane.b32.xlu0 %v1158, 119
          %v1426 = vpop.permute.xlu0 %1425
          %1427 = vrot.lane.b32.xlu0 %v1160, 119
          %v1428 = vpop.permute.xlu0 %1427
          %1429 = vrot.lane.b32.xlu0 %v1176, 119
          %v1430 = vpop.permute.xlu0 %1429
          %1431 = vrot.lane.b32.xlu0 %v1170, 119
          %v1432 = vpop.permute.xlu0 %1431
          %1433 = vrot.lane.b32.xlu0 %v1172, 119
          %v1434 = vpop.permute.xlu0 %1433
          %s1435 = sld [smem:[#allocation2 + $0x90]]
          %v1436 = vstv %s1435
          %v1437 = vmul.f32 %v1436, %v1424
          %v1438 = vmul.f32 %v1436, %v1426
          %v1439 = vmul.f32 %v1436, %v1428
          %v1440 = vadd.f32 %v1404, %v1437
          %v1441 = vadd.f32 %v1405, %v1438
          %v1442 = vadd.f32 %v1406, %v1439
          %s1443 = sld [smem:[#allocation2 + $0xab]]
          %v1444 = vstv %s1443
          %v1445 = vmul.f32 %v1444, %v1430
          %v1446 = vmul.f32 %v1444, %v1432
          %v1447 = vmul.f32 %v1444, %v1434
          %v1448 = vadd.f32 %v1440, %v1445
          %v1449 = vadd.f32 %v1441, %v1446
          %v1450 = vadd.f32 %v1442, %v1447
          %s1451 = sld [smem:[#allocation2 + $0xc6]]
          %v1452 = vstv %s1451
          %v1453 = vmul.f32 %v1452, %v1424
          %v1454 = vmul.f32 %v1452, %v1426
          %v1455 = vmul.f32 %v1452, %v1428
          %v1456 = vadd.f32 %v1420, %v1453
          %v1457 = vadd.f32 %v1421, %v1454
          %v1458 = vadd.f32 %v1422, %v1455
          %s1459 = sld [smem:[#allocation2 + $0xe1]]
          %v1460 = vstv %s1459
          %v1461 = vmul.f32 %v1460, %v1430
          %v1462 = vmul.f32 %v1460, %v1432
          %v1463 = vmul.f32 %v1460, %v1434
          %v1464 = vadd.f32 %v1456, %v1461
          %v1465 = vadd.f32 %v1457, %v1462
          %v1466 = vadd.f32 %v1458, %v1463
          %1467 = vrot.lane.b32.xlu0 %v1164, 118
          %v1468 = vpop.permute.xlu0 %1467
          %1469 = vrot.lane.b32.xlu0 %v1158, 118
          %v1470 = vpop.permute.xlu0 %1469
          %1471 = vrot.lane.b32.xlu0 %v1160, 118
          %v1472 = vpop.permute.xlu0 %1471
          %1473 = vrot.lane.b32.xlu0 %v1176, 118
          %v1474 = vpop.permute.xlu0 %1473
          %1475 = vrot.lane.b32.xlu0 %v1170, 118
          %v1476 = vpop.permute.xlu0 %1475
          %1477 = vrot.lane.b32.xlu0 %v1172, 118
          %v1478 = vpop.permute.xlu0 %1477
          %s1479 = sld [smem:[#allocation2 + $0x91]]
          %v1480 = vstv %s1479
          %v1481 = vmul.f32 %v1480, %v1468
          %v1482 = vmul.f32 %v1480, %v1470
          %v1483 = vmul.f32 %v1480, %v1472
          %v1484 = vadd.f32 %v1448, %v1481
          %v1485 = vadd.f32 %v1449, %v1482
          %v1486 = vadd.f32 %v1450, %v1483
          %s1487 = sld [smem:[#allocation2 + $0xac]]
          %v1488 = vstv %s1487
          %v1489 = vmul.f32 %v1488, %v1474
          %v1490 = vmul.f32 %v1488, %v1476
          %v1491 = vmul.f32 %v1488, %v1478
          %v1492 = vadd.f32 %v1484, %v1489
          %v1493 = vadd.f32 %v1485, %v1490
          %v1494 = vadd.f32 %v1486, %v1491
          %s1495 = sld [smem:[#allocation2 + $0xc7]]
          %v1496 = vstv %s1495
          %v1497 = vmul.f32 %v1496, %v1468
          %v1498 = vmul.f32 %v1496, %v1470
          %v1499 = vmul.f32 %v1496, %v1472
          %v1500 = vadd.f32 %v1464, %v1497
          %v1501 = vadd.f32 %v1465, %v1498
          %v1502 = vadd.f32 %v1466, %v1499
          %s1503 = sld [smem:[#allocation2 + $0xe2]]
          %v1504 = vstv %s1503
          %v1505 = vmul.f32 %v1504, %v1474
          %v1506 = vmul.f32 %v1504, %v1476
          %v1507 = vmul.f32 %v1504, %v1478
          %v1508 = vadd.f32 %v1500, %v1505
          %v1509 = vadd.f32 %v1501, %v1506
          %v1510 = vadd.f32 %v1502, %v1507
          %1511 = vrot.lane.b32.xlu0 %v1164, 117
          %v1512 = vpop.permute.xlu0 %1511
          %1513 = vrot.lane.b32.xlu0 %v1158, 117
          %v1514 = vpop.permute.xlu0 %1513
          %1515 = vrot.lane.b32.xlu0 %v1160, 117
          %v1516 = vpop.permute.xlu0 %1515
          %1517 = vrot.lane.b32.xlu0 %v1176, 117
          %v1518 = vpop.permute.xlu0 %1517
          %1519 = vrot.lane.b32.xlu0 %v1170, 117
          %v1520 = vpop.permute.xlu0 %1519
          %1521 = vrot.lane.b32.xlu0 %v1172, 117
          %v1522 = vpop.permute.xlu0 %1521
          %s1523 = sld [smem:[#allocation2 + $0x92]]
          %v1524 = vstv %s1523
          %v1525 = vmul.f32 %v1524, %v1512
          %v1526 = vmul.f32 %v1524, %v1514
          %v1527 = vmul.f32 %v1524, %v1516
          %v1528 = vadd.f32 %v1492, %v1525
          %v1529 = vadd.f32 %v1493, %v1526
          %v1530 = vadd.f32 %v1494, %v1527
          %s1531 = sld [smem:[#allocation2 + $0xad]]
          %v1532 = vstv %s1531
          %v1533 = vmul.f32 %v1532, %v1518
          %v1534 = vmul.f32 %v1532, %v1520
          %v1535 = vmul.f32 %v1532, %v1522
          %v1536 = vadd.f32 %v1528, %v1533
          %v1537 = vadd.f32 %v1529, %v1534
          %v1538 = vadd.f32 %v1530, %v1535
          %s1539 = sld [smem:[#allocation2 + $0xc8]]
          %v1540 = vstv %s1539
          %v1541 = vmul.f32 %v1540, %v1512
          %v1542 = vmul.f32 %v1540, %v1514
          %v1543 = vmul.f32 %v1540, %v1516
          %v1544 = vadd.f32 %v1508, %v1541
          %v1545 = vadd.f32 %v1509, %v1542
          %v1546 = vadd.f32 %v1510, %v1543
          %s1547 = sld [smem:[#allocation2 + $0xe3]]
          %v1548 = vstv %s1547
          %v1549 = vmul.f32 %v1548, %v1518
          %v1550 = vmul.f32 %v1548, %v1520
          %v1551 = vmul.f32 %v1548, %v1522
          %v1552 = vadd.f32 %v1544, %v1549
          %v1553 = vadd.f32 %v1545, %v1550
          %v1554 = vadd.f32 %v1546, %v1551
          %1555 = vrot.lane.b32.xlu0 %v1146, 11
          %v1556 = vpop.permute.xlu0 %1555
          %1557 = vrot.lane.b32.xlu0 %v1147, 11
          %v1558 = vpop.permute.xlu0 %1557
          %1559 = vrot.lane.b32.xlu0 %v1148, 11
          %v1560 = vpop.permute.xlu0 %1559
          %1561 = vrot.lane.b32.xlu0 %v1149, 11
          %v1562 = vpop.permute.xlu0 %1561
          %1563 = vrot.lane.b32.xlu0 %v1150, 11
          %v1564 = vpop.permute.xlu0 %1563
          %1565 = vrot.lane.b32.xlu0 %v1151, 11
          %v1566 = vpop.permute.xlu0 %1565
          %s1567 = sld [smem:[#allocation2 + $0x93]]
          %v1568 = vstv %s1567
          %v1569 = vmul.f32 %v1568, %v1556
          %v1570 = vmul.f32 %v1568, %v1558
          %v1571 = vmul.f32 %v1568, %v1560
          %v1572 = vadd.f32 %v1536, %v1569
          %v1573 = vadd.f32 %v1537, %v1570
          %v1574 = vadd.f32 %v1538, %v1571
          %s1575 = sld [smem:[#allocation2 + $0xae]]
          %v1576 = vstv %s1575
          %v1577 = vmul.f32 %v1576, %v1562
          %v1578 = vmul.f32 %v1576, %v1564
          %v1579 = vmul.f32 %v1576, %v1566
          %v1580 = vadd.f32 %v1572, %v1577
          %v1581 = vadd.f32 %v1573, %v1578
          %v1582 = vadd.f32 %v1574, %v1579
          %s1583 = sld [smem:[#allocation2 + $0xc9]]
          %v1584 = vstv %s1583
          %v1585 = vmul.f32 %v1584, %v1556
          %v1586 = vmul.f32 %v1584, %v1558
          %v1587 = vmul.f32 %v1584, %v1560
          %v1588 = vadd.f32 %v1552, %v1585
          %v1589 = vadd.f32 %v1553, %v1586
          %v1590 = vadd.f32 %v1554, %v1587
          %s1591 = sld [smem:[#allocation2 + $0xe4]]
          %v1592 = vstv %s1591
          %v1593 = vmul.f32 %v1592, %v1562
          %v1594 = vmul.f32 %v1592, %v1564
          %v1595 = vmul.f32 %v1592, %v1566
          %v1596 = vadd.f32 %v1588, %v1593
          %v1597 = vadd.f32 %v1589, %v1594
          %v1598 = vadd.f32 %v1590, %v1595
          %1599 = vrot.lane.b32.xlu0 %v1146, 10
          %v1600 = vpop.permute.xlu0 %1599
          %1601 = vrot.lane.b32.xlu0 %v1147, 10
          %v1602 = vpop.permute.xlu0 %1601
          %1603 = vrot.lane.b32.xlu0 %v1148, 10
          %v1604 = vpop.permute.xlu0 %1603
          %1605 = vrot.lane.b32.xlu0 %v1149, 10
          %v1606 = vpop.permute.xlu0 %1605
          %1607 = vrot.lane.b32.xlu0 %v1150, 10
          %v1608 = vpop.permute.xlu0 %1607
          %1609 = vrot.lane.b32.xlu0 %v1151, 10
          %v1610 = vpop.permute.xlu0 %1609
          %s1611 = sld [smem:[#allocation2 + $0x94]]
          %v1612 = vstv %s1611
          %v1613 = vmul.f32 %v1612, %v1600
          %v1614 = vmul.f32 %v1612, %v1602
          %v1615 = vmul.f32 %v1612, %v1604
          %v1616 = vadd.f32 %v1580, %v1613
          %v1617 = vadd.f32 %v1581, %v1614
          %v1618 = vadd.f32 %v1582, %v1615
          %s1619 = sld [smem:[#allocation2 + $0xaf]]
          %v1620 = vstv %s1619
          %v1621 = vmul.f32 %v1620, %v1606
          %v1622 = vmul.f32 %v1620, %v1608
          %v1623 = vmul.f32 %v1620, %v1610
          %v1624 = vadd.f32 %v1616, %v1621
          %v1625 = vadd.f32 %v1617, %v1622
          %v1626 = vadd.f32 %v1618, %v1623
          %s1627 = sld [smem:[#allocation2 + $0xca]]
          %v1628 = vstv %s1627
          %v1629 = vmul.f32 %v1628, %v1600
          %v1630 = vmul.f32 %v1628, %v1602
          %v1631 = vmul.f32 %v1628, %v1604
          %v1632 = vadd.f32 %v1596, %v1629
          %v1633 = vadd.f32 %v1597, %v1630
          %v1634 = vadd.f32 %v1598, %v1631
          %s1635 = sld [smem:[#allocation2 + $0xe5]]
          %v1636 = vstv %s1635
          %v1637 = vmul.f32 %v1636, %v1606
          %v1638 = vmul.f32 %v1636, %v1608
          %v1639 = vmul.f32 %v1636, %v1610
          %v1640 = vadd.f32 %v1632, %v1637
          %v1641 = vadd.f32 %v1633, %v1638
          %v1642 = vadd.f32 %v1634, %v1639
          %1643 = vrot.lane.b32.xlu0 %v1146, 9
          %v1644 = vpop.permute.xlu0 %1643
          %1645 = vrot.lane.b32.xlu0 %v1147, 9
          %v1646 = vpop.permute.xlu0 %1645
          %1647 = vrot.lane.b32.xlu0 %v1148, 9
          %v1648 = vpop.permute.xlu0 %1647
          %1649 = vrot.lane.b32.xlu0 %v1149, 9
          %v1650 = vpop.permute.xlu0 %1649
          %1651 = vrot.lane.b32.xlu0 %v1150, 9
          %v1652 = vpop.permute.xlu0 %1651
          %1653 = vrot.lane.b32.xlu0 %v1151, 9
          %v1654 = vpop.permute.xlu0 %1653
          %s1655 = sld [smem:[#allocation2 + $0x95]]
          %v1656 = vstv %s1655
          %v1657 = vmul.f32 %v1656, %v1644
          %v1658 = vmul.f32 %v1656, %v1646
          %v1659 = vmul.f32 %v1656, %v1648
          %v1660 = vadd.f32 %v1624, %v1657
          %v1661 = vadd.f32 %v1625, %v1658
          %v1662 = vadd.f32 %v1626, %v1659
          %s1663 = sld [smem:[#allocation2 + $0xb0]]
          %v1664 = vstv %s1663
          %v1665 = vmul.f32 %v1664, %v1650
          %v1666 = vmul.f32 %v1664, %v1652
          %v1667 = vmul.f32 %v1664, %v1654
          %v1668 = vadd.f32 %v1660, %v1665
          %v1669 = vadd.f32 %v1661, %v1666
          %v1670 = vadd.f32 %v1662, %v1667
          %s1671 = sld [smem:[#allocation2 + $0xcb]]
          %v1672 = vstv %s1671
          %v1673 = vmul.f32 %v1672, %v1644
          %v1674 = vmul.f32 %v1672, %v1646
          %v1675 = vmul.f32 %v1672, %v1648
          %v1676 = vadd.f32 %v1640, %v1673
          %v1677 = vadd.f32 %v1641, %v1674
          %v1678 = vadd.f32 %v1642, %v1675
          %s1679 = sld [smem:[#allocation2 + $0xe6]]
          %v1680 = vstv %s1679
          %v1681 = vmul.f32 %v1680, %v1650
          %v1682 = vmul.f32 %v1680, %v1652
          %v1683 = vmul.f32 %v1680, %v1654
          %v1684 = vadd.f32 %v1676, %v1681
          %v1685 = vadd.f32 %v1677, %v1682
          %v1686 = vadd.f32 %v1678, %v1683
          %1687 = vrot.lane.b32.xlu0 %v1146, 1
          %v1688 = vpop.permute.xlu0 %1687
          %1689 = vrot.lane.b32.xlu0 %v1147, 1
          %v1690 = vpop.permute.xlu0 %1689
          %1691 = vrot.lane.b32.xlu0 %v1148, 1
          %v1692 = vpop.permute.xlu0 %1691
          %1693 = vrot.lane.b32.xlu0 %v1149, 1
          %v1694 = vpop.permute.xlu0 %1693
          %1695 = vrot.lane.b32.xlu0 %v1150, 1
          %v1696 = vpop.permute.xlu0 %1695
          %1697 = vrot.lane.b32.xlu0 %v1151, 1
          %v1698 = vpop.permute.xlu0 %1697
          %s1699 = sld [smem:[#allocation2 + $0x96]]
          %v1700 = vstv %s1699
          %v1701 = vmul.f32 %v1700, %v1688
          %v1702 = vmul.f32 %v1700, %v1690
          %v1703 = vmul.f32 %v1700, %v1692
          %v1704 = vadd.f32 %v1668, %v1701
          %v1705 = vadd.f32 %v1669, %v1702
          %v1706 = vadd.f32 %v1670, %v1703
          %s1707 = sld [smem:[#allocation2 + $0xb1]]
          %v1708 = vstv %s1707
          %v1709 = vmul.f32 %v1708, %v1694
          %v1710 = vmul.f32 %v1708, %v1696
          %v1711 = vmul.f32 %v1708, %v1698
          %v1712 = vadd.f32 %v1704, %v1709
          %v1713 = vadd.f32 %v1705, %v1710
          %v1714 = vadd.f32 %v1706, %v1711
          %s1715 = sld [smem:[#allocation2 + $0xcc]]
          %v1716 = vstv %s1715
          %v1717 = vmul.f32 %v1716, %v1688
          %v1718 = vmul.f32 %v1716, %v1690
          %v1719 = vmul.f32 %v1716, %v1692
          %v1720 = vadd.f32 %v1684, %v1717
          %v1721 = vadd.f32 %v1685, %v1718
          %v1722 = vadd.f32 %v1686, %v1719
          %s1723 = sld [smem:[#allocation2 + $0xe7]]
          %v1724 = vstv %s1723
          %v1725 = vmul.f32 %v1724, %v1694
          %v1726 = vmul.f32 %v1724, %v1696
          %v1727 = vmul.f32 %v1724, %v1698
          %v1728 = vadd.f32 %v1720, %v1725
          %v1729 = vadd.f32 %v1721, %v1726
          %v1730 = vadd.f32 %v1722, %v1727
          %s1731 = sld [smem:[#allocation2 + $0x97]]
          %v1732 = vstv %s1731
          %v1733 = vmul.f32 %v1732, %v1146
          %v1734 = vmul.f32 %v1732, %v1147
          %v1735 = vmul.f32 %v1732, %v1148
          %v1736 = vadd.f32 %v1712, %v1733
          %v1737 = vadd.f32 %v1713, %v1734
          %v1738 = vadd.f32 %v1714, %v1735
          %s1739 = sld [smem:[#allocation2 + $0xb2]]
          %v1740 = vstv %s1739
          %v1741 = vmul.f32 %v1740, %v1149
          %v1742 = vmul.f32 %v1740, %v1150
          %v1743 = vmul.f32 %v1740, %v1151
          %v1744 = vadd.f32 %v1736, %v1741
          %v1745 = vadd.f32 %v1737, %v1742
          %v1746 = vadd.f32 %v1738, %v1743
          %s1747 = sld [smem:[#allocation2 + $0xcd]]
          %v1748 = vstv %s1747
          %v1749 = vmul.f32 %v1748, %v1146
          %v1750 = vmul.f32 %v1748, %v1147
          %v1751 = vmul.f32 %v1748, %v1148
          %v1752 = vadd.f32 %v1728, %v1749
          %v1753 = vadd.f32 %v1729, %v1750
          %v1754 = vadd.f32 %v1730, %v1751
          %s1755 = sld [smem:[#allocation2 + $0xe8]]
          %v1756 = vstv %s1755
          %v1757 = vmul.f32 %v1756, %v1149
          %v1758 = vmul.f32 %v1756, %v1150
          %v1759 = vmul.f32 %v1756, %v1151
          %v1760 = vadd.f32 %v1752, %v1757
          %v1761 = vadd.f32 %v1753, %v1758
          %v1762 = vadd.f32 %v1754, %v1759
          %1763 = vrot.lane.b32.xlu0 %v1146, 127
          %v1764 = vpop.permute.xlu0 %1763
          %1765 = vrot.lane.b32.xlu0 %v1147, 127
          %v1766 = vpop.permute.xlu0 %1765
          %1767 = vrot.lane.b32.xlu0 %v1148, 127
          %v1768 = vpop.permute.xlu0 %1767
          %1769 = vrot.lane.b32.xlu0 %v1149, 127
          %v1770 = vpop.permute.xlu0 %1769
          %1771 = vrot.lane.b32.xlu0 %v1150, 127
          %v1772 = vpop.permute.xlu0 %1771
          %1773 = vrot.lane.b32.xlu0 %v1151, 127
          %v1774 = vpop.permute.xlu0 %1773
          %s1775 = sld [smem:[#allocation2 + $0x98]]
          %v1776 = vstv %s1775
          %v1777 = vmul.f32 %v1776, %v1764
          %v1778 = vmul.f32 %v1776, %v1766
          %v1779 = vmul.f32 %v1776, %v1768
          %v1780 = vadd.f32 %v1744, %v1777
          %v1781 = vadd.f32 %v1745, %v1778
          %v1782 = vadd.f32 %v1746, %v1779
          %s1783 = sld [smem:[#allocation2 + $0xb3]]
          %v1784 = vstv %s1783
          %v1785 = vmul.f32 %v1784, %v1770
          %v1786 = vmul.f32 %v1784, %v1772
          %v1787 = vmul.f32 %v1784, %v1774
          %v1788 = vadd.f32 %v1780, %v1785
          %v1789 = vadd.f32 %v1781, %v1786
          %v1790 = vadd.f32 %v1782, %v1787
          %s1791 = sld [smem:[#allocation2 + $0xce]]
          %v1792 = vstv %s1791
          %v1793 = vmul.f32 %v1792, %v1764
          %v1794 = vmul.f32 %v1792, %v1766
          %v1795 = vmul.f32 %v1792, %v1768
          %v1796 = vadd.f32 %v1760, %v1793
          %v1797 = vadd.f32 %v1761, %v1794
          %v1798 = vadd.f32 %v1762, %v1795
          %s1799 = sld [smem:[#allocation2 + $0xe9]]
          %v1800 = vstv %s1799
          %v1801 = vmul.f32 %v1800, %v1770
          %v1802 = vmul.f32 %v1800, %v1772
          %v1803 = vmul.f32 %v1800, %v1774
          %v1804 = vadd.f32 %v1796, %v1801
          %v1805 = vadd.f32 %v1797, %v1802
          %v1806 = vadd.f32 %v1798, %v1803
          %1807 = vrot.lane.b32.xlu0 %v1146, 119
          %v1808 = vpop.permute.xlu0 %1807
          %1809 = vrot.lane.b32.xlu0 %v1147, 119
          %v1810 = vpop.permute.xlu0 %1809
          %1811 = vrot.lane.b32.xlu0 %v1148, 119
          %v1812 = vpop.permute.xlu0 %1811
          %1813 = vrot.lane.b32.xlu0 %v1149, 119
          %v1814 = vpop.permute.xlu0 %1813
          %1815 = vrot.lane.b32.xlu0 %v1150, 119
          %v1816 = vpop.permute.xlu0 %1815
          %1817 = vrot.lane.b32.xlu0 %v1151, 119
          %v1818 = vpop.permute.xlu0 %1817
          %s1819 = sld [smem:[#allocation2 + $0x99]]
          %v1820 = vstv %s1819
          %v1821 = vmul.f32 %v1820, %v1808
          %v1822 = vmul.f32 %v1820, %v1810
          %v1823 = vmul.f32 %v1820, %v1812
          %v1824 = vadd.f32 %v1788, %v1821
          %v1825 = vadd.f32 %v1789, %v1822
          %v1826 = vadd.f32 %v1790, %v1823
          %s1827 = sld [smem:[#allocation2 + $0xb4]]
          %v1828 = vstv %s1827
          %v1829 = vmul.f32 %v1828, %v1814
          %v1830 = vmul.f32 %v1828, %v1816
          %v1831 = vmul.f32 %v1828, %v1818
          %v1832 = vadd.f32 %v1824, %v1829
          %v1833 = vadd.f32 %v1825, %v1830
          %v1834 = vadd.f32 %v1826, %v1831
          %s1835 = sld [smem:[#allocation2 + $0xcf]]
          %v1836 = vstv %s1835
          %v1837 = vmul.f32 %v1836, %v1808
          %v1838 = vmul.f32 %v1836, %v1810
          %v1839 = vmul.f32 %v1836, %v1812
          %v1840 = vadd.f32 %v1804, %v1837
          %v1841 = vadd.f32 %v1805, %v1838
          %v1842 = vadd.f32 %v1806, %v1839
          %s1843 = sld [smem:[#allocation2 + $0xea]]
          %v1844 = vstv %s1843
          %v1845 = vmul.f32 %v1844, %v1814
          %v1846 = vmul.f32 %v1844, %v1816
          %v1847 = vmul.f32 %v1844, %v1818
          %v1848 = vadd.f32 %v1840, %v1845
          %v1849 = vadd.f32 %v1841, %v1846
          %v1850 = vadd.f32 %v1842, %v1847
          %1851 = vrot.lane.b32.xlu0 %v1146, 118
          %v1852 = vpop.permute.xlu0 %1851
          %1853 = vrot.lane.b32.xlu0 %v1147, 118
          %v1854 = vpop.permute.xlu0 %1853
          %1855 = vrot.lane.b32.xlu0 %v1148, 118
          %v1856 = vpop.permute.xlu0 %1855
          %1857 = vrot.lane.b32.xlu0 %v1149, 118
          %v1858 = vpop.permute.xlu0 %1857
          %1859 = vrot.lane.b32.xlu0 %v1150, 118
          %v1860 = vpop.permute.xlu0 %1859
          %1861 = vrot.lane.b32.xlu0 %v1151, 118
          %v1862 = vpop.permute.xlu0 %1861
          %s1863 = sld [smem:[#allocation2 + $0x9a]]
          %v1864 = vstv %s1863
          %v1865 = vmul.f32 %v1864, %v1852
          %v1866 = vmul.f32 %v1864, %v1854
          %v1867 = vmul.f32 %v1864, %v1856
          %v1868 = vadd.f32 %v1832, %v1865
          %v1869 = vadd.f32 %v1833, %v1866
          %v1870 = vadd.f32 %v1834, %v1867
          %s1871 = sld [smem:[#allocation2 + $0xb5]]
          %v1872 = vstv %s1871
          %v1873 = vmul.f32 %v1872, %v1858
          %v1874 = vmul.f32 %v1872, %v1860
          %v1875 = vmul.f32 %v1872, %v1862
          %v1876 = vadd.f32 %v1868, %v1873
          %v1877 = vadd.f32 %v1869, %v1874
          %v1878 = vadd.f32 %v1870, %v1875
          %s1879 = sld [smem:[#allocation2 + $0xd0]]
          %v1880 = vstv %s1879
          %v1881 = vmul.f32 %v1880, %v1852
          %v1882 = vmul.f32 %v1880, %v1854
          %v1883 = vmul.f32 %v1880, %v1856
          %v1884 = vadd.f32 %v1848, %v1881
          %v1885 = vadd.f32 %v1849, %v1882
          %v1886 = vadd.f32 %v1850, %v1883
          %s1887 = sld [smem:[#allocation2 + $0xeb]]
          %v1888 = vstv %s1887
          %v1889 = vmul.f32 %v1888, %v1858
          %v1890 = vmul.f32 %v1888, %v1860
          %v1891 = vmul.f32 %v1888, %v1862
          %v1892 = vadd.f32 %v1884, %v1889
          %v1893 = vadd.f32 %v1885, %v1890
          %v1894 = vadd.f32 %v1886, %v1891
          %1895 = vrot.lane.b32.xlu0 %v1146, 117
          %v1896 = vpop.permute.xlu0 %1895
          %1897 = vrot.lane.b32.xlu0 %v1147, 117
          %v1898 = vpop.permute.xlu0 %1897
          %1899 = vrot.lane.b32.xlu0 %v1148, 117
          %v1900 = vpop.permute.xlu0 %1899
          %1901 = vrot.lane.b32.xlu0 %v1149, 117
          %v1902 = vpop.permute.xlu0 %1901
          %1903 = vrot.lane.b32.xlu0 %v1150, 117
          %v1904 = vpop.permute.xlu0 %1903
          %1905 = vrot.lane.b32.xlu0 %v1151, 117
          %v1906 = vpop.permute.xlu0 %1905
          %s1907 = sld [smem:[#allocation2 + $0x9b]]
          %v1908 = vstv %s1907
          %v1909 = vmul.f32 %v1908, %v1896
          %v1910 = vmul.f32 %v1908, %v1898
          %v1911 = vmul.f32 %v1908, %v1900
          %v1912 = vadd.f32 %v1876, %v1909
          %v1913 = vadd.f32 %v1877, %v1910
          %v1914 = vadd.f32 %v1878, %v1911
          %s1915 = sld [smem:[#allocation2 + $0xb6]]
          %v1916 = vstv %s1915
          %v1917 = vmul.f32 %v1916, %v1902
          %v1918 = vmul.f32 %v1916, %v1904
          %v1919 = vmul.f32 %v1916, %v1906
          %v1920 = vadd.f32 %v1912, %v1917
          %v1921 = vadd.f32 %v1913, %v1918
          %v1922 = vadd.f32 %v1914, %v1919
          %s1923 = sld [smem:[#allocation2 + $0xd1]]
          %v1924 = vstv %s1923
          %v1925 = vmul.f32 %v1924, %v1896
          %v1926 = vmul.f32 %v1924, %v1898
          %v1927 = vmul.f32 %v1924, %v1900
          %v1928 = vadd.f32 %v1892, %v1925
          %v1929 = vadd.f32 %v1893, %v1926
          %v1930 = vadd.f32 %v1894, %v1927
          %s1931 = sld [smem:[#allocation2 + $0xec]]
          %v1932 = vstv %s1931
          %v1933 = vmul.f32 %v1932, %v1902
          %v1934 = vmul.f32 %v1932, %v1904
          %v1935 = vmul.f32 %v1932, %v1906
          %v1936 = vadd.f32 %v1928, %v1933
          %v1937 = vadd.f32 %v1929, %v1934
          %v1938 = vadd.f32 %v1930, %v1935
          %vm1939 = vcmask 1046528
          %v1940 = vrot.slane %v1146, 1
          %v1941 = vrot.slane %v1147, 1
          %v1942 = vsel %vm1939, %v1940, %v1941
          %v1943 = vrot.slane %v1148, 1
          %v1944 = vsel %vm1939, %v1941, %v1943
          %v1948 = vsel %vm1939, %v1943, 0.0
          %v1949 = vrot.slane %v1149, 1
          %v1950 = vrot.slane %v1150, 1
          %v1951 = vsel %vm1939, %v1949, %v1950
          %v1952 = vrot.slane %v1151, 1
          %v1953 = vsel %vm1939, %v1950, %v1952
          %v1957 = vsel %vm1939, %v1952, 0.0
          %1958 = vrot.lane.b32.xlu0 %v1942, 11
          %v1959 = vpop.permute.xlu0 %1958
          %1960 = vrot.lane.b32.xlu0 %v1944, 11
          %v1961 = vpop.permute.xlu0 %1960
          %1962 = vrot.lane.b32.xlu0 %v1948, 11
          %v1963 = vpop.permute.xlu0 %1962
          %1964 = vrot.lane.b32.xlu0 %v1951, 11
          %v1965 = vpop.permute.xlu0 %1964
          %1966 = vrot.lane.b32.xlu0 %v1953, 11
          %v1967 = vpop.permute.xlu0 %1966
          %1968 = vrot.lane.b32.xlu0 %v1957, 11
          %v1969 = vpop.permute.xlu0 %1968
          %s1970 = sld [smem:[#allocation2 + $0x9c]]
          %v1971 = vstv %s1970
          %v1972 = vmul.f32 %v1971, %v1959
          %v1973 = vmul.f32 %v1971, %v1961
          %v1974 = vmul.f32 %v1971, %v1963
          %v1975 = vadd.f32 %v1920, %v1972
          %v1976 = vadd.f32 %v1921, %v1973
          %v1977 = vadd.f32 %v1922, %v1974
          %s1978 = sld [smem:[#allocation2 + $0xb7]]
          %v1979 = vstv %s1978
          %v1980 = vmul.f32 %v1979, %v1965
          %v1981 = vmul.f32 %v1979, %v1967
          %v1982 = vmul.f32 %v1979, %v1969
          %v1983 = vadd.f32 %v1975, %v1980
          %v1984 = vadd.f32 %v1976, %v1981
          %v1985 = vadd.f32 %v1977, %v1982
          %s1986 = sld [smem:[#allocation2 + $0xd2]]
          %v1987 = vstv %s1986
          %v1988 = vmul.f32 %v1987, %v1959
          %v1989 = vmul.f32 %v1987, %v1961
          %v1990 = vmul.f32 %v1987, %v1963
          %v1991 = vadd.f32 %v1936, %v1988
          %v1992 = vadd.f32 %v1937, %v1989
          %v1993 = vadd.f32 %v1938, %v1990
          %s1994 = sld [smem:[#allocation2 + $0xed]]
          %v1995 = vstv %s1994
          %v1996 = vmul.f32 %v1995, %v1965
          %v1997 = vmul.f32 %v1995, %v1967
          %v1998 = vmul.f32 %v1995, %v1969
          %v1999 = vadd.f32 %v1991, %v1996
          %v2000 = vadd.f32 %v1992, %v1997
          %v2001 = vadd.f32 %v1993, %v1998
          %2002 = vrot.lane.b32.xlu0 %v1942, 10
          %v2003 = vpop.permute.xlu0 %2002
          %2004 = vrot.lane.b32.xlu0 %v1944, 10
          %v2005 = vpop.permute.xlu0 %2004
          %2006 = vrot.lane.b32.xlu0 %v1948, 10
          %v2007 = vpop.permute.xlu0 %2006
          %2008 = vrot.lane.b32.xlu0 %v1951, 10
          %v2009 = vpop.permute.xlu0 %2008
          %2010 = vrot.lane.b32.xlu0 %v1953, 10
          %v2011 = vpop.permute.xlu0 %2010
          %2012 = vrot.lane.b32.xlu0 %v1957, 10
          %v2013 = vpop.permute.xlu0 %2012
          %s2014 = sld [smem:[#allocation2 + $0x9d]]
          %v2015 = vstv %s2014
          %v2016 = vmul.f32 %v2015, %v2003
          %v2017 = vmul.f32 %v2015, %v2005
          %v2018 = vmul.f32 %v2015, %v2007
          %v2019 = vadd.f32 %v1983, %v2016
          %v2020 = vadd.f32 %v1984, %v2017
          %v2021 = vadd.f32 %v1985, %v2018
          %s2022 = sld [smem:[#allocation2 + $0xb8]]
          %v2023 = vstv %s2022
          %v2024 = vmul.f32 %v2023, %v2009
          %v2025 = vmul.f32 %v2023, %v2011
          %v2026 = vmul.f32 %v2023, %v2013
          %v2027 = vadd.f32 %v2019, %v2024
          %v2028 = vadd.f32 %v2020, %v2025
          %v2029 = vadd.f32 %v2021, %v2026
          %s2030 = sld [smem:[#allocation2 + $0xd3]]
          %v2031 = vstv %s2030
          %v2032 = vmul.f32 %v2031, %v2003
          %v2033 = vmul.f32 %v2031, %v2005
          %v2034 = vmul.f32 %v2031, %v2007
          %v2035 = vadd.f32 %v1999, %v2032
          %v2036 = vadd.f32 %v2000, %v2033
          %v2037 = vadd.f32 %v2001, %v2034
          %s2038 = sld [smem:[#allocation2 + $0xee]]
          %v2039 = vstv %s2038
          %v2040 = vmul.f32 %v2039, %v2009
          %v2041 = vmul.f32 %v2039, %v2011
          %v2042 = vmul.f32 %v2039, %v2013
          %v2043 = vadd.f32 %v2035, %v2040
          %v2044 = vadd.f32 %v2036, %v2041
          %v2045 = vadd.f32 %v2037, %v2042
          %2046 = vrot.lane.b32.xlu0 %v1942, 9
          %v2047 = vpop.permute.xlu0 %2046
          %2048 = vrot.lane.b32.xlu0 %v1944, 9
          %v2049 = vpop.permute.xlu0 %2048
          %2050 = vrot.lane.b32.xlu0 %v1948, 9
          %v2051 = vpop.permute.xlu0 %2050
          %2052 = vrot.lane.b32.xlu0 %v1951, 9
          %v2053 = vpop.permute.xlu0 %2052
          %2054 = vrot.lane.b32.xlu0 %v1953, 9
          %v2055 = vpop.permute.xlu0 %2054
          %2056 = vrot.lane.b32.xlu0 %v1957, 9
          %v2057 = vpop.permute.xlu0 %2056
          %s2058 = sld [smem:[#allocation2 + $0x9e]]
          %v2059 = vstv %s2058
          %v2060 = vmul.f32 %v2059, %v2047
          %v2061 = vmul.f32 %v2059, %v2049
          %v2062 = vmul.f32 %v2059, %v2051
          %v2063 = vadd.f32 %v2027, %v2060
          %v2064 = vadd.f32 %v2028, %v2061
          %v2065 = vadd.f32 %v2029, %v2062
          %s2066 = sld [smem:[#allocation2 + $0xb9]]
          %v2067 = vstv %s2066
          %v2068 = vmul.f32 %v2067, %v2053
          %v2069 = vmul.f32 %v2067, %v2055
          %v2070 = vmul.f32 %v2067, %v2057
          %v2071 = vadd.f32 %v2063, %v2068
          %v2072 = vadd.f32 %v2064, %v2069
          %v2073 = vadd.f32 %v2065, %v2070
          %s2074 = sld [smem:[#allocation2 + $0xd4]]
          %v2075 = vstv %s2074
          %v2076 = vmul.f32 %v2075, %v2047
          %v2077 = vmul.f32 %v2075, %v2049
          %v2078 = vmul.f32 %v2075, %v2051
          %v2079 = vadd.f32 %v2043, %v2076
          %v2080 = vadd.f32 %v2044, %v2077
          %v2081 = vadd.f32 %v2045, %v2078
          %s2082 = sld [smem:[#allocation2 + $0xef]]
          %v2083 = vstv %s2082
          %v2084 = vmul.f32 %v2083, %v2053
          %v2085 = vmul.f32 %v2083, %v2055
          %v2086 = vmul.f32 %v2083, %v2057
          %v2087 = vadd.f32 %v2079, %v2084
          %v2088 = vadd.f32 %v2080, %v2085
          %v2089 = vadd.f32 %v2081, %v2086
          %2090 = vrot.lane.b32.xlu0 %v1942, 1
          %v2091 = vpop.permute.xlu0 %2090
          %2092 = vrot.lane.b32.xlu0 %v1944, 1
          %v2093 = vpop.permute.xlu0 %2092
          %2094 = vrot.lane.b32.xlu0 %v1948, 1
          %v2095 = vpop.permute.xlu0 %2094
          %2096 = vrot.lane.b32.xlu0 %v1951, 1
          %v2097 = vpop.permute.xlu0 %2096
          %2098 = vrot.lane.b32.xlu0 %v1953, 1
          %v2099 = vpop.permute.xlu0 %2098
          %2100 = vrot.lane.b32.xlu0 %v1957, 1
          %v2101 = vpop.permute.xlu0 %2100
          %s2102 = sld [smem:[#allocation2 + $0x9f]]
          %v2103 = vstv %s2102
          %v2104 = vmul.f32 %v2103, %v2091
          %v2105 = vmul.f32 %v2103, %v2093
          %v2106 = vmul.f32 %v2103, %v2095
          %v2107 = vadd.f32 %v2071, %v2104
          %v2108 = vadd.f32 %v2072, %v2105
          %v2109 = vadd.f32 %v2073, %v2106
          %s2110 = sld [smem:[#allocation2 + $0xba]]
          %v2111 = vstv %s2110
          %v2112 = vmul.f32 %v2111, %v2097
          %v2113 = vmul.f32 %v2111, %v2099
          %v2114 = vmul.f32 %v2111, %v2101
          %v2115 = vadd.f32 %v2107, %v2112
          %v2116 = vadd.f32 %v2108, %v2113
          %v2117 = vadd.f32 %v2109, %v2114
          %s2118 = sld [smem:[#allocation2 + $0xd5]]
          %v2119 = vstv %s2118
          %v2120 = vmul.f32 %v2119, %v2091
          %v2121 = vmul.f32 %v2119, %v2093
          %v2122 = vmul.f32 %v2119, %v2095
          %v2123 = vadd.f32 %v2087, %v2120
          %v2124 = vadd.f32 %v2088, %v2121
          %v2125 = vadd.f32 %v2089, %v2122
          %s2126 = sld [smem:[#allocation2 + $0xf0]]
          %v2127 = vstv %s2126
          %v2128 = vmul.f32 %v2127, %v2097
          %v2129 = vmul.f32 %v2127, %v2099
          %v2130 = vmul.f32 %v2127, %v2101
          %v2131 = vadd.f32 %v2123, %v2128
          %v2132 = vadd.f32 %v2124, %v2129
          %v2133 = vadd.f32 %v2125, %v2130
          %s2134 = sld [smem:[#allocation2 + $0xa0]]
          %v2135 = vstv %s2134
          %v2136 = vmul.f32 %v2135, %v1942
          %v2137 = vmul.f32 %v2135, %v1944
          %v2138 = vmul.f32 %v2135, %v1948
          %v2139 = vadd.f32 %v2115, %v2136
          %v2140 = vadd.f32 %v2116, %v2137
          %v2141 = vadd.f32 %v2117, %v2138
          %s2142 = sld [smem:[#allocation2 + $0xbb]]
          %v2143 = vstv %s2142
          %v2144 = vmul.f32 %v2143, %v1951
          %v2145 = vmul.f32 %v2143, %v1953
          %v2146 = vmul.f32 %v2143, %v1957
          %v2147 = vadd.f32 %v2139, %v2144
          %v2148 = vadd.f32 %v2140, %v2145
          %v2149 = vadd.f32 %v2141, %v2146
          %s2150 = sld [smem:[#allocation2 + $0xd6]]
          %v2151 = vstv %s2150
          %v2152 = vmul.f32 %v2151, %v1942
          %v2153 = vmul.f32 %v2151, %v1944
          %v2154 = vmul.f32 %v2151, %v1948
          %v2155 = vadd.f32 %v2131, %v2152
          %v2156 = vadd.f32 %v2132, %v2153
          %v2157 = vadd.f32 %v2133, %v2154
          %s2158 = sld [smem:[#allocation2 + $0xf1]]
          %v2159 = vstv %s2158
          %v2160 = vmul.f32 %v2159, %v1951
          %v2161 = vmul.f32 %v2159, %v1953
          %v2162 = vmul.f32 %v2159, %v1957
          %v2163 = vadd.f32 %v2155, %v2160
          %v2164 = vadd.f32 %v2156, %v2161
          %v2165 = vadd.f32 %v2157, %v2162
          %2166 = vrot.lane.b32.xlu0 %v1942, 127
          %v2167 = vpop.permute.xlu0 %2166
          %2168 = vrot.lane.b32.xlu0 %v1944, 127
          %v2169 = vpop.permute.xlu0 %2168
          %2170 = vrot.lane.b32.xlu0 %v1948, 127
          %v2171 = vpop.permute.xlu0 %2170
          %2172 = vrot.lane.b32.xlu0 %v1951, 127
          %v2173 = vpop.permute.xlu0 %2172
          %2174 = vrot.lane.b32.xlu0 %v1953, 127
          %v2175 = vpop.permute.xlu0 %2174
          %2176 = vrot.lane.b32.xlu0 %v1957, 127
          %v2177 = vpop.permute.xlu0 %2176
          %s2178 = sld [smem:[#allocation2 + $0xa1]]
          %v2179 = vstv %s2178
          %v2180 = vmul.f32 %v2179, %v2167
          %v2181 = vmul.f32 %v2179, %v2169
          %v2182 = vmul.f32 %v2179, %v2171
          %v2183 = vadd.f32 %v2147, %v2180
          %v2184 = vadd.f32 %v2148, %v2181
          %v2185 = vadd.f32 %v2149, %v2182
          %s2186 = sld [smem:[#allocation2 + $0xbc]]
          %v2187 = vstv %s2186
          %v2188 = vmul.f32 %v2187, %v2173
          %v2189 = vmul.f32 %v2187, %v2175
          %v2190 = vmul.f32 %v2187, %v2177
          %v2191 = vadd.f32 %v2183, %v2188
          %v2192 = vadd.f32 %v2184, %v2189
          %v2193 = vadd.f32 %v2185, %v2190
          %s2194 = sld [smem:[#allocation2 + $0xd7]]
          %v2195 = vstv %s2194
          %v2196 = vmul.f32 %v2195, %v2167
          %v2197 = vmul.f32 %v2195, %v2169
          %v2198 = vmul.f32 %v2195, %v2171
          %v2199 = vadd.f32 %v2163, %v2196
          %v2200 = vadd.f32 %v2164, %v2197
          %v2201 = vadd.f32 %v2165, %v2198
          %s2202 = sld [smem:[#allocation2 + $0xf2]]
          %v2203 = vstv %s2202
          %v2204 = vmul.f32 %v2203, %v2173
          %v2205 = vmul.f32 %v2203, %v2175
          %v2206 = vmul.f32 %v2203, %v2177
          %v2207 = vadd.f32 %v2199, %v2204
          %v2208 = vadd.f32 %v2200, %v2205
          %v2209 = vadd.f32 %v2201, %v2206
          %2210 = vrot.lane.b32.xlu0 %v1942, 119
          %v2211 = vpop.permute.xlu0 %2210
          %2212 = vrot.lane.b32.xlu0 %v1944, 119
          %v2213 = vpop.permute.xlu0 %2212
          %2214 = vrot.lane.b32.xlu0 %v1948, 119
          %v2215 = vpop.permute.xlu0 %2214
          %2216 = vrot.lane.b32.xlu0 %v1951, 119
          %v2217 = vpop.permute.xlu0 %2216
          %2218 = vrot.lane.b32.xlu0 %v1953, 119
          %v2219 = vpop.permute.xlu0 %2218
          %2220 = vrot.lane.b32.xlu0 %v1957, 119
          %v2221 = vpop.permute.xlu0 %2220
          %s2222 = sld [smem:[#allocation2 + $0xa2]]
          %v2223 = vstv %s2222
          %v2224 = vmul.f32 %v2223, %v2211
          %v2225 = vmul.f32 %v2223, %v2213
          %v2226 = vmul.f32 %v2223, %v2215
          %v2227 = vadd.f32 %v2191, %v2224
          %v2228 = vadd.f32 %v2192, %v2225
          %v2229 = vadd.f32 %v2193, %v2226
          %s2230 = sld [smem:[#allocation2 + $0xbd]]
          %v2231 = vstv %s2230
          %v2232 = vmul.f32 %v2231, %v2217
          %v2233 = vmul.f32 %v2231, %v2219
          %v2234 = vmul.f32 %v2231, %v2221
          %v2235 = vadd.f32 %v2227, %v2232
          %v2236 = vadd.f32 %v2228, %v2233
          %v2237 = vadd.f32 %v2229, %v2234
          %s2238 = sld [smem:[#allocation2 + $0xd8]]
          %v2239 = vstv %s2238
          %v2240 = vmul.f32 %v2239, %v2211
          %v2241 = vmul.f32 %v2239, %v2213
          %v2242 = vmul.f32 %v2239, %v2215
          %v2243 = vadd.f32 %v2207, %v2240
          %v2244 = vadd.f32 %v2208, %v2241
          %v2245 = vadd.f32 %v2209, %v2242
          %s2246 = sld [smem:[#allocation2 + $0xf3]]
          %v2247 = vstv %s2246
          %v2248 = vmul.f32 %v2247, %v2217
          %v2249 = vmul.f32 %v2247, %v2219
          %v2250 = vmul.f32 %v2247, %v2221
          %v2251 = vadd.f32 %v2243, %v2248
          %v2252 = vadd.f32 %v2244, %v2249
          %v2253 = vadd.f32 %v2245, %v2250
          %2254 = vrot.lane.b32.xlu0 %v1942, 118
          %v2255 = vpop.permute.xlu0 %2254
          %2256 = vrot.lane.b32.xlu0 %v1944, 118
          %v2257 = vpop.permute.xlu0 %2256
          %2258 = vrot.lane.b32.xlu0 %v1948, 118
          %v2259 = vpop.permute.xlu0 %2258
          %2260 = vrot.lane.b32.xlu0 %v1951, 118
          %v2261 = vpop.permute.xlu0 %2260
          %2262 = vrot.lane.b32.xlu0 %v1953, 118
          %v2263 = vpop.permute.xlu0 %2262
          %2264 = vrot.lane.b32.xlu0 %v1957, 118
          %v2265 = vpop.permute.xlu0 %2264
          %s2266 = sld [smem:[#allocation2 + $0xa3]]
          %v2267 = vstv %s2266
          %v2268 = vmul.f32 %v2267, %v2255
          %v2269 = vmul.f32 %v2267, %v2257
          %v2270 = vmul.f32 %v2267, %v2259
          %v2271 = vadd.f32 %v2235, %v2268
          %v2272 = vadd.f32 %v2236, %v2269
          %v2273 = vadd.f32 %v2237, %v2270
          %s2274 = sld [smem:[#allocation2 + $0xbe]]
          %v2275 = vstv %s2274
          %v2276 = vmul.f32 %v2275, %v2261
          %v2277 = vmul.f32 %v2275, %v2263
          %v2278 = vmul.f32 %v2275, %v2265
          %v2279 = vadd.f32 %v2271, %v2276
          %v2280 = vadd.f32 %v2272, %v2277
          %v2281 = vadd.f32 %v2273, %v2278
          %s2282 = sld [smem:[#allocation2 + $0xd9]]
          %v2283 = vstv %s2282
          %v2284 = vmul.f32 %v2283, %v2255
          %v2285 = vmul.f32 %v2283, %v2257
          %v2286 = vmul.f32 %v2283, %v2259
          %v2287 = vadd.f32 %v2251, %v2284
          %v2288 = vadd.f32 %v2252, %v2285
          %v2289 = vadd.f32 %v2253, %v2286
          %s2290 = sld [smem:[#allocation2 + $0xf4]]
          %v2291 = vstv %s2290
          %v2292 = vmul.f32 %v2291, %v2261
          %v2293 = vmul.f32 %v2291, %v2263
          %v2294 = vmul.f32 %v2291, %v2265
          %v2295 = vadd.f32 %v2287, %v2292
          %v2296 = vadd.f32 %v2288, %v2293
          %v2297 = vadd.f32 %v2289, %v2294
          %2298 = vrot.lane.b32.xlu0 %v1942, 117
          %v2299 = vpop.permute.xlu0 %2298
          %2300 = vrot.lane.b32.xlu0 %v1944, 117
          %v2301 = vpop.permute.xlu0 %2300
          %2302 = vrot.lane.b32.xlu0 %v1948, 117
          %v2303 = vpop.permute.xlu0 %2302
          %2304 = vrot.lane.b32.xlu0 %v1951, 117
          %v2305 = vpop.permute.xlu0 %2304
          %2306 = vrot.lane.b32.xlu0 %v1953, 117
          %v2307 = vpop.permute.xlu0 %2306
          %2308 = vrot.lane.b32.xlu0 %v1957, 117
          %v2309 = vpop.permute.xlu0 %2308
          %s2310 = sld [smem:[#allocation2 + $0xa4]]
          %v2311 = vstv %s2310
          %v2312 = vmul.f32 %v2311, %v2299
          %v2313 = vmul.f32 %v2311, %v2301
          %v2314 = vmul.f32 %v2311, %v2303
          %v2315 = vadd.f32 %v2279, %v2312
          %v2316 = vadd.f32 %v2280, %v2313
          %v2317 = vadd.f32 %v2281, %v2314
          %s2318 = sld [smem:[#allocation2 + $0xbf]]
          %v2319 = vstv %s2318
          %v2320 = vmul.f32 %v2319, %v2305
          %v2321 = vmul.f32 %v2319, %v2307
          %v2322 = vmul.f32 %v2319, %v2309
          %v2323 = vadd.f32 %v2315, %v2320
          %v2324 = vadd.f32 %v2316, %v2321
          %v2325 = vadd.f32 %v2317, %v2322
          %s2326 = sld [smem:[#allocation2 + $0xda]]
          %v2327 = vstv %s2326
          %v2328 = vmul.f32 %v2327, %v2299
          %v2329 = vmul.f32 %v2327, %v2301
          %v2330 = vmul.f32 %v2327, %v2303
          %v2331 = vadd.f32 %v2295, %v2328
          %v2332 = vadd.f32 %v2296, %v2329
          %v2333 = vadd.f32 %v2297, %v2330
          %s2334 = sld [smem:[#allocation2 + $0xf5]]
          %v2335 = vstv %s2334
          %v2336 = vmul.f32 %v2335, %v2305
          %v2337 = vmul.f32 %v2335, %v2307
          %v2338 = vmul.f32 %v2335, %v2309
          %v2339 = vadd.f32 %v2331, %v2336
          %v2340 = vadd.f32 %v2332, %v2337
          %v2341 = vadd.f32 %v2333, %v2338
          %s2342 = sld [smem:[#allocation2 + $0xf6]]
          %v2343 = vstv %s2342
          %v2344 = vadd.f32 %v2323, %v2343
          %v2345 = vadd.f32 %v2324, %v2343
          %v2346 = vadd.f32 %v2325, %v2343
          %s2347 = sld [smem:[#allocation2 + $0xf7]]
          %v2348 = vstv %s2347
          %v2349 = vadd.f32 %v2339, %v2348
          %v2350 = vadd.f32 %v2340, %v2348
          %v2351 = vadd.f32 %v2341, %v2348
          %s2352 = sld [smem:[#allocation2 + $0xf8]]
          %v2353 = vstv %s2352
          %v2354 = vmul.f32 %v2353, %v2344
          %v2355 = vmul.f32 %v2353, %v2345
          %v2356 = vmul.f32 %v2353, %v2346
          %s2357 = sld [smem:[#allocation2 + $0xf9]]
          %v2358 = vstv %s2357
          %v2359 = vmul.f32 %v2358, %v2349
          %v2360 = vmul.f32 %v2358, %v2350
          %v2361 = vmul.f32 %v2358, %v2351
          %v2362 = vadd.f32 %v2354, %v2359
          %v2363 = vadd.f32 %v2355, %v2360
          %v2364 = vadd.f32 %v2356, %v2361
          %s2365 = sld [smem:[#allocation2 + $0xfc]]
          %v2366 = vstv %s2365
          %v2367 = vadd.f32 %v2362, %v2366
          %v2368 = vadd.f32 %v2363, %v2366
          %v2369 = vadd.f32 %v2364, %v2366
          %s2370 = sld [smem:[#allocation2 + $0xfa]]
          %v2371 = vstv %s2370
          %v2372 = vmul.f32 %v2371, %v2344
          %v2373 = vmul.f32 %v2371, %v2345
          %v2374 = vmul.f32 %v2371, %v2346
          %s2375 = sld [smem:[#allocation2 + $0xfb]]
          %v2376 = vstv %s2375
          %v2377 = vmul.f32 %v2376, %v2349
          %v2378 = vmul.f32 %v2376, %v2350
          %v2379 = vmul.f32 %v2376, %v2351
          %v2380 = vadd.f32 %v2372, %v2377
          %v2381 = vadd.f32 %v2373, %v2378
          %v2382 = vadd.f32 %v2374, %v2379
          %s2383 = sld [smem:[#allocation2 + $0xfd]]
          %v2384 = vstv %s2383
          %v2385 = vadd.f32 %v2380, %v2384
          %v2386 = vadd.f32 %v2381, %v2384
          %v2387 = vadd.f32 %v2382, %v2384
          %v2388 = vmul.f32 %v2367, %v165
          %v2389 = vmul.f32 %v2368, %v166
          %v2390 = vmul.f32 %v2369, %v167
          %v2391 = vmul.f32 %v2385, %v165
          %v2392 = vmul.f32 %v2386, %v166
          %v2393 = vmul.f32 %v2387, %v167
          %v2394 = vadd.f32 %v2388, %v2389
          %v2395 = vadd.f32 %v2394, %v2390
          %2396 = vadd.xlane.f32.xlu0 %v2395
          %v2397 = vpop.xlane.xlu0 %2396
          %v2398 = vrot.slane %v2397, 4
          %v2399 = vadd.f32 %v2397, %v2398
          %v2400 = vrot.slane %v2399, 2
          %v2401 = vadd.f32 %v2399, %v2400
          %v2402 = vrot.slane %v2401, 1
          %v2403 = vadd.f32 %v2401, %v2402
          %s2404 = vtos %v2403
          %s2405 = smul.f32 %s2404, 0.0009765625
          %v2406 = vmul.f32 %v2388, %v2388
          %v2407 = vmul.f32 %v2389, %v2389
          %v2408 = vmul.f32 %v2390, %v2390
          %v2409 = vadd.f32 %v2406, %v2407
          %v2410 = vadd.f32 %v2409, %v2408
          %2411 = vadd.xlane.f32.xlu0 %v2410
          %v2412 = vpop.xlane.xlu0 %2411
          %v2413 = vrot.slane %v2412, 4
          %v2414 = vadd.f32 %v2412, %v2413
          %v2415 = vrot.slane %v2414, 2
          %v2416 = vadd.f32 %v2414, %v2415
          %v2417 = vrot.slane %v2416, 1
          %v2418 = vadd.f32 %v2416, %v2417
          %s2419 = vtos %v2418
          %s2420 = smul.f32 %s2419, 0.0009765625
          %s2421 = smul.f32 %s2405, %s2405
          %s2422 = ssub.f32 %s2420, %s2421
          %s2423 = sld [smem:[#allocation2 + $0xfe]]
          %s2424 = sadd.f32 %s2422, 1e-05
          %v2425 = vstv %s2424
          %v2426 = vrsqrt.pop %v2425
          %s2427 = vtos %v2426
          %s2428 = smul.f32 %s2423, %s2427
          %s2429 = sld [smem:[#allocation2 + $0x280]]
          %s2430 = smul.f32 %s2405, %s2428
          %s2431 = ssub.f32 %s2429, %s2430
          %v2432 = vstv %s2428
          %v2433 = vmul.f32 %v2388, %v2432
          %v2434 = vmul.f32 %v2389, %v2432
          %v2435 = vmul.f32 %v2390, %v2432
          %v2436 = vstv %s2431
          %v2437 = vadd.f32 %v2433, %v2436
          %v2438 = vadd.f32 %v2434, %v2436
          %v2439 = vadd.f32 %v2435, %v2436
          %v2440 = vmax.f32 %v2437, 0.0
          %v2441 = vmax.f32 %v2438, 0.0
          %v2442 = vmax.f32 %v2439, 0.0
          %v2443 = vmul.f32 %v2440, %v165
          %v2444 = vmul.f32 %v2441, %v166
          %v2445 = vmul.f32 %v2442, %v167
          %v2446 = vadd.f32 %v2391, %v2392
          %v2447 = vadd.f32 %v2446, %v2393
          %2448 = vadd.xlane.f32.xlu0 %v2447
          %v2449 = vpop.xlane.xlu0 %2448
          %v2450 = vrot.slane %v2449, 4
          %v2451 = vadd.f32 %v2449, %v2450
          %v2452 = vrot.slane %v2451, 2
          %v2453 = vadd.f32 %v2451, %v2452
          %v2454 = vrot.slane %v2453, 1
          %v2455 = vadd.f32 %v2453, %v2454
          %s2456 = vtos %v2455
          %s2457 = smul.f32 %s2456, 0.0009765625
          %v2458 = vmul.f32 %v2391, %v2391
          %v2459 = vmul.f32 %v2392, %v2392
          %v2460 = vmul.f32 %v2393, %v2393
          %v2461 = vadd.f32 %v2458, %v2459
          %v2462 = vadd.f32 %v2461, %v2460
          %2463 = vadd.xlane.f32.xlu0 %v2462
          %v2464 = vpop.xlane.xlu0 %2463
          %v2465 = vrot.slane %v2464, 4
          %v2466 = vadd.f32 %v2464, %v2465
          %v2467 = vrot.slane %v2466, 2
          %v2468 = vadd.f32 %v2466, %v2467
          %v2469 = vrot.slane %v2468, 1
          %v2470 = vadd.f32 %v2468, %v2469
          %s2471 = vtos %v2470
          %s2472 = smul.f32 %s2471, 0.0009765625
          %s2473 = smul.f32 %s2457, %s2457
          %s2474 = ssub.f32 %s2472, %s2473
          %s2475 = sld [smem:[#allocation2 + $0xff]]
          %s2476 = sadd.f32 %s2474, 1e-05
          %v2477 = vstv %s2476
          %v2478 = vrsqrt.pop %v2477
          %s2479 = vtos %v2478
          %s2480 = smul.f32 %s2475, %s2479
          %s2481 = sld [smem:[#allocation2 + $0x281]]
          %s2482 = smul.f32 %s2457, %s2480
          %s2483 = ssub.f32 %s2481, %s2482
          %v2484 = vstv %s2480
          %v2485 = vmul.f32 %v2391, %v2484
          %v2486 = vmul.f32 %v2392, %v2484
          %v2487 = vmul.f32 %v2393, %v2484
          %v2488 = vstv %s2483
          %v2489 = vadd.f32 %v2485, %v2488
          %v2490 = vadd.f32 %v2486, %v2488
          %v2491 = vadd.f32 %v2487, %v2488
          %v2492 = vmax.f32 %v2489, 0.0
          %v2493 = vmax.f32 %v2490, 0.0
          %v2494 = vmax.f32 %v2491, 0.0
          %v2495 = vmul.f32 %v2492, %v165
          %v2496 = vmul.f32 %v2493, %v166
          %v2497 = vmul.f32 %v2494, %v167
          %s2498 = sld [smem:[#allocation2 + $0x282]]
          %v2499 = vstv %s2498
          %v2500 = vmul.f32 %v2499, %v2443
          %v2501 = vmul.f32 %v2499, %v2444
          %v2502 = vmul.f32 %v2499, %v2445
          %s2503 = sld [smem:[#allocation2 + $0x283]]
          %v2504 = vstv %s2503
          %v2505 = vmul.f32 %v2504, %v2495
          %v2506 = vmul.f32 %v2504, %v2496
          %v2507 = vmul.f32 %v2504, %v2497
          %v2508 = vadd.f32 %v2500, %v2505
          %v2509 = vadd.f32 %v2501, %v2506
          %v2510 = vadd.f32 %v2502, %v2507
          %s2511 = sld [smem:[#allocation2 + $0x286]]
          %v2512 = vstv %s2511
          %v2513 = vadd.f32 %v2508, %v2512
          %v2514 = vadd.f32 %v2509, %v2512
          %v2515 = vadd.f32 %v2510, %v2512
          %s2516 = sld [smem:[#allocation2 + $0x284]]
          %v2517 = vstv %s2516
          %v2518 = vmul.f32 %v2517, %v2443
          %v2519 = vmul.f32 %v2517, %v2444
          %v2520 = vmul.f32 %v2517, %v2445
          %s2521 = sld [smem:[#allocation2 + $0x285]]
          %v2522 = vstv %s2521
          %v2523 = vmul.f32 %v2522, %v2495
          %v2524 = vmul.f32 %v2522, %v2496
          %v2525 = vmul.f32 %v2522, %v2497
          %v2526 = vadd.f32 %v2518, %v2523
          %v2527 = vadd.f32 %v2519, %v2524
          %v2528 = vadd.f32 %v2520, %v2525
          %s2529 = sld [smem:[#allocation2 + $0x287]]
          %v2530 = vstv %s2529
          %v2531 = vadd.f32 %v2526, %v2530
          %v2532 = vadd.f32 %v2527, %v2530
          %v2533 = vadd.f32 %v2528, %v2530
          %v2534 = vmul.f32 %v2513, %v165
          %v2535 = vmul.f32 %v2514, %v166
          %v2536 = vmul.f32 %v2515, %v167
          %v2537 = vmul.f32 %v2531, %v165
          %v2538 = vmul.f32 %v2532, %v166
          %v2539 = vmul.f32 %v2533, %v167
          %v2543 = vrot.slane %v2534, 7
          %v2544 = vrot.slane %v2535, 7
          %v2545 = vsel %vm1155, %v2543, %v2544
          %v2546 = vrot.slane %v2536, 7
          %v2547 = vsel %vm1155, %v2544, %v2546
          %v2551 = vsel %vm1155, 0.0, %v2543
          %v2555 = vrot.slane %v2537, 7
          %v2556 = vrot.slane %v2538, 7
          %v2557 = vsel %vm1155, %v2555, %v2556
          %v2558 = vrot.slane %v2539, 7
          %v2559 = vsel %vm1155, %v2556, %v2558
          %v2563 = vsel %vm1155, 0.0, %v2555
          %2564 = vrot.lane.b32.xlu0 %v2551, 11
          %v2565 = vpop.permute.xlu0 %2564
          %2566 = vrot.lane.b32.xlu0 %v2545, 11
          %v2567 = vpop.permute.xlu0 %2566
          %2568 = vrot.lane.b32.xlu0 %v2547, 11
          %v2569 = vpop.permute.xlu0 %2568
          %2570 = vrot.lane.b32.xlu0 %v2563, 11
          %v2571 = vpop.permute.xlu0 %2570
          %2572 = vrot.lane.b32.xlu0 %v2557, 11
          %v2573 = vpop.permute.xlu0 %2572
          %2574 = vrot.lane.b32.xlu0 %v2559, 11
          %v2575 = vpop.permute.xlu0 %2574
          %s2576 = sld [smem:[#allocation2 + $0x288]]
          %v2577 = vstv %s2576
          %v2578 = vmul.f32 %v2577, %v2565
          %v2579 = vmul.f32 %v2577, %v2567
          %v2580 = vmul.f32 %v2577, %v2569
          %s2581 = sld [smem:[#allocation2 + $0x2a3]]
          %v2582 = vstv %s2581
          %v2583 = vmul.f32 %v2582, %v2571
          %v2584 = vmul.f32 %v2582, %v2573
          %v2585 = vmul.f32 %v2582, %v2575
          %v2586 = vadd.f32 %v2578, %v2583
          %v2587 = vadd.f32 %v2579, %v2584
          %v2588 = vadd.f32 %v2580, %v2585
          %s2589 = sld [smem:[#allocation2 + $0x2be]]
          %v2590 = vstv %s2589
          %v2591 = vmul.f32 %v2590, %v2565
          %v2592 = vmul.f32 %v2590, %v2567
          %v2593 = vmul.f32 %v2590, %v2569
          %s2594 = sld [smem:[#allocation2 + $0x2d9]]
          %v2595 = vstv %s2594
          %v2596 = vmul.f32 %v2595, %v2571
          %v2597 = vmul.f32 %v2595, %v2573
          %v2598 = vmul.f32 %v2595, %v2575
          %v2599 = vadd.f32 %v2591, %v2596
          %v2600 = vadd.f32 %v2592, %v2597
          %v2601 = vadd.f32 %v2593, %v2598
          %2602 = vrot.lane.b32.xlu0 %v2551, 10
          %v2603 = vpop.permute.xlu0 %2602
          %2604 = vrot.lane.b32.xlu0 %v2545, 10
          %v2605 = vpop.permute.xlu0 %2604
          %2606 = vrot.lane.b32.xlu0 %v2547, 10
          %v2607 = vpop.permute.xlu0 %2606
          %2608 = vrot.lane.b32.xlu0 %v2563, 10
          %v2609 = vpop.permute.xlu0 %2608
          %2610 = vrot.lane.b32.xlu0 %v2557, 10
          %v2611 = vpop.permute.xlu0 %2610
          %2612 = vrot.lane.b32.xlu0 %v2559, 10
          %v2613 = vpop.permute.xlu0 %2612
          %s2614 = sld [smem:[#allocation2 + $0x289]]
          %v2615 = vstv %s2614
          %v2616 = vmul.f32 %v2615, %v2603
          %v2617 = vmul.f32 %v2615, %v2605
          %v2618 = vmul.f32 %v2615, %v2607
          %v2619 = vadd.f32 %v2586, %v2616
          %v2620 = vadd.f32 %v2587, %v2617
          %v2621 = vadd.f32 %v2588, %v2618
          %s2622 = sld [smem:[#allocation2 + $0x2a4]]
          %v2623 = vstv %s2622
          %v2624 = vmul.f32 %v2623, %v2609
          %v2625 = vmul.f32 %v2623, %v2611
          %v2626 = vmul.f32 %v2623, %v2613
          %v2627 = vadd.f32 %v2619, %v2624
          %v2628 = vadd.f32 %v2620, %v2625
          %v2629 = vadd.f32 %v2621, %v2626
          %s2630 = sld [smem:[#allocation2 + $0x2bf]]
          %v2631 = vstv %s2630
          %v2632 = vmul.f32 %v2631, %v2603
          %v2633 = vmul.f32 %v2631, %v2605
          %v2634 = vmul.f32 %v2631, %v2607
          %v2635 = vadd.f32 %v2599, %v2632
          %v2636 = vadd.f32 %v2600, %v2633
          %v2637 = vadd.f32 %v2601, %v2634
          %s2638 = sld [smem:[#allocation2 + $0x2da]]
          %v2639 = vstv %s2638
          %v2640 = vmul.f32 %v2639, %v2609
          %v2641 = vmul.f32 %v2639, %v2611
          %v2642 = vmul.f32 %v2639, %v2613
          %v2643 = vadd.f32 %v2635, %v2640
          %v2644 = vadd.f32 %v2636, %v2641
          %v2645 = vadd.f32 %v2637, %v2642
          %2646 = vrot.lane.b32.xlu0 %v2551, 9
          %v2647 = vpop.permute.xlu0 %2646
          %2648 = vrot.lane.b32.xlu0 %v2545, 9
          %v2649 = vpop.permute.xlu0 %2648
          %2650 = vrot.lane.b32.xlu0 %v2547, 9
          %v2651 = vpop.permute.xlu0 %2650
          %2652 = vrot.lane.b32.xlu0 %v2563, 9
          %v2653 = vpop.permute.xlu0 %2652
          %2654 = vrot.lane.b32.xlu0 %v2557, 9
          %v2655 = vpop.permute.xlu0 %2654
          %2656 = vrot.lane.b32.xlu0 %v2559, 9
          %v2657 = vpop.permute.xlu0 %2656
          %s2658 = sld [smem:[#allocation2 + $0x28a]]
          %v2659 = vstv %s2658
          %v2660 = vmul.f32 %v2659, %v2647
          %v2661 = vmul.f32 %v2659, %v2649
          %v2662 = vmul.f32 %v2659, %v2651
          %v2663 = vadd.f32 %v2627, %v2660
          %v2664 = vadd.f32 %v2628, %v2661
          %v2665 = vadd.f32 %v2629, %v2662
          %s2666 = sld [smem:[#allocation2 + $0x2a5]]
          %v2667 = vstv %s2666
          %v2668 = vmul.f32 %v2667, %v2653
          %v2669 = vmul.f32 %v2667, %v2655
          %v2670 = vmul.f32 %v2667, %v2657
          %v2671 = vadd.f32 %v2663, %v2668
          %v2672 = vadd.f32 %v2664, %v2669
          %v2673 = vadd.f32 %v2665, %v2670
          %s2674 = sld [smem:[#allocation2 + $0x2c0]]
          %v2675 = vstv %s2674
          %v2676 = vmul.f32 %v2675, %v2647
          %v2677 = vmul.f32 %v2675, %v2649
          %v2678 = vmul.f32 %v2675, %v2651
          %v2679 = vadd.f32 %v2643, %v2676
          %v2680 = vadd.f32 %v2644, %v2677
          %v2681 = vadd.f32 %v2645, %v2678
          %s2682 = sld [smem:[#allocation2 + $0x2db]]
          %v2683 = vstv %s2682
          %v2684 = vmul.f32 %v2683, %v2653
          %v2685 = vmul.f32 %v2683, %v2655
          %v2686 = vmul.f32 %v2683, %v2657
          %v2687 = vadd.f32 %v2679, %v2684
          %v2688 = vadd.f32 %v2680, %v2685
          %v2689 = vadd.f32 %v2681, %v2686
          %2690 = vrot.lane.b32.xlu0 %v2551, 1
          %v2691 = vpop.permute.xlu0 %2690
          %2692 = vrot.lane.b32.xlu0 %v2545, 1
          %v2693 = vpop.permute.xlu0 %2692
          %2694 = vrot.lane.b32.xlu0 %v2547, 1
          %v2695 = vpop.permute.xlu0 %2694
          %2696 = vrot.lane.b32.xlu0 %v2563, 1
          %v2697 = vpop.permute.xlu0 %2696
          %2698 = vrot.lane.b32.xlu0 %v2557, 1
          %v2699 = vpop.permute.xlu0 %2698
          %2700 = vrot.lane.b32.xlu0 %v2559, 1
          %v2701 = vpop.permute.xlu0 %2700
          %s2702 = sld [smem:[#allocation2 + $0x28b]]
          %v2703 = vstv %s2702
          %v2704 = vmul.f32 %v2703, %v2691
          %v2705 = vmul.f32 %v2703, %v2693
          %v2706 = vmul.f32 %v2703, %v2695
          %v2707 = vadd.f32 %v2671, %v2704
          %v2708 = vadd.f32 %v2672, %v2705
          %v2709 = vadd.f32 %v2673, %v2706
          %s2710 = sld [smem:[#allocation2 + $0x2a6]]
          %v2711 = vstv %s2710
          %v2712 = vmul.f32 %v2711, %v2697
          %v2713 = vmul.f32 %v2711, %v2699
          %v2714 = vmul.f32 %v2711, %v2701
          %v2715 = vadd.f32 %v2707, %v2712
          %v2716 = vadd.f32 %v2708, %v2713
          %v2717 = vadd.f32 %v2709, %v2714
          %s2718 = sld [smem:[#allocation2 + $0x2c1]]
          %v2719 = vstv %s2718
          %v2720 = vmul.f32 %v2719, %v2691
          %v2721 = vmul.f32 %v2719, %v2693
          %v2722 = vmul.f32 %v2719, %v2695
          %v2723 = vadd.f32 %v2687, %v2720
          %v2724 = vadd.f32 %v2688, %v2721
          %v2725 = vadd.f32 %v2689, %v2722
          %s2726 = sld [smem:[#allocation2 + $0x2dc]]
          %v2727 = vstv %s2726
          %v2728 = vmul.f32 %v2727, %v2697
          %v2729 = vmul.f32 %v2727, %v2699
          %v2730 = vmul.f32 %v2727, %v2701
          %v2731 = vadd.f32 %v2723, %v2728
          %v2732 = vadd.f32 %v2724, %v2729
          %v2733 = vadd.f32 %v2725, %v2730
          %s2734 = sld [smem:[#allocation2 + $0x28c]]
          %v2735 = vstv %s2734
          %v2736 = vmul.f32 %v2735, %v2551
          %v2737 = vmul.f32 %v2735, %v2545
          %v2738 = vmul.f32 %v2735, %v2547
          %v2739 = vadd.f32 %v2715, %v2736
          %v2740 = vadd.f32 %v2716, %v2737
          %v2741 = vadd.f32 %v2717, %v2738
          %s2742 = sld [smem:[#allocation2 + $0x2a7]]
          %v2743 = vstv %s2742
          %v2744 = vmul.f32 %v2743, %v2563
          %v2745 = vmul.f32 %v2743, %v2557
          %v2746 = vmul.f32 %v2743, %v2559
          %v2747 = vadd.f32 %v2739, %v2744
          %v2748 = vadd.f32 %v2740, %v2745
          %v2749 = vadd.f32 %v2741, %v2746
          %s2750 = sld [smem:[#allocation2 + $0x2c2]]
          %v2751 = vstv %s2750
          %v2752 = vmul.f32 %v2751, %v2551
          %v2753 = vmul.f32 %v2751, %v2545
          %v2754 = vmul.f32 %v2751, %v2547
          %v2755 = vadd.f32 %v2731, %v2752
          %v2756 = vadd.f32 %v2732, %v2753
          %v2757 = vadd.f32 %v2733, %v2754
          %s2758 = sld [smem:[#allocation2 + $0x2dd]]
          %v2759 = vstv %s2758
          %v2760 = vmul.f32 %v2759, %v2563
          %v2761 = vmul.f32 %v2759, %v2557
          %v2762 = vmul.f32 %v2759, %v2559
          %v2763 = vadd.f32 %v2755, %v2760
          %v2764 = vadd.f32 %v2756, %v2761
          %v2765 = vadd.f32 %v2757, %v2762
          %2766 = vrot.lane.b32.xlu0 %v2551, 127
          %v2767 = vpop.permute.xlu0 %2766
          %2768 = vrot.lane.b32.xlu0 %v2545, 127
          %v2769 = vpop.permute.xlu0 %2768
          %2770 = vrot.lane.b32.xlu0 %v2547, 127
          %v2771 = vpop.permute.xlu0 %2770
          %2772 = vrot.lane.b32.xlu0 %v2563, 127
          %v2773 = vpop.permute.xlu0 %2772
          %2774 = vrot.lane.b32.xlu0 %v2557, 127
          %v2775 = vpop.permute.xlu0 %2774
          %2776 = vrot.lane.b32.xlu0 %v2559, 127
          %v2777 = vpop.permute.xlu0 %2776
          %s2778 = sld [smem:[#allocation2 + $0x28d]]
          %v2779 = vstv %s2778
          %v2780 = vmul.f32 %v2779, %v2767
          %v2781 = vmul.f32 %v2779, %v2769
          %v2782 = vmul.f32 %v2779, %v2771
          %v2783 = vadd.f32 %v2747, %v2780
          %v2784 = vadd.f32 %v2748, %v2781
          %v2785 = vadd.f32 %v2749, %v2782
          %s2786 = sld [smem:[#allocation2 + $0x2a8]]
          %v2787 = vstv %s2786
          %v2788 = vmul.f32 %v2787, %v2773
          %v2789 = vmul.f32 %v2787, %v2775
          %v2790 = vmul.f32 %v2787, %v2777
          %v2791 = vadd.f32 %v2783, %v2788
          %v2792 = vadd.f32 %v2784, %v2789
          %v2793 = vadd.f32 %v2785, %v2790
          %s2794 = sld [smem:[#allocation2 + $0x2c3]]
          %v2795 = vstv %s2794
          %v2796 = vmul.f32 %v2795, %v2767
          %v2797 = vmul.f32 %v2795, %v2769
          %v2798 = vmul.f32 %v2795, %v2771
          %v2799 = vadd.f32 %v2763, %v2796
          %v2800 = vadd.f32 %v2764, %v2797
          %v2801 = vadd.f32 %v2765, %v2798
          %s2802 = sld [smem:[#allocation2 + $0x2de]]
          %v2803 = vstv %s2802
          %v2804 = vmul.f32 %v2803, %v2773
          %v2805 = vmul.f32 %v2803, %v2775
          %v2806 = vmul.f32 %v2803, %v2777
          %v2807 = vadd.f32 %v2799, %v2804
          %v2808 = vadd.f32 %v2800, %v2805
          %v2809 = vadd.f32 %v2801, %v2806
          %2810 = vrot.lane.b32.xlu0 %v2551, 119
          %v2811 = vpop.permute.xlu0 %2810
          %2812 = vrot.lane.b32.xlu0 %v2545, 119
          %v2813 = vpop.permute.xlu0 %2812
          %2814 = vrot.lane.b32.xlu0 %v2547, 119
          %v2815 = vpop.permute.xlu0 %2814
          %2816 = vrot.lane.b32.xlu0 %v2563, 119
          %v2817 = vpop.permute.xlu0 %2816
          %2818 = vrot.lane.b32.xlu0 %v2557, 119
          %v2819 = vpop.permute.xlu0 %2818
          %2820 = vrot.lane.b32.xlu0 %v2559, 119
          %v2821 = vpop.permute.xlu0 %2820
          %s2822 = sld [smem:[#allocation2 + $0x28e]]
          %v2823 = vstv %s2822
          %v2824 = vmul.f32 %v2823, %v2811
          %v2825 = vmul.f32 %v2823, %v2813
          %v2826 = vmul.f32 %v2823, %v2815
          %v2827 = vadd.f32 %v2791, %v2824
          %v2828 = vadd.f32 %v2792, %v2825
          %v2829 = vadd.f32 %v2793, %v2826
          %s2830 = sld [smem:[#allocation2 + $0x2a9]]
          %v2831 = vstv %s2830
          %v2832 = vmul.f32 %v2831, %v2817
          %v2833 = vmul.f32 %v2831, %v2819
          %v2834 = vmul.f32 %v2831, %v2821
          %v2835 = vadd.f32 %v2827, %v2832
          %v2836 = vadd.f32 %v2828, %v2833
          %v2837 = vadd.f32 %v2829, %v2834
          %s2838 = sld [smem:[#allocation2 + $0x2c4]]
          %v2839 = vstv %s2838
          %v2840 = vmul.f32 %v2839, %v2811
          %v2841 = vmul.f32 %v2839, %v2813
          %v2842 = vmul.f32 %v2839, %v2815
          %v2843 = vadd.f32 %v2807, %v2840
          %v2844 = vadd.f32 %v2808, %v2841
          %v2845 = vadd.f32 %v2809, %v2842
          %s2846 = sld [smem:[#allocation2 + $0x2df]]
          %v2847 = vstv %s2846
          %v2848 = vmul.f32 %v2847, %v2817
          %v2849 = vmul.f32 %v2847, %v2819
          %v2850 = vmul.f32 %v2847, %v2821
          %v2851 = vadd.f32 %v2843, %v2848
          %v2852 = vadd.f32 %v2844, %v2849
          %v2853 = vadd.f32 %v2845, %v2850
          %2854 = vrot.lane.b32.xlu0 %v2551, 118
          %v2855 = vpop.permute.xlu0 %2854
          %2856 = vrot.lane.b32.xlu0 %v2545, 118
          %v2857 = vpop.permute.xlu0 %2856
          %2858 = vrot.lane.b32.xlu0 %v2547, 118
          %v2859 = vpop.permute.xlu0 %2858
          %2860 = vrot.lane.b32.xlu0 %v2563, 118
          %v2861 = vpop.permute.xlu0 %2860
          %2862 = vrot.lane.b32.xlu0 %v2557, 118
          %v2863 = vpop.permute.xlu0 %2862
          %2864 = vrot.lane.b32.xlu0 %v2559, 118
          %v2865 = vpop.permute.xlu0 %2864
          %s2866 = sld [smem:[#allocation2 + $0x28f]]
          %v2867 = vstv %s2866
          %v2868 = vmul.f32 %v2867, %v2855
          %v2869 = vmul.f32 %v2867, %v2857
          %v2870 = vmul.f32 %v2867, %v2859
          %v2871 = vadd.f32 %v2835, %v2868
          %v2872 = vadd.f32 %v2836, %v2869
          %v2873 = vadd.f32 %v2837, %v2870
          %s2874 = sld [smem:[#allocation2 + $0x2aa]]
          %v2875 = vstv %s2874
          %v2876 = vmul.f32 %v2875, %v2861
          %v2877 = vmul.f32 %v2875, %v2863
          %v2878 = vmul.f32 %v2875, %v2865
          %v2879 = vadd.f32 %v2871, %v2876
          %v2880 = vadd.f32 %v2872, %v2877
          %v2881 = vadd.f32 %v2873, %v2878
          %s2882 = sld [smem:[#allocation2 + $0x2c5]]
          %v2883 = vstv %s2882
          %v2884 = vmul.f32 %v2883, %v2855
          %v2885 = vmul.f32 %v2883, %v2857
          %v2886 = vmul.f32 %v2883, %v2859
          %v2887 = vadd.f32 %v2851, %v2884
          %v2888 = vadd.f32 %v2852, %v2885
          %v2889 = vadd.f32 %v2853, %v2886
          %s2890 = sld [smem:[#allocation2 + $0x2e0]]
          %v2891 = vstv %s2890
          %v2892 = vmul.f32 %v2891, %v2861
          %v2893 = vmul.f32 %v2891, %v2863
          %v2894 = vmul.f32 %v2891, %v2865
          %v2895 = vadd.f32 %v2887, %v2892
          %v2896 = vadd.f32 %v2888, %v2893
          %v2897 = vadd.f32 %v2889, %v2894
          %2898 = vrot.lane.b32.xlu0 %v2551, 117
          %v2899 = vpop.permute.xlu0 %2898
          %2900 = vrot.lane.b32.xlu0 %v2545, 117
          %v2901 = vpop.permute.xlu0 %2900
          %2902 = vrot.lane.b32.xlu0 %v2547, 117
          %v2903 = vpop.permute.xlu0 %2902
          %2904 = vrot.lane.b32.xlu0 %v2563, 117
          %v2905 = vpop.permute.xlu0 %2904
          %2906 = vrot.lane.b32.xlu0 %v2557, 117
          %v2907 = vpop.permute.xlu0 %2906
          %2908 = vrot.lane.b32.xlu0 %v2559, 117
          %v2909 = vpop.permute.xlu0 %2908
          %s2910 = sld [smem:[#allocation2 + $0x290]]
          %v2911 = vstv %s2910
          %v2912 = vmul.f32 %v2911, %v2899
          %v2913 = vmul.f32 %v2911, %v2901
          %v2914 = vmul.f32 %v2911, %v2903
          %v2915 = vadd.f32 %v2879, %v2912
          %v2916 = vadd.f32 %v2880, %v2913
          %v2917 = vadd.f32 %v2881, %v2914
          %s2918 = sld [smem:[#allocation2 + $0x2ab]]
          %v2919 = vstv %s2918
          %v2920 = vmul.f32 %v2919, %v2905
          %v2921 = vmul.f32 %v2919, %v2907
          %v2922 = vmul.f32 %v2919, %v2909
          %v2923 = vadd.f32 %v2915, %v2920
          %v2924 = vadd.f32 %v2916, %v2921
          %v2925 = vadd.f32 %v2917, %v2922
          %s2926 = sld [smem:[#allocation2 + $0x2c6]]
          %v2927 = vstv %s2926
          %v2928 = vmul.f32 %v2927, %v2899
          %v2929 = vmul.f32 %v2927, %v2901
          %v2930 = vmul.f32 %v2927, %v2903
          %v2931 = vadd.f32 %v2895, %v2928
          %v2932 = vadd.f32 %v2896, %v2929
          %v2933 = vadd.f32 %v2897, %v2930
          %s2934 = sld [smem:[#allocation2 + $0x2e1]]
          %v2935 = vstv %s2934
          %v2936 = vmul.f32 %v2935, %v2905
          %v2937 = vmul.f32 %v2935, %v2907
          %v2938 = vmul.f32 %v2935, %v2909
          %v2939 = vadd.f32 %v2931, %v2936
          %v2940 = vadd.f32 %v2932, %v2937
          %v2941 = vadd.f32 %v2933, %v2938
          %2942 = vrot.lane.b32.xlu0 %v2534, 11
          %v2943 = vpop.permute.xlu0 %2942
          %2944 = vrot.lane.b32.xlu0 %v2535, 11
          %v2945 = vpop.permute.xlu0 %2944
          %2946 = vrot.lane.b32.xlu0 %v2536, 11
          %v2947 = vpop.permute.xlu0 %2946
          %2948 = vrot.lane.b32.xlu0 %v2537, 11
          %v2949 = vpop.permute.xlu0 %2948
          %2950 = vrot.lane.b32.xlu0 %v2538, 11
          %v2951 = vpop.permute.xlu0 %2950
          %2952 = vrot.lane.b32.xlu0 %v2539, 11
          %v2953 = vpop.permute.xlu0 %2952
          %s2954 = sld [smem:[#allocation2 + $0x291]]
          %v2955 = vstv %s2954
          %v2956 = vmul.f32 %v2955, %v2943
          %v2957 = vmul.f32 %v2955, %v2945
          %v2958 = vmul.f32 %v2955, %v2947
          %v2959 = vadd.f32 %v2923, %v2956
          %v2960 = vadd.f32 %v2924, %v2957
          %v2961 = vadd.f32 %v2925, %v2958
          %s2962 = sld [smem:[#allocation2 + $0x2ac]]
          %v2963 = vstv %s2962
          %v2964 = vmul.f32 %v2963, %v2949
          %v2965 = vmul.f32 %v2963, %v2951
          %v2966 = vmul.f32 %v2963, %v2953
          %v2967 = vadd.f32 %v2959, %v2964
          %v2968 = vadd.f32 %v2960, %v2965
          %v2969 = vadd.f32 %v2961, %v2966
          %s2970 = sld [smem:[#allocation2 + $0x2c7]]
          %v2971 = vstv %s2970
          %v2972 = vmul.f32 %v2971, %v2943
          %v2973 = vmul.f32 %v2971, %v2945
          %v2974 = vmul.f32 %v2971, %v2947
          %v2975 = vadd.f32 %v2939, %v2972
          %v2976 = vadd.f32 %v2940, %v2973
          %v2977 = vadd.f32 %v2941, %v2974
          %s2978 = sld [smem:[#allocation2 + $0x2e2]]
          %v2979 = vstv %s2978
          %v2980 = vmul.f32 %v2979, %v2949
          %v2981 = vmul.f32 %v2979, %v2951
          %v2982 = vmul.f32 %v2979, %v2953
          %v2983 = vadd.f32 %v2975, %v2980
          %v2984 = vadd.f32 %v2976, %v2981
          %v2985 = vadd.f32 %v2977, %v2982
          %2986 = vrot.lane.b32.xlu0 %v2534, 10
          %v2987 = vpop.permute.xlu0 %2986
          %2988 = vrot.lane.b32.xlu0 %v2535, 10
          %v2989 = vpop.permute.xlu0 %2988
          %2990 = vrot.lane.b32.xlu0 %v2536, 10
          %v2991 = vpop.permute.xlu0 %2990
          %2992 = vrot.lane.b32.xlu0 %v2537, 10
          %v2993 = vpop.permute.xlu0 %2992
          %2994 = vrot.lane.b32.xlu0 %v2538, 10
          %v2995 = vpop.permute.xlu0 %2994
          %2996 = vrot.lane.b32.xlu0 %v2539, 10
          %v2997 = vpop.permute.xlu0 %2996
          %s2998 = sld [smem:[#allocation2 + $0x292]]
          %v2999 = vstv %s2998
          %v3000 = vmul.f32 %v2999, %v2987
          %v3001 = vmul.f32 %v2999, %v2989
          %v3002 = vmul.f32 %v2999, %v2991
          %v3003 = vadd.f32 %v2967, %v3000
          %v3004 = vadd.f32 %v2968, %v3001
          %v3005 = vadd.f32 %v2969, %v3002
          %s3006 = sld [smem:[#allocation2 + $0x2ad]]
          %v3007 = vstv %s3006
          %v3008 = vmul.f32 %v3007, %v2993
          %v3009 = vmul.f32 %v3007, %v2995
          %v3010 = vmul.f32 %v3007, %v2997
          %v3011 = vadd.f32 %v3003, %v3008
          %v3012 = vadd.f32 %v3004, %v3009
          %v3013 = vadd.f32 %v3005, %v3010
          %s3014 = sld [smem:[#allocation2 + $0x2c8]]
          %v3015 = vstv %s3014
          %v3016 = vmul.f32 %v3015, %v2987
          %v3017 = vmul.f32 %v3015, %v2989
          %v3018 = vmul.f32 %v3015, %v2991
          %v3019 = vadd.f32 %v2983, %v3016
          %v3020 = vadd.f32 %v2984, %v3017
          %v3021 = vadd.f32 %v2985, %v3018
          %s3022 = sld [smem:[#allocation2 + $0x2e3]]
          %v3023 = vstv %s3022
          %v3024 = vmul.f32 %v3023, %v2993
          %v3025 = vmul.f32 %v3023, %v2995
          %v3026 = vmul.f32 %v3023, %v2997
          %v3027 = vadd.f32 %v3019, %v3024
          %v3028 = vadd.f32 %v3020, %v3025
          %v3029 = vadd.f32 %v3021, %v3026
          %3030 = vrot.lane.b32.xlu0 %v2534, 9
          %v3031 = vpop.permute.xlu0 %3030
          %3032 = vrot.lane.b32.xlu0 %v2535, 9
          %v3033 = vpop.permute.xlu0 %3032
          %3034 = vrot.lane.b32.xlu0 %v2536, 9
          %v3035 = vpop.permute.xlu0 %3034
          %3036 = vrot.lane.b32.xlu0 %v2537, 9
          %v3037 = vpop.permute.xlu0 %3036
          %3038 = vrot.lane.b32.xlu0 %v2538, 9
          %v3039 = vpop.permute.xlu0 %3038
          %3040 = vrot.lane.b32.xlu0 %v2539, 9
          %v3041 = vpop.permute.xlu0 %3040
          %s3042 = sld [smem:[#allocation2 + $0x293]]
          %v3043 = vstv %s3042
          %v3044 = vmul.f32 %v3043, %v3031
          %v3045 = vmul.f32 %v3043, %v3033
          %v3046 = vmul.f32 %v3043, %v3035
          %v3047 = vadd.f32 %v3011, %v3044
          %v3048 = vadd.f32 %v3012, %v3045
          %v3049 = vadd.f32 %v3013, %v3046
          %s3050 = sld [smem:[#allocation2 + $0x2ae]]
          %v3051 = vstv %s3050
          %v3052 = vmul.f32 %v3051, %v3037
          %v3053 = vmul.f32 %v3051, %v3039
          %v3054 = vmul.f32 %v3051, %v3041
          %v3055 = vadd.f32 %v3047, %v3052
          %v3056 = vadd.f32 %v3048, %v3053
          %v3057 = vadd.f32 %v3049, %v3054
          %s3058 = sld [smem:[#allocation2 + $0x2c9]]
          %v3059 = vstv %s3058
          %v3060 = vmul.f32 %v3059, %v3031
          %v3061 = vmul.f32 %v3059, %v3033
          %v3062 = vmul.f32 %v3059, %v3035
          %v3063 = vadd.f32 %v3027, %v3060
          %v3064 = vadd.f32 %v3028, %v3061
          %v3065 = vadd.f32 %v3029, %v3062
          %s3066 = sld [smem:[#allocation2 + $0x2e4]]
          %v3067 = vstv %s3066
          %v3068 = vmul.f32 %v3067, %v3037
          %v3069 = vmul.f32 %v3067, %v3039
          %v3070 = vmul.f32 %v3067, %v3041
          %v3071 = vadd.f32 %v3063, %v3068
          %v3072 = vadd.f32 %v3064, %v3069
          %v3073 = vadd.f32 %v3065, %v3070
          %3074 = vrot.lane.b32.xlu0 %v2534, 1
          %v3075 = vpop.permute.xlu0 %3074
          %3076 = vrot.lane.b32.xlu0 %v2535, 1
          %v3077 = vpop.permute.xlu0 %3076
          %3078 = vrot.lane.b32.xlu0 %v2536, 1
          %v3079 = vpop.permute.xlu0 %3078
          %3080 = vrot.lane.b32.xlu0 %v2537, 1
          %v3081 = vpop.permute.xlu0 %3080
          %3082 = vrot.lane.b32.xlu0 %v2538, 1
          %v3083 = vpop.permute.xlu0 %3082
          %3084 = vrot.lane.b32.xlu0 %v2539, 1
          %v3085 = vpop.permute.xlu0 %3084
          %s3086 = sld [smem:[#allocation2 + $0x294]]
          %v3087 = vstv %s3086
          %v3088 = vmul.f32 %v3087, %v3075
          %v3089 = vmul.f32 %v3087, %v3077
          %v3090 = vmul.f32 %v3087, %v3079
          %v3091 = vadd.f32 %v3055, %v3088
          %v3092 = vadd.f32 %v3056, %v3089
          %v3093 = vadd.f32 %v3057, %v3090
          %s3094 = sld [smem:[#allocation2 + $0x2af]]
          %v3095 = vstv %s3094
          %v3096 = vmul.f32 %v3095, %v3081
          %v3097 = vmul.f32 %v3095, %v3083
          %v3098 = vmul.f32 %v3095, %v3085
          %v3099 = vadd.f32 %v3091, %v3096
          %v3100 = vadd.f32 %v3092, %v3097
          %v3101 = vadd.f32 %v3093, %v3098
          %s3102 = sld [smem:[#allocation2 + $0x2ca]]
          %v3103 = vstv %s3102
          %v3104 = vmul.f32 %v3103, %v3075
          %v3105 = vmul.f32 %v3103, %v3077
          %v3106 = vmul.f32 %v3103, %v3079
          %v3107 = vadd.f32 %v3071, %v3104
          %v3108 = vadd.f32 %v3072, %v3105
          %v3109 = vadd.f32 %v3073, %v3106
          %s3110 = sld [smem:[#allocation2 + $0x2e5]]
          %v3111 = vstv %s3110
          %v3112 = vmul.f32 %v3111, %v3081
          %v3113 = vmul.f32 %v3111, %v3083
          %v3114 = vmul.f32 %v3111, %v3085
          %v3115 = vadd.f32 %v3107, %v3112
          %v3116 = vadd.f32 %v3108, %v3113
          %v3117 = vadd.f32 %v3109, %v3114
          %s3118 = sld [smem:[#allocation2 + $0x295]]
          %v3119 = vstv %s3118
          %v3120 = vmul.f32 %v3119, %v2534
          %v3121 = vmul.f32 %v3119, %v2535
          %v3122 = vmul.f32 %v3119, %v2536
          %v3123 = vadd.f32 %v3099, %v3120
          %v3124 = vadd.f32 %v3100, %v3121
          %v3125 = vadd.f32 %v3101, %v3122
          %s3126 = sld [smem:[#allocation2 + $0x2b0]]
          %v3127 = vstv %s3126
          %v3128 = vmul.f32 %v3127, %v2537
          %v3129 = vmul.f32 %v3127, %v2538
          %v3130 = vmul.f32 %v3127, %v2539
          %v3131 = vadd.f32 %v3123, %v3128
          %v3132 = vadd.f32 %v3124, %v3129
          %v3133 = vadd.f32 %v3125, %v3130
          %s3134 = sld [smem:[#allocation2 + $0x2cb]]
          %v3135 = vstv %s3134
          %v3136 = vmul.f32 %v3135, %v2534
          %v3137 = vmul.f32 %v3135, %v2535
          %v3138 = vmul.f32 %v3135, %v2536
          %v3139 = vadd.f32 %v3115, %v3136
          %v3140 = vadd.f32 %v3116, %v3137
          %v3141 = vadd.f32 %v3117, %v3138
          %s3142 = sld [smem:[#allocation2 + $0x2e6]]
          %v3143 = vstv %s3142
          %v3144 = vmul.f32 %v3143, %v2537
          %v3145 = vmul.f32 %v3143, %v2538
          %v3146 = vmul.f32 %v3143, %v2539
          %v3147 = vadd.f32 %v3139, %v3144
          %v3148 = vadd.f32 %v3140, %v3145
          %v3149 = vadd.f32 %v3141, %v3146
          %3150 = vrot.lane.b32.xlu0 %v2534, 127
          %v3151 = vpop.permute.xlu0 %3150
          %3152 = vrot.lane.b32.xlu0 %v2535, 127
          %v3153 = vpop.permute.xlu0 %3152
          %3154 = vrot.lane.b32.xlu0 %v2536, 127
          %v3155 = vpop.permute.xlu0 %3154
          %3156 = vrot.lane.b32.xlu0 %v2537, 127
          %v3157 = vpop.permute.xlu0 %3156
          %3158 = vrot.lane.b32.xlu0 %v2538, 127
          %v3159 = vpop.permute.xlu0 %3158
          %3160 = vrot.lane.b32.xlu0 %v2539, 127
          %v3161 = vpop.permute.xlu0 %3160
          %s3162 = sld [smem:[#allocation2 + $0x296]]
          %v3163 = vstv %s3162
          %v3164 = vmul.f32 %v3163, %v3151
          %v3165 = vmul.f32 %v3163, %v3153
          %v3166 = vmul.f32 %v3163, %v3155
          %v3167 = vadd.f32 %v3131, %v3164
          %v3168 = vadd.f32 %v3132, %v3165
          %v3169 = vadd.f32 %v3133, %v3166
          %s3170 = sld [smem:[#allocation2 + $0x2b1]]
          %v3171 = vstv %s3170
          %v3172 = vmul.f32 %v3171, %v3157
          %v3173 = vmul.f32 %v3171, %v3159
          %v3174 = vmul.f32 %v3171, %v3161
          %v3175 = vadd.f32 %v3167, %v3172
          %v3176 = vadd.f32 %v3168, %v3173
          %v3177 = vadd.f32 %v3169, %v3174
          %s3178 = sld [smem:[#allocation2 + $0x2cc]]
          %v3179 = vstv %s3178
          %v3180 = vmul.f32 %v3179, %v3151
          %v3181 = vmul.f32 %v3179, %v3153
          %v3182 = vmul.f32 %v3179, %v3155
          %v3183 = vadd.f32 %v3147, %v3180
          %v3184 = vadd.f32 %v3148, %v3181
          %v3185 = vadd.f32 %v3149, %v3182
          %s3186 = sld [smem:[#allocation2 + $0x2e7]]
          %v3187 = vstv %s3186
          %v3188 = vmul.f32 %v3187, %v3157
          %v3189 = vmul.f32 %v3187, %v3159
          %v3190 = vmul.f32 %v3187, %v3161
          %v3191 = vadd.f32 %v3183, %v3188
          %v3192 = vadd.f32 %v3184, %v3189
          %v3193 = vadd.f32 %v3185, %v3190
          %3194 = vrot.lane.b32.xlu0 %v2534, 119
          %v3195 = vpop.permute.xlu0 %3194
          %3196 = vrot.lane.b32.xlu0 %v2535, 119
          %v3197 = vpop.permute.xlu0 %3196
          %3198 = vrot.lane.b32.xlu0 %v2536, 119
          %v3199 = vpop.permute.xlu0 %3198
          %3200 = vrot.lane.b32.xlu0 %v2537, 119
          %v3201 = vpop.permute.xlu0 %3200
          %3202 = vrot.lane.b32.xlu0 %v2538, 119
          %v3203 = vpop.permute.xlu0 %3202
          %3204 = vrot.lane.b32.xlu0 %v2539, 119
          %v3205 = vpop.permute.xlu0 %3204
          %s3206 = sld [smem:[#allocation2 + $0x297]]
          %v3207 = vstv %s3206
          %v3208 = vmul.f32 %v3207, %v3195
          %v3209 = vmul.f32 %v3207, %v3197
          %v3210 = vmul.f32 %v3207, %v3199
          %v3211 = vadd.f32 %v3175, %v3208
          %v3212 = vadd.f32 %v3176, %v3209
          %v3213 = vadd.f32 %v3177, %v3210
          %s3214 = sld [smem:[#allocation2 + $0x2b2]]
          %v3215 = vstv %s3214
          %v3216 = vmul.f32 %v3215, %v3201
          %v3217 = vmul.f32 %v3215, %v3203
          %v3218 = vmul.f32 %v3215, %v3205
          %v3219 = vadd.f32 %v3211, %v3216
          %v3220 = vadd.f32 %v3212, %v3217
          %v3221 = vadd.f32 %v3213, %v3218
          %s3222 = sld [smem:[#allocation2 + $0x2cd]]
          %v3223 = vstv %s3222
          %v3224 = vmul.f32 %v3223, %v3195
          %v3225 = vmul.f32 %v3223, %v3197
          %v3226 = vmul.f32 %v3223, %v3199
          %v3227 = vadd.f32 %v3191, %v3224
          %v3228 = vadd.f32 %v3192, %v3225
          %v3229 = vadd.f32 %v3193, %v3226
          %s3230 = sld [smem:[#allocation2 + $0x2e8]]
          %v3231 = vstv %s3230
          %v3232 = vmul.f32 %v3231, %v3201
          %v3233 = vmul.f32 %v3231, %v3203
          %v3234 = vmul.f32 %v3231, %v3205
          %v3235 = vadd.f32 %v3227, %v3232
          %v3236 = vadd.f32 %v3228, %v3233
          %v3237 = vadd.f32 %v3229, %v3234
          %3238 = vrot.lane.b32.xlu0 %v2534, 118
          %v3239 = vpop.permute.xlu0 %3238
          %3240 = vrot.lane.b32.xlu0 %v2535, 118
          %v3241 = vpop.permute.xlu0 %3240
          %3242 = vrot.lane.b32.xlu0 %v2536, 118
          %v3243 = vpop.permute.xlu0 %3242
          %3244 = vrot.lane.b32.xlu0 %v2537, 118
          %v3245 = vpop.permute.xlu0 %3244
          %3246 = vrot.lane.b32.xlu0 %v2538, 118
          %v3247 = vpop.permute.xlu0 %3246
          %3248 = vrot.lane.b32.xlu0 %v2539, 118
          %v3249 = vpop.permute.xlu0 %3248
          %s3250 = sld [smem:[#allocation2 + $0x298]]
          %v3251 = vstv %s3250
          %v3252 = vmul.f32 %v3251, %v3239
          %v3253 = vmul.f32 %v3251, %v3241
          %v3254 = vmul.f32 %v3251, %v3243
          %v3255 = vadd.f32 %v3219, %v3252
          %v3256 = vadd.f32 %v3220, %v3253
          %v3257 = vadd.f32 %v3221, %v3254
          %s3258 = sld [smem:[#allocation2 + $0x2b3]]
          %v3259 = vstv %s3258
          %v3260 = vmul.f32 %v3259, %v3245
          %v3261 = vmul.f32 %v3259, %v3247
          %v3262 = vmul.f32 %v3259, %v3249
          %v3263 = vadd.f32 %v3255, %v3260
          %v3264 = vadd.f32 %v3256, %v3261
          %v3265 = vadd.f32 %v3257, %v3262
          %s3266 = sld [smem:[#allocation2 + $0x2ce]]
          %v3267 = vstv %s3266
          %v3268 = vmul.f32 %v3267, %v3239
          %v3269 = vmul.f32 %v3267, %v3241
          %v3270 = vmul.f32 %v3267, %v3243
          %v3271 = vadd.f32 %v3235, %v3268
          %v3272 = vadd.f32 %v3236, %v3269
          %v3273 = vadd.f32 %v3237, %v3270
          %s3274 = sld [smem:[#allocation2 + $0x2e9]]
          %v3275 = vstv %s3274
          %v3276 = vmul.f32 %v3275, %v3245
          %v3277 = vmul.f32 %v3275, %v3247
          %v3278 = vmul.f32 %v3275, %v3249
          %v3279 = vadd.f32 %v3271, %v3276
          %v3280 = vadd.f32 %v3272, %v3277
          %v3281 = vadd.f32 %v3273, %v3278
          %3282 = vrot.lane.b32.xlu0 %v2534, 117
          %v3283 = vpop.permute.xlu0 %3282
          %3284 = vrot.lane.b32.xlu0 %v2535, 117
          %v3285 = vpop.permute.xlu0 %3284
          %3286 = vrot.lane.b32.xlu0 %v2536, 117
          %v3287 = vpop.permute.xlu0 %3286
          %3288 = vrot.lane.b32.xlu0 %v2537, 117
          %v3289 = vpop.permute.xlu0 %3288
          %3290 = vrot.lane.b32.xlu0 %v2538, 117
          %v3291 = vpop.permute.xlu0 %3290
          %3292 = vrot.lane.b32.xlu0 %v2539, 117
          %v3293 = vpop.permute.xlu0 %3292
          %s3294 = sld [smem:[#allocation2 + $0x299]]
          %v3295 = vstv %s3294
          %v3296 = vmul.f32 %v3295, %v3283
          %v3297 = vmul.f32 %v3295, %v3285
          %v3298 = vmul.f32 %v3295, %v3287
          %v3299 = vadd.f32 %v3263, %v3296
          %v3300 = vadd.f32 %v3264, %v3297
          %v3301 = vadd.f32 %v3265, %v3298
          %s3302 = sld [smem:[#allocation2 + $0x2b4]]
          %v3303 = vstv %s3302
          %v3304 = vmul.f32 %v3303, %v3289
          %v3305 = vmul.f32 %v3303, %v3291
          %v3306 = vmul.f32 %v3303, %v3293
          %v3307 = vadd.f32 %v3299, %v3304
          %v3308 = vadd.f32 %v3300, %v3305
          %v3309 = vadd.f32 %v3301, %v3306
          %s3310 = sld [smem:[#allocation2 + $0x2cf]]
          %v3311 = vstv %s3310
          %v3312 = vmul.f32 %v3311, %v3283
          %v3313 = vmul.f32 %v3311, %v3285
          %v3314 = vmul.f32 %v3311, %v3287
          %v3315 = vadd.f32 %v3279, %v3312
          %v3316 = vadd.f32 %v3280, %v3313
          %v3317 = vadd.f32 %v3281, %v3314
          %s3318 = sld [smem:[#allocation2 + $0x2ea]]
          %v3319 = vstv %s3318
          %v3320 = vmul.f32 %v3319, %v3289
          %v3321 = vmul.f32 %v3319, %v3291
          %v3322 = vmul.f32 %v3319, %v3293
          %v3323 = vadd.f32 %v3315, %v3320
          %v3324 = vadd.f32 %v3316, %v3321
          %v3325 = vadd.f32 %v3317, %v3322
          %v3326 = vrot.slane %v2534, 1
          %v3327 = vrot.slane %v2535, 1
          %v3328 = vsel %vm1939, %v3326, %v3327
          %v3329 = vrot.slane %v2536, 1
          %v3330 = vsel %vm1939, %v3327, %v3329
          %v3334 = vsel %vm1939, %v3329, 0.0
          %v3335 = vrot.slane %v2537, 1
          %v3336 = vrot.slane %v2538, 1
          %v3337 = vsel %vm1939, %v3335, %v3336
          %v3338 = vrot.slane %v2539, 1
          %v3339 = vsel %vm1939, %v3336, %v3338
          %v3343 = vsel %vm1939, %v3338, 0.0
          %3344 = vrot.lane.b32.xlu0 %v3328, 11
          %v3345 = vpop.permute.xlu0 %3344
          %3346 = vrot.lane.b32.xlu0 %v3330, 11
          %v3347 = vpop.permute.xlu0 %3346
          %3348 = vrot.lane.b32.xlu0 %v3334, 11
          %v3349 = vpop.permute.xlu0 %3348
          %3350 = vrot.lane.b32.xlu0 %v3337, 11
          %v3351 = vpop.permute.xlu0 %3350
          %3352 = vrot.lane.b32.xlu0 %v3339, 11
          %v3353 = vpop.permute.xlu0 %3352
          %3354 = vrot.lane.b32.xlu0 %v3343, 11
          %v3355 = vpop.permute.xlu0 %3354
          %s3356 = sld [smem:[#allocation2 + $0x29a]]
          %v3357 = vstv %s3356
          %v3358 = vmul.f32 %v3357, %v3345
          %v3359 = vmul.f32 %v3357, %v3347
          %v3360 = vmul.f32 %v3357, %v3349
          %v3361 = vadd.f32 %v3307, %v3358
          %v3362 = vadd.f32 %v3308, %v3359
          %v3363 = vadd.f32 %v3309, %v3360
          %s3364 = sld [smem:[#allocation2 + $0x2b5]]
          %v3365 = vstv %s3364
          %v3366 = vmul.f32 %v3365, %v3351
          %v3367 = vmul.f32 %v3365, %v3353
          %v3368 = vmul.f32 %v3365, %v3355
          %v3369 = vadd.f32 %v3361, %v3366
          %v3370 = vadd.f32 %v3362, %v3367
          %v3371 = vadd.f32 %v3363, %v3368
          %s3372 = sld [smem:[#allocation2 + $0x2d0]]
          %v3373 = vstv %s3372
          %v3374 = vmul.f32 %v3373, %v3345
          %v3375 = vmul.f32 %v3373, %v3347
          %v3376 = vmul.f32 %v3373, %v3349
          %v3377 = vadd.f32 %v3323, %v3374
          %v3378 = vadd.f32 %v3324, %v3375
          %v3379 = vadd.f32 %v3325, %v3376
          %s3380 = sld [smem:[#allocation2 + $0x2eb]]
          %v3381 = vstv %s3380
          %v3382 = vmul.f32 %v3381, %v3351
          %v3383 = vmul.f32 %v3381, %v3353
          %v3384 = vmul.f32 %v3381, %v3355
          %v3385 = vadd.f32 %v3377, %v3382
          %v3386 = vadd.f32 %v3378, %v3383
          %v3387 = vadd.f32 %v3379, %v3384
          %3388 = vrot.lane.b32.xlu0 %v3328, 10
          %v3389 = vpop.permute.xlu0 %3388
          %3390 = vrot.lane.b32.xlu0 %v3330, 10
          %v3391 = vpop.permute.xlu0 %3390
          %3392 = vrot.lane.b32.xlu0 %v3334, 10
          %v3393 = vpop.permute.xlu0 %3392
          %3394 = vrot.lane.b32.xlu0 %v3337, 10
          %v3395 = vpop.permute.xlu0 %3394
          %3396 = vrot.lane.b32.xlu0 %v3339, 10
          %v3397 = vpop.permute.xlu0 %3396
          %3398 = vrot.lane.b32.xlu0 %v3343, 10
          %v3399 = vpop.permute.xlu0 %3398
          %s3400 = sld [smem:[#allocation2 + $0x29b]]
          %v3401 = vstv %s3400
          %v3402 = vmul.f32 %v3401, %v3389
          %v3403 = vmul.f32 %v3401, %v3391
          %v3404 = vmul.f32 %v3401, %v3393
          %v3405 = vadd.f32 %v3369, %v3402
          %v3406 = vadd.f32 %v3370, %v3403
          %v3407 = vadd.f32 %v3371, %v3404
          %s3408 = sld [smem:[#allocation2 + $0x2b6]]
          %v3409 = vstv %s3408
          %v3410 = vmul.f32 %v3409, %v3395
          %v3411 = vmul.f32 %v3409, %v3397
          %v3412 = vmul.f32 %v3409, %v3399
          %v3413 = vadd.f32 %v3405, %v3410
          %v3414 = vadd.f32 %v3406, %v3411
          %v3415 = vadd.f32 %v3407, %v3412
          %s3416 = sld [smem:[#allocation2 + $0x2d1]]
          %v3417 = vstv %s3416
          %v3418 = vmul.f32 %v3417, %v3389
          %v3419 = vmul.f32 %v3417, %v3391
          %v3420 = vmul.f32 %v3417, %v3393
          %v3421 = vadd.f32 %v3385, %v3418
          %v3422 = vadd.f32 %v3386, %v3419
          %v3423 = vadd.f32 %v3387, %v3420
          %s3424 = sld [smem:[#allocation2 + $0x2ec]]
          %v3425 = vstv %s3424
          %v3426 = vmul.f32 %v3425, %v3395
          %v3427 = vmul.f32 %v3425, %v3397
          %v3428 = vmul.f32 %v3425, %v3399
          %v3429 = vadd.f32 %v3421, %v3426
          %v3430 = vadd.f32 %v3422, %v3427
          %v3431 = vadd.f32 %v3423, %v3428
          %3432 = vrot.lane.b32.xlu0 %v3328, 9
          %v3433 = vpop.permute.xlu0 %3432
          %3434 = vrot.lane.b32.xlu0 %v3330, 9
          %v3435 = vpop.permute.xlu0 %3434
          %3436 = vrot.lane.b32.xlu0 %v3334, 9
          %v3437 = vpop.permute.xlu0 %3436
          %3438 = vrot.lane.b32.xlu0 %v3337, 9
          %v3439 = vpop.permute.xlu0 %3438
          %3440 = vrot.lane.b32.xlu0 %v3339, 9
          %v3441 = vpop.permute.xlu0 %3440
          %3442 = vrot.lane.b32.xlu0 %v3343, 9
          %v3443 = vpop.permute.xlu0 %3442
          %s3444 = sld [smem:[#allocation2 + $0x29c]]
          %v3445 = vstv %s3444
          %v3446 = vmul.f32 %v3445, %v3433
          %v3447 = vmul.f32 %v3445, %v3435
          %v3448 = vmul.f32 %v3445, %v3437
          %v3449 = vadd.f32 %v3413, %v3446
          %v3450 = vadd.f32 %v3414, %v3447
          %v3451 = vadd.f32 %v3415, %v3448
          %s3452 = sld [smem:[#allocation2 + $0x2b7]]
          %v3453 = vstv %s3452
          %v3454 = vmul.f32 %v3453, %v3439
          %v3455 = vmul.f32 %v3453, %v3441
          %v3456 = vmul.f32 %v3453, %v3443
          %v3457 = vadd.f32 %v3449, %v3454
          %v3458 = vadd.f32 %v3450, %v3455
          %v3459 = vadd.f32 %v3451, %v3456
          %s3460 = sld [smem:[#allocation2 + $0x2d2]]
          %v3461 = vstv %s3460
          %v3462 = vmul.f32 %v3461, %v3433
          %v3463 = vmul.f32 %v3461, %v3435
          %v3464 = vmul.f32 %v3461, %v3437
          %v3465 = vadd.f32 %v3429, %v3462
          %v3466 = vadd.f32 %v3430, %v3463
          %v3467 = vadd.f32 %v3431, %v3464
          %s3468 = sld [smem:[#allocation2 + $0x2ed]]
          %v3469 = vstv %s3468
          %v3470 = vmul.f32 %v3469, %v3439
          %v3471 = vmul.f32 %v3469, %v3441
          %v3472 = vmul.f32 %v3469, %v3443
          %v3473 = vadd.f32 %v3465, %v3470
          %v3474 = vadd.f32 %v3466, %v3471
          %v3475 = vadd.f32 %v3467, %v3472
          %3476 = vrot.lane.b32.xlu0 %v3328, 1
          %v3477 = vpop.permute.xlu0 %3476
          %3478 = vrot.lane.b32.xlu0 %v3330, 1
          %v3479 = vpop.permute.xlu0 %3478
          %3480 = vrot.lane.b32.xlu0 %v3334, 1
          %v3481 = vpop.permute.xlu0 %3480
          %3482 = vrot.lane.b32.xlu0 %v3337, 1
          %v3483 = vpop.permute.xlu0 %3482
          %3484 = vrot.lane.b32.xlu0 %v3339, 1
          %v3485 = vpop.permute.xlu0 %3484
          %3486 = vrot.lane.b32.xlu0 %v3343, 1
          %v3487 = vpop.permute.xlu0 %3486
          %s3488 = sld [smem:[#allocation2 + $0x29d]]
          %v3489 = vstv %s3488
          %v3490 = vmul.f32 %v3489, %v3477
          %v3491 = vmul.f32 %v3489, %v3479
          %v3492 = vmul.f32 %v3489, %v3481
          %v3493 = vadd.f32 %v3457, %v3490
          %v3494 = vadd.f32 %v3458, %v3491
          %v3495 = vadd.f32 %v3459, %v3492
          %s3496 = sld [smem:[#allocation2 + $0x2b8]]
          %v3497 = vstv %s3496
          %v3498 = vmul.f32 %v3497, %v3483
          %v3499 = vmul.f32 %v3497, %v3485
          %v3500 = vmul.f32 %v3497, %v3487
          %v3501 = vadd.f32 %v3493, %v3498
          %v3502 = vadd.f32 %v3494, %v3499
          %v3503 = vadd.f32 %v3495, %v3500
          %s3504 = sld [smem:[#allocation2 + $0x2d3]]
          %v3505 = vstv %s3504
          %v3506 = vmul.f32 %v3505, %v3477
          %v3507 = vmul.f32 %v3505, %v3479
          %v3508 = vmul.f32 %v3505, %v3481
          %v3509 = vadd.f32 %v3473, %v3506
          %v3510 = vadd.f32 %v3474, %v3507
          %v3511 = vadd.f32 %v3475, %v3508
          %s3512 = sld [smem:[#allocation2 + $0x2ee]]
          %v3513 = vstv %s3512
          %v3514 = vmul.f32 %v3513, %v3483
          %v3515 = vmul.f32 %v3513, %v3485
          %v3516 = vmul.f32 %v3513, %v3487
          %v3517 = vadd.f32 %v3509, %v3514
          %v3518 = vadd.f32 %v3510, %v3515
          %v3519 = vadd.f32 %v3511, %v3516
          %s3520 = sld [smem:[#allocation2 + $0x29e]]
          %v3521 = vstv %s3520
          %v3522 = vmul.f32 %v3521, %v3328
          %v3523 = vmul.f32 %v3521, %v3330
          %v3524 = vmul.f32 %v3521, %v3334
          %v3525 = vadd.f32 %v3501, %v3522
          %v3526 = vadd.f32 %v3502, %v3523
          %v3527 = vadd.f32 %v3503, %v3524
          %s3528 = sld [smem:[#allocation2 + $0x2b9]]
          %v3529 = vstv %s3528
          %v3530 = vmul.f32 %v3529, %v3337
          %v3531 = vmul.f32 %v3529, %v3339
          %v3532 = vmul.f32 %v3529, %v3343
          %v3533 = vadd.f32 %v3525, %v3530
          %v3534 = vadd.f32 %v3526, %v3531
          %v3535 = vadd.f32 %v3527, %v3532
          %s3536 = sld [smem:[#allocation2 + $0x2d4]]
          %v3537 = vstv %s3536
          %v3538 = vmul.f32 %v3537, %v3328
          %v3539 = vmul.f32 %v3537, %v3330
          %v3540 = vmul.f32 %v3537, %v3334
          %v3541 = vadd.f32 %v3517, %v3538
          %v3542 = vadd.f32 %v3518, %v3539
          %v3543 = vadd.f32 %v3519, %v3540
          %s3544 = sld [smem:[#allocation2 + $0x2ef]]
          %v3545 = vstv %s3544
          %v3546 = vmul.f32 %v3545, %v3337
          %v3547 = vmul.f32 %v3545, %v3339
          %v3548 = vmul.f32 %v3545, %v3343
          %v3549 = vadd.f32 %v3541, %v3546
          %v3550 = vadd.f32 %v3542, %v3547
          %v3551 = vadd.f32 %v3543, %v3548
          %3552 = vrot.lane.b32.xlu0 %v3328, 127
          %v3553 = vpop.permute.xlu0 %3552
          %3554 = vrot.lane.b32.xlu0 %v3330, 127
          %v3555 = vpop.permute.xlu0 %3554
          %3556 = vrot.lane.b32.xlu0 %v3334, 127
          %v3557 = vpop.permute.xlu0 %3556
          %3558 = vrot.lane.b32.xlu0 %v3337, 127
          %v3559 = vpop.permute.xlu0 %3558
          %3560 = vrot.lane.b32.xlu0 %v3339, 127
          %v3561 = vpop.permute.xlu0 %3560
          %3562 = vrot.lane.b32.xlu0 %v3343, 127
          %v3563 = vpop.permute.xlu0 %3562
          %s3564 = sld [smem:[#allocation2 + $0x29f]]
          %v3565 = vstv %s3564
          %v3566 = vmul.f32 %v3565, %v3553
          %v3567 = vmul.f32 %v3565, %v3555
          %v3568 = vmul.f32 %v3565, %v3557
          %v3569 = vadd.f32 %v3533, %v3566
          %v3570 = vadd.f32 %v3534, %v3567
          %v3571 = vadd.f32 %v3535, %v3568
          %s3572 = sld [smem:[#allocation2 + $0x2ba]]
          %v3573 = vstv %s3572
          %v3574 = vmul.f32 %v3573, %v3559
          %v3575 = vmul.f32 %v3573, %v3561
          %v3576 = vmul.f32 %v3573, %v3563
          %v3577 = vadd.f32 %v3569, %v3574
          %v3578 = vadd.f32 %v3570, %v3575
          %v3579 = vadd.f32 %v3571, %v3576
          %s3580 = sld [smem:[#allocation2 + $0x2d5]]
          %v3581 = vstv %s3580
          %v3582 = vmul.f32 %v3581, %v3553
          %v3583 = vmul.f32 %v3581, %v3555
          %v3584 = vmul.f32 %v3581, %v3557
          %v3585 = vadd.f32 %v3549, %v3582
          %v3586 = vadd.f32 %v3550, %v3583
          %v3587 = vadd.f32 %v3551, %v3584
          %s3588 = sld [smem:[#allocation2 + $0x2f0]]
          %v3589 = vstv %s3588
          %v3590 = vmul.f32 %v3589, %v3559
          %v3591 = vmul.f32 %v3589, %v3561
          %v3592 = vmul.f32 %v3589, %v3563
          %v3593 = vadd.f32 %v3585, %v3590
          %v3594 = vadd.f32 %v3586, %v3591
          %v3595 = vadd.f32 %v3587, %v3592
          %3596 = vrot.lane.b32.xlu0 %v3328, 119
          %v3597 = vpop.permute.xlu0 %3596
          %3598 = vrot.lane.b32.xlu0 %v3330, 119
          %v3599 = vpop.permute.xlu0 %3598
          %3600 = vrot.lane.b32.xlu0 %v3334, 119
          %v3601 = vpop.permute.xlu0 %3600
          %3602 = vrot.lane.b32.xlu0 %v3337, 119
          %v3603 = vpop.permute.xlu0 %3602
          %3604 = vrot.lane.b32.xlu0 %v3339, 119
          %v3605 = vpop.permute.xlu0 %3604
          %3606 = vrot.lane.b32.xlu0 %v3343, 119
          %v3607 = vpop.permute.xlu0 %3606
          %s3608 = sld [smem:[#allocation2 + $0x2a0]]
          %v3609 = vstv %s3608
          %v3610 = vmul.f32 %v3609, %v3597
          %v3611 = vmul.f32 %v3609, %v3599
          %v3612 = vmul.f32 %v3609, %v3601
          %v3613 = vadd.f32 %v3577, %v3610
          %v3614 = vadd.f32 %v3578, %v3611
          %v3615 = vadd.f32 %v3579, %v3612
          %s3616 = sld [smem:[#allocation2 + $0x2bb]]
          %v3617 = vstv %s3616
          %v3618 = vmul.f32 %v3617, %v3603
          %v3619 = vmul.f32 %v3617, %v3605
          %v3620 = vmul.f32 %v3617, %v3607
          %v3621 = vadd.f32 %v3613, %v3618
          %v3622 = vadd.f32 %v3614, %v3619
          %v3623 = vadd.f32 %v3615, %v3620
          %s3624 = sld [smem:[#allocation2 + $0x2d6]]
          %v3625 = vstv %s3624
          %v3626 = vmul.f32 %v3625, %v3597
          %v3627 = vmul.f32 %v3625, %v3599
          %v3628 = vmul.f32 %v3625, %v3601
          %v3629 = vadd.f32 %v3593, %v3626
          %v3630 = vadd.f32 %v3594, %v3627
          %v3631 = vadd.f32 %v3595, %v3628
          %s3632 = sld [smem:[#allocation2 + $0x2f1]]
          %v3633 = vstv %s3632
          %v3634 = vmul.f32 %v3633, %v3603
          %v3635 = vmul.f32 %v3633, %v3605
          %v3636 = vmul.f32 %v3633, %v3607
          %v3637 = vadd.f32 %v3629, %v3634
          %v3638 = vadd.f32 %v3630, %v3635
          %v3639 = vadd.f32 %v3631, %v3636
          %3640 = vrot.lane.b32.xlu0 %v3328, 118
          %v3641 = vpop.permute.xlu0 %3640
          %3642 = vrot.lane.b32.xlu0 %v3330, 118
          %v3643 = vpop.permute.xlu0 %3642
          %3644 = vrot.lane.b32.xlu0 %v3334, 118
          %v3645 = vpop.permute.xlu0 %3644
          %3646 = vrot.lane.b32.xlu0 %v3337, 118
          %v3647 = vpop.permute.xlu0 %3646
          %3648 = vrot.lane.b32.xlu0 %v3339, 118
          %v3649 = vpop.permute.xlu0 %3648
          %3650 = vrot.lane.b32.xlu0 %v3343, 118
          %v3651 = vpop.permute.xlu0 %3650
          %s3652 = sld [smem:[#allocation2 + $0x2a1]]
          %v3653 = vstv %s3652
          %v3654 = vmul.f32 %v3653, %v3641
          %v3655 = vmul.f32 %v3653, %v3643
          %v3656 = vmul.f32 %v3653, %v3645
          %v3657 = vadd.f32 %v3621, %v3654
          %v3658 = vadd.f32 %v3622, %v3655
          %v3659 = vadd.f32 %v3623, %v3656
          %s3660 = sld [smem:[#allocation2 + $0x2bc]]
          %v3661 = vstv %s3660
          %v3662 = vmul.f32 %v3661, %v3647
          %v3663 = vmul.f32 %v3661, %v3649
          %v3664 = vmul.f32 %v3661, %v3651
          %v3665 = vadd.f32 %v3657, %v3662
          %v3666 = vadd.f32 %v3658, %v3663
          %v3667 = vadd.f32 %v3659, %v3664
          %s3668 = sld [smem:[#allocation2 + $0x2d7]]
          %v3669 = vstv %s3668
          %v3670 = vmul.f32 %v3669, %v3641
          %v3671 = vmul.f32 %v3669, %v3643
          %v3672 = vmul.f32 %v3669, %v3645
          %v3673 = vadd.f32 %v3637, %v3670
          %v3674 = vadd.f32 %v3638, %v3671
          %v3675 = vadd.f32 %v3639, %v3672
          %s3676 = sld [smem:[#allocation2 + $0x2f2]]
          %v3677 = vstv %s3676
          %v3678 = vmul.f32 %v3677, %v3647
          %v3679 = vmul.f32 %v3677, %v3649
          %v3680 = vmul.f32 %v3677, %v3651
          %v3681 = vadd.f32 %v3673, %v3678
          %v3682 = vadd.f32 %v3674, %v3679
          %v3683 = vadd.f32 %v3675, %v3680
          %3684 = vrot.lane.b32.xlu0 %v3328, 117
          %v3685 = vpop.permute.xlu0 %3684
          %3686 = vrot.lane.b32.xlu0 %v3330, 117
          %v3687 = vpop.permute.xlu0 %3686
          %3688 = vrot.lane.b32.xlu0 %v3334, 117
          %v3689 = vpop.permute.xlu0 %3688
          %3690 = vrot.lane.b32.xlu0 %v3337, 117
          %v3691 = vpop.permute.xlu0 %3690
          %3692 = vrot.lane.b32.xlu0 %v3339, 117
          %v3693 = vpop.permute.xlu0 %3692
          %3694 = vrot.lane.b32.xlu0 %v3343, 117
          %v3695 = vpop.permute.xlu0 %3694
          %s3696 = sld [smem:[#allocation2 + $0x2a2]]
          %v3697 = vstv %s3696
          %v3698 = vmul.f32 %v3697, %v3685
          %v3699 = vmul.f32 %v3697, %v3687
          %v3700 = vmul.f32 %v3697, %v3689
          %v3701 = vadd.f32 %v3665, %v3698
          %v3702 = vadd.f32 %v3666, %v3699
          %v3703 = vadd.f32 %v3667, %v3700
          %s3704 = sld [smem:[#allocation2 + $0x2bd]]
          %v3705 = vstv %s3704
          %v3706 = vmul.f32 %v3705, %v3691
          %v3707 = vmul.f32 %v3705, %v3693
          %v3708 = vmul.f32 %v3705, %v3695
          %v3709 = vadd.f32 %v3701, %v3706
          %v3710 = vadd.f32 %v3702, %v3707
          %v3711 = vadd.f32 %v3703, %v3708
          %s3712 = sld [smem:[#allocation2 + $0x2d8]]
          %v3713 = vstv %s3712
          %v3714 = vmul.f32 %v3713, %v3685
          %v3715 = vmul.f32 %v3713, %v3687
          %v3716 = vmul.f32 %v3713, %v3689
          %v3717 = vadd.f32 %v3681, %v3714
          %v3718 = vadd.f32 %v3682, %v3715
          %v3719 = vadd.f32 %v3683, %v3716
          %s3720 = sld [smem:[#allocation2 + $0x2f3]]
          %v3721 = vstv %s3720
          %v3722 = vmul.f32 %v3721, %v3691
          %v3723 = vmul.f32 %v3721, %v3693
          %v3724 = vmul.f32 %v3721, %v3695
          %v3725 = vadd.f32 %v3717, %v3722
          %v3726 = vadd.f32 %v3718, %v3723
          %v3727 = vadd.f32 %v3719, %v3724
          %s3728 = sld [smem:[#allocation2 + $0x2f4]]
          %v3729 = vstv %s3728
          %v3730 = vadd.f32 %v3709, %v3729
          %v3731 = vadd.f32 %v3710, %v3729
          %v3732 = vadd.f32 %v3711, %v3729
          %s3733 = sld [smem:[#allocation2 + $0x2f5]]
          %v3734 = vstv %s3733
          %v3735 = vadd.f32 %v3725, %v3734
          %v3736 = vadd.f32 %v3726, %v3734
          %v3737 = vadd.f32 %v3727, %v3734
          %s3738 = sld [smem:[#allocation2 + $0x2f6]]
          %v3739 = vstv %s3738
          %v3740 = vmul.f32 %v3739, %v3730
          %v3741 = vmul.f32 %v3739, %v3731
          %v3742 = vmul.f32 %v3739, %v3732
          %s3743 = sld [smem:[#allocation2 + $0x2f7]]
          %v3744 = vstv %s3743
          %v3745 = vmul.f32 %v3744, %v3735
          %v3746 = vmul.f32 %v3744, %v3736
          %v3747 = vmul.f32 %v3744, %v3737
          %v3748 = vadd.f32 %v3740, %v3745
          %v3749 = vadd.f32 %v3741, %v3746
          %v3750 = vadd.f32 %v3742, %v3747
          %s3751 = sld [smem:[#allocation2 + $0x2fa]]
          %v3752 = vstv %s3751
          %v3753 = vadd.f32 %v3748, %v3752
          %v3754 = vadd.f32 %v3749, %v3752
          %v3755 = vadd.f32 %v3750, %v3752
          %s3756 = sld [smem:[#allocation2 + $0x2f8]]
          %v3757 = vstv %s3756
          %v3758 = vmul.f32 %v3757, %v3730
          %v3759 = vmul.f32 %v3757, %v3731
          %v3760 = vmul.f32 %v3757, %v3732
          %s3761 = sld [smem:[#allocation2 + $0x2f9]]
          %v3762 = vstv %s3761
          %v3763 = vmul.f32 %v3762, %v3735
          %v3764 = vmul.f32 %v3762, %v3736
          %v3765 = vmul.f32 %v3762, %v3737
          %v3766 = vadd.f32 %v3758, %v3763
          %v3767 = vadd.f32 %v3759, %v3764
          %v3768 = vadd.f32 %v3760, %v3765
          %s3769 = sld [smem:[#allocation2 + $0x2fb]]
          %v3770 = vstv %s3769
          %v3771 = vadd.f32 %v3766, %v3770
          %v3772 = vadd.f32 %v3767, %v3770
          %v3773 = vadd.f32 %v3768, %v3770
          %v3774 = vmul.f32 %v3753, %v165
          %v3775 = vmul.f32 %v3754, %v166
          %v3776 = vmul.f32 %v3755, %v167
          %v3777 = vmul.f32 %v3771, %v165
          %v3778 = vmul.f32 %v3772, %v166
          %v3779 = vmul.f32 %v3773, %v167
          %v3780 = vadd.f32 %v3774, %v3775
          %v3781 = vadd.f32 %v3780, %v3776
          %3782 = vadd.xlane.f32.xlu0 %v3781
          %v3783 = vpop.xlane.xlu0 %3782
          %v3784 = vrot.slane %v3783, 4
          %v3785 = vadd.f32 %v3783, %v3784
          %v3786 = vrot.slane %v3785, 2
          %v3787 = vadd.f32 %v3785, %v3786
          %v3788 = vrot.slane %v3787, 1
          %v3789 = vadd.f32 %v3787, %v3788
          %s3790 = vtos %v3789
          %s3791 = smul.f32 %s3790, 0.0009765625
          %v3792 = vmul.f32 %v3774, %v3774
          %v3793 = vmul.f32 %v3775, %v3775
          %v3794 = vmul.f32 %v3776, %v3776
          %v3795 = vadd.f32 %v3792, %v3793
          %v3796 = vadd.f32 %v3795, %v3794
          %3797 = vadd.xlane.f32.xlu0 %v3796
          %v3798 = vpop.xlane.xlu0 %3797
          %v3799 = vrot.slane %v3798, 4
          %v3800 = vadd.f32 %v3798, %v3799
          %v3801 = vrot.slane %v3800, 2
          %v3802 = vadd.f32 %v3800, %v3801
          %v3803 = vrot.slane %v3802, 1
          %v3804 = vadd.f32 %v3802, %v3803
          %s3805 = vtos %v3804
          %s3806 = smul.f32 %s3805, 0.0009765625
          %s3807 = smul.f32 %s3791, %s3791
          %s3808 = ssub.f32 %s3806, %s3807
          %s3809 = sld [smem:[#allocation2 + $0x2fc]]
          %s3810 = sadd.f32 %s3808, 1e-05
          %v3811 = vstv %s3810
          %v3812 = vrsqrt.pop %v3811
          %s3813 = vtos %v3812
          %s3814 = smul.f32 %s3809, %s3813
          %s3815 = sld [smem:[#allocation2 + $0x2fe]]
          %s3816 = smul.f32 %s3791, %s3814
          %s3817 = ssub.f32 %s3815, %s3816
          %v3818 = vstv %s3814
          %v3819 = vmul.f32 %v3774, %v3818
          %v3820 = vmul.f32 %v3775, %v3818
          %v3821 = vmul.f32 %v3776, %v3818
          %v3822 = vstv %s3817
          %v3823 = vadd.f32 %v3819, %v3822
          %v3824 = vadd.f32 %v3820, %v3822
          %v3825 = vadd.f32 %v3821, %v3822
          %v3826 = vmax.f32 %v3823, 0.0
          %v3827 = vmax.f32 %v3824, 0.0
          %v3828 = vmax.f32 %v3825, 0.0
          %v3829 = vmul.f32 %v3826, %v165
          %v3830 = vmul.f32 %v3827, %v166
          %v3831 = vmul.f32 %v3828, %v167
          %v3832 = vadd.f32 %v3777, %v3778
          %v3833 = vadd.f32 %v3832, %v3779
          %3834 = vadd.xlane.f32.xlu0 %v3833
          %v3835 = vpop.xlane.xlu0 %3834
          %v3836 = vrot.slane %v3835, 4
          %v3837 = vadd.f32 %v3835, %v3836
          %v3838 = vrot.slane %v3837, 2
          %v3839 = vadd.f32 %v3837, %v3838
          %v3840 = vrot.slane %v3839, 1
          %v3841 = vadd.f32 %v3839, %v3840
          %s3842 = vtos %v3841
          %s3843 = smul.f32 %s3842, 0.0009765625
          %v3844 = vmul.f32 %v3777, %v3777
          %v3845 = vmul.f32 %v3778, %v3778
          %v3846 = vmul.f32 %v3779, %v3779
          %v3847 = vadd.f32 %v3844, %v3845
          %v3848 = vadd.f32 %v3847, %v3846
          %3849 = vadd.xlane.f32.xlu0 %v3848
          %v3850 = vpop.xlane.xlu0 %3849
          %v3851 = vrot.slane %v3850, 4
          %v3852 = vadd.f32 %v3850, %v3851
          %v3853 = vrot.slane %v3852, 2
          %v3854 = vadd.f32 %v3852, %v3853
          %v3855 = vrot.slane %v3854, 1
          %v3856 = vadd.f32 %v3854, %v3855
          %s3857 = vtos %v3856
          %s3858 = smul.f32 %s3857, 0.0009765625
          %s3859 = smul.f32 %s3843, %s3843
          %s3860 = ssub.f32 %s3858, %s3859
          %s3861 = sld [smem:[#allocation2 + $0x2fd]]
          %s3862 = sadd.f32 %s3860, 1e-05
          %v3863 = vstv %s3862
          %v3864 = vrsqrt.pop %v3863
          %s3865 = vtos %v3864
          %s3866 = smul.f32 %s3861, %s3865
          %s3867 = sld [smem:[#allocation2 + $0x2ff]]
          %s3868 = smul.f32 %s3843, %s3866
          %s3869 = ssub.f32 %s3867, %s3868
          %v3870 = vstv %s3866
          %v3871 = vmul.f32 %v3777, %v3870
          %v3872 = vmul.f32 %v3778, %v3870
          %v3873 = vmul.f32 %v3779, %v3870
          %v3874 = vstv %s3869
          %v3875 = vadd.f32 %v3871, %v3874
          %v3876 = vadd.f32 %v3872, %v3874
          %v3877 = vadd.f32 %v3873, %v3874
          %v3878 = vmax.f32 %v3875, 0.0
          %v3879 = vmax.f32 %v3876, 0.0
          %v3880 = vmax.f32 %v3877, 0.0
          %v3881 = vmul.f32 %v3878, %v165
          %v3882 = vmul.f32 %v3879, %v166
          %v3883 = vmul.f32 %v3880, %v167
          %s3884 = sld [smem:[#allocation2 + $0x480]]
          %v3885 = vadd.f32 %v168, %v2443
          %v3886 = vadd.f32 %v169, %v2444
          %v3887 = vadd.f32 %v170, %v2445
          %v3888 = vstv %s3884
          %v3889 = vmul.f32 %v3888, %v3885
          %v3890 = vmul.f32 %v3888, %v3886
          %v3891 = vmul.f32 %v3888, %v3887
          %3892 = vst [vmem:[%s164] sm:$0xff] %v3889
          %3893 = vst [vmem:[%s164 + $0x8] sm:$0xff] %v3890
          %3894 = vst [vmem:[%s164 + $0x10] sm:$0xff] %v3891
          %v3895 = vadd.f32 %v172, %v2495
          %v3896 = vadd.f32 %v173, %v2496
          %v3897 = vadd.f32 %v174, %v2497
          %v3898 = vmul.f32 %v3888, %v3895
          %v3899 = vmul.f32 %v3888, %v3896
          %v3900 = vmul.f32 %v3888, %v3897
          %s3901 = scalar_lea.vmem %s164, 24
          %3902 = vst [vmem:[%s3901] sm:$0xff] %v3898
          %3903 = vst [vmem:[%s3901 + $0x8] sm:$0xff] %v3899
          %3904 = vst [vmem:[%s3901 + $0x10] sm:$0xff] %v3900
          %v3905 = vadd.f32 %v176, %v3829
          %v3906 = vadd.f32 %v177, %v3830
          %v3907 = vadd.f32 %v178, %v3831
          %v3908 = vmul.f32 %v3888, %v3905
          %v3909 = vmul.f32 %v3888, %v3906
          %v3910 = vmul.f32 %v3888, %v3907
          %s3911 = scalar_lea.vmem %s164, 48
          %3912 = vst [vmem:[%s3911] sm:$0xff] %v3908
          %3913 = vst [vmem:[%s3911 + $0x8] sm:$0xff] %v3909
          %3914 = vst [vmem:[%s3911 + $0x10] sm:$0xff] %v3910
          %v3915 = vadd.f32 %v180, %v3881
          %v3916 = vadd.f32 %v181, %v3882
          %v3917 = vadd.f32 %v182, %v3883
          %v3918 = vmul.f32 %v3888, %v3915
          %v3919 = vmul.f32 %v3888, %v3916
          %v3920 = vmul.f32 %v3888, %v3917
          %s3921 = scalar_lea.vmem %s164, 72
          %3922 = vst [vmem:[%s3921] sm:$0xff] %v3918
          %3923 = vst [vmem:[%s3921 + $0x8] sm:$0xff] %v3919
          %3924 = vst [vmem:[%s3921 + $0x10] sm:$0xff] %v3920
        $region44: #{decoder_forward.1} parent=31 // pred_fallthru
          _
        %p3925 = scmp.eq.s32.totalorder %s15, 2
        // Predicated region
        $region45: #{decoder_forward.1} parent=31 // pred_check
          %p3926 = pneg %p3925
        $region46: #{decoder_forward.1} parent=31 // pred_check_branch
          %3928 = sbr.rel (%p3926) target = $region48
        $region47: #{decoder_forward.1} parent=31 // pred_region
          %s3929 = sld [smem:[#allocation2 + $0x100]]
          %v3930 = vstv %s3929
          %v3931 = vmul.f32 %v3930, %v168
          %v3932 = vmul.f32 %v3930, %v169
          %v3933 = vmul.f32 %v3930, %v170
          %s3934 = sld [smem:[#allocation2 + $0x101]]
          %v3935 = vstv %s3934
          %v3936 = vmul.f32 %v3935, %v172
          %v3937 = vmul.f32 %v3935, %v173
          %v3938 = vmul.f32 %v3935, %v174
          %v3939 = vadd.f32 %v3931, %v3936
          %v3940 = vadd.f32 %v3932, %v3937
          %v3941 = vadd.f32 %v3933, %v3938
          %s3942 = sld [smem:[#allocation2 + $0x102]]
          %v3943 = vstv %s3942
          %v3944 = vmul.f32 %v3943, %v176
          %v3945 = vmul.f32 %v3943, %v177
          %v3946 = vmul.f32 %v3943, %v178
          %v3947 = vadd.f32 %v3939, %v3944
          %v3948 = vadd.f32 %v3940, %v3945
          %v3949 = vadd.f32 %v3941, %v3946
          %s3950 = sld [smem:[#allocation2 + $0x103]]
          %v3951 = vstv %s3950
          %v3952 = vmul.f32 %v3951, %v180
          %v3953 = vmul.f32 %v3951, %v181
          %v3954 = vmul.f32 %v3951, %v182
          %v3955 = vadd.f32 %v3947, %v3952
          %v3956 = vadd.f32 %v3948, %v3953
          %v3957 = vadd.f32 %v3949, %v3954
          %s3958 = sld [smem:[#allocation2 + $0x108]]
          %v3959 = vstv %s3958
          %v3960 = vadd.f32 %v3955, %v3959
          %v3961 = vadd.f32 %v3956, %v3959
          %v3962 = vadd.f32 %v3957, %v3959
          %s3963 = sld [smem:[#allocation2 + $0x104]]
          %v3964 = vstv %s3963
          %v3965 = vmul.f32 %v3964, %v168
          %v3966 = vmul.f32 %v3964, %v169
          %v3967 = vmul.f32 %v3964, %v170
          %s3968 = sld [smem:[#allocation2 + $0x105]]
          %v3969 = vstv %s3968
          %v3970 = vmul.f32 %v3969, %v172
          %v3971 = vmul.f32 %v3969, %v173
          %v3972 = vmul.f32 %v3969, %v174
          %v3973 = vadd.f32 %v3965, %v3970
          %v3974 = vadd.f32 %v3966, %v3971
          %v3975 = vadd.f32 %v3967, %v3972
          %s3976 = sld [smem:[#allocation2 + $0x106]]
          %v3977 = vstv %s3976
          %v3978 = vmul.f32 %v3977, %v176
          %v3979 = vmul.f32 %v3977, %v177
          %v3980 = vmul.f32 %v3977, %v178
          %v3981 = vadd.f32 %v3973, %v3978
          %v3982 = vadd.f32 %v3974, %v3979
          %v3983 = vadd.f32 %v3975, %v3980
          %s3984 = sld [smem:[#allocation2 + $0x107]]
          %v3985 = vstv %s3984
          %v3986 = vmul.f32 %v3985, %v180
          %v3987 = vmul.f32 %v3985, %v181
          %v3988 = vmul.f32 %v3985, %v182
          %v3989 = vadd.f32 %v3981, %v3986
          %v3990 = vadd.f32 %v3982, %v3987
          %v3991 = vadd.f32 %v3983, %v3988
          %s3992 = sld [smem:[#allocation2 + $0x109]]
          %v3993 = vstv %s3992
          %v3994 = vadd.f32 %v3989, %v3993
          %v3995 = vadd.f32 %v3990, %v3993
          %v3996 = vadd.f32 %v3991, %v3993
          %v3997 = vmul.f32 %v3960, %v165
          %v3998 = vmul.f32 %v3961, %v166
          %v3999 = vmul.f32 %v3962, %v167
          %v4000 = vmul.f32 %v3994, %v165
          %v4001 = vmul.f32 %v3995, %v166
          %v4002 = vmul.f32 %v3996, %v167
          %vm4006 = vcmask 1040384
          %v4007 = vrot.slane %v3997, 7
          %v4008 = vrot.slane %v3998, 7
          %v4009 = vsel %vm4006, %v4007, %v4008
          %v4010 = vrot.slane %v3999, 7
          %v4011 = vsel %vm4006, %v4008, %v4010
          %v4015 = vsel %vm4006, 0.0, %v4007
          %v4019 = vrot.slane %v4000, 7
          %v4020 = vrot.slane %v4001, 7
          %v4021 = vsel %vm4006, %v4019, %v4020
          %v4022 = vrot.slane %v4002, 7
          %v4023 = vsel %vm4006, %v4020, %v4022
          %v4027 = vsel %vm4006, 0.0, %v4019
          %4028 = vrot.lane.b32.xlu0 %v4015, 10
          %v4029 = vpop.permute.xlu0 %4028
          %4030 = vrot.lane.b32.xlu0 %v4009, 10
          %v4031 = vpop.permute.xlu0 %4030
          %4032 = vrot.lane.b32.xlu0 %v4011, 10
          %v4033 = vpop.permute.xlu0 %4032
          %4034 = vrot.lane.b32.xlu0 %v4027, 10
          %v4035 = vpop.permute.xlu0 %4034
          %4036 = vrot.lane.b32.xlu0 %v4021, 10
          %v4037 = vpop.permute.xlu0 %4036
          %4038 = vrot.lane.b32.xlu0 %v4023, 10
          %v4039 = vpop.permute.xlu0 %4038
          %s4040 = sld [smem:[#allocation2 + $0x10a]]
          %v4041 = vstv %s4040
          %v4042 = vmul.f32 %v4041, %v4029
          %v4043 = vmul.f32 %v4041, %v4031
          %v4044 = vmul.f32 %v4041, %v4033
          %s4045 = sld [smem:[#allocation2 + $0x113]]
          %v4046 = vstv %s4045
          %v4047 = vmul.f32 %v4046, %v4035
          %v4048 = vmul.f32 %v4046, %v4037
          %v4049 = vmul.f32 %v4046, %v4039
          %v4050 = vadd.f32 %v4042, %v4047
          %v4051 = vadd.f32 %v4043, %v4048
          %v4052 = vadd.f32 %v4044, %v4049
          %s4053 = sld [smem:[#allocation2 + $0x11c]]
          %v4054 = vstv %s4053
          %v4055 = vmul.f32 %v4054, %v4029
          %v4056 = vmul.f32 %v4054, %v4031
          %v4057 = vmul.f32 %v4054, %v4033
          %s4058 = sld [smem:[#allocation2 + $0x125]]
          %v4059 = vstv %s4058
          %v4060 = vmul.f32 %v4059, %v4035
          %v4061 = vmul.f32 %v4059, %v4037
          %v4062 = vmul.f32 %v4059, %v4039
          %v4063 = vadd.f32 %v4055, %v4060
          %v4064 = vadd.f32 %v4056, %v4061
          %v4065 = vadd.f32 %v4057, %v4062
          %s4066 = sld [smem:[#allocation2 + $0x10b]]
          %v4067 = vstv %s4066
          %v4068 = vmul.f32 %v4067, %v4015
          %v4069 = vmul.f32 %v4067, %v4009
          %v4070 = vmul.f32 %v4067, %v4011
          %v4071 = vadd.f32 %v4050, %v4068
          %v4072 = vadd.f32 %v4051, %v4069
          %v4073 = vadd.f32 %v4052, %v4070
          %s4074 = sld [smem:[#allocation2 + $0x114]]
          %v4075 = vstv %s4074
          %v4076 = vmul.f32 %v4075, %v4027
          %v4077 = vmul.f32 %v4075, %v4021
          %v4078 = vmul.f32 %v4075, %v4023
          %v4079 = vadd.f32 %v4071, %v4076
          %v4080 = vadd.f32 %v4072, %v4077
          %v4081 = vadd.f32 %v4073, %v4078
          %s4082 = sld [smem:[#allocation2 + $0x11d]]
          %v4083 = vstv %s4082
          %v4084 = vmul.f32 %v4083, %v4015
          %v4085 = vmul.f32 %v4083, %v4009
          %v4086 = vmul.f32 %v4083, %v4011
          %v4087 = vadd.f32 %v4063, %v4084
          %v4088 = vadd.f32 %v4064, %v4085
          %v4089 = vadd.f32 %v4065, %v4086
          %s4090 = sld [smem:[#allocation2 + $0x126]]
          %v4091 = vstv %s4090
          %v4092 = vmul.f32 %v4091, %v4027
          %v4093 = vmul.f32 %v4091, %v4021
          %v4094 = vmul.f32 %v4091, %v4023
          %v4095 = vadd.f32 %v4087, %v4092
          %v4096 = vadd.f32 %v4088, %v4093
          %v4097 = vadd.f32 %v4089, %v4094
          %4098 = vrot.lane.b32.xlu0 %v4015, 118
          %v4099 = vpop.permute.xlu0 %4098
          %4100 = vrot.lane.b32.xlu0 %v4009, 118
          %v4101 = vpop.permute.xlu0 %4100
          %4102 = vrot.lane.b32.xlu0 %v4011, 118
          %v4103 = vpop.permute.xlu0 %4102
          %4104 = vrot.lane.b32.xlu0 %v4027, 118
          %v4105 = vpop.permute.xlu0 %4104
          %4106 = vrot.lane.b32.xlu0 %v4021, 118
          %v4107 = vpop.permute.xlu0 %4106
          %4108 = vrot.lane.b32.xlu0 %v4023, 118
          %v4109 = vpop.permute.xlu0 %4108
          %s4110 = sld [smem:[#allocation2 + $0x10c]]
          %v4111 = vstv %s4110
          %v4112 = vmul.f32 %v4111, %v4099
          %v4113 = vmul.f32 %v4111, %v4101
          %v4114 = vmul.f32 %v4111, %v4103
          %v4115 = vadd.f32 %v4079, %v4112
          %v4116 = vadd.f32 %v4080, %v4113
          %v4117 = vadd.f32 %v4081, %v4114
          %s4118 = sld [smem:[#allocation2 + $0x115]]
          %v4119 = vstv %s4118
          %v4120 = vmul.f32 %v4119, %v4105
          %v4121 = vmul.f32 %v4119, %v4107
          %v4122 = vmul.f32 %v4119, %v4109
          %v4123 = vadd.f32 %v4115, %v4120
          %v4124 = vadd.f32 %v4116, %v4121
          %v4125 = vadd.f32 %v4117, %v4122
          %s4126 = sld [smem:[#allocation2 + $0x11e]]
          %v4127 = vstv %s4126
          %v4128 = vmul.f32 %v4127, %v4099
          %v4129 = vmul.f32 %v4127, %v4101
          %v4130 = vmul.f32 %v4127, %v4103
          %v4131 = vadd.f32 %v4095, %v4128
          %v4132 = vadd.f32 %v4096, %v4129
          %v4133 = vadd.f32 %v4097, %v4130
          %s4134 = sld [smem:[#allocation2 + $0x127]]
          %v4135 = vstv %s4134
          %v4136 = vmul.f32 %v4135, %v4105
          %v4137 = vmul.f32 %v4135, %v4107
          %v4138 = vmul.f32 %v4135, %v4109
          %v4139 = vadd.f32 %v4131, %v4136
          %v4140 = vadd.f32 %v4132, %v4137
          %v4141 = vadd.f32 %v4133, %v4138
          %4142 = vrot.lane.b32.xlu0 %v3997, 10
          %v4143 = vpop.permute.xlu0 %4142
          %4144 = vrot.lane.b32.xlu0 %v3998, 10
          %v4145 = vpop.permute.xlu0 %4144
          %4146 = vrot.lane.b32.xlu0 %v3999, 10
          %v4147 = vpop.permute.xlu0 %4146
          %4148 = vrot.lane.b32.xlu0 %v4000, 10
          %v4149 = vpop.permute.xlu0 %4148
          %4150 = vrot.lane.b32.xlu0 %v4001, 10
          %v4151 = vpop.permute.xlu0 %4150
          %4152 = vrot.lane.b32.xlu0 %v4002, 10
          %v4153 = vpop.permute.xlu0 %4152
          %s4154 = sld [smem:[#allocation2 + $0x10d]]
          %v4155 = vstv %s4154
          %v4156 = vmul.f32 %v4155, %v4143
          %v4157 = vmul.f32 %v4155, %v4145
          %v4158 = vmul.f32 %v4155, %v4147
          %v4159 = vadd.f32 %v4123, %v4156
          %v4160 = vadd.f32 %v4124, %v4157
          %v4161 = vadd.f32 %v4125, %v4158
          %s4162 = sld [smem:[#allocation2 + $0x116]]
          %v4163 = vstv %s4162
          %v4164 = vmul.f32 %v4163, %v4149
          %v4165 = vmul.f32 %v4163, %v4151
          %v4166 = vmul.f32 %v4163, %v4153
          %v4167 = vadd.f32 %v4159, %v4164
          %v4168 = vadd.f32 %v4160, %v4165
          %v4169 = vadd.f32 %v4161, %v4166
          %s4170 = sld [smem:[#allocation2 + $0x11f]]
          %v4171 = vstv %s4170
          %v4172 = vmul.f32 %v4171, %v4143
          %v4173 = vmul.f32 %v4171, %v4145
          %v4174 = vmul.f32 %v4171, %v4147
          %v4175 = vadd.f32 %v4139, %v4172
          %v4176 = vadd.f32 %v4140, %v4173
          %v4177 = vadd.f32 %v4141, %v4174
          %s4178 = sld [smem:[#allocation2 + $0x128]]
          %v4179 = vstv %s4178
          %v4180 = vmul.f32 %v4179, %v4149
          %v4181 = vmul.f32 %v4179, %v4151
          %v4182 = vmul.f32 %v4179, %v4153
          %v4183 = vadd.f32 %v4175, %v4180
          %v4184 = vadd.f32 %v4176, %v4181
          %v4185 = vadd.f32 %v4177, %v4182
          %s4186 = sld [smem:[#allocation2 + $0x10e]]
          %v4187 = vstv %s4186
          %v4188 = vmul.f32 %v4187, %v3997
          %v4189 = vmul.f32 %v4187, %v3998
          %v4190 = vmul.f32 %v4187, %v3999
          %v4191 = vadd.f32 %v4167, %v4188
          %v4192 = vadd.f32 %v4168, %v4189
          %v4193 = vadd.f32 %v4169, %v4190
          %s4194 = sld [smem:[#allocation2 + $0x117]]
          %v4195 = vstv %s4194
          %v4196 = vmul.f32 %v4195, %v4000
          %v4197 = vmul.f32 %v4195, %v4001
          %v4198 = vmul.f32 %v4195, %v4002
          %v4199 = vadd.f32 %v4191, %v4196
          %v4200 = vadd.f32 %v4192, %v4197
          %v4201 = vadd.f32 %v4193, %v4198
          %s4202 = sld [smem:[#allocation2 + $0x120]]
          %v4203 = vstv %s4202
          %v4204 = vmul.f32 %v4203, %v3997
          %v4205 = vmul.f32 %v4203, %v3998
          %v4206 = vmul.f32 %v4203, %v3999
          %v4207 = vadd.f32 %v4183, %v4204
          %v4208 = vadd.f32 %v4184, %v4205
          %v4209 = vadd.f32 %v4185, %v4206
          %s4210 = sld [smem:[#allocation2 + $0x129]]
          %v4211 = vstv %s4210
          %v4212 = vmul.f32 %v4211, %v4000
          %v4213 = vmul.f32 %v4211, %v4001
          %v4214 = vmul.f32 %v4211, %v4002
          %v4215 = vadd.f32 %v4207, %v4212
          %v4216 = vadd.f32 %v4208, %v4213
          %v4217 = vadd.f32 %v4209, %v4214
          %4218 = vrot.lane.b32.xlu0 %v3997, 118
          %v4219 = vpop.permute.xlu0 %4218
          %4220 = vrot.lane.b32.xlu0 %v3998, 118
          %v4221 = vpop.permute.xlu0 %4220
          %4222 = vrot.lane.b32.xlu0 %v3999, 118
          %v4223 = vpop.permute.xlu0 %4222
          %4224 = vrot.lane.b32.xlu0 %v4000, 118
          %v4225 = vpop.permute.xlu0 %4224
          %4226 = vrot.lane.b32.xlu0 %v4001, 118
          %v4227 = vpop.permute.xlu0 %4226
          %4228 = vrot.lane.b32.xlu0 %v4002, 118
          %v4229 = vpop.permute.xlu0 %4228
          %s4230 = sld [smem:[#allocation2 + $0x10f]]
          %v4231 = vstv %s4230
          %v4232 = vmul.f32 %v4231, %v4219
          %v4233 = vmul.f32 %v4231, %v4221
          %v4234 = vmul.f32 %v4231, %v4223
          %v4235 = vadd.f32 %v4199, %v4232
          %v4236 = vadd.f32 %v4200, %v4233
          %v4237 = vadd.f32 %v4201, %v4234
          %s4238 = sld [smem:[#allocation2 + $0x118]]
          %v4239 = vstv %s4238
          %v4240 = vmul.f32 %v4239, %v4225
          %v4241 = vmul.f32 %v4239, %v4227
          %v4242 = vmul.f32 %v4239, %v4229
          %v4243 = vadd.f32 %v4235, %v4240
          %v4244 = vadd.f32 %v4236, %v4241
          %v4245 = vadd.f32 %v4237, %v4242
          %s4246 = sld [smem:[#allocation2 + $0x121]]
          %v4247 = vstv %s4246
          %v4248 = vmul.f32 %v4247, %v4219
          %v4249 = vmul.f32 %v4247, %v4221
          %v4250 = vmul.f32 %v4247, %v4223
          %v4251 = vadd.f32 %v4215, %v4248
          %v4252 = vadd.f32 %v4216, %v4249
          %v4253 = vadd.f32 %v4217, %v4250
          %s4254 = sld [smem:[#allocation2 + $0x12a]]
          %v4255 = vstv %s4254
          %v4256 = vmul.f32 %v4255, %v4225
          %v4257 = vmul.f32 %v4255, %v4227
          %v4258 = vmul.f32 %v4255, %v4229
          %v4259 = vadd.f32 %v4251, %v4256
          %v4260 = vadd.f32 %v4252, %v4257
          %v4261 = vadd.f32 %v4253, %v4258
          %vm4262 = vcmask 1046528
          %v4263 = vrot.slane %v3997, 1
          %v4264 = vrot.slane %v3998, 1
          %v4265 = vsel %vm4262, %v4263, %v4264
          %v4266 = vrot.slane %v3999, 1
          %v4267 = vsel %vm4262, %v4264, %v4266
          %v4271 = vsel %vm4262, %v4266, 0.0
          %v4272 = vrot.slane %v4000, 1
          %v4273 = vrot.slane %v4001, 1
          %v4274 = vsel %vm4262, %v4272, %v4273
          %v4275 = vrot.slane %v4002, 1
          %v4276 = vsel %vm4262, %v4273, %v4275
          %v4280 = vsel %vm4262, %v4275, 0.0
          %4281 = vrot.lane.b32.xlu0 %v4265, 10
          %v4282 = vpop.permute.xlu0 %4281
          %4283 = vrot.lane.b32.xlu0 %v4267, 10
          %v4284 = vpop.permute.xlu0 %4283
          %4285 = vrot.lane.b32.xlu0 %v4271, 10
          %v4286 = vpop.permute.xlu0 %4285
          %4287 = vrot.lane.b32.xlu0 %v4274, 10
          %v4288 = vpop.permute.xlu0 %4287
          %4289 = vrot.lane.b32.xlu0 %v4276, 10
          %v4290 = vpop.permute.xlu0 %4289
          %4291 = vrot.lane.b32.xlu0 %v4280, 10
          %v4292 = vpop.permute.xlu0 %4291
          %s4293 = sld [smem:[#allocation2 + $0x110]]
          %v4294 = vstv %s4293
          %v4295 = vmul.f32 %v4294, %v4282
          %v4296 = vmul.f32 %v4294, %v4284
          %v4297 = vmul.f32 %v4294, %v4286
          %v4298 = vadd.f32 %v4243, %v4295
          %v4299 = vadd.f32 %v4244, %v4296
          %v4300 = vadd.f32 %v4245, %v4297
          %s4301 = sld [smem:[#allocation2 + $0x119]]
          %v4302 = vstv %s4301
          %v4303 = vmul.f32 %v4302, %v4288
          %v4304 = vmul.f32 %v4302, %v4290
          %v4305 = vmul.f32 %v4302, %v4292
          %v4306 = vadd.f32 %v4298, %v4303
          %v4307 = vadd.f32 %v4299, %v4304
          %v4308 = vadd.f32 %v4300, %v4305
          %s4309 = sld [smem:[#allocation2 + $0x122]]
          %v4310 = vstv %s4309
          %v4311 = vmul.f32 %v4310, %v4282
          %v4312 = vmul.f32 %v4310, %v4284
          %v4313 = vmul.f32 %v4310, %v4286
          %v4314 = vadd.f32 %v4259, %v4311
          %v4315 = vadd.f32 %v4260, %v4312
          %v4316 = vadd.f32 %v4261, %v4313
          %s4317 = sld [smem:[#allocation2 + $0x12b]]
          %v4318 = vstv %s4317
          %v4319 = vmul.f32 %v4318, %v4288
          %v4320 = vmul.f32 %v4318, %v4290
          %v4321 = vmul.f32 %v4318, %v4292
          %v4322 = vadd.f32 %v4314, %v4319
          %v4323 = vadd.f32 %v4315, %v4320
          %v4324 = vadd.f32 %v4316, %v4321
          %s4325 = sld [smem:[#allocation2 + $0x111]]
          %v4326 = vstv %s4325
          %v4327 = vmul.f32 %v4326, %v4265
          %v4328 = vmul.f32 %v4326, %v4267
          %v4329 = vmul.f32 %v4326, %v4271
          %v4330 = vadd.f32 %v4306, %v4327
          %v4331 = vadd.f32 %v4307, %v4328
          %v4332 = vadd.f32 %v4308, %v4329
          %s4333 = sld [smem:[#allocation2 + $0x11a]]
          %v4334 = vstv %s4333
          %v4335 = vmul.f32 %v4334, %v4274
          %v4336 = vmul.f32 %v4334, %v4276
          %v4337 = vmul.f32 %v4334, %v4280
          %v4338 = vadd.f32 %v4330, %v4335
          %v4339 = vadd.f32 %v4331, %v4336
          %v4340 = vadd.f32 %v4332, %v4337
          %s4341 = sld [smem:[#allocation2 + $0x123]]
          %v4342 = vstv %s4341
          %v4343 = vmul.f32 %v4342, %v4265
          %v4344 = vmul.f32 %v4342, %v4267
          %v4345 = vmul.f32 %v4342, %v4271
          %v4346 = vadd.f32 %v4322, %v4343
          %v4347 = vadd.f32 %v4323, %v4344
          %v4348 = vadd.f32 %v4324, %v4345
          %s4349 = sld [smem:[#allocation2 + $0x12c]]
          %v4350 = vstv %s4349
          %v4351 = vmul.f32 %v4350, %v4274
          %v4352 = vmul.f32 %v4350, %v4276
          %v4353 = vmul.f32 %v4350, %v4280
          %v4354 = vadd.f32 %v4346, %v4351
          %v4355 = vadd.f32 %v4347, %v4352
          %v4356 = vadd.f32 %v4348, %v4353
          %4357 = vrot.lane.b32.xlu0 %v4265, 118
          %v4358 = vpop.permute.xlu0 %4357
          %4359 = vrot.lane.b32.xlu0 %v4267, 118
          %v4360 = vpop.permute.xlu0 %4359
          %4361 = vrot.lane.b32.xlu0 %v4271, 118
          %v4362 = vpop.permute.xlu0 %4361
          %4363 = vrot.lane.b32.xlu0 %v4274, 118
          %v4364 = vpop.permute.xlu0 %4363
          %4365 = vrot.lane.b32.xlu0 %v4276, 118
          %v4366 = vpop.permute.xlu0 %4365
          %4367 = vrot.lane.b32.xlu0 %v4280, 118
          %v4368 = vpop.permute.xlu0 %4367
          %s4369 = sld [smem:[#allocation2 + $0x112]]
          %v4370 = vstv %s4369
          %v4371 = vmul.f32 %v4370, %v4358
          %v4372 = vmul.f32 %v4370, %v4360
          %v4373 = vmul.f32 %v4370, %v4362
          %v4374 = vadd.f32 %v4338, %v4371
          %v4375 = vadd.f32 %v4339, %v4372
          %v4376 = vadd.f32 %v4340, %v4373
          %s4377 = sld [smem:[#allocation2 + $0x11b]]
          %v4378 = vstv %s4377
          %v4379 = vmul.f32 %v4378, %v4364
          %v4380 = vmul.f32 %v4378, %v4366
          %v4381 = vmul.f32 %v4378, %v4368
          %v4382 = vadd.f32 %v4374, %v4379
          %v4383 = vadd.f32 %v4375, %v4380
          %v4384 = vadd.f32 %v4376, %v4381
          %s4385 = sld [smem:[#allocation2 + $0x124]]
          %v4386 = vstv %s4385
          %v4387 = vmul.f32 %v4386, %v4358
          %v4388 = vmul.f32 %v4386, %v4360
          %v4389 = vmul.f32 %v4386, %v4362
          %v4390 = vadd.f32 %v4354, %v4387
          %v4391 = vadd.f32 %v4355, %v4388
          %v4392 = vadd.f32 %v4356, %v4389
          %s4393 = sld [smem:[#allocation2 + $0x12d]]
          %v4394 = vstv %s4393
          %v4395 = vmul.f32 %v4394, %v4364
          %v4396 = vmul.f32 %v4394, %v4366
          %v4397 = vmul.f32 %v4394, %v4368
          %v4398 = vadd.f32 %v4390, %v4395
          %v4399 = vadd.f32 %v4391, %v4396
          %v4400 = vadd.f32 %v4392, %v4397
          %s4401 = sld [smem:[#allocation2 + $0x12e]]
          %v4402 = vstv %s4401
          %v4403 = vadd.f32 %v4382, %v4402
          %v4404 = vadd.f32 %v4383, %v4402
          %v4405 = vadd.f32 %v4384, %v4402
          %s4406 = sld [smem:[#allocation2 + $0x12f]]
          %v4407 = vstv %s4406
          %v4408 = vadd.f32 %v4398, %v4407
          %v4409 = vadd.f32 %v4399, %v4407
          %v4410 = vadd.f32 %v4400, %v4407
          %s4411 = sld [smem:[#allocation2 + $0x130]]
          %v4412 = vstv %s4411
          %v4413 = vmul.f32 %v4412, %v4403
          %v4414 = vmul.f32 %v4412, %v4404
          %v4415 = vmul.f32 %v4412, %v4405
          %s4416 = sld [smem:[#allocation2 + $0x131]]
          %v4417 = vstv %s4416
          %v4418 = vmul.f32 %v4417, %v4408
          %v4419 = vmul.f32 %v4417, %v4409
          %v4420 = vmul.f32 %v4417, %v4410
          %v4421 = vadd.f32 %v4413, %v4418
          %v4422 = vadd.f32 %v4414, %v4419
          %v4423 = vadd.f32 %v4415, %v4420
          %s4424 = sld [smem:[#allocation2 + $0x134]]
          %v4425 = vstv %s4424
          %v4426 = vadd.f32 %v4421, %v4425
          %v4427 = vadd.f32 %v4422, %v4425
          %v4428 = vadd.f32 %v4423, %v4425
          %s4429 = sld [smem:[#allocation2 + $0x132]]
          %v4430 = vstv %s4429
          %v4431 = vmul.f32 %v4430, %v4403
          %v4432 = vmul.f32 %v4430, %v4404
          %v4433 = vmul.f32 %v4430, %v4405
          %s4434 = sld [smem:[#allocation2 + $0x133]]
          %v4435 = vstv %s4434
          %v4436 = vmul.f32 %v4435, %v4408
          %v4437 = vmul.f32 %v4435, %v4409
          %v4438 = vmul.f32 %v4435, %v4410
          %v4439 = vadd.f32 %v4431, %v4436
          %v4440 = vadd.f32 %v4432, %v4437
          %v4441 = vadd.f32 %v4433, %v4438
          %s4442 = sld [smem:[#allocation2 + $0x135]]
          %v4443 = vstv %s4442
          %v4444 = vadd.f32 %v4439, %v4443
          %v4445 = vadd.f32 %v4440, %v4443
          %v4446 = vadd.f32 %v4441, %v4443
          %v4447 = vmul.f32 %v4426, %v165
          %v4448 = vmul.f32 %v4427, %v166
          %v4449 = vmul.f32 %v4428, %v167
          %v4450 = vmul.f32 %v4444, %v165
          %v4451 = vmul.f32 %v4445, %v166
          %v4452 = vmul.f32 %v4446, %v167
          %v4453 = vadd.f32 %v4447, %v4448
          %v4454 = vadd.f32 %v4453, %v4449
          %4455 = vadd.xlane.f32.xlu0 %v4454
          %v4456 = vpop.xlane.xlu0 %4455
          %v4457 = vrot.slane %v4456, 4
          %v4458 = vadd.f32 %v4456, %v4457
          %v4459 = vrot.slane %v4458, 2
          %v4460 = vadd.f32 %v4458, %v4459
          %v4461 = vrot.slane %v4460, 1
          %v4462 = vadd.f32 %v4460, %v4461
          %s4463 = vtos %v4462
          %s4464 = smul.f32 %s4463, 0.0009765625
          %v4465 = vmul.f32 %v4447, %v4447
          %v4466 = vmul.f32 %v4448, %v4448
          %v4467 = vmul.f32 %v4449, %v4449
          %v4468 = vadd.f32 %v4465, %v4466
          %v4469 = vadd.f32 %v4468, %v4467
          %4470 = vadd.xlane.f32.xlu0 %v4469
          %v4471 = vpop.xlane.xlu0 %4470
          %v4472 = vrot.slane %v4471, 4
          %v4473 = vadd.f32 %v4471, %v4472
          %v4474 = vrot.slane %v4473, 2
          %v4475 = vadd.f32 %v4473, %v4474
          %v4476 = vrot.slane %v4475, 1
          %v4477 = vadd.f32 %v4475, %v4476
          %s4478 = vtos %v4477
          %s4479 = smul.f32 %s4478, 0.0009765625
          %s4480 = smul.f32 %s4464, %s4464
          %s4481 = ssub.f32 %s4479, %s4480
          %s4482 = sld [smem:[#allocation2 + $0x136]]
          %s4483 = sadd.f32 %s4481, 1e-05
          %v4484 = vstv %s4483
          %v4485 = vrsqrt.pop %v4484
          %s4486 = vtos %v4485
          %s4487 = smul.f32 %s4482, %s4486
          %s4488 = sld [smem:[#allocation2 + $0x138]]
          %s4489 = smul.f32 %s4464, %s4487
          %s4490 = ssub.f32 %s4488, %s4489
          %v4491 = vstv %s4487
          %v4492 = vmul.f32 %v4447, %v4491
          %v4493 = vmul.f32 %v4448, %v4491
          %v4494 = vmul.f32 %v4449, %v4491
          %v4495 = vstv %s4490
          %v4496 = vadd.f32 %v4492, %v4495
          %v4497 = vadd.f32 %v4493, %v4495
          %v4498 = vadd.f32 %v4494, %v4495
          %v4499 = vmax.f32 %v4496, 0.0
          %v4500 = vmax.f32 %v4497, 0.0
          %v4501 = vmax.f32 %v4498, 0.0
          %v4502 = vmul.f32 %v4499, %v165
          %v4503 = vmul.f32 %v4500, %v166
          %v4504 = vmul.f32 %v4501, %v167
          %v4505 = vadd.f32 %v4450, %v4451
          %v4506 = vadd.f32 %v4505, %v4452
          %4507 = vadd.xlane.f32.xlu0 %v4506
          %v4508 = vpop.xlane.xlu0 %4507
          %v4509 = vrot.slane %v4508, 4
          %v4510 = vadd.f32 %v4508, %v4509
          %v4511 = vrot.slane %v4510, 2
          %v4512 = vadd.f32 %v4510, %v4511
          %v4513 = vrot.slane %v4512, 1
          %v4514 = vadd.f32 %v4512, %v4513
          %s4515 = vtos %v4514
          %s4516 = smul.f32 %s4515, 0.0009765625
          %v4517 = vmul.f32 %v4450, %v4450
          %v4518 = vmul.f32 %v4451, %v4451
          %v4519 = vmul.f32 %v4452, %v4452
          %v4520 = vadd.f32 %v4517, %v4518
          %v4521 = vadd.f32 %v4520, %v4519
          %4522 = vadd.xlane.f32.xlu0 %v4521
          %v4523 = vpop.xlane.xlu0 %4522
          %v4524 = vrot.slane %v4523, 4
          %v4525 = vadd.f32 %v4523, %v4524
          %v4526 = vrot.slane %v4525, 2
          %v4527 = vadd.f32 %v4525, %v4526
          %v4528 = vrot.slane %v4527, 1
          %v4529 = vadd.f32 %v4527, %v4528
          %s4530 = vtos %v4529
          %s4531 = smul.f32 %s4530, 0.0009765625
          %s4532 = smul.f32 %s4516, %s4516
          %s4533 = ssub.f32 %s4531, %s4532
          %s4534 = sld [smem:[#allocation2 + $0x137]]
          %s4535 = sadd.f32 %s4533, 1e-05
          %v4536 = vstv %s4535
          %v4537 = vrsqrt.pop %v4536
          %s4538 = vtos %v4537
          %s4539 = smul.f32 %s4534, %s4538
          %s4540 = sld [smem:[#allocation2 + $0x139]]
          %s4541 = smul.f32 %s4516, %s4539
          %s4542 = ssub.f32 %s4540, %s4541
          %v4543 = vstv %s4539
          %v4544 = vmul.f32 %v4450, %v4543
          %v4545 = vmul.f32 %v4451, %v4543
          %v4546 = vmul.f32 %v4452, %v4543
          %v4547 = vstv %s4542
          %v4548 = vadd.f32 %v4544, %v4547
          %v4549 = vadd.f32 %v4545, %v4547
          %v4550 = vadd.f32 %v4546, %v4547
          %v4551 = vmax.f32 %v4548, 0.0
          %v4552 = vmax.f32 %v4549, 0.0
          %v4553 = vmax.f32 %v4550, 0.0
          %v4554 = vmul.f32 %v4551, %v165
          %v4555 = vmul.f32 %v4552, %v166
          %v4556 = vmul.f32 %v4553, %v167
          %s4557 = sld [smem:[#allocation2 + $0x13a]]
          %v4558 = vstv %s4557
          %v4559 = vmul.f32 %v4558, %v4502
          %v4560 = vmul.f32 %v4558, %v4503
          %v4561 = vmul.f32 %v4558, %v4504
          %s4562 = sld [smem:[#allocation2 + $0x13b]]
          %v4563 = vstv %s4562
          %v4564 = vmul.f32 %v4563, %v4554
          %v4565 = vmul.f32 %v4563, %v4555
          %v4566 = vmul.f32 %v4563, %v4556
          %v4567 = vadd.f32 %v4559, %v4564
          %v4568 = vadd.f32 %v4560, %v4565
          %v4569 = vadd.f32 %v4561, %v4566
          %s4570 = sld [smem:[#allocation2 + $0x13e]]
          %v4571 = vstv %s4570
          %v4572 = vadd.f32 %v4567, %v4571
          %v4573 = vadd.f32 %v4568, %v4571
          %v4574 = vadd.f32 %v4569, %v4571
          %s4575 = sld [smem:[#allocation2 + $0x13c]]
          %v4576 = vstv %s4575
          %v4577 = vmul.f32 %v4576, %v4502
          %v4578 = vmul.f32 %v4576, %v4503
          %v4579 = vmul.f32 %v4576, %v4504
          %s4580 = sld [smem:[#allocation2 + $0x13d]]
          %v4581 = vstv %s4580
          %v4582 = vmul.f32 %v4581, %v4554
          %v4583 = vmul.f32 %v4581, %v4555
          %v4584 = vmul.f32 %v4581, %v4556
          %v4585 = vadd.f32 %v4577, %v4582
          %v4586 = vadd.f32 %v4578, %v4583
          %v4587 = vadd.f32 %v4579, %v4584
          %s4588 = sld [smem:[#allocation2 + $0x13f]]
          %v4589 = vstv %s4588
          %v4590 = vadd.f32 %v4585, %v4589
          %v4591 = vadd.f32 %v4586, %v4589
          %v4592 = vadd.f32 %v4587, %v4589
          %v4593 = vmul.f32 %v4572, %v165
          %v4594 = vmul.f32 %v4573, %v166
          %v4595 = vmul.f32 %v4574, %v167
          %v4596 = vmul.f32 %v4590, %v165
          %v4597 = vmul.f32 %v4591, %v166
          %v4598 = vmul.f32 %v4592, %v167
          %4599 = vrot.lane.b32.xlu0 %v4593, 1
          %v4600 = vpop.permute.xlu0 %4599
          %4601 = vrot.lane.b32.xlu0 %v4594, 1
          %v4602 = vpop.permute.xlu0 %4601
          %4603 = vrot.lane.b32.xlu0 %v4595, 1
          %v4604 = vpop.permute.xlu0 %4603
          %4605 = vrot.lane.b32.xlu0 %v4596, 1
          %v4606 = vpop.permute.xlu0 %4605
          %4607 = vrot.lane.b32.xlu0 %v4597, 1
          %v4608 = vpop.permute.xlu0 %4607
          %4609 = vrot.lane.b32.xlu0 %v4598, 1
          %v4610 = vpop.permute.xlu0 %4609
          %s4611 = sld [smem:[#allocation2 + $0x140]]
          %v4612 = vstv %s4611
          %v4613 = vmul.f32 %v4612, %v4600
          %v4614 = vmul.f32 %v4612, %v4602
          %v4615 = vmul.f32 %v4612, %v4604
          %s4616 = sld [smem:[#allocation2 + $0x143]]
          %v4617 = vstv %s4616
          %v4618 = vmul.f32 %v4617, %v4606
          %v4619 = vmul.f32 %v4617, %v4608
          %v4620 = vmul.f32 %v4617, %v4610
          %v4621 = vadd.f32 %v4613, %v4618
          %v4622 = vadd.f32 %v4614, %v4619
          %v4623 = vadd.f32 %v4615, %v4620
          %s4624 = sld [smem:[#allocation2 + $0x146]]
          %v4625 = vstv %s4624
          %v4626 = vmul.f32 %v4625, %v4600
          %v4627 = vmul.f32 %v4625, %v4602
          %v4628 = vmul.f32 %v4625, %v4604
          %s4629 = sld [smem:[#allocation2 + $0x149]]
          %v4630 = vstv %s4629
          %v4631 = vmul.f32 %v4630, %v4606
          %v4632 = vmul.f32 %v4630, %v4608
          %v4633 = vmul.f32 %v4630, %v4610
          %v4634 = vadd.f32 %v4626, %v4631
          %v4635 = vadd.f32 %v4627, %v4632
          %v4636 = vadd.f32 %v4628, %v4633
          %s4637 = sld [smem:[#allocation2 + $0x141]]
          %v4638 = vstv %s4637
          %v4639 = vmul.f32 %v4638, %v4593
          %v4640 = vmul.f32 %v4638, %v4594
          %v4641 = vmul.f32 %v4638, %v4595
          %v4642 = vadd.f32 %v4621, %v4639
          %v4643 = vadd.f32 %v4622, %v4640
          %v4644 = vadd.f32 %v4623, %v4641
          %s4645 = sld [smem:[#allocation2 + $0x144]]
          %v4646 = vstv %s4645
          %v4647 = vmul.f32 %v4646, %v4596
          %v4648 = vmul.f32 %v4646, %v4597
          %v4649 = vmul.f32 %v4646, %v4598
          %v4650 = vadd.f32 %v4642, %v4647
          %v4651 = vadd.f32 %v4643, %v4648
          %v4652 = vadd.f32 %v4644, %v4649
          %s4653 = sld [smem:[#allocation2 + $0x147]]
          %v4654 = vstv %s4653
          %v4655 = vmul.f32 %v4654, %v4593
          %v4656 = vmul.f32 %v4654, %v4594
          %v4657 = vmul.f32 %v4654, %v4595
          %v4658 = vadd.f32 %v4634, %v4655
          %v4659 = vadd.f32 %v4635, %v4656
          %v4660 = vadd.f32 %v4636, %v4657
          %s4661 = sld [smem:[#allocation2 + $0x14a]]
          %v4662 = vstv %s4661
          %v4663 = vmul.f32 %v4662, %v4596
          %v4664 = vmul.f32 %v4662, %v4597
          %v4665 = vmul.f32 %v4662, %v4598
          %v4666 = vadd.f32 %v4658, %v4663
          %v4667 = vadd.f32 %v4659, %v4664
          %v4668 = vadd.f32 %v4660, %v4665
          %4669 = vrot.lane.b32.xlu0 %v4593, 127
          %v4670 = vpop.permute.xlu0 %4669
          %4671 = vrot.lane.b32.xlu0 %v4594, 127
          %v4672 = vpop.permute.xlu0 %4671
          %4673 = vrot.lane.b32.xlu0 %v4595, 127
          %v4674 = vpop.permute.xlu0 %4673
          %4675 = vrot.lane.b32.xlu0 %v4596, 127
          %v4676 = vpop.permute.xlu0 %4675
          %4677 = vrot.lane.b32.xlu0 %v4597, 127
          %v4678 = vpop.permute.xlu0 %4677
          %4679 = vrot.lane.b32.xlu0 %v4598, 127
          %v4680 = vpop.permute.xlu0 %4679
          %s4681 = sld [smem:[#allocation2 + $0x142]]
          %v4682 = vstv %s4681
          %v4683 = vmul.f32 %v4682, %v4670
          %v4684 = vmul.f32 %v4682, %v4672
          %v4685 = vmul.f32 %v4682, %v4674
          %v4686 = vadd.f32 %v4650, %v4683
          %v4687 = vadd.f32 %v4651, %v4684
          %v4688 = vadd.f32 %v4652, %v4685
          %s4689 = sld [smem:[#allocation2 + $0x145]]
          %v4690 = vstv %s4689
          %v4691 = vmul.f32 %v4690, %v4676
          %v4692 = vmul.f32 %v4690, %v4678
          %v4693 = vmul.f32 %v4690, %v4680
          %v4694 = vadd.f32 %v4686, %v4691
          %v4695 = vadd.f32 %v4687, %v4692
          %v4696 = vadd.f32 %v4688, %v4693
          %s4697 = sld [smem:[#allocation2 + $0x148]]
          %v4698 = vstv %s4697
          %v4699 = vmul.f32 %v4698, %v4670
          %v4700 = vmul.f32 %v4698, %v4672
          %v4701 = vmul.f32 %v4698, %v4674
          %v4702 = vadd.f32 %v4666, %v4699
          %v4703 = vadd.f32 %v4667, %v4700
          %v4704 = vadd.f32 %v4668, %v4701
          %s4705 = sld [smem:[#allocation2 + $0x14b]]
          %v4706 = vstv %s4705
          %v4707 = vmul.f32 %v4706, %v4676
          %v4708 = vmul.f32 %v4706, %v4678
          %v4709 = vmul.f32 %v4706, %v4680
          %v4710 = vadd.f32 %v4702, %v4707
          %v4711 = vadd.f32 %v4703, %v4708
          %v4712 = vadd.f32 %v4704, %v4709
          %s4713 = sld [smem:[#allocation2 + $0x14c]]
          %v4714 = vstv %s4713
          %v4715 = vadd.f32 %v4694, %v4714
          %v4716 = vadd.f32 %v4695, %v4714
          %v4717 = vadd.f32 %v4696, %v4714
          %s4718 = sld [smem:[#allocation2 + $0x14d]]
          %v4719 = vstv %s4718
          %v4720 = vadd.f32 %v4710, %v4719
          %v4721 = vadd.f32 %v4711, %v4719
          %v4722 = vadd.f32 %v4712, %v4719
          %s4723 = sld [smem:[#allocation2 + $0x14e]]
          %v4724 = vstv %s4723
          %v4725 = vmul.f32 %v4724, %v4715
          %v4726 = vmul.f32 %v4724, %v4716
          %v4727 = vmul.f32 %v4724, %v4717
          %s4728 = sld [smem:[#allocation2 + $0x14f]]
          %v4729 = vstv %s4728
          %v4730 = vmul.f32 %v4729, %v4720
          %v4731 = vmul.f32 %v4729, %v4721
          %v4732 = vmul.f32 %v4729, %v4722
          %v4733 = vadd.f32 %v4725, %v4730
          %v4734 = vadd.f32 %v4726, %v4731
          %v4735 = vadd.f32 %v4727, %v4732
          %s4736 = sld [smem:[#allocation2 + $0x152]]
          %v4737 = vstv %s4736
          %v4738 = vadd.f32 %v4733, %v4737
          %v4739 = vadd.f32 %v4734, %v4737
          %v4740 = vadd.f32 %v4735, %v4737
          %s4741 = sld [smem:[#allocation2 + $0x150]]
          %v4742 = vstv %s4741
          %v4743 = vmul.f32 %v4742, %v4715
          %v4744 = vmul.f32 %v4742, %v4716
          %v4745 = vmul.f32 %v4742, %v4717
          %s4746 = sld [smem:[#allocation2 + $0x151]]
          %v4747 = vstv %s4746
          %v4748 = vmul.f32 %v4747, %v4720
          %v4749 = vmul.f32 %v4747, %v4721
          %v4750 = vmul.f32 %v4747, %v4722
          %v4751 = vadd.f32 %v4743, %v4748
          %v4752 = vadd.f32 %v4744, %v4749
          %v4753 = vadd.f32 %v4745, %v4750
          %s4754 = sld [smem:[#allocation2 + $0x153]]
          %v4755 = vstv %s4754
          %v4756 = vadd.f32 %v4751, %v4755
          %v4757 = vadd.f32 %v4752, %v4755
          %v4758 = vadd.f32 %v4753, %v4755
          %v4759 = vmul.f32 %v4738, %v165
          %v4760 = vmul.f32 %v4739, %v166
          %v4761 = vmul.f32 %v4740, %v167
          %v4762 = vmul.f32 %v4756, %v165
          %v4763 = vmul.f32 %v4757, %v166
          %v4764 = vmul.f32 %v4758, %v167
          %v4765 = vadd.f32 %v4759, %v4760
          %v4766 = vadd.f32 %v4765, %v4761
          %4767 = vadd.xlane.f32.xlu0 %v4766
          %v4768 = vpop.xlane.xlu0 %4767
          %v4769 = vrot.slane %v4768, 4
          %v4770 = vadd.f32 %v4768, %v4769
          %v4771 = vrot.slane %v4770, 2
          %v4772 = vadd.f32 %v4770, %v4771
          %v4773 = vrot.slane %v4772, 1
          %v4774 = vadd.f32 %v4772, %v4773
          %s4775 = vtos %v4774
          %s4776 = smul.f32 %s4775, 0.0009765625
          %v4777 = vmul.f32 %v4759, %v4759
          %v4778 = vmul.f32 %v4760, %v4760
          %v4779 = vmul.f32 %v4761, %v4761
          %v4780 = vadd.f32 %v4777, %v4778
          %v4781 = vadd.f32 %v4780, %v4779
          %4782 = vadd.xlane.f32.xlu0 %v4781
          %v4783 = vpop.xlane.xlu0 %4782
          %v4784 = vrot.slane %v4783, 4
          %v4785 = vadd.f32 %v4783, %v4784
          %v4786 = vrot.slane %v4785, 2
          %v4787 = vadd.f32 %v4785, %v4786
          %v4788 = vrot.slane %v4787, 1
          %v4789 = vadd.f32 %v4787, %v4788
          %s4790 = vtos %v4789
          %s4791 = smul.f32 %s4790, 0.0009765625
          %s4792 = smul.f32 %s4776, %s4776
          %s4793 = ssub.f32 %s4791, %s4792
          %s4794 = sld [smem:[#allocation2 + $0x154]]
          %s4795 = sadd.f32 %s4793, 1e-05
          %v4796 = vstv %s4795
          %v4797 = vrsqrt.pop %v4796
          %s4798 = vtos %v4797
          %s4799 = smul.f32 %s4794, %s4798
          %s4800 = sld [smem:[#allocation2 + $0x156]]
          %s4801 = smul.f32 %s4776, %s4799
          %s4802 = ssub.f32 %s4800, %s4801
          %v4803 = vstv %s4799
          %v4804 = vmul.f32 %v4759, %v4803
          %v4805 = vmul.f32 %v4760, %v4803
          %v4806 = vmul.f32 %v4761, %v4803
          %v4807 = vstv %s4802
          %v4808 = vadd.f32 %v4804, %v4807
          %v4809 = vadd.f32 %v4805, %v4807
          %v4810 = vadd.f32 %v4806, %v4807
          %v4811 = vmax.f32 %v4808, 0.0
          %v4812 = vmax.f32 %v4809, 0.0
          %v4813 = vmax.f32 %v4810, 0.0
          %v4814 = vmul.f32 %v4811, %v165
          %v4815 = vmul.f32 %v4812, %v166
          %v4816 = vmul.f32 %v4813, %v167
          %v4817 = vadd.f32 %v4762, %v4763
          %v4818 = vadd.f32 %v4817, %v4764
          %4819 = vadd.xlane.f32.xlu0 %v4818
          %v4820 = vpop.xlane.xlu0 %4819
          %v4821 = vrot.slane %v4820, 4
          %v4822 = vadd.f32 %v4820, %v4821
          %v4823 = vrot.slane %v4822, 2
          %v4824 = vadd.f32 %v4822, %v4823
          %v4825 = vrot.slane %v4824, 1
          %v4826 = vadd.f32 %v4824, %v4825
          %s4827 = vtos %v4826
          %s4828 = smul.f32 %s4827, 0.0009765625
          %v4829 = vmul.f32 %v4762, %v4762
          %v4830 = vmul.f32 %v4763, %v4763
          %v4831 = vmul.f32 %v4764, %v4764
          %v4832 = vadd.f32 %v4829, %v4830
          %v4833 = vadd.f32 %v4832, %v4831
          %4834 = vadd.xlane.f32.xlu0 %v4833
          %v4835 = vpop.xlane.xlu0 %4834
          %v4836 = vrot.slane %v4835, 4
          %v4837 = vadd.f32 %v4835, %v4836
          %v4838 = vrot.slane %v4837, 2
          %v4839 = vadd.f32 %v4837, %v4838
          %v4840 = vrot.slane %v4839, 1
          %v4841 = vadd.f32 %v4839, %v4840
          %s4842 = vtos %v4841
          %s4843 = smul.f32 %s4842, 0.0009765625
          %s4844 = smul.f32 %s4828, %s4828
          %s4845 = ssub.f32 %s4843, %s4844
          %s4846 = sld [smem:[#allocation2 + $0x155]]
          %s4847 = sadd.f32 %s4845, 1e-05
          %v4848 = vstv %s4847
          %v4849 = vrsqrt.pop %v4848
          %s4850 = vtos %v4849
          %s4851 = smul.f32 %s4846, %s4850
          %s4852 = sld [smem:[#allocation2 + $0x157]]
          %s4853 = smul.f32 %s4828, %s4851
          %s4854 = ssub.f32 %s4852, %s4853
          %v4855 = vstv %s4851
          %v4856 = vmul.f32 %v4762, %v4855
          %v4857 = vmul.f32 %v4763, %v4855
          %v4858 = vmul.f32 %v4764, %v4855
          %v4859 = vstv %s4854
          %v4860 = vadd.f32 %v4856, %v4859
          %v4861 = vadd.f32 %v4857, %v4859
          %v4862 = vadd.f32 %v4858, %v4859
          %v4863 = vmax.f32 %v4860, 0.0
          %v4864 = vmax.f32 %v4861, 0.0
          %v4865 = vmax.f32 %v4862, 0.0
          %v4866 = vmul.f32 %v4863, %v165
          %v4867 = vmul.f32 %v4864, %v166
          %v4868 = vmul.f32 %v4865, %v167
          %s4869 = sld [smem:[#allocation2 + $0x158]]
          %v4870 = vadd.f32 %v168, %v4502
          %v4871 = vadd.f32 %v169, %v4503
          %v4872 = vadd.f32 %v170, %v4504
          %v4873 = vstv %s4869
          %v4874 = vmul.f32 %v4873, %v4870
          %v4875 = vmul.f32 %v4873, %v4871
          %v4876 = vmul.f32 %v4873, %v4872
          %4877 = vst [vmem:[%s164] sm:$0xff] %v4874
          %4878 = vst [vmem:[%s164 + $0x8] sm:$0xff] %v4875
          %4879 = vst [vmem:[%s164 + $0x10] sm:$0xff] %v4876
          %v4880 = vadd.f32 %v172, %v4554
          %v4881 = vadd.f32 %v173, %v4555
          %v4882 = vadd.f32 %v174, %v4556
          %v4883 = vmul.f32 %v4873, %v4880
          %v4884 = vmul.f32 %v4873, %v4881
          %v4885 = vmul.f32 %v4873, %v4882
          %s4886 = scalar_lea.vmem %s164, 24
          %4887 = vst [vmem:[%s4886] sm:$0xff] %v4883
          %4888 = vst [vmem:[%s4886 + $0x8] sm:$0xff] %v4884
          %4889 = vst [vmem:[%s4886 + $0x10] sm:$0xff] %v4885
          %v4890 = vadd.f32 %v176, %v4814
          %v4891 = vadd.f32 %v177, %v4815
          %v4892 = vadd.f32 %v178, %v4816
          %v4893 = vmul.f32 %v4873, %v4890
          %v4894 = vmul.f32 %v4873, %v4891
          %v4895 = vmul.f32 %v4873, %v4892
          %s4896 = scalar_lea.vmem %s164, 48
          %4897 = vst [vmem:[%s4896] sm:$0xff] %v4893
          %4898 = vst [vmem:[%s4896 + $0x8] sm:$0xff] %v4894
          %4899 = vst [vmem:[%s4896 + $0x10] sm:$0xff] %v4895
          %v4900 = vadd.f32 %v180, %v4866
          %v4901 = vadd.f32 %v181, %v4867
          %v4902 = vadd.f32 %v182, %v4868
          %v4903 = vmul.f32 %v4873, %v4900
          %v4904 = vmul.f32 %v4873, %v4901
          %v4905 = vmul.f32 %v4873, %v4902
          %s4906 = scalar_lea.vmem %s164, 72
          %4907 = vst [vmem:[%s4906] sm:$0xff] %v4903
          %4908 = vst [vmem:[%s4906 + $0x8] sm:$0xff] %v4904
          %4909 = vst [vmem:[%s4906 + $0x10] sm:$0xff] %v4905
        $region48: #{decoder_forward.1} parent=31 // pred_fallthru
          _
        %p4910 = scmp.lt.s32.totalorder %s15, 2
        %s4911 = scalar_select %p4910, %s15, 2
        %s4912 = smul.addr %s4911, 12
        %s4913 = smul.addr %s4912, 8
        %s4914 = scalar_lea.vmem %s3, %s4913
        // Predicated region
        $region49: #{decoder_forward.1} parent=31 // pred_check
          %p4915 = pneg %p96
        $region50: #{decoder_forward.1} parent=31 // pred_check_branch
          %4917 = sbr.rel (%p4915) target = $region52
        $region51: #{decoder_forward.1} parent=31 // pred_region
          _
        $region52: #{decoder_forward.1} parent=31 // pred_fallthru
          _
      $region32: #{decoder_forward.1} parent=5 // pred_fallthru
        _
      %p4918 = scmp.le.s32.totalorder 2, %s10
      // Predicated region
      $region53: #{decoder_forward.1} parent=5 // pred_check
        %p4919 = pneg %p4918
      $region54: #{decoder_forward.1} parent=5 // pred_check_branch
        %4921 = sbr.rel (%p4919) target = $region56
      $region55: #{decoder_forward.1} parent=5 // pred_region
        %s4922 = ssub.s32 %s10, 2
        // Predicated region
        $region57: #{decoder_forward.1} parent=55 // pred_check
          %p4923 = pneg %p102
        $region58: #{decoder_forward.1} parent=55 // pred_check_branch
          %4925 = sbr.rel (%p4923) target = $region60
        $region59: #{decoder_forward.1} parent=55 // pred_region
          %p4926 = scmp.lt.s32.totalorder %s16, 2
          %s4927 = scalar_select %p4926, %s16, 2
          %s4928 = smul.addr %s4927, 12
          %s4929 = smul.addr %s4928, 8
          %s4930 = scalar_lea.vmem %s3, %s4929
        $region60: #{decoder_forward.1} parent=55 // pred_fallthru
          _
      $region56: #{decoder_forward.1} parent=5 // pred_fallthru
        _
    $region6: #{decoder_forward.1} parent=1 // loop_footer
      %s14 = sadd.s32 1, %s10
    $region7: #{decoder_forward.1} parent=1 // loop_footer_branch
      %9 = sbr.rel target = $region3
    $region8: #{decoder_forward.1} parent=1 // loop_exit
      _
    %4931 = vsyncpa [#allocation3], 1
    %s4932 = scalar_lea.sflag [#allocation3], 1
    %4933 = vsyncpa %s4932, 1

</llo_original>
